<compile_context>
chip_gen: v5e
topology: v5e:2x2
jax: 0.10.0
libtpu: 0.0.40
codegen_flags: <defaults>
</compile_context>

<pallas_src>
import functools
import math

import jax
import jax.numpy as jnp
from jax import lax
from jax.experimental import pallas as pl
from jax.experimental.pallas import tpu as pltpu

LANE = 128


def _round_up(x, m):
    return ((x + m - 1) // m) * m


def _vmem_limit(block_bytes):
    """Per-kernel scoped-VMEM budget derived from actual block/temp sizes."""
    return int(min(max(4 * block_bytes + (4 << 20), 8 << 20), 48 << 20))


# ----------------------------------------------------------------------------
# Kernel A: fused BN -> ReLU -> 1x1 conv for scale0 + shortcut (one x read)
# ----------------------------------------------------------------------------

def scale0_shortcut(xp, bn0, bnsc, w0, wsc):
    N, P_pad, Cin_p = xp.shape
    Cb_p = w0.shape[1]
    Cout_p = wsc.shape[1]

    def kern(x_ref, s0_ref, b0_ref, ssc_ref, bsc_ref, w0_ref, wsc_ref,
             y_ref, sh_ref):
        x = x_ref[...].astype(jnp.float32)
        a0 = jnp.maximum(x * s0_ref[...] + b0_ref[...], 0.0).astype(jnp.bfloat16)
        y_ref[...] = jnp.dot(a0, w0_ref[...],
                             preferred_element_type=jnp.float32).astype(jnp.bfloat16)
        a1 = jnp.maximum(x * ssc_ref[...] + bsc_ref[...], 0.0).astype(jnp.bfloat16)
        sh_ref[...] = jnp.dot(a1, wsc_ref[...],
                              preferred_element_type=jnp.float32).astype(jnp.bfloat16)

    img = lambda c: pl.BlockSpec((None, P_pad, c), lambda n: (n, 0, 0))
    vec = lambda c: pl.BlockSpec((1, c), lambda n: (0, 0))
    mat = lambda k, c: pl.BlockSpec((k, c), lambda n: (0, 0))
    blk_bytes = (P_pad * Cin_p * 2                       # x block (bf16)
                 + 4 * Cin_p * 4                         # bn vectors
                 + Cin_p * (Cb_p + Cout_p) * 2           # weights
                 + P_pad * (Cb_p + Cout_p) * 2           # outputs
                 + 3 * P_pad * Cin_p * 4)                # f32 / act temporaries
    return pl.pallas_call(
        kern,
        out_shape=(jax.ShapeDtypeStruct((N, P_pad, Cb_p), jnp.bfloat16),
                   jax.ShapeDtypeStruct((N, P_pad, Cout_p), jnp.bfloat16)),
        grid_spec=pltpu.PrefetchScalarGridSpec(
            num_scalar_prefetch=0,
            grid=(N,),
            in_specs=[img(Cin_p), vec(Cin_p), vec(Cin_p), vec(Cin_p), vec(Cin_p),
                      mat(Cin_p, Cb_p), mat(Cin_p, Cout_p)],
            out_specs=(img(Cb_p), img(Cout_p)),
        ),
        compiler_params=pltpu.CompilerParams(
            dimension_semantics=("parallel",),
            vmem_limit_bytes=_vmem_limit(blk_bytes)),
    )(xp, bn0[0].reshape(1, Cin_p), bn0[1].reshape(1, Cin_p),
      bnsc[0].reshape(1, Cin_p), bnsc[1].reshape(1, Cin_p), w0, wsc)


# ----------------------------------------------------------------------------
# Kernel B: fused upsample -> residual add -> BN -> ReLU -> 3x3 conv
# ----------------------------------------------------------------------------

def process3x3(z, m, y_prev, bn, w_ctr, w_grp, H, W):
    """y = conv3x3(relu(bn(M @ z + y_prev))), one image per grid step."""
    N, P_pad, Cb_p = y_prev.shape
    Kp = z.shape[1]
    Wp = W + 2
    MARGIN = _round_up(Wp + 1, 8)            # aligned halo margin in the scratch
    P_halo = P_pad + 2 * MARGIN
    shifts = [(kh - 1) * Wp + (kw - 1) for kh in range(3) for kw in range(3)]

    def kern(z_ref, m_ref, y_ref, sc_ref, bi_ref, wc_ref, wg_ref, o_ref, act_ref):
        # fused bilinear upsample of the pooled branch (tiny K matmul)
        s = jnp.dot(m_ref[...], z_ref[...], preferred_element_type=jnp.float32)
        # residual add (f32) -> BN -> ReLU
        a = jnp.maximum((s + y_ref[...].astype(jnp.float32)) * sc_ref[...]
                        + bi_ref[...], 0.0)
        # interior mask from the flat row index (reproduces conv zero padding;
        # halo ring / row padding of y_prev carry garbage and must be zeroed).
        row = lax.broadcasted_iota(jnp.int32, (P_pad, 1), 0).astype(jnp.float32)
        h = jnp.floor((row + 0.5) * (1.0 / Wp))
        w = row - h * Wp
        interior = (h >= 1.0) & (h <= float(H)) & (w >= 1.0) & (w <= float(W))
        a = jnp.where(interior, a, 0.0)

        # stage the masked activation with zeroed margins so every tap is a
        # full-length matmul (shifts only move the load offset; stores stay
        # full-width and aligned).
        act_ref[0:MARGIN, :] = jnp.zeros((MARGIN, Cb_p), jnp.float32)
        act_ref[MARGIN + P_pad:MARGIN + P_pad + MARGIN, :] = jnp.zeros(
            (MARGIN, Cb_p), jnp.float32)
        act_ref[MARGIN:MARGIN + P_pad, :] = a

        def tap(t):
            s0 = MARGIN + shifts[t]
            return act_ref[s0:s0 + P_pad, :].astype(jnp.bfloat16)

        # centre tap (K=Cb) + two grouped taps (K=4*Cb) to fill the MXU.
        o = jnp.dot(a.astype(jnp.bfloat16), wc_ref[...],
                    preferred_element_type=jnp.float32)
        ga = jnp.concatenate([tap(0), tap(1), tap(2), tap(3)], axis=-1)
        o = o + jnp.dot(ga, wg_ref[0], preferred_element_type=jnp.float32)
        gb = jnp.concatenate([tap(5), tap(6), tap(7), tap(8)], axis=-1)
        o = o + jnp.dot(gb, wg_ref[1], preferred_element_type=jnp.float32)
        o_ref[...] = o.astype(jnp.bfloat16)

    blk_bytes = (Kp * Cb_p * 2 + P_pad * Kp * 2          # z, M
                 + P_pad * Cb_p * 2                       # y_prev
                 + 2 * Cb_p * 4                           # bn
                 + 9 * Cb_p * Cb_p * 2                    # weights
                 + P_pad * Cb_p * 2                       # output
                 + P_halo * Cb_p * 4                      # scratch
                 + 2 * P_pad * 4 * Cb_p * 2               # group concats
                 + 2 * P_pad * Cb_p * 4)                  # a / o f32 temps
    return pl.pallas_call(
        kern,
        out_shape=jax.ShapeDtypeStruct((N, P_pad, Cb_p), jnp.bfloat16),
        grid_spec=pltpu.PrefetchScalarGridSpec(
            num_scalar_prefetch=0,
            grid=(N,),
            in_specs=[pl.BlockSpec((None, Kp, Cb_p), lambda n: (n, 0, 0)),
                      pl.BlockSpec((P_pad, Kp), lambda n: (0, 0)),
                      pl.BlockSpec((None, P_pad, Cb_p), lambda n: (n, 0, 0)),
                      pl.BlockSpec((1, Cb_p), lambda n: (0, 0)),
                      pl.BlockSpec((1, Cb_p), lambda n: (0, 0)),
                      pl.BlockSpec((Cb_p, Cb_p), lambda n: (0, 0)),
                      pl.BlockSpec((2, 4 * Cb_p, Cb_p), lambda n: (0, 0, 0))],
            out_specs=pl.BlockSpec((None, P_pad, Cb_p), lambda n: (n, 0, 0)),
            scratch_shapes=[pltpu.VMEM((P_halo, Cb_p), jnp.float32)],
        ),
        compiler_params=pltpu.CompilerParams(
            dimension_semantics=("parallel",),
            vmem_limit_bytes=_vmem_limit(blk_bytes)),
    )(z, m, y_prev, bn[0].reshape(1, Cb_p), bn[1].reshape(1, Cb_p), w_ctr, w_grp)


# ----------------------------------------------------------------------------
# Kernel C: compression — single K=5*Cb matmul on a lane-concat, + shortcut
# ----------------------------------------------------------------------------

def compression(y0, y1, y2, y3, y4, short, cmp_scale, cmp_bias, w_cmp):
    N, P_pad, Cb_p = y0.shape
    Cout_p = short.shape[-1]

    def kern(y0r, y1r, y2r, y3r, y4r, sh_ref, sc_ref, bi_ref, w_ref, o_ref):
        parts = []
        for i, yr in enumerate((y0r, y1r, y2r, y3r, y4r)):
            a = jnp.maximum(yr[...].astype(jnp.float32) * sc_ref[i:i + 1, :]
                            + bi_ref[i:i + 1, :], 0.0)
            parts.append(a.astype(jnp.bfloat16))
        cat = jnp.concatenate(parts, axis=-1)            # (P_pad, 5*Cb_p)
        o_ref[...] = sh_ref[...].astype(jnp.float32) + jnp.dot(
            cat, w_ref[...], preferred_element_type=jnp.float32)

    img = lambda c: pl.BlockSpec((None, P_pad, c), lambda n: (n, 0, 0))
    blk_bytes = (5 * P_pad * Cb_p * 2 + P_pad * Cout_p * 2
                 + 2 * 5 * Cb_p * 4 + 5 * Cb_p * Cout_p * 2
                 + P_pad * Cout_p * 4                     # output (f32)
                 + P_pad * 5 * Cb_p * 2 + P_pad * Cb_p * 4)   # cat + temps
    return pl.pallas_call(
        kern,
        out_shape=jax.ShapeDtypeStruct((N, P_pad, Cout_p), jnp.float32),
        grid_spec=pltpu.PrefetchScalarGridSpec(
            num_scalar_prefetch=0,
            grid=(N,),
            in_specs=[img(Cb_p)] * 5 + [
                img(Cout_p),
                pl.BlockSpec((5, Cb_p), lambda n: (0, 0)),
                pl.BlockSpec((5, Cb_p), lambda n: (0, 0)),
                pl.BlockSpec((5 * Cb_p, Cout_p), lambda n: (0, 0)),
            ],
            out_specs=img(Cout_p),
        ),
        compiler_params=pltpu.CompilerParams(
            dimension_semantics=("parallel",),
            vmem_limit_bytes=_vmem_limit(blk_bytes)),
    )(y0, y1, y2, y3, y4, short, cmp_scale, cmp_bias, w_cmp)


# ----------------------------------------------------------------------------
# XLA glue: pooling and the tiny bilinear-interpolation matrices
# ----------------------------------------------------------------------------

def avg_pool_nhwc(x, k, s, p):
    # PyTorch AvgPool2d defaults: count_include_pad=True, ceil_mode=False
    summed = lax.reduce_window(
        x, 0.0, lax.add,
        window_dimensions=(1, k, k, 1),
        window_strides=(1, s, s, 1),
        padding=((0, 0), (p, p), (p, p), (0, 0)),
    )
    return summed / float(k * k)


def _interp_matrix(out_size, in_size, pad=1):
    # F.interpolate(mode='bilinear', align_corners=False)  (algc = False)
    i = (jnp.arange(out_size, dtype=jnp.float32) + 0.5) * (in_size / out_size) - 0.5
    i = jnp.clip(i, 0.0, in_size - 1.0)
    i0 = jnp.floor(i).astype(jnp.int32)
    i1 = jnp.minimum(i0 + 1, in_size - 1)
    f = i - i0.astype(jnp.float32)
    m = jnp.zeros((out_size, in_size), jnp.float32)
    r = jnp.arange(out_size)
    m = m.at[r, i0].add(1.0 - f)
    m = m.at[r, i1].add(f)
    # zero border rows -> result lands directly in the 1-pixel-padded layout
    return jnp.pad(m, ((pad, pad), (0, 0)))


# ----------------------------------------------------------------------------
# DAPPM forward
# ----------------------------------------------------------------------------

def dappm_forward(x_nchw, p, *, outplanes):
    N, Cin, H, W = x_nchw.shape
    Cin_p, Cb_p = p["w_s0"].shape
    Hp, Wp = H + 2, W + 2
    P = Hp * Wp
    P_pad = _round_up(P, 8)

    x = jnp.transpose(x_nchw, (0, 2, 3, 1)).astype(jnp.float32)      # NHWC
    xc = jnp.pad(x, ((0, 0), (0, 0), (0, 0), (0, Cin_p - Cin)))      # lane-dense C
    # halo-padded, flattened, row-padded, bf16 view of x (padded-flat layout)
    xp = jnp.pad(xc, ((0, 0), (1, 1), (1, 1), (0, 0))).reshape(N, P, Cin_p)
    xp = jnp.pad(xp, ((0, 0), (0, P_pad - P), (0, 0))).astype(jnp.bfloat16)

    # scale0 + shortcut fused (single pass over x), bf16 outputs
    y0, short = scale0_shortcut(xp, p["bn_s0"], p["bn_sc"], p["w_s0"], p["w_sc"])

    def branch_inputs(pooled, bn, w):
        # Tiny tensors: pooled BN/ReLU/1x1 stays in XLA; the upsample matrix M
        # (kron of the two interp matrices, emitting the padded-flat layout)
        # is fused into process3x3 as a single matmul.
        n, hs, ws, _ = pooled.shape
        a = jnp.maximum(pooled * bn[0] + bn[1], 0.0)
        z = jnp.einsum("nhwc,cd->nhwd", a, w.astype(jnp.float32),
                       precision=lax.Precision.HIGHEST)
        K = hs * ws
        Kp = _round_up(K, LANE)
        z = jnp.pad(z.reshape(n, K, Cb_p), ((0, 0), (0, Kp - K), (0, 0)))
        rh = _interp_matrix(H, hs)                        # (Hp, hs)
        rw = _interp_matrix(W, ws)                        # (Wp, ws)
        m = (rh[:, None, :, None] * rw[None, :, None, :]).reshape(P, K)
        m = jnp.pad(m, ((0, P_pad - P), (0, Kp - K)))
        return z.astype(jnp.bfloat16), m.astype(jnp.bfloat16)

    z1, m1 = branch_inputs(avg_pool_nhwc(xc, 5, 2, 2), p["bn_s1"], p["w_s1"])
    z2, m2 = branch_inputs(avg_pool_nhwc(xc, 9, 4, 4), p["bn_s2"], p["w_s2"])
    z3, m3 = branch_inputs(avg_pool_nhwc(xc, 17, 8, 8), p["bn_s3"], p["w_s3"])
    z4, m4 = branch_inputs(jnp.mean(xc, axis=(1, 2), keepdims=True),
                           p["bn_s4"], p["w_s4"])

    # process1..4: fused upsample + residual add + BN + ReLU + 3x3 conv
    y1 = process3x3(z1, m1, y0, p["bn_p1"], p["w_p1_ctr"], p["w_p1_grp"], H, W)
    y2 = process3x3(z2, m2, y1, p["bn_p2"], p["w_p2_ctr"], p["w_p2_grp"], H, W)
    y3 = process3x3(z3, m3, y2, p["bn_p3"], p["w_p3_ctr"], p["w_p3_grp"], H, W)
    y4 = process3x3(z4, m4, y3, p["bn_p4"], p["w_p4_ctr"], p["w_p4_grp"], H, W)

    out_flat = compression(y0, y1, y2, y3, y4, short,
                           p["cmp_scale"], p["cmp_bias"], p["w_cmp"])

    out = out_flat[:, :P, :].reshape(N, Hp, Wp, -1)[:, 1:H + 1, 1:W + 1, :outplanes]
    return jnp.transpose(out, (0, 3, 1, 2))               # back to NCHW


# ----------------------------------------------------------------------------
# Deterministic parameter init (shapes per DAPPM.__init__), BN folded, padded
# ----------------------------------------------------------------------------

def init_params(key, inplanes, branch, outplanes):
    Cin_p = _round_up(inplanes, LANE)
    Cb_p = _round_up(branch, LANE)
    Cout_p = _round_up(outplanes, LANE)
    keys = iter(jax.random.split(key, 64))

    def bn_folded(c, c_pad):
        gamma = 1.0 + 0.1 * jax.random.normal(next(keys), (c,), jnp.float32)
        beta = 0.1 * jax.random.normal(next(keys), (c,), jnp.float32)
        rmean = 0.1 * jax.random.normal(next(keys), (c,), jnp.float32)
        rvar = 1.0 + 0.1 * jnp.abs(jax.random.normal(next(keys), (c,), jnp.float32))
        scale = gamma / jnp.sqrt(rvar + 1e-5)
        bias = beta - rmean * scale
        return (jnp.pad(scale, (0, c_pad - c)), jnp.pad(bias, (0, c_pad - c)))

    def conv1x1(cin, cout, cin_p, cout_p):
        # PyTorch weight (cout, cin, 1, 1) -> (cin, cout), zero-padded, bf16
        w = jax.random.normal(next(keys), (cout, cin), jnp.float32) / math.sqrt(cin)
        w = jnp.pad(jnp.transpose(w), ((0, cin_p - cin), (0, cout_p - cout)))
        return w.astype(jnp.bfloat16)

    def conv3x3(cin, cout, cin_p, cout_p):
        # PyTorch (cout, cin, 3, 3) -> centre tap (cin,cout) + two K=4*cin groups
        w = jax.random.normal(next(keys), (cout, cin, 3, 3), jnp.float32) / math.sqrt(9 * cin)
        w = jnp.transpose(w, (2, 3, 1, 0)).reshape(9, cin, cout)
        w = jnp.pad(w, ((0, 0), (0, cin_p - cin), (0, cout_p - cout)))
        w_ctr = w[4]
        grp_a = jnp.concatenate([w[0], w[1], w[2], w[3]], axis=0)
        grp_b = jnp.concatenate([w[5], w[6], w[7], w[8]], axis=0)
        w_grp = jnp.stack([grp_a, grp_b])                 # (2, 4*cin_p, cout_p)
        return w_ctr.astype(jnp.bfloat16), w_grp.astype(jnp.bfloat16)

    p = {}
    for name in ("s0", "s1", "s2", "s3", "s4"):
        p["bn_" + name] = bn_folded(inplanes, Cin_p)
        p["w_" + name] = conv1x1(inplanes, branch, Cin_p, Cb_p)
    for name in ("p1", "p2", "p3", "p4"):
        p["bn_" + name] = bn_folded(branch, Cb_p)
        p["w_" + name + "_ctr"], p["w_" + name + "_grp"] = conv3x3(
            branch, branch, Cb_p, Cb_p)

    # compression: BN over 5*branch channels + 1x1 conv, laid out per-branch
    cmp_s, cmp_b = bn_folded(5 * branch, 5 * branch)
    w = jax.random.normal(next(keys), (outplanes, 5 * branch), jnp.float32) / math.sqrt(5 * branch)
    w = jnp.transpose(w)                                   # (5*branch, outplanes)
    sc_chunks, bi_chunks, w_chunks = [], [], []
    for i in range(5):
        sl = slice(i * branch, (i + 1) * branch)
        sc_chunks.append(jnp.pad(cmp_s[sl], (0, Cb_p - branch)))
        bi_chunks.append(jnp.pad(cmp_b[sl], (0, Cb_p - branch)))
        w_chunks.append(jnp.pad(w[sl], ((0, Cb_p - branch), (0, Cout_p - outplanes))))
    p["cmp_scale"] = jnp.stack(sc_chunks)                  # (5, Cb_p)
    p["cmp_bias"] = jnp.stack(bi_chunks)                   # (5, Cb_p)
    p["w_cmp"] = jnp.concatenate(w_chunks, axis=0).astype(jnp.bfloat16)  # (5*Cb_p, Cout_p)

    p["bn_sc"] = bn_folded(inplanes, Cin_p)
    p["w_sc"] = conv1x1(inplanes, outplanes, Cin_p, Cout_p)
    return p


if __name__ == "__main__":
    # NOTE: production DAPPM shapes are ~inplanes=1024, branch=96..112,
    # outplanes=128..256 at 1/64 resolution; tune there, this is a smoke test.
    inplanes, branch_planes, outplanes = 16, 8, 16
    n, hgt, wid = 2, 16, 16

    key = jax.random.PRNGKey(0)
    kx, kp = jax.random.split(key)
    x = jax.random.normal(kx, (n, inplanes, hgt, wid), dtype=jnp.float32)
    params = init_params(kp, inplanes, branch_planes, outplanes)

    fwd = jax.jit(functools.partial(dappm_forward, outplanes=outplanes))
    out = jax.block_until_ready(fwd(x, params))
    assert out.shape == (n, outplanes, hgt, wid)
    assert bool(jnp.all(jnp.isfinite(out)))
    print("KERNEL_OK")
</pallas_src>

<mosaic_0001>
module attributes {stable_mosaic.version = 11 : i64} {
  func.func @kern(%arg0: i32, %arg1: memref<1x328x128xbf16, #tpu.memory_space<vmem>>, %arg2: memref<1x128xf32, #tpu.memory_space<vmem>>, %arg3: memref<1x128xf32, #tpu.memory_space<vmem>>, %arg4: memref<1x128xf32, #tpu.memory_space<vmem>>, %arg5: memref<1x128xf32, #tpu.memory_space<vmem>>, %arg6: memref<128x128xbf16, #tpu.memory_space<vmem>>, %arg7: memref<128x128xbf16, #tpu.memory_space<vmem>>, %arg8: memref<1x328x128xbf16, #tpu.memory_space<vmem>>, %arg9: memref<1x328x128xbf16, #tpu.memory_space<vmem>>) attributes {dimension_semantics = [#tpu.dimension_semantics<parallel>], iteration_bounds = array<i64: 2>, scalar_prefetch = 0 : i64, scratch_operands = 0 : i64, tpu.core_type = #tpu.core_type<tc>, window_params = [{transform_indices = @transform_0, window_bounds = array<i64: 1, 328, 128>}, {pipeline_mode = #tpu.pipeline_mode<synchronous>, transform_indices = @transform_1, window_bounds = array<i64: 1, 128>}, {pipeline_mode = #tpu.pipeline_mode<synchronous>, transform_indices = @transform_2, window_bounds = array<i64: 1, 128>}, {pipeline_mode = #tpu.pipeline_mode<synchronous>, transform_indices = @transform_3, window_bounds = array<i64: 1, 128>}, {pipeline_mode = #tpu.pipeline_mode<synchronous>, transform_indices = @transform_4, window_bounds = array<i64: 1, 128>}, {pipeline_mode = #tpu.pipeline_mode<synchronous>, transform_indices = @transform_5, window_bounds = array<i64: 128, 128>}, {pipeline_mode = #tpu.pipeline_mode<synchronous>, transform_indices = @transform_6, window_bounds = array<i64: 128, 128>}, {transform_indices = @transform_7, window_bounds = array<i64: 1, 328, 128>}, {transform_indices = @transform_8, window_bounds = array<i64: 1, 328, 128>}]} {
    %c0 = arith.constant 0 : index
    %c0_0 = arith.constant 0 : index
    %c0_1 = arith.constant 0 : index
    %0 = vector.load %arg1[%c0, %c0_0, %c0_1] : memref<1x328x128xbf16, #tpu.memory_space<vmem>>, vector<1x328x128xbf16>
    %1 = vector.shape_cast %0 : vector<1x328x128xbf16> to vector<328x128xbf16>
    %2 = arith.extf %1 : vector<328x128xbf16> to vector<328x128xf32>
    %c0_2 = arith.constant 0 : index
    %c0_3 = arith.constant 0 : index
    %3 = vector.load %arg2[%c0_2, %c0_3] : memref<1x128xf32, #tpu.memory_space<vmem>>, vector<1x128xf32>
    %4 = vector.broadcast %3 : vector<1x128xf32> to vector<328x128xf32>
    %5 = arith.mulf %2, %4 : vector<328x128xf32>
    %c0_4 = arith.constant 0 : index
    %c0_5 = arith.constant 0 : index
    %6 = vector.load %arg3[%c0_4, %c0_5] : memref<1x128xf32, #tpu.memory_space<vmem>>, vector<1x128xf32>
    %7 = vector.broadcast %6 : vector<1x128xf32> to vector<328x128xf32>
    %8 = arith.addf %5, %7 : vector<328x128xf32>
    %cst = arith.constant 0.000000e+00 : f32
    %9 = vector.broadcast %cst : f32 to vector<328x128xf32>
    %10 = arith.maximumf %8, %9 : vector<328x128xf32>
    %11 = arith.truncf %10 : vector<328x128xf32> to vector<328x128xbf16>
    %c0_6 = arith.constant 0 : index
    %c0_7 = arith.constant 0 : index
    %12 = vector.load %arg6[%c0_6, %c0_7] : memref<128x128xbf16, #tpu.memory_space<vmem>>, vector<128x128xbf16>
    %cst_8 = arith.constant dense<0.000000e+00> : vector<328x128xf32>
    %13 = tpu.matmul %11, %12, %cst_8 {dimension_numbers = #tpu.dot_dimension_numbers<[1], [0], [0], [1], [0, 0, 1, 1], [], []>} : vector<328x128xbf16>, vector<128x128xbf16>, vector<328x128xf32> -> vector<328x128xf32>
    %14 = arith.truncf %13 : vector<328x128xf32> to vector<328x128xbf16>
    %c0_9 = arith.constant 0 : index
    %c0_10 = arith.constant 0 : index
    %c0_11 = arith.constant 0 : index
    %15 = vector.load %arg8[%c0_9, %c0_10, %c0_11] : memref<1x328x128xbf16, #tpu.memory_space<vmem>>, vector<1x328x128xbf16>
    %16 = vector.shape_cast %15 : vector<1x328x128xbf16> to vector<328x128xbf16>
    %17 = vector.shape_cast %14 : vector<328x128xbf16> to vector<1x328x128xbf16>
    tpu.vector_store %arg8[%c0_9, %c0_10, %c0_11], %17 {strides = array<i32>} : memref<1x328x128xbf16, #tpu.memory_space<vmem>>, vector<1x328x128xbf16>,
    %c0_12 = arith.constant 0 : index
    %c0_13 = arith.constant 0 : index
    %18 = vector.load %arg4[%c0_12, %c0_13] : memref<1x128xf32, #tpu.memory_space<vmem>>, vector<1x128xf32>
    %19 = vector.broadcast %18 : vector<1x128xf32> to vector<328x128xf32>
    %20 = arith.mulf %2, %19 : vector<328x128xf32>
    %c0_14 = arith.constant 0 : index
    %c0_15 = arith.constant 0 : index
    %21 = vector.load %arg5[%c0_14, %c0_15] : memref<1x128xf32, #tpu.memory_space<vmem>>, vector<1x128xf32>
    %22 = vector.broadcast %21 : vector<1x128xf32> to vector<328x128xf32>
    %23 = arith.addf %20, %22 : vector<328x128xf32>
    %cst_16 = arith.constant 0.000000e+00 : f32
    %24 = vector.broadcast %cst_16 : f32 to vector<328x128xf32>
    %25 = arith.maximumf %23, %24 : vector<328x128xf32>
    %26 = arith.truncf %25 : vector<328x128xf32> to vector<328x128xbf16>
    %c0_17 = arith.constant 0 : index
    %c0_18 = arith.constant 0 : index
    %27 = vector.load %arg7[%c0_17, %c0_18] : memref<128x128xbf16, #tpu.memory_space<vmem>>, vector<128x128xbf16>
    %cst_19 = arith.constant dense<0.000000e+00> : vector<328x128xf32>
    %28 = tpu.matmul %26, %27, %cst_19 {dimension_numbers = #tpu.dot_dimension_numbers<[1], [0], [0], [1], [0, 0, 1, 1], [], []>} : vector<328x128xbf16>, vector<128x128xbf16>, vector<328x128xf32> -> vector<328x128xf32>
    %29 = arith.truncf %28 : vector<328x128xf32> to vector<328x128xbf16>
    %c0_20 = arith.constant 0 : index
    %c0_21 = arith.constant 0 : index
    %c0_22 = arith.constant 0 : index
    %30 = vector.load %arg9[%c0_20, %c0_21, %c0_22] : memref<1x328x128xbf16, #tpu.memory_space<vmem>>, vector<1x328x128xbf16>
    %31 = vector.shape_cast %30 : vector<1x328x128xbf16> to vector<328x128xbf16>
    %32 = vector.shape_cast %29 : vector<328x128xbf16> to vector<1x328x128xbf16>
    tpu.vector_store %arg9[%c0_20, %c0_21, %c0_22], %32 {strides = array<i32>} : memref<1x328x128xbf16, #tpu.memory_space<vmem>>, vector<1x328x128xbf16>,
    return
  }
  func.func @transform_0(%arg0: i32) -> (i32, i32, i32) {
    %c0_i32 = arith.constant 0 : i32
    %c0_i32_0 = arith.constant 0 : i32
    %c0_i32_1 = arith.constant 0 : i32
    return %arg0, %c0_i32, %c0_i32_0 : i32, i32, i32
  }
  func.func @transform_1(%arg0: i32) -> (i32, i32) {
    %c0_i32 = arith.constant 0 : i32
    %c0_i32_0 = arith.constant 0 : i32
    %c0_i32_1 = arith.constant 0 : i32
    return %c0_i32, %c0_i32_0 : i32, i32
  }
  func.func @transform_2(%arg0: i32) -> (i32, i32) {
    %c0_i32 = arith.constant 0 : i32
    %c0_i32_0 = arith.constant 0 : i32
    %c0_i32_1 = arith.constant 0 : i32
    return %c0_i32, %c0_i32_0 : i32, i32
  }
  func.func @transform_3(%arg0: i32) -> (i32, i32) {
    %c0_i32 = arith.constant 0 : i32
    %c0_i32_0 = arith.constant 0 : i32
    %c0_i32_1 = arith.constant 0 : i32
    return %c0_i32, %c0_i32_0 : i32, i32
  }
  func.func @transform_4(%arg0: i32) -> (i32, i32) {
    %c0_i32 = arith.constant 0 : i32
    %c0_i32_0 = arith.constant 0 : i32
    %c0_i32_1 = arith.constant 0 : i32
    return %c0_i32, %c0_i32_0 : i32, i32
  }
  func.func @transform_5(%arg0: i32) -> (i32, i32) {
    %c0_i32 = arith.constant 0 : i32
    %c0_i32_0 = arith.constant 0 : i32
    %c0_i32_1 = arith.constant 0 : i32
    return %c0_i32, %c0_i32_0 : i32, i32
  }
  func.func @transform_6(%arg0: i32) -> (i32, i32) {
    %c0_i32 = arith.constant 0 : i32
    %c0_i32_0 = arith.constant 0 : i32
    %c0_i32_1 = arith.constant 0 : i32
    return %c0_i32, %c0_i32_0 : i32, i32
  }
  func.func @transform_7(%arg0: i32) -> (i32, i32, i32) {
    %c0_i32 = arith.constant 0 : i32
    %c0_i32_0 = arith.constant 0 : i32
    %c0_i32_1 = arith.constant 0 : i32
    return %arg0, %c0_i32, %c0_i32_0 : i32, i32, i32
  }
  func.func @transform_8(%arg0: i32) -> (i32, i32, i32) {
    %c0_i32 = arith.constant 0 : i32
    %c0_i32_0 = arith.constant 0 : i32
    %c0_i32_1 = arith.constant 0 : i32
    return %arg0, %c0_i32, %c0_i32_0 : i32, i32, i32
  }
}

module attributes {stable_mosaic.version = 11 : i64} {
  func.func @kern(%arg0: i32, %arg1: memref<1x128x128xbf16, #tpu.memory_space<vmem>>, %arg2: memref<328x128xbf16, #tpu.memory_space<vmem>>, %arg3: memref<1x328x128xbf16, #tpu.memory_space<vmem>>, %arg4: memref<1x128xf32, #tpu.memory_space<vmem>>, %arg5: memref<1x128xf32, #tpu.memory_space<vmem>>, %arg6: memref<128x128xbf16, #tpu.memory_space<vmem>>, %arg7: memref<2x512x128xbf16, #tpu.memory_space<vmem>>, %arg8: memref<1x328x128xbf16, #tpu.memory_space<vmem>>, %arg9: memref<376x128xf32, #tpu.memory_space<vmem>>) attributes {dimension_semantics = [#tpu.dimension_semantics<parallel>], iteration_bounds = array<i64: 2>, scalar_prefetch = 0 : i64, scratch_operands = 1 : i64, tpu.core_type = #tpu.core_type<tc>, window_params = [{transform_indices = @transform_0, window_bounds = array<i64: 1, 128, 128>}, {pipeline_mode = #tpu.pipeline_mode<synchronous>, transform_indices = @transform_1, window_bounds = array<i64: 328, 128>}, {transform_indices = @transform_2, window_bounds = array<i64: 1, 328, 128>}, {pipeline_mode = #tpu.pipeline_mode<synchronous>, transform_indices = @transform_3, window_bounds = array<i64: 1, 128>}, {pipeline_mode = #tpu.pipeline_mode<synchronous>, transform_indices = @transform_4, window_bounds = array<i64: 1, 128>}, {pipeline_mode = #tpu.pipeline_mode<synchronous>, transform_indices = @transform_5, window_bounds = array<i64: 128, 128>}, {pipeline_mode = #tpu.pipeline_mode<synchronous>, transform_indices = @transform_6, window_bounds = array<i64: 2, 512, 128>}, {transform_indices = @transform_7, window_bounds = array<i64: 1, 328, 128>}]} {
    %c0 = arith.constant 0 : index
    %c0_0 = arith.constant 0 : index
    %0 = vector.load %arg2[%c0, %c0_0] : memref<328x128xbf16, #tpu.memory_space<vmem>>, vector<328x128xbf16>
    %c0_1 = arith.constant 0 : index
    %c0_2 = arith.constant 0 : index
    %c0_3 = arith.constant 0 : index
    %1 = vector.load %arg1[%c0_1, %c0_2, %c0_3] : memref<1x128x128xbf16, #tpu.memory_space<vmem>>, vector<1x128x128xbf16>
    %2 = vector.shape_cast %1 : vector<1x128x128xbf16> to vector<128x128xbf16>
    %cst = arith.constant dense<0.000000e+00> : vector<328x128xf32>
    %3 = tpu.matmul %0, %2, %cst {dimension_numbers = #tpu.dot_dimension_numbers<[1], [0], [0], [1], [0, 0, 1, 1], [], []>} : vector<328x128xbf16>, vector<128x128xbf16>, vector<328x128xf32> -> vector<328x128xf32>
    %c0_4 = arith.constant 0 : index
    %c0_5 = arith.constant 0 : index
    %c0_6 = arith.constant 0 : index
    %4 = vector.load %arg3[%c0_4, %c0_5, %c0_6] : memref<1x328x128xbf16, #tpu.memory_space<vmem>>, vector<1x328x128xbf16>
    %5 = vector.shape_cast %4 : vector<1x328x128xbf16> to vector<328x128xbf16>
    %6 = arith.extf %5 : vector<328x128xbf16> to vector<328x128xf32>
    %7 = arith.addf %3, %6 : vector<328x128xf32>
    %c0_7 = arith.constant 0 : index
    %c0_8 = arith.constant 0 : index
    %8 = vector.load %arg4[%c0_7, %c0_8] : memref<1x128xf32, #tpu.memory_space<vmem>>, vector<1x128xf32>
    %9 = vector.broadcast %8 : vector<1x128xf32> to vector<328x128xf32>
    %10 = arith.mulf %7, %9 : vector<328x128xf32>
    %c0_9 = arith.constant 0 : index
    %c0_10 = arith.constant 0 : index
    %11 = vector.load %arg5[%c0_9, %c0_10] : memref<1x128xf32, #tpu.memory_space<vmem>>, vector<1x128xf32>
    %12 = vector.broadcast %11 : vector<1x128xf32> to vector<328x128xf32>
    %13 = arith.addf %10, %12 : vector<328x128xf32>
    %cst_11 = arith.constant 0.000000e+00 : f32
    %14 = vector.broadcast %cst_11 : f32 to vector<328x128xf32>
    %15 = arith.maximumf %13, %14 : vector<328x128xf32>
    %16 = tpu.iota {dimensions = array<i32: 0>} : vector<328x1xi32>
    %17 = arith.sitofp %16 : vector<328x1xi32> to vector<328x1xf32>
    %cst_12 = arith.constant 5.000000e-01 : f32
    %18 = vector.broadcast %cst_12 : f32 to vector<328x1xf32>
    %19 = arith.addf %17, %18 : vector<328x1xf32>
    %cst_13 = arith.constant 0.055555556 : f32
    %20 = vector.broadcast %cst_13 : f32 to vector<328x1xf32>
    %21 = arith.mulf %19, %20 : vector<328x1xf32>
    %22 = math.floor %21 : vector<328x1xf32>
    %cst_14 = arith.constant 1.800000e+01 : f32
    %23 = vector.broadcast %cst_14 : f32 to vector<328x1xf32>
    %24 = arith.mulf %22, %23 : vector<328x1xf32>
    %25 = arith.subf %17, %24 : vector<328x1xf32>
    %cst_15 = arith.constant 1.000000e+00 : f32
    %26 = vector.broadcast %cst_15 : f32 to vector<328x1xf32>
    %27 = arith.cmpf oge, %22, %26 : vector<328x1xf32>
    %cst_16 = arith.constant 1.600000e+01 : f32
    %28 = vector.broadcast %cst_16 : f32 to vector<328x1xf32>
    %29 = arith.cmpf ole, %22, %28 : vector<328x1xf32>
    %30 = arith.andi %27, %29 : vector<328x1xi1>
    %cst_17 = arith.constant 1.000000e+00 : f32
    %31 = vector.broadcast %cst_17 : f32 to vector<328x1xf32>
    %32 = arith.cmpf oge, %25, %31 : vector<328x1xf32>
    %33 = arith.andi %30, %32 : vector<328x1xi1>
    %cst_18 = arith.constant 1.600000e+01 : f32
    %34 = vector.broadcast %cst_18 : f32 to vector<328x1xf32>
    %35 = arith.cmpf ole, %25, %34 : vector<328x1xf32>
    %36 = arith.andi %33, %35 : vector<328x1xi1>
    %cst_19 = arith.constant 0.000000e+00 : f32
    %37 = vector.shape_cast %36 : vector<328x1xi1> to vector<328x1xi1>
    %38 = vector.broadcast %37 : vector<328x1xi1> to vector<328x128xi1>
    %39 = vector.broadcast %cst_19 : f32 to vector<328x128xf32>
    %40 = arith.select %38, %15, %39 : vector<328x128xi1>, vector<328x128xf32>
    %cst_20 = arith.constant 0.000000e+00 : f32
    %41 = vector.broadcast %cst_20 : f32 to vector<24x128xf32>
    %c0_21 = arith.constant 0 : index
    %c0_22 = arith.constant 0 : index
    %42 = vector.load %arg9[%c0_21, %c0_22] : memref<376x128xf32, #tpu.memory_space<vmem>>, vector<24x128xf32>
    tpu.vector_store %arg9[%c0_21, %c0_22], %41 {strides = array<i32>} : memref<376x128xf32, #tpu.memory_space<vmem>>, vector<24x128xf32>,
    %cst_23 = arith.constant 0.000000e+00 : f32
    %43 = vector.broadcast %cst_23 : f32 to vector<24x128xf32>
    %c352 = arith.constant 352 : index
    %c0_24 = arith.constant 0 : index
    %44 = vector.load %arg9[%c352, %c0_24] : memref<376x128xf32, #tpu.memory_space<vmem>>, vector<24x128xf32>
    tpu.vector_store %arg9[%c352, %c0_24], %43 {strides = array<i32>} : memref<376x128xf32, #tpu.memory_space<vmem>>, vector<24x128xf32>,
    %c24 = arith.constant 24 : index
    %c0_25 = arith.constant 0 : index
    %45 = vector.load %arg9[%c24, %c0_25] : memref<376x128xf32, #tpu.memory_space<vmem>>, vector<328x128xf32>
    tpu.vector_store %arg9[%c24, %c0_25], %40 {strides = array<i32>} : memref<376x128xf32, #tpu.memory_space<vmem>>, vector<328x128xf32>,
    %46 = arith.truncf %40 : vector<328x128xf32> to vector<328x128xbf16>
    %c0_26 = arith.constant 0 : index
    %c0_27 = arith.constant 0 : index
    %47 = vector.load %arg6[%c0_26, %c0_27] : memref<128x128xbf16, #tpu.memory_space<vmem>>, vector<128x128xbf16>
    %cst_28 = arith.constant dense<0.000000e+00> : vector<328x128xf32>
    %48 = tpu.matmul %46, %47, %cst_28 {dimension_numbers = #tpu.dot_dimension_numbers<[1], [0], [0], [1], [0, 0, 1, 1], [], []>} : vector<328x128xbf16>, vector<128x128xbf16>, vector<328x128xf32> -> vector<328x128xf32>
    %c5 = arith.constant 5 : index
    %c0_29 = arith.constant 0 : index
    %49 = vector.load %arg9[%c5, %c0_29] : memref<376x128xf32, #tpu.memory_space<vmem>>, vector<328x128xf32>
    %50 = arith.truncf %49 : vector<328x128xf32> to vector<328x128xbf16>
    %c6 = arith.constant 6 : index
    %c0_30 = arith.constant 0 : index
    %51 = vector.load %arg9[%c6, %c0_30] : memref<376x128xf32, #tpu.memory_space<vmem>>, vector<328x128xf32>
    %52 = arith.truncf %51 : vector<328x128xf32> to vector<328x128xbf16>
    %c7 = arith.constant 7 : index
    %c0_31 = arith.constant 0 : index
    %53 = vector.load %arg9[%c7, %c0_31] : memref<376x128xf32, #tpu.memory_space<vmem>>, vector<328x128xf32>
    %54 = arith.truncf %53 : vector<328x128xf32> to vector<328x128xbf16>
    %c23 = arith.constant 23 : index
    %c0_32 = arith.constant 0 : index
    %55 = vector.load %arg9[%c23, %c0_32] : memref<376x128xf32, #tpu.memory_space<vmem>>, vector<328x128xf32>
    %56 = arith.truncf %55 : vector<328x128xf32> to vector<328x128xbf16>
    %57 = tpu.concatenate %50, %52, %54, %56 in 1 : vector<328x128xbf16>, vector<328x128xbf16>, vector<328x128xbf16>, vector<328x128xbf16> -> vector<328x512xbf16>
    %c0_33 = arith.constant 0 : index
    %c0_34 = arith.constant 0 : index
    %c0_35 = arith.constant 0 : index
    %58 = vector.load %arg7[%c0_33, %c0_34, %c0_35] : memref<2x512x128xbf16, #tpu.memory_space<vmem>>, vector<1x512x128xbf16>
    %59 = vector.shape_cast %58 : vector<1x512x128xbf16> to vector<512x128xbf16>
    %cst_36 = arith.constant dense<0.000000e+00> : vector<328x128xf32>
    %60 = tpu.matmul %57, %59, %cst_36 {dimension_numbers = #tpu.dot_dimension_numbers<[1], [0], [0], [1], [0, 0, 1, 1], [], []>} : vector<328x512xbf16>, vector<512x128xbf16>, vector<328x128xf32> -> vector<328x128xf32>
    %61 = arith.addf %48, %60 : vector<328x128xf32>
    %c25 = arith.constant 25 : index
    %c0_37 = arith.constant 0 : index
    %62 = vector.load %arg9[%c25, %c0_37] : memref<376x128xf32, #tpu.memory_space<vmem>>, vector<328x128xf32>
    %63 = arith.truncf %62 : vector<328x128xf32> to vector<328x128xbf16>
    %c41 = arith.constant 41 : index
    %c0_38 = arith.constant 0 : index
    %64 = vector.load %arg9[%c41, %c0_38] : memref<376x128xf32, #tpu.memory_space<vmem>>, vector<328x128xf32>
    %65 = arith.truncf %64 : vector<328x128xf32> to vector<328x128xbf16>
    %c42 = arith.constant 42 : index
    %c0_39 = arith.constant 0 : index
    %66 = vector.load %arg9[%c42, %c0_39] : memref<376x128xf32, #tpu.memory_space<vmem>>, vector<328x128xf32>
    %67 = arith.truncf %66 : vector<328x128xf32> to vector<328x128xbf16>
    %c43 = arith.constant 43 : index
    %c0_40 = arith.constant 0 : index
    %68 = vector.load %arg9[%c43, %c0_40] : memref<376x128xf32, #tpu.memory_space<vmem>>, vector<328x128xf32>
    %69 = arith.truncf %68 : vector<328x128xf32> to vector<328x128xbf16>
    %70 = tpu.concatenate %63, %65, %67, %69 in 1 : vector<328x128xbf16>, vector<328x128xbf16>, vector<328x128xbf16>, vector<328x128xbf16> -> vector<328x512xbf16>
    %c1 = arith.constant 1 : index
    %c0_41 = arith.constant 0 : index
    %c0_42 = arith.constant 0 : index
    %71 = vector.load %arg7[%c1, %c0_41, %c0_42] : memref<2x512x128xbf16, #tpu.memory_space<vmem>>, vector<1x512x128xbf16>
    %72 = vector.shape_cast %71 : vector<1x512x128xbf16> to vector<512x128xbf16>
    %cst_43 = arith.constant dense<0.000000e+00> : vector<328x128xf32>
    %73 = tpu.matmul %70, %72, %cst_43 {dimension_numbers = #tpu.dot_dimension_numbers<[1], [0], [0], [1], [0, 0, 1, 1], [], []>} : vector<328x512xbf16>, vector<512x128xbf16>, vector<328x128xf32> -> vector<328x128xf32>
    %74 = arith.addf %61, %73 : vector<328x128xf32>
    %75 = arith.truncf %74 : vector<328x128xf32> to vector<328x128xbf16>
    %c0_44 = arith.constant 0 : index
    %c0_45 = arith.constant 0 : index
    %c0_46 = arith.constant 0 : index
    %76 = vector.load %arg8[%c0_44, %c0_45, %c0_46] : memref<1x328x128xbf16, #tpu.memory_space<vmem>>, vector<1x328x128xbf16>
    %77 = vector.shape_cast %76 : vector<1x328x128xbf16> to vector<328x128xbf16>
    %78 = vector.shape_cast %75 : vector<328x128xbf16> to vector<1x328x128xbf16>
    tpu.vector_store %arg8[%c0_44, %c0_45, %c0_46], %78 {strides = array<i32>} : memref<1x328x128xbf16, #tpu.memory_space<vmem>>, vector<1x328x128xbf16>,
    return
  }
  func.func @transform_0(%arg0: i32) -> (i32, i32, i32) {
    %c0_i32 = arith.constant 0 : i32
    %c0_i32_0 = arith.constant 0 : i32
    %c0_i32_1 = arith.constant 0 : i32
    return %arg0, %c0_i32, %c0_i32_0 : i32, i32, i32
  }
  func.func @transform_1(%arg0: i32) -> (i32, i32) {
    %c0_i32 = arith.constant 0 : i32
    %c0_i32_0 = arith.constant 0 : i32
    %c0_i32_1 = arith.constant 0 : i32
    return %c0_i32, %c0_i32_0 : i32, i32
  }
  func.func @transform_2(%arg0: i32) -> (i32, i32, i32) {
    %c0_i32 = arith.constant 0 : i32
    %c0_i32_0 = arith.constant 0 : i32
    %c0_i32_1 = arith.constant 0 : i32
    return %arg0, %c0_i32, %c0_i32_0 : i32, i32, i32
  }
  func.func @transform_3(%arg0: i32) -> (i32, i32) {
    %c0_i32 = arith.constant 0 : i32
    %c0_i32_0 = arith.constant 0 : i32
    %c0_i32_1 = arith.constant 0 : i32
    return %c0_i32, %c0_i32_0 : i32, i32
  }
  func.func @transform_4(%arg0: i32) -> (i32, i32) {
    %c0_i32 = arith.constant 0 : i32
    %c0_i32_0 = arith.constant 0 : i32
    %c0_i32_1 = arith.constant 0 : i32
    return %c0_i32, %c0_i32_0 : i32, i32
  }
  func.func @transform_5(%arg0: i32) -> (i32, i32) {
    %c0_i32 = arith.constant 0 : i32
    %c0_i32_0 = arith.constant 0 : i32
    %c0_i32_1 = arith.constant 0 : i32
    return %c0_i32, %c0_i32_0 : i32, i32
  }
  func.func @transform_6(%arg0: i32) -> (i32, i32, i32) {
    %c0_i32 = arith.constant 0 : i32
    %c0_i32_0 = arith.constant 0 : i32
    %c0_i32_1 = arith.constant 0 : i32
    %c0_i32_2 = arith.constant 0 : i32
    return %c0_i32, %c0_i32_0, %c0_i32_1 : i32, i32, i32
  }
  func.func @transform_7(%arg0: i32) -> (i32, i32, i32) {
    %c0_i32 = arith.constant 0 : i32
    %c0_i32_0 = arith.constant 0 : i32
    %c0_i32_1 = arith.constant 0 : i32
    return %arg0, %c0_i32, %c0_i32_0 : i32, i32, i32
  }
}

module attributes {stable_mosaic.version = 11 : i64} {
  func.func @kern(%arg0: i32, %arg1: memref<1x328x128xbf16, #tpu.memory_space<vmem>>, %arg2: memref<1x328x128xbf16, #tpu.memory_space<vmem>>, %arg3: memref<1x328x128xbf16, #tpu.memory_space<vmem>>, %arg4: memref<1x328x128xbf16, #tpu.memory_space<vmem>>, %arg5: memref<1x328x128xbf16, #tpu.memory_space<vmem>>, %arg6: memref<1x328x128xbf16, #tpu.memory_space<vmem>>, %arg7: memref<5x128xf32, #tpu.memory_space<vmem>>, %arg8: memref<5x128xf32, #tpu.memory_space<vmem>>, %arg9: memref<640x128xbf16, #tpu.memory_space<vmem>>, %arg10: memref<1x328x128xf32, #tpu.memory_space<vmem>>) attributes {dimension_semantics = [#tpu.dimension_semantics<parallel>], iteration_bounds = array<i64: 2>, scalar_prefetch = 0 : i64, scratch_operands = 0 : i64, tpu.core_type = #tpu.core_type<tc>, window_params = [{transform_indices = @transform_0, window_bounds = array<i64: 1, 328, 128>}, {transform_indices = @transform_1, window_bounds = array<i64: 1, 328, 128>}, {transform_indices = @transform_2, window_bounds = array<i64: 1, 328, 128>}, {transform_indices = @transform_3, window_bounds = array<i64: 1, 328, 128>}, {transform_indices = @transform_4, window_bounds = array<i64: 1, 328, 128>}, {transform_indices = @transform_5, window_bounds = array<i64: 1, 328, 128>}, {pipeline_mode = #tpu.pipeline_mode<synchronous>, transform_indices = @transform_6, window_bounds = array<i64: 5, 128>}, {pipeline_mode = #tpu.pipeline_mode<synchronous>, transform_indices = @transform_7, window_bounds = array<i64: 5, 128>}, {pipeline_mode = #tpu.pipeline_mode<synchronous>, transform_indices = @transform_8, window_bounds = array<i64: 640, 128>}, {transform_indices = @transform_9, window_bounds = array<i64: 1, 328, 128>}]} {
    %c0 = arith.constant 0 : index
    %c0_0 = arith.constant 0 : index
    %c0_1 = arith.constant 0 : index
    %0 = vector.load %arg1[%c0, %c0_0, %c0_1] : memref<1x328x128xbf16, #tpu.memory_space<vmem>>, vector<1x328x128xbf16>
    %1 = vector.shape_cast %0 : vector<1x328x128xbf16> to vector<328x128xbf16>
    %2 = arith.extf %1 : vector<328x128xbf16> to vector<328x128xf32>
    %c0_2 = arith.constant 0 : index
    %c0_3 = arith.constant 0 : index
    %3 = vector.load %arg7[%c0_2, %c0_3] : memref<5x128xf32, #tpu.memory_space<vmem>>, vector<1x128xf32>
    %4 = vector.broadcast %3 : vector<1x128xf32> to vector<328x128xf32>
    %5 = arith.mulf %2, %4 : vector<328x128xf32>
    %c0_4 = arith.constant 0 : index
    %c0_5 = arith.constant 0 : index
    %6 = vector.load %arg8[%c0_4, %c0_5] : memref<5x128xf32, #tpu.memory_space<vmem>>, vector<1x128xf32>
    %7 = vector.broadcast %6 : vector<1x128xf32> to vector<328x128xf32>
    %8 = arith.addf %5, %7 : vector<328x128xf32>
    %cst = arith.constant 0.000000e+00 : f32
    %9 = vector.broadcast %cst : f32 to vector<328x128xf32>
    %10 = arith.maximumf %8, %9 : vector<328x128xf32>
    %11 = arith.truncf %10 : vector<328x128xf32> to vector<328x128xbf16>
    %c0_6 = arith.constant 0 : index
    %c0_7 = arith.constant 0 : index
    %c0_8 = arith.constant 0 : index
    %12 = vector.load %arg2[%c0_6, %c0_7, %c0_8] : memref<1x328x128xbf16, #tpu.memory_space<vmem>>, vector<1x328x128xbf16>
    %13 = vector.shape_cast %12 : vector<1x328x128xbf16> to vector<328x128xbf16>
    %14 = arith.extf %13 : vector<328x128xbf16> to vector<328x128xf32>
    %c1 = arith.constant 1 : index
    %c0_9 = arith.constant 0 : index
    %15 = vector.load %arg7[%c1, %c0_9] : memref<5x128xf32, #tpu.memory_space<vmem>>, vector<1x128xf32>
    %16 = vector.broadcast %15 : vector<1x128xf32> to vector<328x128xf32>
    %17 = arith.mulf %14, %16 : vector<328x128xf32>
    %c1_10 = arith.constant 1 : index
    %c0_11 = arith.constant 0 : index
    %18 = vector.load %arg8[%c1_10, %c0_11] : memref<5x128xf32, #tpu.memory_space<vmem>>, vector<1x128xf32>
    %19 = vector.broadcast %18 : vector<1x128xf32> to vector<328x128xf32>
    %20 = arith.addf %17, %19 : vector<328x128xf32>
    %cst_12 = arith.constant 0.000000e+00 : f32
    %21 = vector.broadcast %cst_12 : f32 to vector<328x128xf32>
    %22 = arith.maximumf %20, %21 : vector<328x128xf32>
    %23 = arith.truncf %22 : vector<328x128xf32> to vector<328x128xbf16>
    %c0_13 = arith.constant 0 : index
    %c0_14 = arith.constant 0 : index
    %c0_15 = arith.constant 0 : index
    %24 = vector.load %arg3[%c0_13, %c0_14, %c0_15] : memref<1x328x128xbf16, #tpu.memory_space<vmem>>, vector<1x328x128xbf16>
    %25 = vector.shape_cast %24 : vector<1x328x128xbf16> to vector<328x128xbf16>
    %26 = arith.extf %25 : vector<328x128xbf16> to vector<328x128xf32>
    %c2 = arith.constant 2 : index
    %c0_16 = arith.constant 0 : index
    %27 = vector.load %arg7[%c2, %c0_16] : memref<5x128xf32, #tpu.memory_space<vmem>>, vector<1x128xf32>
    %28 = vector.broadcast %27 : vector<1x128xf32> to vector<328x128xf32>
    %29 = arith.mulf %26, %28 : vector<328x128xf32>
    %c2_17 = arith.constant 2 : index
    %c0_18 = arith.constant 0 : index
    %30 = vector.load %arg8[%c2_17, %c0_18] : memref<5x128xf32, #tpu.memory_space<vmem>>, vector<1x128xf32>
    %31 = vector.broadcast %30 : vector<1x128xf32> to vector<328x128xf32>
    %32 = arith.addf %29, %31 : vector<328x128xf32>
    %cst_19 = arith.constant 0.000000e+00 : f32
    %33 = vector.broadcast %cst_19 : f32 to vector<328x128xf32>
    %34 = arith.maximumf %32, %33 : vector<328x128xf32>
    %35 = arith.truncf %34 : vector<328x128xf32> to vector<328x128xbf16>
    %c0_20 = arith.constant 0 : index
    %c0_21 = arith.constant 0 : index
    %c0_22 = arith.constant 0 : index
    %36 = vector.load %arg4[%c0_20, %c0_21, %c0_22] : memref<1x328x128xbf16, #tpu.memory_space<vmem>>, vector<1x328x128xbf16>
    %37 = vector.shape_cast %36 : vector<1x328x128xbf16> to vector<328x128xbf16>
    %38 = arith.extf %37 : vector<328x128xbf16> to vector<328x128xf32>
    %c3 = arith.constant 3 : index
    %c0_23 = arith.constant 0 : index
    %39 = vector.load %arg7[%c3, %c0_23] : memref<5x128xf32, #tpu.memory_space<vmem>>, vector<1x128xf32>
    %40 = vector.broadcast %39 : vector<1x128xf32> to vector<328x128xf32>
    %41 = arith.mulf %38, %40 : vector<328x128xf32>
    %c3_24 = arith.constant 3 : index
    %c0_25 = arith.constant 0 : index
    %42 = vector.load %arg8[%c3_24, %c0_25] : memref<5x128xf32, #tpu.memory_space<vmem>>, vector<1x128xf32>
    %43 = vector.broadcast %42 : vector<1x128xf32> to vector<328x128xf32>
    %44 = arith.addf %41, %43 : vector<328x128xf32>
    %cst_26 = arith.constant 0.000000e+00 : f32
    %45 = vector.broadcast %cst_26 : f32 to vector<328x128xf32>
    %46 = arith.maximumf %44, %45 : vector<328x128xf32>
    %47 = arith.truncf %46 : vector<328x128xf32> to vector<328x128xbf16>
    %c0_27 = arith.constant 0 : index
    %c0_28 = arith.constant 0 : index
    %c0_29 = arith.constant 0 : index
    %48 = vector.load %arg5[%c0_27, %c0_28, %c0_29] : memref<1x328x128xbf16, #tpu.memory_space<vmem>>, vector<1x328x128xbf16>
    %49 = vector.shape_cast %48 : vector<1x328x128xbf16> to vector<328x128xbf16>
    %50 = arith.extf %49 : vector<328x128xbf16> to vector<328x128xf32>
    %c4 = arith.constant 4 : index
    %c0_30 = arith.constant 0 : index
    %51 = vector.load %arg7[%c4, %c0_30] : memref<5x128xf32, #tpu.memory_space<vmem>>, vector<1x128xf32>
    %52 = vector.broadcast %51 : vector<1x128xf32> to vector<328x128xf32>
    %53 = arith.mulf %50, %52 : vector<328x128xf32>
    %c4_31 = arith.constant 4 : index
    %c0_32 = arith.constant 0 : index
    %54 = vector.load %arg8[%c4_31, %c0_32] : memref<5x128xf32, #tpu.memory_space<vmem>>, vector<1x128xf32>
    %55 = vector.broadcast %54 : vector<1x128xf32> to vector<328x128xf32>
    %56 = arith.addf %53, %55 : vector<328x128xf32>
    %cst_33 = arith.constant 0.000000e+00 : f32
    %57 = vector.broadcast %cst_33 : f32 to vector<328x128xf32>
    %58 = arith.maximumf %56, %57 : vector<328x128xf32>
    %59 = arith.truncf %58 : vector<328x128xf32> to vector<328x128xbf16>
    %60 = tpu.concatenate %11, %23, %35, %47, %59 in 1 : vector<328x128xbf16>, vector<328x128xbf16>, vector<328x128xbf16>, vector<328x128xbf16>, vector<328x128xbf16> -> vector<328x640xbf16>
    %c0_34 = arith.constant 0 : index
    %c0_35 = arith.constant 0 : index
    %c0_36 = arith.constant 0 : index
    %61 = vector.load %arg6[%c0_34, %c0_35, %c0_36] : memref<1x328x128xbf16, #tpu.memory_space<vmem>>, vector<1x328x128xbf16>
    %62 = vector.shape_cast %61 : vector<1x328x128xbf16> to vector<328x128xbf16>
    %63 = arith.extf %62 : vector<328x128xbf16> to vector<328x128xf32>
    %c0_37 = arith.constant 0 : index
    %c0_38 = arith.constant 0 : index
    %64 = vector.load %arg9[%c0_37, %c0_38] : memref<640x128xbf16, #tpu.memory_space<vmem>>, vector<640x128xbf16>
    %cst_39 = arith.constant dense<0.000000e+00> : vector<328x128xf32>
    %65 = tpu.matmul %60, %64, %cst_39 {dimension_numbers = #tpu.dot_dimension_numbers<[1], [0], [0], [1], [0, 0, 1, 1], [], []>} : vector<328x640xbf16>, vector<640x128xbf16>, vector<328x128xf32> -> vector<328x128xf32>
    %66 = arith.addf %63, %65 : vector<328x128xf32>
    %c0_40 = arith.constant 0 : index
    %c0_41 = arith.constant 0 : index
    %c0_42 = arith.constant 0 : index
    %67 = vector.load %arg10[%c0_40, %c0_41, %c0_42] : memref<1x328x128xf32, #tpu.memory_space<vmem>>, vector<1x328x128xf32>
    %68 = vector.shape_cast %67 : vector<1x328x128xf32> to vector<328x128xf32>
    %69 = vector.shape_cast %66 : vector<328x128xf32> to vector<1x328x128xf32>
    tpu.vector_store %arg10[%c0_40, %c0_41, %c0_42], %69 {strides = array<i32>} : memref<1x328x128xf32, #tpu.memory_space<vmem>>, vector<1x328x128xf32>,
    return
  }
  func.func @transform_0(%arg0: i32) -> (i32, i32, i32) {
    %c0_i32 = arith.constant 0 : i32
    %c0_i32_0 = arith.constant 0 : i32
    %c0_i32_1 = arith.constant 0 : i32
    return %arg0, %c0_i32, %c0_i32_0 : i32, i32, i32
  }
  func.func @transform_1(%arg0: i32) -> (i32, i32, i32) {
    %c0_i32 = arith.constant 0 : i32
    %c0_i32_0 = arith.constant 0 : i32
    %c0_i32_1 = arith.constant 0 : i32
    return %arg0, %c0_i32, %c0_i32_0 : i32, i32, i32
  }
  func.func @transform_2(%arg0: i32) -> (i32, i32, i32) {
    %c0_i32 = arith.constant 0 : i32
    %c0_i32_0 = arith.constant 0 : i32
    %c0_i32_1 = arith.constant 0 : i32
    return %arg0, %c0_i32, %c0_i32_0 : i32, i32, i32
  }
  func.func @transform_3(%arg0: i32) -> (i32, i32, i32) {
    %c0_i32 = arith.constant 0 : i32
    %c0_i32_0 = arith.constant 0 : i32
    %c0_i32_1 = arith.constant 0 : i32
    return %arg0, %c0_i32, %c0_i32_0 : i32, i32, i32
  }
  func.func @transform_4(%arg0: i32) -> (i32, i32, i32) {
    %c0_i32 = arith.constant 0 : i32
    %c0_i32_0 = arith.constant 0 : i32
    %c0_i32_1 = arith.constant 0 : i32
    return %arg0, %c0_i32, %c0_i32_0 : i32, i32, i32
  }
  func.func @transform_5(%arg0: i32) -> (i32, i32, i32) {
    %c0_i32 = arith.constant 0 : i32
    %c0_i32_0 = arith.constant 0 : i32
    %c0_i32_1 = arith.constant 0 : i32
    return %arg0, %c0_i32, %c0_i32_0 : i32, i32, i32
  }
  func.func @transform_6(%arg0: i32) -> (i32, i32) {
    %c0_i32 = arith.constant 0 : i32
    %c0_i32_0 = arith.constant 0 : i32
    %c0_i32_1 = arith.constant 0 : i32
    return %c0_i32, %c0_i32_0 : i32, i32
  }
  func.func @transform_7(%arg0: i32) -> (i32, i32) {
    %c0_i32 = arith.constant 0 : i32
    %c0_i32_0 = arith.constant 0 : i32
    %c0_i32_1 = arith.constant 0 : i32
    return %c0_i32, %c0_i32_0 : i32, i32
  }
  func.func @transform_8(%arg0: i32) -> (i32, i32) {
    %c0_i32 = arith.constant 0 : i32
    %c0_i32_0 = arith.constant 0 : i32
    %c0_i32_1 = arith.constant 0 : i32
    return %c0_i32, %c0_i32_0 : i32, i32
  }
  func.func @transform_9(%arg0: i32) -> (i32, i32, i32) {
    %c0_i32 = arith.constant 0 : i32
    %c0_i32_0 = arith.constant 0 : i32
    %c0_i32_1 = arith.constant 0 : i32
    return %arg0, %c0_i32, %c0_i32_0 : i32, i32, i32
  }
}

</mosaic_0001>

<llo_original>
// kernel: dappm_forward.6
$region0: #{dappm_forward.6}
  #allocation0 [shape = 'u32[]', space=smem, size = 0x4, offset = 0x4, fixed_abs, tag = 'smem constant byte address 0x4 - core index']
  #allocation1 [shape = 'u32[72,128]{1,0:T(1,128)}', space=vmem, size = 0x9000, scoped, tag = 'internal scratch']
  %s0 = inlined_call_operand.vmem [shape: bf16[2,328,128], index: 0, kind: input, shape index: {}]
  %s1 = inlined_call_operand.vmem [shape: f32[1,128], index: 1, kind: input, shape index: {}]
  %s2 = inlined_call_operand.vmem [shape: f32[1,128], index: 2, kind: input, shape index: {}]
  %s3 = inlined_call_operand.vmem [shape: f32[1,128], index: 3, kind: input, shape index: {}]
  %s4 = inlined_call_operand.vmem [shape: f32[1,128], index: 4, kind: input, shape index: {}]
  %s5 = inlined_call_operand.vmem [shape: bf16[128,128], index: 5, kind: input, shape index: {}]
  %s6 = inlined_call_operand.vmem [shape: bf16[128,128], index: 6, kind: input, shape index: {}]
  %s7 = inlined_call_operand.vmem [shape: bf16[2,328,128], index: 7, kind: output, shape index: {0}]
  %s8 = inlined_call_operand.vmem [shape: bf16[2,328,128], index: 8, kind: output, shape index: {1}]
  %9 = xla_tuple %s7, %s8
  %s10 = sld [smem:[#allocation0]]
  $region69: #{dappm_forward.6} parent=0
    _
  %s12 = ssub.s32 1, %s10
  %s13 = scalar_select 0, %s12, %s10
  loop: start=0, step=1, limit=4
  $region2: #{dappm_forward.6} parent=0 // loop_pre_header
    _
  $region3: #{dappm_forward.6} parent=0 // loop_header
    %s15 = sphi 0, %s19
    %p16 = scmp.ge.s32.totalorder %s15, 4
    %s25 = sphi 0, %s27
    %s28 = sphi 0, %s25
    %s29 = sphi 0, %s28
    %s45 = sphi 0, %s29
    %s49 = sphi 0, %s49
    %s51 = sphi 0, %s49
    %s52 = sphi 0, %s51
    %s66 = sphi 0, %s52
    %s70 = sphi 0, %s70
    %s72 = sphi 0, %s70
    %s73 = sphi 0, %s72
    %s87 = sphi 0, %s73
    %s91 = sphi 0, %s91
    %s93 = sphi 0, %s91
    %s94 = sphi 0, %s93
    %s108 = sphi 0, %s94
    %s112 = sphi 0, %s112
    %s114 = sphi 0, %s112
    %s115 = sphi 0, %s114
    %s129 = sphi 0, %s115
    %s133 = sphi 0, %s133
    %s135 = sphi 0, %s133
    %s136 = sphi 0, %s135
    %s150 = sphi 0, %s136
    %s154 = sphi 0, %s154
    %s156 = sphi 0, %s154
    %s157 = sphi 0, %s156
    %s171 = sphi 0, %s157
    %s177 = sphi 0, %s179
    %s180 = sphi 0, %s177
    %s181 = sphi 0, %s180
    %s197 = sphi 0, %s181
    %s203 = sphi 0, %s205
    %s206 = sphi 0, %s203
    %s207 = sphi 0, %s206
    %s223 = sphi 0, %s207
  $region4: #{dappm_forward.6} parent=0 // loop_header_branch
    %18 = sbr.rel (%p16) target = $region8
  $region5: #{dappm_forward.6} parent=0 // loop_body
    %s20 = ssub.s32 %s15, 1
    %s21 = ssub.s32 %s15, 2
    %s22 = sadd.s32 %s15, 1
    %s23 = ssub.s32 %s15, %s22
    %p24 = scmp.eq.s32.totalorder %s23, 0
    %s26 = sadd.s32 %s25, 1
    %s27 = scalar_select %p24, %s25, %s26
    %p30 = pneg %p24
    %p31 = scmp.eq.s32.totalorder %s15, 1
    %p32 = por %p30, %p31
    %p33 = scmp.ne.s32.totalorder %s25, %s28
    %p34 = scmp.eq.s32.totalorder %s15, 0
    %p35 = por %p33, %p34
    %p36 = scmp.ne.s32.totalorder %s25, %s28
    %p37 = scmp.eq.s32.totalorder %s20, 1
    %p38 = por %p36, %p37
    %p39 = scmp.ne.s32.totalorder %s28, %s29
    %p40 = scmp.eq.s32.totalorder %s20, 0
    %p41 = por %p39, %p40
    %p42 = scmp.ne.s32.totalorder %s28, %s29
    %p43 = scmp.eq.s32.totalorder %s21, 1
    %p44 = por %p42, %p43
    %p46 = scmp.ne.s32.totalorder %s29, %s45
    %p47 = scmp.eq.s32.totalorder %s21, 0
    %p48 = por %p46, %p47
    %s50 = sadd.s32 %s49, 1
    %p53 = scmp.eq.s32.totalorder %s15, 1
    %p54 = scmp.ne.s32.totalorder %s49, %s51
    %p55 = scmp.eq.s32.totalorder %s15, 0
    %p56 = por %p54, %p55
    %p57 = scmp.ne.s32.totalorder %s49, %s51
    %p58 = scmp.eq.s32.totalorder %s20, 1
    %p59 = por %p57, %p58
    %p60 = scmp.ne.s32.totalorder %s51, %s52
    %p61 = scmp.eq.s32.totalorder %s20, 0
    %p62 = por %p60, %p61
    %p63 = scmp.ne.s32.totalorder %s51, %s52
    %p64 = scmp.eq.s32.totalorder %s21, 1
    %p65 = por %p63, %p64
    %p67 = scmp.ne.s32.totalorder %s52, %s66
    %p68 = scmp.eq.s32.totalorder %s21, 0
    %p69 = por %p67, %p68
    %s71 = sadd.s32 %s70, 1
    %p74 = scmp.eq.s32.totalorder %s15, 1
    %p75 = scmp.ne.s32.totalorder %s70, %s72
    %p76 = scmp.eq.s32.totalorder %s15, 0
    %p77 = por %p75, %p76
    %p78 = scmp.ne.s32.totalorder %s70, %s72
    %p79 = scmp.eq.s32.totalorder %s20, 1
    %p80 = por %p78, %p79
    %p81 = scmp.ne.s32.totalorder %s72, %s73
    %p82 = scmp.eq.s32.totalorder %s20, 0
    %p83 = por %p81, %p82
    %p84 = scmp.ne.s32.totalorder %s72, %s73
    %p85 = scmp.eq.s32.totalorder %s21, 1
    %p86 = por %p84, %p85
    %p88 = scmp.ne.s32.totalorder %s73, %s87
    %p89 = scmp.eq.s32.totalorder %s21, 0
    %p90 = por %p88, %p89
    %s92 = sadd.s32 %s91, 1
    %p95 = scmp.eq.s32.totalorder %s15, 1
    %p96 = scmp.ne.s32.totalorder %s91, %s93
    %p97 = scmp.eq.s32.totalorder %s15, 0
    %p98 = por %p96, %p97
    %p99 = scmp.ne.s32.totalorder %s91, %s93
    %p100 = scmp.eq.s32.totalorder %s20, 1
    %p101 = por %p99, %p100
    %p102 = scmp.ne.s32.totalorder %s93, %s94
    %p103 = scmp.eq.s32.totalorder %s20, 0
    %p104 = por %p102, %p103
    %p105 = scmp.ne.s32.totalorder %s93, %s94
    %p106 = scmp.eq.s32.totalorder %s21, 1
    %p107 = por %p105, %p106
    %p109 = scmp.ne.s32.totalorder %s94, %s108
    %p110 = scmp.eq.s32.totalorder %s21, 0
    %p111 = por %p109, %p110
    %s113 = sadd.s32 %s112, 1
    %p116 = scmp.eq.s32.totalorder %s15, 1
    %p117 = scmp.ne.s32.totalorder %s112, %s114
    %p118 = scmp.eq.s32.totalorder %s15, 0
    %p119 = por %p117, %p118
    %p120 = scmp.ne.s32.totalorder %s112, %s114
    %p121 = scmp.eq.s32.totalorder %s20, 1
    %p122 = por %p120, %p121
    %p123 = scmp.ne.s32.totalorder %s114, %s115
    %p124 = scmp.eq.s32.totalorder %s20, 0
    %p125 = por %p123, %p124
    %p126 = scmp.ne.s32.totalorder %s114, %s115
    %p127 = scmp.eq.s32.totalorder %s21, 1
    %p128 = por %p126, %p127
    %p130 = scmp.ne.s32.totalorder %s115, %s129
    %p131 = scmp.eq.s32.totalorder %s21, 0
    %p132 = por %p130, %p131
    %s134 = sadd.s32 %s133, 1
    %p137 = scmp.eq.s32.totalorder %s15, 1
    %p138 = scmp.ne.s32.totalorder %s133, %s135
    %p139 = scmp.eq.s32.totalorder %s15, 0
    %p140 = por %p138, %p139
    %p141 = scmp.ne.s32.totalorder %s133, %s135
    %p142 = scmp.eq.s32.totalorder %s20, 1
    %p143 = por %p141, %p142
    %p144 = scmp.ne.s32.totalorder %s135, %s136
    %p145 = scmp.eq.s32.totalorder %s20, 0
    %p146 = por %p144, %p145
    %p147 = scmp.ne.s32.totalorder %s135, %s136
    %p148 = scmp.eq.s32.totalorder %s21, 1
    %p149 = por %p147, %p148
    %p151 = scmp.ne.s32.totalorder %s136, %s150
    %p152 = scmp.eq.s32.totalorder %s21, 0
    %p153 = por %p151, %p152
    %s155 = sadd.s32 %s154, 1
    %p158 = scmp.eq.s32.totalorder %s15, 1
    %p159 = scmp.ne.s32.totalorder %s154, %s156
    %p160 = scmp.eq.s32.totalorder %s15, 0
    %p161 = por %p159, %p160
    %p162 = scmp.ne.s32.totalorder %s154, %s156
    %p163 = scmp.eq.s32.totalorder %s20, 1
    %p164 = por %p162, %p163
    %p165 = scmp.ne.s32.totalorder %s156, %s157
    %p166 = scmp.eq.s32.totalorder %s20, 0
    %p167 = por %p165, %p166
    %p168 = scmp.ne.s32.totalorder %s156, %s157
    %p169 = scmp.eq.s32.totalorder %s21, 1
    %p170 = por %p168, %p169
    %p172 = scmp.ne.s32.totalorder %s157, %s171
    %p173 = scmp.eq.s32.totalorder %s21, 0
    %p174 = por %p172, %p173
    %s175 = ssub.s32 %s15, %s22
    %p176 = scmp.eq.s32.totalorder %s175, 0
    %s178 = sadd.s32 %s177, 1
    %s179 = scalar_select %p176, %s177, %s178
    %p182 = pneg %p176
    %p183 = scmp.eq.s32.totalorder %s15, 1
    %p184 = por %p182, %p183
    %p185 = scmp.ne.s32.totalorder %s177, %s180
    %p186 = scmp.eq.s32.totalorder %s15, 0
    %p187 = por %p185, %p186
    %p188 = scmp.ne.s32.totalorder %s177, %s180
    %p189 = scmp.eq.s32.totalorder %s20, 1
    %p190 = por %p188, %p189
    %p191 = scmp.ne.s32.totalorder %s180, %s181
    %p192 = scmp.eq.s32.totalorder %s20, 0
    %p193 = por %p191, %p192
    %p194 = scmp.ne.s32.totalorder %s180, %s181
    %p195 = scmp.eq.s32.totalorder %s21, 1
    %p196 = por %p194, %p195
    %p198 = scmp.ne.s32.totalorder %s181, %s197
    %p199 = scmp.eq.s32.totalorder %s21, 0
    %p200 = por %p198, %p199
    %s201 = ssub.s32 %s15, %s22
    %p202 = scmp.eq.s32.totalorder %s201, 0
    %s204 = sadd.s32 %s203, 1
    %s205 = scalar_select %p202, %s203, %s204
    %p208 = pneg %p202
    %p209 = scmp.eq.s32.totalorder %s15, 1
    %p210 = por %p208, %p209
    %p211 = scmp.ne.s32.totalorder %s203, %s206
    %p212 = scmp.eq.s32.totalorder %s15, 0
    %p213 = por %p211, %p212
    %p214 = scmp.ne.s32.totalorder %s203, %s206
    %p215 = scmp.eq.s32.totalorder %s20, 1
    %p216 = por %p214, %p215
    %p217 = scmp.ne.s32.totalorder %s206, %s207
    %p218 = scmp.eq.s32.totalorder %s20, 0
    %p219 = por %p217, %p218
    %p220 = scmp.ne.s32.totalorder %s206, %s207
    %p221 = scmp.eq.s32.totalorder %s21, 1
    %p222 = por %p220, %p221
    %p224 = scmp.ne.s32.totalorder %s207, %s223
    %p225 = scmp.eq.s32.totalorder %s21, 0
    %p226 = por %p224, %p225
    %p227 = scmp.le.s32.totalorder 1, %s15
    %p228 = scmp.lt.s32.totalorder %s15, 3
    %p229 = pnand %p227, %p228
    %p230 = pneg %p229
    // Predicated region
    $region9: #{dappm_forward.6} parent=5 // pred_check
      _
    $region10: #{dappm_forward.6} parent=5 // pred_check_branch
      %232 = sbr.rel (%p229) target = $region12
    $region11: #{dappm_forward.6} parent=5 // pred_region
      %s233 = ssub.s32 %s15, 1
      // Predicated region
      $region13: #{dappm_forward.6} parent=11 // pred_check
        %p234 = pneg %p62
      $region14: #{dappm_forward.6} parent=11 // pred_check_branch
        %236 = sbr.rel (%p234) target = $region16
      $region15: #{dappm_forward.6} parent=11 // pred_region
        _
      $region16: #{dappm_forward.6} parent=11 // pred_fallthru
        _
      // Predicated region
      $region17: #{dappm_forward.6} parent=11 // pred_check
        %p237 = pneg %p83
      $region18: #{dappm_forward.6} parent=11 // pred_check_branch
        %239 = sbr.rel (%p237) target = $region20
      $region19: #{dappm_forward.6} parent=11 // pred_region
        _
      $region20: #{dappm_forward.6} parent=11 // pred_fallthru
        _
      // Predicated region
      $region21: #{dappm_forward.6} parent=11 // pred_check
        %p240 = pneg %p104
      $region22: #{dappm_forward.6} parent=11 // pred_check_branch
        %242 = sbr.rel (%p240) target = $region24
      $region23: #{dappm_forward.6} parent=11 // pred_region
        _
      $region24: #{dappm_forward.6} parent=11 // pred_fallthru
        _
      // Predicated region
      $region25: #{dappm_forward.6} parent=11 // pred_check
        %p243 = pneg %p125
      $region26: #{dappm_forward.6} parent=11 // pred_check_branch
        %245 = sbr.rel (%p243) target = $region28
      $region27: #{dappm_forward.6} parent=11 // pred_region
        _
      $region28: #{dappm_forward.6} parent=11 // pred_fallthru
        _
      // Predicated region
      $region29: #{dappm_forward.6} parent=11 // pred_check
        %p246 = pneg %p146
      $region30: #{dappm_forward.6} parent=11 // pred_check_branch
        %248 = sbr.rel (%p246) target = $region32
      $region31: #{dappm_forward.6} parent=11 // pred_region
        _
      $region32: #{dappm_forward.6} parent=11 // pred_fallthru
        _
      // Predicated region
      $region33: #{dappm_forward.6} parent=11 // pred_check
        %p249 = pneg %p167
      $region34: #{dappm_forward.6} parent=11 // pred_check_branch
        %251 = sbr.rel (%p249) target = $region36
      $region35: #{dappm_forward.6} parent=11 // pred_region
        _
      $region36: #{dappm_forward.6} parent=11 // pred_fallthru
        _
    $region12: #{dappm_forward.6} parent=5 // pred_fallthru
      _
    %p252 = scmp.lt.s32.totalorder %s15, 2
    // Predicated region
    $region37: #{dappm_forward.6} parent=5 // pred_check
      %p253 = pneg %p252
    $region38: #{dappm_forward.6} parent=5 // pred_check_branch
      %255 = sbr.rel (%p253) target = $region40
    $region39: #{dappm_forward.6} parent=5 // pred_region
      // Predicated region
      $region41: #{dappm_forward.6} parent=39 // pred_check
        %p256 = pneg %p35
      $region42: #{dappm_forward.6} parent=39 // pred_check_branch
        %258 = sbr.rel (%p256) target = $region44
      $region43: #{dappm_forward.6} parent=39 // pred_region
        %p259 = scmp.lt.s32.totalorder %s15, 1
        %s260 = scalar_select %p259, %s15, 1
        %s261 = smul.addr %s260, 41
        %s262 = smul.addr %s261, 4
        %s263 = scalar_lea.vmem %s0, %s262
      $region44: #{dappm_forward.6} parent=39 // pred_fallthru
        _
    $region40: #{dappm_forward.6} parent=5 // pred_fallthru
      _
    %p264 = scmp.le.s32.totalorder 1, %s15
    %p265 = scmp.lt.s32.totalorder %s15, 3
    %p266 = pnand %p264, %p265
    %p267 = pneg %p266
    // Predicated region
    $region45: #{dappm_forward.6} parent=5 // pred_check
      _
    $region46: #{dappm_forward.6} parent=5 // pred_check_branch
      %269 = sbr.rel (%p266) target = $region48
    $region47: #{dappm_forward.6} parent=5 // pred_region
      %s270 = ssub.s32 %s15, 1
      %p271 = scmp.lt.s32.totalorder %s20, 1
      %s272 = scalar_select %p271, %s20, 1
      %s273 = smul.addr %s272, 41
      %s274 = smul.addr %s273, 4
      %s275 = scalar_lea.vmem %s0, %s274
      %p276 = pneg %p41
      %p277 = pneg %p38
      %p278 = pneg %p62
      %p279 = pneg %p59
      %p280 = pneg %p83
      %p281 = pneg %p80
      %p282 = pneg %p104
      %p283 = pneg %p101
      %p284 = pneg %p125
      %p285 = pneg %p122
      %p286 = pneg %p146
      %p287 = pneg %p143
      %p288 = pneg %p167
      %p289 = pneg %p164
      %p290 = pneg %p193
      %p291 = pneg %p190
      %p292 = scmp.lt.s32.totalorder %s20, 1
      %s293 = scalar_select %p292, %s20, 1
      %s294 = smul.addr %s293, 41
      %s295 = smul.addr %s294, 4
      %s296 = scalar_lea.vmem %s7, %s295
      %p297 = pneg %p219
      %p298 = pneg %p216
      %p299 = scmp.lt.s32.totalorder %s20, 1
      %s300 = scalar_select %p299, %s20, 1
      %s301 = smul.addr %s300, 41
      %s302 = smul.addr %s301, 4
      %s303 = scalar_lea.vmem %s8, %s302
      %p304 = scmp.lt.s32.totalorder %s20, 1
      %s305 = scalar_select %p304, %s20, 1
      %s306 = smul.addr %s305, 41
      %s307 = smul.addr %s306, 4
      %s308 = scalar_lea.vmem %s0, %s307
      %p309 = scmp.lt.s32.totalorder %s20, 1
      %s310 = scalar_select %p309, %s20, 1
      %s311 = smul.addr %s310, 41
      %s312 = smul.addr %s311, 4
      %s313 = scalar_lea.vmem %s7, %s312
      %p314 = scmp.lt.s32.totalorder %s20, 1
      %s315 = scalar_select %p314, %s20, 1
      %s316 = smul.addr %s315, 41
      %s317 = smul.addr %s316, 4
      %s318 = scalar_lea.vmem %s8, %s317
      %v319 = vld [vmem:[%s308] sm:$0xf]
      %v320 = vld [vmem:[%s308 + $0x4] sm:$0xf]
      %v321 = vld [vmem:[%s308 + $0x8] sm:$0xf]
      %v322 = vld [vmem:[%s308 + $0xc] sm:$0xf]
      %v323 = vld [vmem:[%s308 + $0x10] sm:$0xf]
      %v324 = vld [vmem:[%s308 + $0x14] sm:$0xf]
      %v325 = vld [vmem:[%s308 + $0x18] sm:$0xf]
      %v326 = vld [vmem:[%s308 + $0x1c] sm:$0xf]
      %v327 = vld [vmem:[%s308 + $0x20] sm:$0xf]
      %v328 = vld [vmem:[%s308 + $0x24] sm:$0xf]
      %v329 = vld [vmem:[%s308 + $0x28] sm:$0xf]
      %v330 = vld [vmem:[%s308 + $0x2c] sm:$0xf]
      %v331 = vld [vmem:[%s308 + $0x30] sm:$0xf]
      %v332 = vld [vmem:[%s308 + $0x34] sm:$0xf]
      %v333 = vld [vmem:[%s308 + $0x38] sm:$0xf]
      %v334 = vld [vmem:[%s308 + $0x3c] sm:$0xf]
      %v335 = vld [vmem:[%s308 + $0x40] sm:$0xf]
      %v336 = vld [vmem:[%s308 + $0x44] sm:$0xf]
      %v337 = vld [vmem:[%s308 + $0x48] sm:$0xf]
      %v338 = vld [vmem:[%s308 + $0x4c] sm:$0xf]
      %v339 = vld [vmem:[%s308 + $0x50] sm:$0xf]
      %v340 = vld [vmem:[%s308 + $0x54] sm:$0xf]
      %v341 = vld [vmem:[%s308 + $0x58] sm:$0xf]
      %v342 = vld [vmem:[%s308 + $0x5c] sm:$0xf]
      %v343 = vld [vmem:[%s308 + $0x60] sm:$0xf]
      %v344 = vld [vmem:[%s308 + $0x64] sm:$0xf]
      %v345 = vld [vmem:[%s308 + $0x68] sm:$0xf]
      %v346 = vld [vmem:[%s308 + $0x6c] sm:$0xf]
      %v347 = vld [vmem:[%s308 + $0x70] sm:$0xf]
      %v348 = vld [vmem:[%s308 + $0x74] sm:$0xf]
      %v349 = vld [vmem:[%s308 + $0x78] sm:$0xf]
      %v350 = vld [vmem:[%s308 + $0x7c] sm:$0xf]
      %v351 = vld [vmem:[%s308 + $0x80] sm:$0xf]
      %v352 = vld [vmem:[%s308 + $0x84] sm:$0xf]
      %v353 = vld [vmem:[%s308 + $0x88] sm:$0xf]
      %v354 = vld [vmem:[%s308 + $0x8c] sm:$0xf]
      %v355 = vld [vmem:[%s308 + $0x90] sm:$0xf]
      %v356 = vld [vmem:[%s308 + $0x94] sm:$0xf]
      %v357 = vld [vmem:[%s308 + $0x98] sm:$0xf]
      %v358 = vld [vmem:[%s308 + $0x9c] sm:$0xf]
      %v359 = vld [vmem:[%s308 + $0xa0] sm:$0xf]
      %v360 = vunpack.c.l.bf16 %v319
      %v361 = vunpack.c.l.bf16 %v320
      %v362 = vunpack.c.l.bf16 %v321
      %v363 = vunpack.c.l.bf16 %v322
      %v364 = vunpack.c.l.bf16 %v323
      %v365 = vunpack.c.l.bf16 %v324
      %v366 = vunpack.c.l.bf16 %v325
      %v367 = vunpack.c.l.bf16 %v326
      %v368 = vunpack.c.l.bf16 %v327
      %v369 = vunpack.c.l.bf16 %v328
      %v370 = vunpack.c.l.bf16 %v329
      %v371 = vunpack.c.l.bf16 %v330
      %v372 = vunpack.c.l.bf16 %v331
      %v373 = vunpack.c.l.bf16 %v332
      %v374 = vunpack.c.l.bf16 %v333
      %v375 = vunpack.c.l.bf16 %v334
      %v376 = vunpack.c.l.bf16 %v335
      %v377 = vunpack.c.l.bf16 %v336
      %v378 = vunpack.c.l.bf16 %v337
      %v379 = vunpack.c.l.bf16 %v338
      %v380 = vunpack.c.l.bf16 %v339
      %v381 = vunpack.c.l.bf16 %v340
      %v382 = vunpack.c.l.bf16 %v341
      %v383 = vunpack.c.l.bf16 %v342
      %v384 = vunpack.c.l.bf16 %v343
      %v385 = vunpack.c.l.bf16 %v344
      %v386 = vunpack.c.l.bf16 %v345
      %v387 = vunpack.c.l.bf16 %v346
      %v388 = vunpack.c.l.bf16 %v347
      %v389 = vunpack.c.l.bf16 %v348
      %v390 = vunpack.c.l.bf16 %v349
      %v391 = vunpack.c.l.bf16 %v350
      %v392 = vunpack.c.l.bf16 %v351
      %v393 = vunpack.c.l.bf16 %v352
      %v394 = vunpack.c.l.bf16 %v353
      %v395 = vunpack.c.l.bf16 %v354
      %v396 = vunpack.c.l.bf16 %v355
      %v397 = vunpack.c.l.bf16 %v356
      %v398 = vunpack.c.l.bf16 %v357
      %v399 = vunpack.c.l.bf16 %v358
      %v400 = vunpack.c.l.bf16 %v359
      %v401 = vld [vmem:[%s1] sm:$0x1]
      %v403 = vperm.slane %v401, 0
      %v405 = vmul.f32 %v360, %v403
      %v406 = vmul.f32 %v361, %v403
      %v407 = vmul.f32 %v362, %v403
      %v408 = vmul.f32 %v363, %v403
      %v409 = vmul.f32 %v364, %v403
      %v410 = vmul.f32 %v365, %v403
      %v411 = vmul.f32 %v366, %v403
      %v412 = vmul.f32 %v367, %v403
      %v413 = vmul.f32 %v368, %v403
      %v414 = vmul.f32 %v369, %v403
      %v415 = vmul.f32 %v370, %v403
      %v416 = vmul.f32 %v371, %v403
      %v417 = vmul.f32 %v372, %v403
      %v418 = vmul.f32 %v373, %v403
      %v419 = vmul.f32 %v374, %v403
      %v420 = vmul.f32 %v375, %v403
      %v421 = vmul.f32 %v376, %v403
      %v422 = vmul.f32 %v377, %v403
      %v423 = vmul.f32 %v378, %v403
      %v424 = vmul.f32 %v379, %v403
      %v425 = vmul.f32 %v380, %v403
      %v426 = vmul.f32 %v381, %v403
      %v427 = vmul.f32 %v382, %v403
      %v428 = vmul.f32 %v383, %v403
      %v429 = vmul.f32 %v384, %v403
      %v430 = vmul.f32 %v385, %v403
      %v431 = vmul.f32 %v386, %v403
      %v432 = vmul.f32 %v387, %v403
      %v433 = vmul.f32 %v388, %v403
      %v434 = vmul.f32 %v389, %v403
      %v435 = vmul.f32 %v390, %v403
      %v436 = vmul.f32 %v391, %v403
      %v437 = vmul.f32 %v392, %v403
      %v438 = vmul.f32 %v393, %v403
      %v439 = vmul.f32 %v394, %v403
      %v440 = vmul.f32 %v395, %v403
      %v441 = vmul.f32 %v396, %v403
      %v442 = vmul.f32 %v397, %v403
      %v443 = vmul.f32 %v398, %v403
      %v444 = vmul.f32 %v399, %v403
      %v445 = vmul.f32 %v400, %v403
      %v446 = vld [vmem:[%s2] sm:$0x1]
      %v448 = vperm.slane %v446, 0
      %v450 = vadd.f32 %v405, %v448
      %v451 = vadd.f32 %v406, %v448
      %v452 = vadd.f32 %v407, %v448
      %v453 = vadd.f32 %v408, %v448
      %v454 = vadd.f32 %v409, %v448
      %v455 = vadd.f32 %v410, %v448
      %v456 = vadd.f32 %v411, %v448
      %v457 = vadd.f32 %v412, %v448
      %v458 = vadd.f32 %v413, %v448
      %v459 = vadd.f32 %v414, %v448
      %v460 = vadd.f32 %v415, %v448
      %v461 = vadd.f32 %v416, %v448
      %v462 = vadd.f32 %v417, %v448
      %v463 = vadd.f32 %v418, %v448
      %v464 = vadd.f32 %v419, %v448
      %v465 = vadd.f32 %v420, %v448
      %v466 = vadd.f32 %v421, %v448
      %v467 = vadd.f32 %v422, %v448
      %v468 = vadd.f32 %v423, %v448
      %v469 = vadd.f32 %v424, %v448
      %v470 = vadd.f32 %v425, %v448
      %v471 = vadd.f32 %v426, %v448
      %v472 = vadd.f32 %v427, %v448
      %v473 = vadd.f32 %v428, %v448
      %v474 = vadd.f32 %v429, %v448
      %v475 = vadd.f32 %v430, %v448
      %v476 = vadd.f32 %v431, %v448
      %v477 = vadd.f32 %v432, %v448
      %v478 = vadd.f32 %v433, %v448
      %v479 = vadd.f32 %v434, %v448
      %v480 = vadd.f32 %v435, %v448
      %v481 = vadd.f32 %v436, %v448
      %v482 = vadd.f32 %v437, %v448
      %v483 = vadd.f32 %v438, %v448
      %v484 = vadd.f32 %v439, %v448
      %v485 = vadd.f32 %v440, %v448
      %v486 = vadd.f32 %v441, %v448
      %v487 = vadd.f32 %v442, %v448
      %v488 = vadd.f32 %v443, %v448
      %v489 = vadd.f32 %v444, %v448
      %v490 = vadd.f32 %v445, %v448
      %v491 = vmax.f32 %v450, 0.0
      %v492 = vmax.f32 %v451, 0.0
      %v493 = vmax.f32 %v452, 0.0
      %v494 = vmax.f32 %v453, 0.0
      %v495 = vmax.f32 %v454, 0.0
      %v496 = vmax.f32 %v455, 0.0
      %v497 = vmax.f32 %v456, 0.0
      %v498 = vmax.f32 %v457, 0.0
      %v499 = vmax.f32 %v458, 0.0
      %v500 = vmax.f32 %v459, 0.0
      %v501 = vmax.f32 %v460, 0.0
      %v502 = vmax.f32 %v461, 0.0
      %v503 = vmax.f32 %v462, 0.0
      %v504 = vmax.f32 %v463, 0.0
      %v505 = vmax.f32 %v464, 0.0
      %v506 = vmax.f32 %v465, 0.0
      %v507 = vmax.f32 %v466, 0.0
      %v508 = vmax.f32 %v467, 0.0
      %v509 = vmax.f32 %v468, 0.0
      %v510 = vmax.f32 %v469, 0.0
      %v511 = vmax.f32 %v470, 0.0
      %v512 = vmax.f32 %v471, 0.0
      %v513 = vmax.f32 %v472, 0.0
      %v514 = vmax.f32 %v473, 0.0
      %v515 = vmax.f32 %v474, 0.0
      %v516 = vmax.f32 %v475, 0.0
      %v517 = vmax.f32 %v476, 0.0
      %v518 = vmax.f32 %v477, 0.0
      %v519 = vmax.f32 %v478, 0.0
      %v520 = vmax.f32 %v479, 0.0
      %v521 = vmax.f32 %v480, 0.0
      %v522 = vmax.f32 %v481, 0.0
      %v523 = vmax.f32 %v482, 0.0
      %v524 = vmax.f32 %v483, 0.0
      %v525 = vmax.f32 %v484, 0.0
      %v526 = vmax.f32 %v485, 0.0
      %v527 = vmax.f32 %v486, 0.0
      %v528 = vmax.f32 %v487, 0.0
      %v529 = vmax.f32 %v488, 0.0
      %v530 = vmax.f32 %v489, 0.0
      %v531 = vmax.f32 %v490, 0.0
      %v532 = vpack.c.bf16 %v492, %v491
      %v533 = vpack.c.bf16 %v494, %v493
      %v534 = vpack.c.bf16 %v496, %v495
      %v535 = vpack.c.bf16 %v498, %v497
      %v536 = vpack.c.bf16 %v500, %v499
      %v537 = vpack.c.bf16 %v502, %v501
      %v538 = vpack.c.bf16 %v504, %v503
      %v539 = vpack.c.bf16 %v506, %v505
      %v540 = vpack.c.bf16 %v508, %v507
      %v541 = vpack.c.bf16 %v510, %v509
      %v542 = vpack.c.bf16 %v512, %v511
      %v543 = vpack.c.bf16 %v514, %v513
      %v544 = vpack.c.bf16 %v516, %v515
      %v545 = vpack.c.bf16 %v518, %v517
      %v546 = vpack.c.bf16 %v520, %v519
      %v547 = vpack.c.bf16 %v522, %v521
      %v548 = vpack.c.bf16 %v524, %v523
      %v549 = vpack.c.bf16 %v526, %v525
      %v550 = vpack.c.bf16 %v528, %v527
      %v551 = vpack.c.bf16 %v530, %v529
      %v552 = vpack.c.bf16 %v531, %v531
      %v553 = vld [vmem:[%s5] sm:$0xf]
      %v554 = vld [vmem:[%s5 + $0x4] sm:$0xf]
      %v555 = vld [vmem:[%s5 + $0x8] sm:$0xf]
      %v556 = vld [vmem:[%s5 + $0xc] sm:$0xf]
      %v557 = vld [vmem:[%s5 + $0x10] sm:$0xf]
      %v558 = vld [vmem:[%s5 + $0x14] sm:$0xf]
      %v559 = vld [vmem:[%s5 + $0x18] sm:$0xf]
      %v560 = vld [vmem:[%s5 + $0x1c] sm:$0xf]
      %v561 = vld [vmem:[%s5 + $0x20] sm:$0xf]
      %v562 = vld [vmem:[%s5 + $0x24] sm:$0xf]
      %v563 = vld [vmem:[%s5 + $0x28] sm:$0xf]
      %v564 = vld [vmem:[%s5 + $0x2c] sm:$0xf]
      %v565 = vld [vmem:[%s5 + $0x30] sm:$0xf]
      %v566 = vld [vmem:[%s5 + $0x34] sm:$0xf]
      %v567 = vld [vmem:[%s5 + $0x38] sm:$0xf]
      %v568 = vld [vmem:[%s5 + $0x3c] sm:$0xf]
      %v585 = vunpack.c.l.b16 %v553
      %v586 = vunpack.c.l.b16 %v554
      %v587 = vunpack.c.l.b16 %v555
      %v588 = vunpack.c.l.b16 %v556
      %v589 = vunpack.c.l.b16 %v557
      %v590 = vunpack.c.l.b16 %v558
      %v591 = vunpack.c.l.b16 %v559
      %v592 = vunpack.c.l.b16 %v560
      %v593 = vunpack.c.l.b16 %v561
      %v594 = vunpack.c.l.b16 %v562
      %v595 = vunpack.c.l.b16 %v563
      %v596 = vunpack.c.l.b16 %v564
      %v597 = vunpack.c.l.b16 %v565
      %v598 = vunpack.c.l.b16 %v566
      %v599 = vunpack.c.l.b16 %v567
      %v600 = vunpack.c.l.b16 %v568
      %v601 = vpack.c.b16 %v586, %v585
      %v602 = vpack.c.b16 %v588, %v587
      %v603 = vpack.c.b16 %v590, %v589
      %v604 = vpack.c.b16 %v592, %v591
      %v605 = vpack.c.b16 %v594, %v593
      %v606 = vpack.c.b16 %v596, %v595
      %v607 = vpack.c.b16 %v598, %v597
      %v608 = vpack.c.b16 %v600, %v599
      %617 = vmatpush.bf16.msra.mxu0 %v608
      %618 = vmatpush.bf16.msra.mxu0 %v607
      %619 = vmatpush.bf16.msra.mxu0 %v606
      %620 = vmatpush.bf16.msra.mxu0 %v605
      %621 = vmatpush.bf16.msra.mxu0 %v604
      %622 = vmatpush.bf16.msra.mxu0 %v603
      %623 = vmatpush.bf16.msra.mxu0 %v602
      %624 = vmatpush.bf16.msra.mxu0 %v601
      %625 = vmatmul.bf16.gmra.mxu0 %v532
      %v626 = vpop.f32.mrf.mxu0
      %v627 = vadd.f32 0.0, %v626
      %v628 = vpop.f32.mrf.mxu0
      %v629 = vadd.f32 0.0, %v628
      %630 = vmatmul.bf16.gmra.mxu0 %v533
      %v631 = vpop.f32.mrf.mxu0
      %v632 = vadd.f32 0.0, %v631
      %v633 = vpop.f32.mrf.mxu0
      %v634 = vadd.f32 0.0, %v633
      %635 = vmatmul.bf16.gmra.mxu0 %v534
      %v636 = vpop.f32.mrf.mxu0
      %v637 = vadd.f32 0.0, %v636
      %v638 = vpop.f32.mrf.mxu0
      %v639 = vadd.f32 0.0, %v638
      %640 = vmatmul.bf16.gmra.mxu0 %v535
      %v641 = vpop.f32.mrf.mxu0
      %v642 = vadd.f32 0.0, %v641
      %v643 = vpop.f32.mrf.mxu0
      %v644 = vadd.f32 0.0, %v643
      %645 = vmatmul.bf16.gmra.mxu0 %v536
      %v646 = vpop.f32.mrf.mxu0
      %v647 = vadd.f32 0.0, %v646
      %v648 = vpop.f32.mrf.mxu0
      %v649 = vadd.f32 0.0, %v648
      %650 = vmatmul.bf16.gmra.mxu0 %v537
      %v651 = vpop.f32.mrf.mxu0
      %v652 = vadd.f32 0.0, %v651
      %v653 = vpop.f32.mrf.mxu0
      %v654 = vadd.f32 0.0, %v653
      %655 = vmatmul.bf16.gmra.mxu0 %v538
      %v656 = vpop.f32.mrf.mxu0
      %v657 = vadd.f32 0.0, %v656
      %v658 = vpop.f32.mrf.mxu0
      %v659 = vadd.f32 0.0, %v658
      %660 = vmatmul.bf16.gmra.mxu0 %v539
      %v661 = vpop.f32.mrf.mxu0
      %v662 = vadd.f32 0.0, %v661
      %v663 = vpop.f32.mrf.mxu0
      %v664 = vadd.f32 0.0, %v663
      %665 = vmatmul.bf16.gmra.mxu0 %v540
      %v666 = vpop.f32.mrf.mxu0
      %v667 = vadd.f32 0.0, %v666
      %v668 = vpop.f32.mrf.mxu0
      %v669 = vadd.f32 0.0, %v668
      %670 = vmatmul.bf16.gmra.mxu0 %v541
      %v671 = vpop.f32.mrf.mxu0
      %v672 = vadd.f32 0.0, %v671
      %v673 = vpop.f32.mrf.mxu0
      %v674 = vadd.f32 0.0, %v673
      %675 = vmatmul.bf16.gmra.mxu0 %v542
      %v676 = vpop.f32.mrf.mxu0
      %v677 = vadd.f32 0.0, %v676
      %v678 = vpop.f32.mrf.mxu0
      %v679 = vadd.f32 0.0, %v678
      %680 = vmatmul.bf16.gmra.mxu0 %v543
      %v681 = vpop.f32.mrf.mxu0
      %v682 = vadd.f32 0.0, %v681
      %v683 = vpop.f32.mrf.mxu0
      %v684 = vadd.f32 0.0, %v683
      %685 = vmatmul.bf16.gmra.mxu0 %v544
      %v686 = vpop.f32.mrf.mxu0
      %v687 = vadd.f32 0.0, %v686
      %v688 = vpop.f32.mrf.mxu0
      %v689 = vadd.f32 0.0, %v688
      %690 = vmatmul.bf16.gmra.mxu0 %v545
      %v691 = vpop.f32.mrf.mxu0
      %v692 = vadd.f32 0.0, %v691
      %v693 = vpop.f32.mrf.mxu0
      %v694 = vadd.f32 0.0, %v693
      %695 = vmatmul.bf16.gmra.mxu0 %v546
      %v696 = vpop.f32.mrf.mxu0
      %v697 = vadd.f32 0.0, %v696
      %v698 = vpop.f32.mrf.mxu0
      %v699 = vadd.f32 0.0, %v698
      %700 = vmatmul.bf16.gmra.mxu0 %v547
      %v701 = vpop.f32.mrf.mxu0
      %v702 = vadd.f32 0.0, %v701
      %v703 = vpop.f32.mrf.mxu0
      %v704 = vadd.f32 0.0, %v703
      %705 = vmatmul.bf16.gmra.mxu0 %v548
      %v706 = vpop.f32.mrf.mxu0
      %v707 = vadd.f32 0.0, %v706
      %v708 = vpop.f32.mrf.mxu0
      %v709 = vadd.f32 0.0, %v708
      %710 = vmatmul.bf16.gmra.mxu0 %v549
      %v711 = vpop.f32.mrf.mxu0
      %v712 = vadd.f32 0.0, %v711
      %v713 = vpop.f32.mrf.mxu0
      %v714 = vadd.f32 0.0, %v713
      %715 = vmatmul.bf16.gmra.mxu0 %v550
      %v716 = vpop.f32.mrf.mxu0
      %v717 = vadd.f32 0.0, %v716
      %v718 = vpop.f32.mrf.mxu0
      %v719 = vadd.f32 0.0, %v718
      %720 = vmatmul.bf16.gmra.mxu0 %v551
      %v721 = vpop.f32.mrf.mxu0
      %v722 = vadd.f32 0.0, %v721
      %v723 = vpop.f32.mrf.mxu0
      %v724 = vadd.f32 0.0, %v723
      %725 = vmatmul.bf16.gmra.mxu0 %v552
      %v726 = vpop.f32.mrf.mxu0
      %v727 = vadd.f32 0.0, %v726
      %v728 = vpop.f32.mrf.mxu0
      %729 = vdwg.mxu0
      %v730 = vpack.c.bf16 %v627, %v627
      %v731 = vpack.c.bf16 %v629, %v629
      %v732 = vpack.c.bf16 %v632, %v632
      %v733 = vpack.c.bf16 %v634, %v634
      %v734 = vpack.c.bf16 %v637, %v637
      %v735 = vpack.c.bf16 %v639, %v639
      %v736 = vpack.c.bf16 %v642, %v642
      %v737 = vpack.c.bf16 %v644, %v644
      %v738 = vpack.c.bf16 %v647, %v647
      %v739 = vpack.c.bf16 %v649, %v649
      %v740 = vpack.c.bf16 %v652, %v652
      %v741 = vpack.c.bf16 %v654, %v654
      %v742 = vpack.c.bf16 %v657, %v657
      %v743 = vpack.c.bf16 %v659, %v659
      %v744 = vpack.c.bf16 %v662, %v662
      %v745 = vpack.c.bf16 %v664, %v664
      %v746 = vpack.c.bf16 %v667, %v667
      %v747 = vpack.c.bf16 %v669, %v669
      %v748 = vpack.c.bf16 %v672, %v672
      %v749 = vpack.c.bf16 %v674, %v674
      %v750 = vpack.c.bf16 %v677, %v677
      %v751 = vpack.c.bf16 %v679, %v679
      %v752 = vpack.c.bf16 %v682, %v682
      %v753 = vpack.c.bf16 %v684, %v684
      %v754 = vpack.c.bf16 %v687, %v687
      %v755 = vpack.c.bf16 %v689, %v689
      %v756 = vpack.c.bf16 %v692, %v692
      %v757 = vpack.c.bf16 %v694, %v694
      %v758 = vpack.c.bf16 %v697, %v697
      %v759 = vpack.c.bf16 %v699, %v699
      %v760 = vpack.c.bf16 %v702, %v702
      %v761 = vpack.c.bf16 %v704, %v704
      %v762 = vpack.c.bf16 %v707, %v707
      %v763 = vpack.c.bf16 %v709, %v709
      %v764 = vpack.c.bf16 %v712, %v712
      %v765 = vpack.c.bf16 %v714, %v714
      %v766 = vpack.c.bf16 %v717, %v717
      %v767 = vpack.c.bf16 %v719, %v719
      %v768 = vpack.c.bf16 %v722, %v722
      %v769 = vpack.c.bf16 %v724, %v724
      %v770 = vpack.c.bf16 %v727, %v727
      %771 = vst [vmem:[%s313] sm:$0xf] %v730
      %772 = vst [vmem:[%s313 + $0x4] sm:$0xf] %v731
      %773 = vst [vmem:[%s313 + $0x8] sm:$0xf] %v732
      %774 = vst [vmem:[%s313 + $0xc] sm:$0xf] %v733
      %775 = vst [vmem:[%s313 + $0x10] sm:$0xf] %v734
      %776 = vst [vmem:[%s313 + $0x14] sm:$0xf] %v735
      %777 = vst [vmem:[%s313 + $0x18] sm:$0xf] %v736
      %778 = vst [vmem:[%s313 + $0x1c] sm:$0xf] %v737
      %779 = vst [vmem:[%s313 + $0x20] sm:$0xf] %v738
      %780 = vst [vmem:[%s313 + $0x24] sm:$0xf] %v739
      %781 = vst [vmem:[%s313 + $0x28] sm:$0xf] %v740
      %782 = vst [vmem:[%s313 + $0x2c] sm:$0xf] %v741
      %783 = vst [vmem:[%s313 + $0x30] sm:$0xf] %v742
      %784 = vst [vmem:[%s313 + $0x34] sm:$0xf] %v743
      %785 = vst [vmem:[%s313 + $0x38] sm:$0xf] %v744
      %786 = vst [vmem:[%s313 + $0x3c] sm:$0xf] %v745
      %787 = vst [vmem:[%s313 + $0x40] sm:$0xf] %v746
      %788 = vst [vmem:[%s313 + $0x44] sm:$0xf] %v747
      %789 = vst [vmem:[%s313 + $0x48] sm:$0xf] %v748
      %790 = vst [vmem:[%s313 + $0x4c] sm:$0xf] %v749
      %791 = vst [vmem:[%s313 + $0x50] sm:$0xf] %v750
      %792 = vst [vmem:[%s313 + $0x54] sm:$0xf] %v751
      %793 = vst [vmem:[%s313 + $0x58] sm:$0xf] %v752
      %794 = vst [vmem:[%s313 + $0x5c] sm:$0xf] %v753
      %795 = vst [vmem:[%s313 + $0x60] sm:$0xf] %v754
      %796 = vst [vmem:[%s313 + $0x64] sm:$0xf] %v755
      %797 = vst [vmem:[%s313 + $0x68] sm:$0xf] %v756
      %798 = vst [vmem:[%s313 + $0x6c] sm:$0xf] %v757
      %799 = vst [vmem:[%s313 + $0x70] sm:$0xf] %v758
      %800 = vst [vmem:[%s313 + $0x74] sm:$0xf] %v759
      %801 = vst [vmem:[%s313 + $0x78] sm:$0xf] %v760
      %802 = vst [vmem:[%s313 + $0x7c] sm:$0xf] %v761
      %803 = vst [vmem:[%s313 + $0x80] sm:$0xf] %v762
      %804 = vst [vmem:[%s313 + $0x84] sm:$0xf] %v763
      %805 = vst [vmem:[%s313 + $0x88] sm:$0xf] %v764
      %806 = vst [vmem:[%s313 + $0x8c] sm:$0xf] %v765
      %807 = vst [vmem:[%s313 + $0x90] sm:$0xf] %v766
      %808 = vst [vmem:[%s313 + $0x94] sm:$0xf] %v767
      %809 = vst [vmem:[%s313 + $0x98] sm:$0xf] %v768
      %810 = vst [vmem:[%s313 + $0x9c] sm:$0xf] %v769
      %811 = vst [vmem:[%s313 + $0xa0] sm:$0xf] %v770
      %v812 = vld [vmem:[%s3] sm:$0x1]
      %v814 = vperm.slane %v812, 0
      %v816 = vmul.f32 %v360, %v814
      %v817 = vmul.f32 %v361, %v814
      %v818 = vmul.f32 %v362, %v814
      %v819 = vmul.f32 %v363, %v814
      %v820 = vmul.f32 %v364, %v814
      %v821 = vmul.f32 %v365, %v814
      %v822 = vmul.f32 %v366, %v814
      %v823 = vmul.f32 %v367, %v814
      %v824 = vmul.f32 %v368, %v814
      %v825 = vmul.f32 %v369, %v814
      %v826 = vmul.f32 %v370, %v814
      %v827 = vmul.f32 %v371, %v814
      %v828 = vmul.f32 %v372, %v814
      %v829 = vmul.f32 %v373, %v814
      %v830 = vmul.f32 %v374, %v814
      %v831 = vmul.f32 %v375, %v814
      %v832 = vmul.f32 %v376, %v814
      %v833 = vmul.f32 %v377, %v814
      %v834 = vmul.f32 %v378, %v814
      %v835 = vmul.f32 %v379, %v814
      %v836 = vmul.f32 %v380, %v814
      %v837 = vmul.f32 %v381, %v814
      %v838 = vmul.f32 %v382, %v814
      %v839 = vmul.f32 %v383, %v814
      %v840 = vmul.f32 %v384, %v814
      %v841 = vmul.f32 %v385, %v814
      %v842 = vmul.f32 %v386, %v814
      %v843 = vmul.f32 %v387, %v814
      %v844 = vmul.f32 %v388, %v814
      %v845 = vmul.f32 %v389, %v814
      %v846 = vmul.f32 %v390, %v814
      %v847 = vmul.f32 %v391, %v814
      %v848 = vmul.f32 %v392, %v814
      %v849 = vmul.f32 %v393, %v814
      %v850 = vmul.f32 %v394, %v814
      %v851 = vmul.f32 %v395, %v814
      %v852 = vmul.f32 %v396, %v814
      %v853 = vmul.f32 %v397, %v814
      %v854 = vmul.f32 %v398, %v814
      %v855 = vmul.f32 %v399, %v814
      %v856 = vmul.f32 %v400, %v814
      %v857 = vld [vmem:[%s4] sm:$0x1]
      %v859 = vperm.slane %v857, 0
      %v861 = vadd.f32 %v816, %v859
      %v862 = vadd.f32 %v817, %v859
      %v863 = vadd.f32 %v818, %v859
      %v864 = vadd.f32 %v819, %v859
      %v865 = vadd.f32 %v820, %v859
      %v866 = vadd.f32 %v821, %v859
      %v867 = vadd.f32 %v822, %v859
      %v868 = vadd.f32 %v823, %v859
      %v869 = vadd.f32 %v824, %v859
      %v870 = vadd.f32 %v825, %v859
      %v871 = vadd.f32 %v826, %v859
      %v872 = vadd.f32 %v827, %v859
      %v873 = vadd.f32 %v828, %v859
      %v874 = vadd.f32 %v829, %v859
      %v875 = vadd.f32 %v830, %v859
      %v876 = vadd.f32 %v831, %v859
      %v877 = vadd.f32 %v832, %v859
      %v878 = vadd.f32 %v833, %v859
      %v879 = vadd.f32 %v834, %v859
      %v880 = vadd.f32 %v835, %v859
      %v881 = vadd.f32 %v836, %v859
      %v882 = vadd.f32 %v837, %v859
      %v883 = vadd.f32 %v838, %v859
      %v884 = vadd.f32 %v839, %v859
      %v885 = vadd.f32 %v840, %v859
      %v886 = vadd.f32 %v841, %v859
      %v887 = vadd.f32 %v842, %v859
      %v888 = vadd.f32 %v843, %v859
      %v889 = vadd.f32 %v844, %v859
      %v890 = vadd.f32 %v845, %v859
      %v891 = vadd.f32 %v846, %v859
      %v892 = vadd.f32 %v847, %v859
      %v893 = vadd.f32 %v848, %v859
      %v894 = vadd.f32 %v849, %v859
      %v895 = vadd.f32 %v850, %v859
      %v896 = vadd.f32 %v851, %v859
      %v897 = vadd.f32 %v852, %v859
      %v898 = vadd.f32 %v853, %v859
      %v899 = vadd.f32 %v854, %v859
      %v900 = vadd.f32 %v855, %v859
      %v901 = vadd.f32 %v856, %v859
      %v902 = vmax.f32 %v861, 0.0
      %v903 = vmax.f32 %v862, 0.0
      %v904 = vmax.f32 %v863, 0.0
      %v905 = vmax.f32 %v864, 0.0
      %v906 = vmax.f32 %v865, 0.0
      %v907 = vmax.f32 %v866, 0.0
      %v908 = vmax.f32 %v867, 0.0
      %v909 = vmax.f32 %v868, 0.0
      %v910 = vmax.f32 %v869, 0.0
      %v911 = vmax.f32 %v870, 0.0
      %v912 = vmax.f32 %v871, 0.0
      %v913 = vmax.f32 %v872, 0.0
      %v914 = vmax.f32 %v873, 0.0
      %v915 = vmax.f32 %v874, 0.0
      %v916 = vmax.f32 %v875, 0.0
      %v917 = vmax.f32 %v876, 0.0
      %v918 = vmax.f32 %v877, 0.0
      %v919 = vmax.f32 %v878, 0.0
      %v920 = vmax.f32 %v879, 0.0
      %v921 = vmax.f32 %v880, 0.0
      %v922 = vmax.f32 %v881, 0.0
      %v923 = vmax.f32 %v882, 0.0
      %v924 = vmax.f32 %v883, 0.0
      %v925 = vmax.f32 %v884, 0.0
      %v926 = vmax.f32 %v885, 0.0
      %v927 = vmax.f32 %v886, 0.0
      %v928 = vmax.f32 %v887, 0.0
      %v929 = vmax.f32 %v888, 0.0
      %v930 = vmax.f32 %v889, 0.0
      %v931 = vmax.f32 %v890, 0.0
      %v932 = vmax.f32 %v891, 0.0
      %v933 = vmax.f32 %v892, 0.0
      %v934 = vmax.f32 %v893, 0.0
      %v935 = vmax.f32 %v894, 0.0
      %v936 = vmax.f32 %v895, 0.0
      %v937 = vmax.f32 %v896, 0.0
      %v938 = vmax.f32 %v897, 0.0
      %v939 = vmax.f32 %v898, 0.0
      %v940 = vmax.f32 %v899, 0.0
      %v941 = vmax.f32 %v900, 0.0
      %v942 = vmax.f32 %v901, 0.0
      %v943 = vpack.c.bf16 %v903, %v902
      %v944 = vpack.c.bf16 %v905, %v904
      %v945 = vpack.c.bf16 %v907, %v906
      %v946 = vpack.c.bf16 %v909, %v908
      %v947 = vpack.c.bf16 %v911, %v910
      %v948 = vpack.c.bf16 %v913, %v912
      %v949 = vpack.c.bf16 %v915, %v914
      %v950 = vpack.c.bf16 %v917, %v916
      %v951 = vpack.c.bf16 %v919, %v918
      %v952 = vpack.c.bf16 %v921, %v920
      %v953 = vpack.c.bf16 %v923, %v922
      %v954 = vpack.c.bf16 %v925, %v924
      %v955 = vpack.c.bf16 %v927, %v926
      %v956 = vpack.c.bf16 %v929, %v928
      %v957 = vpack.c.bf16 %v931, %v930
      %v958 = vpack.c.bf16 %v933, %v932
      %v959 = vpack.c.bf16 %v935, %v934
      %v960 = vpack.c.bf16 %v937, %v936
      %v961 = vpack.c.bf16 %v939, %v938
      %v962 = vpack.c.bf16 %v941, %v940
      %v963 = vpack.c.bf16 %v942, %v942
      %v964 = vld [vmem:[%s6] sm:$0xf]
      %v965 = vld [vmem:[%s6 + $0x4] sm:$0xf]
      %v966 = vld [vmem:[%s6 + $0x8] sm:$0xf]
      %v967 = vld [vmem:[%s6 + $0xc] sm:$0xf]
      %v968 = vld [vmem:[%s6 + $0x10] sm:$0xf]
      %v969 = vld [vmem:[%s6 + $0x14] sm:$0xf]
      %v970 = vld [vmem:[%s6 + $0x18] sm:$0xf]
      %v971 = vld [vmem:[%s6 + $0x1c] sm:$0xf]
      %v972 = vld [vmem:[%s6 + $0x20] sm:$0xf]
      %v973 = vld [vmem:[%s6 + $0x24] sm:$0xf]
      %v974 = vld [vmem:[%s6 + $0x28] sm:$0xf]
      %v975 = vld [vmem:[%s6 + $0x2c] sm:$0xf]
      %v976 = vld [vmem:[%s6 + $0x30] sm:$0xf]
      %v977 = vld [vmem:[%s6 + $0x34] sm:$0xf]
      %v978 = vld [vmem:[%s6 + $0x38] sm:$0xf]
      %v979 = vld [vmem:[%s6 + $0x3c] sm:$0xf]
      %v996 = vunpack.c.l.b16 %v964
      %v997 = vunpack.c.l.b16 %v965
      %v998 = vunpack.c.l.b16 %v966
      %v999 = vunpack.c.l.b16 %v967
      %v1000 = vunpack.c.l.b16 %v968
      %v1001 = vunpack.c.l.b16 %v969
      %v1002 = vunpack.c.l.b16 %v970
      %v1003 = vunpack.c.l.b16 %v971
      %v1004 = vunpack.c.l.b16 %v972
      %v1005 = vunpack.c.l.b16 %v973
      %v1006 = vunpack.c.l.b16 %v974
      %v1007 = vunpack.c.l.b16 %v975
      %v1008 = vunpack.c.l.b16 %v976
      %v1009 = vunpack.c.l.b16 %v977
      %v1010 = vunpack.c.l.b16 %v978
      %v1011 = vunpack.c.l.b16 %v979
      %v1012 = vpack.c.b16 %v997, %v996
      %v1013 = vpack.c.b16 %v999, %v998
      %v1014 = vpack.c.b16 %v1001, %v1000
      %v1015 = vpack.c.b16 %v1003, %v1002
      %v1016 = vpack.c.b16 %v1005, %v1004
      %v1017 = vpack.c.b16 %v1007, %v1006
      %v1018 = vpack.c.b16 %v1009, %v1008
      %v1019 = vpack.c.b16 %v1011, %v1010
      %1028 = vmatpush.bf16.msra.mxu0 %v1019
      %1029 = vmatpush.bf16.msra.mxu0 %v1018
      %1030 = vmatpush.bf16.msra.mxu0 %v1017
      %1031 = vmatpush.bf16.msra.mxu0 %v1016
      %1032 = vmatpush.bf16.msra.mxu0 %v1015
      %1033 = vmatpush.bf16.msra.mxu0 %v1014
      %1034 = vmatpush.bf16.msra.mxu0 %v1013
      %1035 = vmatpush.bf16.msra.mxu0 %v1012
      %1036 = vmatmul.bf16.gmra.mxu0 %v943
      %v1037 = vpop.f32.mrf.mxu0
      %v1038 = vadd.f32 0.0, %v1037
      %v1039 = vpop.f32.mrf.mxu0
      %v1040 = vadd.f32 0.0, %v1039
      %1041 = vmatmul.bf16.gmra.mxu0 %v944
      %v1042 = vpop.f32.mrf.mxu0
      %v1043 = vadd.f32 0.0, %v1042
      %v1044 = vpop.f32.mrf.mxu0
      %v1045 = vadd.f32 0.0, %v1044
      %1046 = vmatmul.bf16.gmra.mxu0 %v945
      %v1047 = vpop.f32.mrf.mxu0
      %v1048 = vadd.f32 0.0, %v1047
      %v1049 = vpop.f32.mrf.mxu0
      %v1050 = vadd.f32 0.0, %v1049
      %1051 = vmatmul.bf16.gmra.mxu0 %v946
      %v1052 = vpop.f32.mrf.mxu0
      %v1053 = vadd.f32 0.0, %v1052
      %v1054 = vpop.f32.mrf.mxu0
      %v1055 = vadd.f32 0.0, %v1054
      %1056 = vmatmul.bf16.gmra.mxu0 %v947
      %v1057 = vpop.f32.mrf.mxu0
      %v1058 = vadd.f32 0.0, %v1057
      %v1059 = vpop.f32.mrf.mxu0
      %v1060 = vadd.f32 0.0, %v1059
      %1061 = vmatmul.bf16.gmra.mxu0 %v948
      %v1062 = vpop.f32.mrf.mxu0
      %v1063 = vadd.f32 0.0, %v1062
      %v1064 = vpop.f32.mrf.mxu0
      %v1065 = vadd.f32 0.0, %v1064
      %1066 = vmatmul.bf16.gmra.mxu0 %v949
      %v1067 = vpop.f32.mrf.mxu0
      %v1068 = vadd.f32 0.0, %v1067
      %v1069 = vpop.f32.mrf.mxu0
      %v1070 = vadd.f32 0.0, %v1069
      %1071 = vmatmul.bf16.gmra.mxu0 %v950
      %v1072 = vpop.f32.mrf.mxu0
      %v1073 = vadd.f32 0.0, %v1072
      %v1074 = vpop.f32.mrf.mxu0
      %v1075 = vadd.f32 0.0, %v1074
      %1076 = vmatmul.bf16.gmra.mxu0 %v951
      %v1077 = vpop.f32.mrf.mxu0
      %v1078 = vadd.f32 0.0, %v1077
      %v1079 = vpop.f32.mrf.mxu0
      %v1080 = vadd.f32 0.0, %v1079
      %1081 = vmatmul.bf16.gmra.mxu0 %v952
      %v1082 = vpop.f32.mrf.mxu0
      %v1083 = vadd.f32 0.0, %v1082
      %v1084 = vpop.f32.mrf.mxu0
      %v1085 = vadd.f32 0.0, %v1084
      %1086 = vmatmul.bf16.gmra.mxu0 %v953
      %v1087 = vpop.f32.mrf.mxu0
      %v1088 = vadd.f32 0.0, %v1087
      %v1089 = vpop.f32.mrf.mxu0
      %v1090 = vadd.f32 0.0, %v1089
      %1091 = vmatmul.bf16.gmra.mxu0 %v954
      %v1092 = vpop.f32.mrf.mxu0
      %v1093 = vadd.f32 0.0, %v1092
      %v1094 = vpop.f32.mrf.mxu0
      %v1095 = vadd.f32 0.0, %v1094
      %1096 = vmatmul.bf16.gmra.mxu0 %v955
      %v1097 = vpop.f32.mrf.mxu0
      %v1098 = vadd.f32 0.0, %v1097
      %v1099 = vpop.f32.mrf.mxu0
      %v1100 = vadd.f32 0.0, %v1099
      %1101 = vmatmul.bf16.gmra.mxu0 %v956
      %v1102 = vpop.f32.mrf.mxu0
      %v1103 = vadd.f32 0.0, %v1102
      %v1104 = vpop.f32.mrf.mxu0
      %v1105 = vadd.f32 0.0, %v1104
      %1106 = vmatmul.bf16.gmra.mxu0 %v957
      %v1107 = vpop.f32.mrf.mxu0
      %v1108 = vadd.f32 0.0, %v1107
      %v1109 = vpop.f32.mrf.mxu0
      %v1110 = vadd.f32 0.0, %v1109
      %1111 = vmatmul.bf16.gmra.mxu0 %v958
      %v1112 = vpop.f32.mrf.mxu0
      %v1113 = vadd.f32 0.0, %v1112
      %v1114 = vpop.f32.mrf.mxu0
      %v1115 = vadd.f32 0.0, %v1114
      %1116 = vmatmul.bf16.gmra.mxu0 %v959
      %v1117 = vpop.f32.mrf.mxu0
      %v1118 = vadd.f32 0.0, %v1117
      %v1119 = vpop.f32.mrf.mxu0
      %v1120 = vadd.f32 0.0, %v1119
      %1121 = vmatmul.bf16.gmra.mxu0 %v960
      %v1122 = vpop.f32.mrf.mxu0
      %v1123 = vadd.f32 0.0, %v1122
      %v1124 = vpop.f32.mrf.mxu0
      %v1125 = vadd.f32 0.0, %v1124
      %1126 = vmatmul.bf16.gmra.mxu0 %v961
      %v1127 = vpop.f32.mrf.mxu0
      %v1128 = vadd.f32 0.0, %v1127
      %v1129 = vpop.f32.mrf.mxu0
      %v1130 = vadd.f32 0.0, %v1129
      %1131 = vmatmul.bf16.gmra.mxu0 %v962
      %v1132 = vpop.f32.mrf.mxu0
      %v1133 = vadd.f32 0.0, %v1132
      %v1134 = vpop.f32.mrf.mxu0
      %v1135 = vadd.f32 0.0, %v1134
      %1136 = vmatmul.bf16.gmra.mxu0 %v963
      %v1137 = vpop.f32.mrf.mxu0
      %v1138 = vadd.f32 0.0, %v1137
      %v1139 = vpop.f32.mrf.mxu0
      %1140 = vdwg.mxu0
      %v1141 = vpack.c.bf16 %v1038, %v1038
      %v1142 = vpack.c.bf16 %v1040, %v1040
      %v1143 = vpack.c.bf16 %v1043, %v1043
      %v1144 = vpack.c.bf16 %v1045, %v1045
      %v1145 = vpack.c.bf16 %v1048, %v1048
      %v1146 = vpack.c.bf16 %v1050, %v1050
      %v1147 = vpack.c.bf16 %v1053, %v1053
      %v1148 = vpack.c.bf16 %v1055, %v1055
      %v1149 = vpack.c.bf16 %v1058, %v1058
      %v1150 = vpack.c.bf16 %v1060, %v1060
      %v1151 = vpack.c.bf16 %v1063, %v1063
      %v1152 = vpack.c.bf16 %v1065, %v1065
      %v1153 = vpack.c.bf16 %v1068, %v1068
      %v1154 = vpack.c.bf16 %v1070, %v1070
      %v1155 = vpack.c.bf16 %v1073, %v1073
      %v1156 = vpack.c.bf16 %v1075, %v1075
      %v1157 = vpack.c.bf16 %v1078, %v1078
      %v1158 = vpack.c.bf16 %v1080, %v1080
      %v1159 = vpack.c.bf16 %v1083, %v1083
      %v1160 = vpack.c.bf16 %v1085, %v1085
      %v1161 = vpack.c.bf16 %v1088, %v1088
      %v1162 = vpack.c.bf16 %v1090, %v1090
      %v1163 = vpack.c.bf16 %v1093, %v1093
      %v1164 = vpack.c.bf16 %v1095, %v1095
      %v1165 = vpack.c.bf16 %v1098, %v1098
      %v1166 = vpack.c.bf16 %v1100, %v1100
      %v1167 = vpack.c.bf16 %v1103, %v1103
      %v1168 = vpack.c.bf16 %v1105, %v1105
      %v1169 = vpack.c.bf16 %v1108, %v1108
      %v1170 = vpack.c.bf16 %v1110, %v1110
      %v1171 = vpack.c.bf16 %v1113, %v1113
      %v1172 = vpack.c.bf16 %v1115, %v1115
      %v1173 = vpack.c.bf16 %v1118, %v1118
      %v1174 = vpack.c.bf16 %v1120, %v1120
      %v1175 = vpack.c.bf16 %v1123, %v1123
      %v1176 = vpack.c.bf16 %v1125, %v1125
      %v1177 = vpack.c.bf16 %v1128, %v1128
      %v1178 = vpack.c.bf16 %v1130, %v1130
      %v1179 = vpack.c.bf16 %v1133, %v1133
      %v1180 = vpack.c.bf16 %v1135, %v1135
      %v1181 = vpack.c.bf16 %v1138, %v1138
      %1182 = vst [vmem:[%s318] sm:$0xf] %v1141
      %1183 = vst [vmem:[%s318 + $0x4] sm:$0xf] %v1142
      %1184 = vst [vmem:[%s318 + $0x8] sm:$0xf] %v1143
      %1185 = vst [vmem:[%s318 + $0xc] sm:$0xf] %v1144
      %1186 = vst [vmem:[%s318 + $0x10] sm:$0xf] %v1145
      %1187 = vst [vmem:[%s318 + $0x14] sm:$0xf] %v1146
      %1188 = vst [vmem:[%s318 + $0x18] sm:$0xf] %v1147
      %1189 = vst [vmem:[%s318 + $0x1c] sm:$0xf] %v1148
      %1190 = vst [vmem:[%s318 + $0x20] sm:$0xf] %v1149
      %1191 = vst [vmem:[%s318 + $0x24] sm:$0xf] %v1150
      %1192 = vst [vmem:[%s318 + $0x28] sm:$0xf] %v1151
      %1193 = vst [vmem:[%s318 + $0x2c] sm:$0xf] %v1152
      %1194 = vst [vmem:[%s318 + $0x30] sm:$0xf] %v1153
      %1195 = vst [vmem:[%s318 + $0x34] sm:$0xf] %v1154
      %1196 = vst [vmem:[%s318 + $0x38] sm:$0xf] %v1155
      %1197 = vst [vmem:[%s318 + $0x3c] sm:$0xf] %v1156
      %1198 = vst [vmem:[%s318 + $0x40] sm:$0xf] %v1157
      %1199 = vst [vmem:[%s318 + $0x44] sm:$0xf] %v1158
      %1200 = vst [vmem:[%s318 + $0x48] sm:$0xf] %v1159
      %1201 = vst [vmem:[%s318 + $0x4c] sm:$0xf] %v1160
      %1202 = vst [vmem:[%s318 + $0x50] sm:$0xf] %v1161
      %1203 = vst [vmem:[%s318 + $0x54] sm:$0xf] %v1162
      %1204 = vst [vmem:[%s318 + $0x58] sm:$0xf] %v1163
      %1205 = vst [vmem:[%s318 + $0x5c] sm:$0xf] %v1164
      %1206 = vst [vmem:[%s318 + $0x60] sm:$0xf] %v1165
      %1207 = vst [vmem:[%s318 + $0x64] sm:$0xf] %v1166
      %1208 = vst [vmem:[%s318 + $0x68] sm:$0xf] %v1167
      %1209 = vst [vmem:[%s318 + $0x6c] sm:$0xf] %v1168
      %1210 = vst [vmem:[%s318 + $0x70] sm:$0xf] %v1169
      %1211 = vst [vmem:[%s318 + $0x74] sm:$0xf] %v1170
      %1212 = vst [vmem:[%s318 + $0x78] sm:$0xf] %v1171
      %1213 = vst [vmem:[%s318 + $0x7c] sm:$0xf] %v1172
      %1214 = vst [vmem:[%s318 + $0x80] sm:$0xf] %v1173
      %1215 = vst [vmem:[%s318 + $0x84] sm:$0xf] %v1174
      %1216 = vst [vmem:[%s318 + $0x88] sm:$0xf] %v1175
      %1217 = vst [vmem:[%s318 + $0x8c] sm:$0xf] %v1176
      %1218 = vst [vmem:[%s318 + $0x90] sm:$0xf] %v1177
      %1219 = vst [vmem:[%s318 + $0x94] sm:$0xf] %v1178
      %1220 = vst [vmem:[%s318 + $0x98] sm:$0xf] %v1179
      %1221 = vst [vmem:[%s318 + $0x9c] sm:$0xf] %v1180
      %1222 = vst [vmem:[%s318 + $0xa0] sm:$0xf] %v1181
      %p1223 = scmp.lt.s32.totalorder %s20, 1
      %s1224 = scalar_select %p1223, %s20, 1
      %s1225 = smul.addr %s1224, 41
      %s1226 = smul.addr %s1225, 4
      %s1227 = scalar_lea.vmem %s7, %s1226
      %p1228 = scmp.lt.s32.totalorder %s20, 1
      %s1229 = scalar_select %p1228, %s20, 1
      %s1230 = smul.addr %s1229, 41
      %s1231 = smul.addr %s1230, 4
      %s1232 = scalar_lea.vmem %s8, %s1231
      // Predicated region
      $region49: #{dappm_forward.6} parent=47 // pred_check
        %p1233 = pneg %p190
      $region50: #{dappm_forward.6} parent=47 // pred_check_branch
        %1235 = sbr.rel (%p1233) target = $region52
      $region51: #{dappm_forward.6} parent=47 // pred_region
        _
      $region52: #{dappm_forward.6} parent=47 // pred_fallthru
        _
      // Predicated region
      $region53: #{dappm_forward.6} parent=47 // pred_check
        %p1236 = pneg %p216
      $region54: #{dappm_forward.6} parent=47 // pred_check_branch
        %1238 = sbr.rel (%p1236) target = $region56
      $region55: #{dappm_forward.6} parent=47 // pred_region
        _
      $region56: #{dappm_forward.6} parent=47 // pred_fallthru
        _
    $region48: #{dappm_forward.6} parent=5 // pred_fallthru
      _
    %p1239 = scmp.le.s32.totalorder 2, %s15
    // Predicated region
    $region57: #{dappm_forward.6} parent=5 // pred_check
      %p1240 = pneg %p1239
    $region58: #{dappm_forward.6} parent=5 // pred_check_branch
      %1242 = sbr.rel (%p1240) target = $region60
    $region59: #{dappm_forward.6} parent=5 // pred_region
      %s1243 = ssub.s32 %s15, 2
      // Predicated region
      $region61: #{dappm_forward.6} parent=59 // pred_check
        %p1244 = pneg %p196
      $region62: #{dappm_forward.6} parent=59 // pred_check_branch
        %1246 = sbr.rel (%p1244) target = $region64
      $region63: #{dappm_forward.6} parent=59 // pred_region
        %p1247 = scmp.lt.s32.totalorder %s21, 1
        %s1248 = scalar_select %p1247, %s21, 1
        %s1249 = smul.addr %s1248, 41
        %s1250 = smul.addr %s1249, 4
        %s1251 = scalar_lea.vmem %s7, %s1250
      $region64: #{dappm_forward.6} parent=59 // pred_fallthru
        _
      // Predicated region
      $region65: #{dappm_forward.6} parent=59 // pred_check
        %p1252 = pneg %p222
      $region66: #{dappm_forward.6} parent=59 // pred_check_branch
        %1254 = sbr.rel (%p1252) target = $region68
      $region67: #{dappm_forward.6} parent=59 // pred_region
        %p1255 = scmp.lt.s32.totalorder %s21, 1
        %s1256 = scalar_select %p1255, %s21, 1
        %s1257 = smul.addr %s1256, 41
        %s1258 = smul.addr %s1257, 4
        %s1259 = scalar_lea.vmem %s8, %s1258
      $region68: #{dappm_forward.6} parent=59 // pred_fallthru
        _
    $region60: #{dappm_forward.6} parent=5 // pred_fallthru
      _
  $region6: #{dappm_forward.6} parent=0 // loop_footer
    %s19 = sadd.s32 1, %s15
  $region7: #{dappm_forward.6} parent=0 // loop_footer_branch
    %14 = sbr.rel target = $region3
  $region8: #{dappm_forward.6} parent=0 // loop_exit
    _

// kernel: dappm_forward.7
$region0: #{dappm_forward.7}
  #allocation0 [shape = 'u32[]', space=smem, size = 0x4, offset = 0x4, fixed_abs, tag = 'smem constant byte address 0x4 - core index']
  #allocation1 [shape = 'u32[72,128]{1,0:T(1,128)}', space=vmem, size = 0x9000, scoped, tag = 'internal scratch']
  #allocation2 [shape = 'f32[376,128]{1,0:T(8,128)}', space=vmem, size = 0x2f000, scoped, tag = 'scratch operand']
  %s0 = inlined_call_operand.vmem [shape: bf16[2,128,128], index: 0, kind: input, shape index: {}]
  %s1 = inlined_call_operand.vmem [shape: bf16[328,128], index: 1, kind: input, shape index: {}]
  %s2 = inlined_call_operand.vmem [shape: bf16[2,328,128], index: 2, kind: input, shape index: {}]
  %s3 = inlined_call_operand.vmem [shape: f32[1,128], index: 3, kind: input, shape index: {}]
  %s4 = inlined_call_operand.vmem [shape: f32[1,128], index: 4, kind: input, shape index: {}]
  %s5 = inlined_call_operand.vmem [shape: bf16[128,128], index: 5, kind: input, shape index: {}]
  %s6 = inlined_call_operand.vmem [shape: bf16[2,512,128], index: 6, kind: input, shape index: {}]
  %s7 = inlined_call_operand.vmem [shape: bf16[2,328,128], index: 7, kind: output, shape index: {}]
  %s8 = sld [smem:[#allocation0]]
  $region61: #{dappm_forward.7} parent=0
    _
  %s10 = ssub.s32 1, %s8
  %s11 = scalar_select 0, %s10, %s8
  loop: start=0, step=1, limit=4
  $region2: #{dappm_forward.7} parent=0 // loop_pre_header
    _
  $region3: #{dappm_forward.7} parent=0 // loop_header
    %s13 = sphi 0, %s17
    %p14 = scmp.ge.s32.totalorder %s13, 4
    %s23 = sphi 0, %s25
    %s26 = sphi 0, %s23
    %s27 = sphi 0, %s26
    %s43 = sphi 0, %s27
    %s47 = sphi 0, %s47
    %s49 = sphi 0, %s47
    %s50 = sphi 0, %s49
    %s64 = sphi 0, %s50
    %s70 = sphi 0, %s72
    %s73 = sphi 0, %s70
    %s74 = sphi 0, %s73
    %s90 = sphi 0, %s74
    %s94 = sphi 0, %s94
    %s96 = sphi 0, %s94
    %s97 = sphi 0, %s96
    %s111 = sphi 0, %s97
    %s115 = sphi 0, %s115
    %s117 = sphi 0, %s115
    %s118 = sphi 0, %s117
    %s132 = sphi 0, %s118
    %s136 = sphi 0, %s136
    %s138 = sphi 0, %s136
    %s139 = sphi 0, %s138
    %s153 = sphi 0, %s139
    %s157 = sphi 0, %s157
    %s159 = sphi 0, %s157
    %s160 = sphi 0, %s159
    %s174 = sphi 0, %s160
    %s180 = sphi 0, %s182
    %s183 = sphi 0, %s180
    %s184 = sphi 0, %s183
    %s200 = sphi 0, %s184
  $region4: #{dappm_forward.7} parent=0 // loop_header_branch
    %16 = sbr.rel (%p14) target = $region8
  $region5: #{dappm_forward.7} parent=0 // loop_body
    %s18 = ssub.s32 %s13, 1
    %s19 = ssub.s32 %s13, 2
    %s20 = sadd.s32 %s13, 1
    %s21 = ssub.s32 %s13, %s20
    %p22 = scmp.eq.s32.totalorder %s21, 0
    %s24 = sadd.s32 %s23, 1
    %s25 = scalar_select %p22, %s23, %s24
    %p28 = pneg %p22
    %p29 = scmp.eq.s32.totalorder %s13, 1
    %p30 = por %p28, %p29
    %p31 = scmp.ne.s32.totalorder %s23, %s26
    %p32 = scmp.eq.s32.totalorder %s13, 0
    %p33 = por %p31, %p32
    %p34 = scmp.ne.s32.totalorder %s23, %s26
    %p35 = scmp.eq.s32.totalorder %s18, 1
    %p36 = por %p34, %p35
    %p37 = scmp.ne.s32.totalorder %s26, %s27
    %p38 = scmp.eq.s32.totalorder %s18, 0
    %p39 = por %p37, %p38
    %p40 = scmp.ne.s32.totalorder %s26, %s27
    %p41 = scmp.eq.s32.totalorder %s19, 1
    %p42 = por %p40, %p41
    %p44 = scmp.ne.s32.totalorder %s27, %s43
    %p45 = scmp.eq.s32.totalorder %s19, 0
    %p46 = por %p44, %p45
    %s48 = sadd.s32 %s47, 1
    %p51 = scmp.eq.s32.totalorder %s13, 1
    %p52 = scmp.ne.s32.totalorder %s47, %s49
    %p53 = scmp.eq.s32.totalorder %s13, 0
    %p54 = por %p52, %p53
    %p55 = scmp.ne.s32.totalorder %s47, %s49
    %p56 = scmp.eq.s32.totalorder %s18, 1
    %p57 = por %p55, %p56
    %p58 = scmp.ne.s32.totalorder %s49, %s50
    %p59 = scmp.eq.s32.totalorder %s18, 0
    %p60 = por %p58, %p59
    %p61 = scmp.ne.s32.totalorder %s49, %s50
    %p62 = scmp.eq.s32.totalorder %s19, 1
    %p63 = por %p61, %p62
    %p65 = scmp.ne.s32.totalorder %s50, %s64
    %p66 = scmp.eq.s32.totalorder %s19, 0
    %p67 = por %p65, %p66
    %s68 = ssub.s32 %s13, %s20
    %p69 = scmp.eq.s32.totalorder %s68, 0
    %s71 = sadd.s32 %s70, 1
    %s72 = scalar_select %p69, %s70, %s71
    %p75 = pneg %p69
    %p76 = scmp.eq.s32.totalorder %s13, 1
    %p77 = por %p75, %p76
    %p78 = scmp.ne.s32.totalorder %s70, %s73
    %p79 = scmp.eq.s32.totalorder %s13, 0
    %p80 = por %p78, %p79
    %p81 = scmp.ne.s32.totalorder %s70, %s73
    %p82 = scmp.eq.s32.totalorder %s18, 1
    %p83 = por %p81, %p82
    %p84 = scmp.ne.s32.totalorder %s73, %s74
    %p85 = scmp.eq.s32.totalorder %s18, 0
    %p86 = por %p84, %p85
    %p87 = scmp.ne.s32.totalorder %s73, %s74
    %p88 = scmp.eq.s32.totalorder %s19, 1
    %p89 = por %p87, %p88
    %p91 = scmp.ne.s32.totalorder %s74, %s90
    %p92 = scmp.eq.s32.totalorder %s19, 0
    %p93 = por %p91, %p92
    %s95 = sadd.s32 %s94, 1
    %p98 = scmp.eq.s32.totalorder %s13, 1
    %p99 = scmp.ne.s32.totalorder %s94, %s96
    %p100 = scmp.eq.s32.totalorder %s13, 0
    %p101 = por %p99, %p100
    %p102 = scmp.ne.s32.totalorder %s94, %s96
    %p103 = scmp.eq.s32.totalorder %s18, 1
    %p104 = por %p102, %p103
    %p105 = scmp.ne.s32.totalorder %s96, %s97
    %p106 = scmp.eq.s32.totalorder %s18, 0
    %p107 = por %p105, %p106
    %p108 = scmp.ne.s32.totalorder %s96, %s97
    %p109 = scmp.eq.s32.totalorder %s19, 1
    %p110 = por %p108, %p109
    %p112 = scmp.ne.s32.totalorder %s97, %s111
    %p113 = scmp.eq.s32.totalorder %s19, 0
    %p114 = por %p112, %p113
    %s116 = sadd.s32 %s115, 1
    %p119 = scmp.eq.s32.totalorder %s13, 1
    %p120 = scmp.ne.s32.totalorder %s115, %s117
    %p121 = scmp.eq.s32.totalorder %s13, 0
    %p122 = por %p120, %p121
    %p123 = scmp.ne.s32.totalorder %s115, %s117
    %p124 = scmp.eq.s32.totalorder %s18, 1
    %p125 = por %p123, %p124
    %p126 = scmp.ne.s32.totalorder %s117, %s118
    %p127 = scmp.eq.s32.totalorder %s18, 0
    %p128 = por %p126, %p127
    %p129 = scmp.ne.s32.totalorder %s117, %s118
    %p130 = scmp.eq.s32.totalorder %s19, 1
    %p131 = por %p129, %p130
    %p133 = scmp.ne.s32.totalorder %s118, %s132
    %p134 = scmp.eq.s32.totalorder %s19, 0
    %p135 = por %p133, %p134
    %s137 = sadd.s32 %s136, 1
    %p140 = scmp.eq.s32.totalorder %s13, 1
    %p141 = scmp.ne.s32.totalorder %s136, %s138
    %p142 = scmp.eq.s32.totalorder %s13, 0
    %p143 = por %p141, %p142
    %p144 = scmp.ne.s32.totalorder %s136, %s138
    %p145 = scmp.eq.s32.totalorder %s18, 1
    %p146 = por %p144, %p145
    %p147 = scmp.ne.s32.totalorder %s138, %s139
    %p148 = scmp.eq.s32.totalorder %s18, 0
    %p149 = por %p147, %p148
    %p150 = scmp.ne.s32.totalorder %s138, %s139
    %p151 = scmp.eq.s32.totalorder %s19, 1
    %p152 = por %p150, %p151
    %p154 = scmp.ne.s32.totalorder %s139, %s153
    %p155 = scmp.eq.s32.totalorder %s19, 0
    %p156 = por %p154, %p155
    %s158 = sadd.s32 %s157, 1
    %p161 = scmp.eq.s32.totalorder %s13, 1
    %p162 = scmp.ne.s32.totalorder %s157, %s159
    %p163 = scmp.eq.s32.totalorder %s13, 0
    %p164 = por %p162, %p163
    %p165 = scmp.ne.s32.totalorder %s157, %s159
    %p166 = scmp.eq.s32.totalorder %s18, 1
    %p167 = por %p165, %p166
    %p168 = scmp.ne.s32.totalorder %s159, %s160
    %p169 = scmp.eq.s32.totalorder %s18, 0
    %p170 = por %p168, %p169
    %p171 = scmp.ne.s32.totalorder %s159, %s160
    %p172 = scmp.eq.s32.totalorder %s19, 1
    %p173 = por %p171, %p172
    %p175 = scmp.ne.s32.totalorder %s160, %s174
    %p176 = scmp.eq.s32.totalorder %s19, 0
    %p177 = por %p175, %p176
    %s178 = ssub.s32 %s13, %s20
    %p179 = scmp.eq.s32.totalorder %s178, 0
    %s181 = sadd.s32 %s180, 1
    %s182 = scalar_select %p179, %s180, %s181
    %p185 = pneg %p179
    %p186 = scmp.eq.s32.totalorder %s13, 1
    %p187 = por %p185, %p186
    %p188 = scmp.ne.s32.totalorder %s180, %s183
    %p189 = scmp.eq.s32.totalorder %s13, 0
    %p190 = por %p188, %p189
    %p191 = scmp.ne.s32.totalorder %s180, %s183
    %p192 = scmp.eq.s32.totalorder %s18, 1
    %p193 = por %p191, %p192
    %p194 = scmp.ne.s32.totalorder %s183, %s184
    %p195 = scmp.eq.s32.totalorder %s18, 0
    %p196 = por %p194, %p195
    %p197 = scmp.ne.s32.totalorder %s183, %s184
    %p198 = scmp.eq.s32.totalorder %s19, 1
    %p199 = por %p197, %p198
    %p201 = scmp.ne.s32.totalorder %s184, %s200
    %p202 = scmp.eq.s32.totalorder %s19, 0
    %p203 = por %p201, %p202
    %p204 = scmp.le.s32.totalorder 1, %s13
    %p205 = scmp.lt.s32.totalorder %s13, 3
    %p206 = pnand %p204, %p205
    %p207 = pneg %p206
    // Predicated region
    $region9: #{dappm_forward.7} parent=5 // pred_check
      _
    $region10: #{dappm_forward.7} parent=5 // pred_check_branch
      %209 = sbr.rel (%p206) target = $region12
    $region11: #{dappm_forward.7} parent=5 // pred_region
      %s210 = ssub.s32 %s13, 1
      // Predicated region
      $region13: #{dappm_forward.7} parent=11 // pred_check
        %p211 = pneg %p60
      $region14: #{dappm_forward.7} parent=11 // pred_check_branch
        %213 = sbr.rel (%p211) target = $region16
      $region15: #{dappm_forward.7} parent=11 // pred_region
        _
      $region16: #{dappm_forward.7} parent=11 // pred_fallthru
        _
      // Predicated region
      $region17: #{dappm_forward.7} parent=11 // pred_check
        %p214 = pneg %p107
      $region18: #{dappm_forward.7} parent=11 // pred_check_branch
        %216 = sbr.rel (%p214) target = $region20
      $region19: #{dappm_forward.7} parent=11 // pred_region
        _
      $region20: #{dappm_forward.7} parent=11 // pred_fallthru
        _
      // Predicated region
      $region21: #{dappm_forward.7} parent=11 // pred_check
        %p217 = pneg %p128
      $region22: #{dappm_forward.7} parent=11 // pred_check_branch
        %219 = sbr.rel (%p217) target = $region24
      $region23: #{dappm_forward.7} parent=11 // pred_region
        _
      $region24: #{dappm_forward.7} parent=11 // pred_fallthru
        _
      // Predicated region
      $region25: #{dappm_forward.7} parent=11 // pred_check
        %p220 = pneg %p149
      $region26: #{dappm_forward.7} parent=11 // pred_check_branch
        %222 = sbr.rel (%p220) target = $region28
      $region27: #{dappm_forward.7} parent=11 // pred_region
        _
      $region28: #{dappm_forward.7} parent=11 // pred_fallthru
        _
      // Predicated region
      $region29: #{dappm_forward.7} parent=11 // pred_check
        %p223 = pneg %p170
      $region30: #{dappm_forward.7} parent=11 // pred_check_branch
        %225 = sbr.rel (%p223) target = $region32
      $region31: #{dappm_forward.7} parent=11 // pred_region
        _
      $region32: #{dappm_forward.7} parent=11 // pred_fallthru
        _
    $region12: #{dappm_forward.7} parent=5 // pred_fallthru
      _
    %p226 = scmp.lt.s32.totalorder %s13, 2
    // Predicated region
    $region33: #{dappm_forward.7} parent=5 // pred_check
      %p227 = pneg %p226
    $region34: #{dappm_forward.7} parent=5 // pred_check_branch
      %229 = sbr.rel (%p227) target = $region36
    $region35: #{dappm_forward.7} parent=5 // pred_region
      // Predicated region
      $region37: #{dappm_forward.7} parent=35 // pred_check
        %p230 = pneg %p33
      $region38: #{dappm_forward.7} parent=35 // pred_check_branch
        %232 = sbr.rel (%p230) target = $region40
      $region39: #{dappm_forward.7} parent=35 // pred_region
        %p233 = scmp.lt.s32.totalorder %s13, 1
        %s234 = scalar_select %p233, %s13, 1
        %s235 = smul.addr %s234, 16
        %s236 = smul.addr %s235, 4
        %s237 = scalar_lea.vmem %s0, %s236
      $region40: #{dappm_forward.7} parent=35 // pred_fallthru
        _
      // Predicated region
      $region41: #{dappm_forward.7} parent=35 // pred_check
        %p238 = pneg %p80
      $region42: #{dappm_forward.7} parent=35 // pred_check_branch
        %240 = sbr.rel (%p238) target = $region44
      $region43: #{dappm_forward.7} parent=35 // pred_region
        %p241 = scmp.lt.s32.totalorder %s13, 1
        %s242 = scalar_select %p241, %s13, 1
        %s243 = smul.addr %s242, 41
        %s244 = smul.addr %s243, 4
        %s245 = scalar_lea.vmem %s2, %s244
      $region44: #{dappm_forward.7} parent=35 // pred_fallthru
        _
    $region36: #{dappm_forward.7} parent=5 // pred_fallthru
      _
    %p246 = scmp.le.s32.totalorder 1, %s13
    %p247 = scmp.lt.s32.totalorder %s13, 3
    %p248 = pnand %p246, %p247
    %p249 = pneg %p248
    // Predicated region
    $region45: #{dappm_forward.7} parent=5 // pred_check
      _
    $region46: #{dappm_forward.7} parent=5 // pred_check_branch
      %251 = sbr.rel (%p248) target = $region48
    $region47: #{dappm_forward.7} parent=5 // pred_region
      %s252 = ssub.s32 %s13, 1
      %p253 = scmp.lt.s32.totalorder %s18, 1
      %s254 = scalar_select %p253, %s18, 1
      %s255 = smul.addr %s254, 16
      %s256 = smul.addr %s255, 4
      %s257 = scalar_lea.vmem %s0, %s256
      %p258 = pneg %p39
      %p259 = pneg %p36
      %p260 = pneg %p60
      %p261 = pneg %p57
      %p262 = scmp.lt.s32.totalorder %s18, 1
      %s263 = scalar_select %p262, %s18, 1
      %s264 = smul.addr %s263, 41
      %s265 = smul.addr %s264, 4
      %s266 = scalar_lea.vmem %s2, %s265
      %p267 = pneg %p86
      %p268 = pneg %p83
      %p269 = pneg %p107
      %p270 = pneg %p104
      %p271 = pneg %p128
      %p272 = pneg %p125
      %p273 = pneg %p149
      %p274 = pneg %p146
      %p275 = pneg %p170
      %p276 = pneg %p167
      %p277 = pneg %p196
      %p278 = pneg %p193
      %p279 = scmp.lt.s32.totalorder %s18, 1
      %s280 = scalar_select %p279, %s18, 1
      %s281 = smul.addr %s280, 41
      %s282 = smul.addr %s281, 4
      %s283 = scalar_lea.vmem %s7, %s282
      %p284 = scmp.lt.s32.totalorder %s18, 1
      %s285 = scalar_select %p284, %s18, 1
      %s286 = smul.addr %s285, 16
      %s287 = smul.addr %s286, 4
      %s288 = scalar_lea.vmem %s0, %s287
      %p289 = scmp.lt.s32.totalorder %s18, 1
      %s290 = scalar_select %p289, %s18, 1
      %s291 = smul.addr %s290, 41
      %s292 = smul.addr %s291, 4
      %s293 = scalar_lea.vmem %s2, %s292
      %p294 = scmp.lt.s32.totalorder %s18, 1
      %s295 = scalar_select %p294, %s18, 1
      %s296 = smul.addr %s295, 41
      %s297 = smul.addr %s296, 4
      %s298 = scalar_lea.vmem %s7, %s297
      %v299 = vld [vmem:[%s1] sm:$0xf]
      %v300 = vld [vmem:[%s1 + $0x4] sm:$0xf]
      %v301 = vld [vmem:[%s1 + $0x8] sm:$0xf]
      %v302 = vld [vmem:[%s1 + $0xc] sm:$0xf]
      %v303 = vld [vmem:[%s1 + $0x10] sm:$0xf]
      %v304 = vld [vmem:[%s1 + $0x14] sm:$0xf]
      %v305 = vld [vmem:[%s1 + $0x18] sm:$0xf]
      %v306 = vld [vmem:[%s1 + $0x1c] sm:$0xf]
      %v307 = vld [vmem:[%s1 + $0x20] sm:$0xf]
      %v308 = vld [vmem:[%s1 + $0x24] sm:$0xf]
      %v309 = vld [vmem:[%s1 + $0x28] sm:$0xf]
      %v310 = vld [vmem:[%s1 + $0x2c] sm:$0xf]
      %v311 = vld [vmem:[%s1 + $0x30] sm:$0xf]
      %v312 = vld [vmem:[%s1 + $0x34] sm:$0xf]
      %v313 = vld [vmem:[%s1 + $0x38] sm:$0xf]
      %v314 = vld [vmem:[%s1 + $0x3c] sm:$0xf]
      %v315 = vld [vmem:[%s1 + $0x40] sm:$0xf]
      %v316 = vld [vmem:[%s1 + $0x44] sm:$0xf]
      %v317 = vld [vmem:[%s1 + $0x48] sm:$0xf]
      %v318 = vld [vmem:[%s1 + $0x4c] sm:$0xf]
      %v319 = vld [vmem:[%s1 + $0x50] sm:$0xf]
      %v320 = vld [vmem:[%s1 + $0x54] sm:$0xf]
      %v321 = vld [vmem:[%s1 + $0x58] sm:$0xf]
      %v322 = vld [vmem:[%s1 + $0x5c] sm:$0xf]
      %v323 = vld [vmem:[%s1 + $0x60] sm:$0xf]
      %v324 = vld [vmem:[%s1 + $0x64] sm:$0xf]
      %v325 = vld [vmem:[%s1 + $0x68] sm:$0xf]
      %v326 = vld [vmem:[%s1 + $0x6c] sm:$0xf]
      %v327 = vld [vmem:[%s1 + $0x70] sm:$0xf]
      %v328 = vld [vmem:[%s1 + $0x74] sm:$0xf]
      %v329 = vld [vmem:[%s1 + $0x78] sm:$0xf]
      %v330 = vld [vmem:[%s1 + $0x7c] sm:$0xf]
      %v331 = vld [vmem:[%s1 + $0x80] sm:$0xf]
      %v332 = vld [vmem:[%s1 + $0x84] sm:$0xf]
      %v333 = vld [vmem:[%s1 + $0x88] sm:$0xf]
      %v334 = vld [vmem:[%s1 + $0x8c] sm:$0xf]
      %v335 = vld [vmem:[%s1 + $0x90] sm:$0xf]
      %v336 = vld [vmem:[%s1 + $0x94] sm:$0xf]
      %v337 = vld [vmem:[%s1 + $0x98] sm:$0xf]
      %v338 = vld [vmem:[%s1 + $0x9c] sm:$0xf]
      %v339 = vld [vmem:[%s1 + $0xa0] sm:$0xf]
      %v340 = vld [vmem:[%s288] sm:$0xf]
      %v341 = vld [vmem:[%s288 + $0x4] sm:$0xf]
      %v342 = vld [vmem:[%s288 + $0x8] sm:$0xf]
      %v343 = vld [vmem:[%s288 + $0xc] sm:$0xf]
      %v344 = vld [vmem:[%s288 + $0x10] sm:$0xf]
      %v345 = vld [vmem:[%s288 + $0x14] sm:$0xf]
      %v346 = vld [vmem:[%s288 + $0x18] sm:$0xf]
      %v347 = vld [vmem:[%s288 + $0x1c] sm:$0xf]
      %v348 = vld [vmem:[%s288 + $0x20] sm:$0xf]
      %v349 = vld [vmem:[%s288 + $0x24] sm:$0xf]
      %v350 = vld [vmem:[%s288 + $0x28] sm:$0xf]
      %v351 = vld [vmem:[%s288 + $0x2c] sm:$0xf]
      %v352 = vld [vmem:[%s288 + $0x30] sm:$0xf]
      %v353 = vld [vmem:[%s288 + $0x34] sm:$0xf]
      %v354 = vld [vmem:[%s288 + $0x38] sm:$0xf]
      %v355 = vld [vmem:[%s288 + $0x3c] sm:$0xf]
      %v356 = vld [vmem:[%s293] sm:$0xf]
      %v357 = vld [vmem:[%s293 + $0x4] sm:$0xf]
      %v358 = vld [vmem:[%s293 + $0x8] sm:$0xf]
      %v359 = vld [vmem:[%s293 + $0xc] sm:$0xf]
      %v360 = vld [vmem:[%s293 + $0x10] sm:$0xf]
      %v361 = vld [vmem:[%s293 + $0x14] sm:$0xf]
      %v362 = vld [vmem:[%s293 + $0x18] sm:$0xf]
      %v363 = vld [vmem:[%s293 + $0x1c] sm:$0xf]
      %v364 = vld [vmem:[%s293 + $0x20] sm:$0xf]
      %v365 = vld [vmem:[%s293 + $0x24] sm:$0xf]
      %v366 = vld [vmem:[%s293 + $0x28] sm:$0xf]
      %v367 = vld [vmem:[%s293 + $0x2c] sm:$0xf]
      %v368 = vld [vmem:[%s293 + $0x30] sm:$0xf]
      %v369 = vld [vmem:[%s293 + $0x34] sm:$0xf]
      %v370 = vld [vmem:[%s293 + $0x38] sm:$0xf]
      %v371 = vld [vmem:[%s293 + $0x3c] sm:$0xf]
      %v372 = vld [vmem:[%s293 + $0x40] sm:$0xf]
      %v373 = vld [vmem:[%s293 + $0x44] sm:$0xf]
      %v374 = vld [vmem:[%s293 + $0x48] sm:$0xf]
      %v375 = vld [vmem:[%s293 + $0x4c] sm:$0xf]
      %v376 = vld [vmem:[%s293 + $0x50] sm:$0xf]
      %v377 = vld [vmem:[%s293 + $0x54] sm:$0xf]
      %v378 = vld [vmem:[%s293 + $0x58] sm:$0xf]
      %v379 = vld [vmem:[%s293 + $0x5c] sm:$0xf]
      %v380 = vld [vmem:[%s293 + $0x60] sm:$0xf]
      %v381 = vld [vmem:[%s293 + $0x64] sm:$0xf]
      %v382 = vld [vmem:[%s293 + $0x68] sm:$0xf]
      %v383 = vld [vmem:[%s293 + $0x6c] sm:$0xf]
      %v384 = vld [vmem:[%s293 + $0x70] sm:$0xf]
      %v385 = vld [vmem:[%s293 + $0x74] sm:$0xf]
      %v386 = vld [vmem:[%s293 + $0x78] sm:$0xf]
      %v387 = vld [vmem:[%s293 + $0x7c] sm:$0xf]
      %v388 = vld [vmem:[%s293 + $0x80] sm:$0xf]
      %v389 = vld [vmem:[%s293 + $0x84] sm:$0xf]
      %v390 = vld [vmem:[%s293 + $0x88] sm:$0xf]
      %v391 = vld [vmem:[%s293 + $0x8c] sm:$0xf]
      %v392 = vld [vmem:[%s293 + $0x90] sm:$0xf]
      %v393 = vld [vmem:[%s293 + $0x94] sm:$0xf]
      %v394 = vld [vmem:[%s293 + $0x98] sm:$0xf]
      %v395 = vld [vmem:[%s293 + $0x9c] sm:$0xf]
      %v396 = vld [vmem:[%s293 + $0xa0] sm:$0xf]
      %v397 = vunpack.c.l.bf16 %v356
      %v398 = vunpack.c.l.bf16 %v357
      %v399 = vunpack.c.l.bf16 %v358
      %v400 = vunpack.c.l.bf16 %v359
      %v401 = vunpack.c.l.bf16 %v360
      %v402 = vunpack.c.l.bf16 %v361
      %v403 = vunpack.c.l.bf16 %v362
      %v404 = vunpack.c.l.bf16 %v363
      %v405 = vunpack.c.l.bf16 %v364
      %v406 = vunpack.c.l.bf16 %v365
      %v407 = vunpack.c.l.bf16 %v366
      %v408 = vunpack.c.l.bf16 %v367
      %v409 = vunpack.c.l.bf16 %v368
      %v410 = vunpack.c.l.bf16 %v369
      %v411 = vunpack.c.l.bf16 %v370
      %v412 = vunpack.c.l.bf16 %v371
      %v413 = vunpack.c.l.bf16 %v372
      %v414 = vunpack.c.l.bf16 %v373
      %v415 = vunpack.c.l.bf16 %v374
      %v416 = vunpack.c.l.bf16 %v375
      %v417 = vunpack.c.l.bf16 %v376
      %v418 = vunpack.c.l.bf16 %v377
      %v419 = vunpack.c.l.bf16 %v378
      %v420 = vunpack.c.l.bf16 %v379
      %v421 = vunpack.c.l.bf16 %v380
      %v422 = vunpack.c.l.bf16 %v381
      %v423 = vunpack.c.l.bf16 %v382
      %v424 = vunpack.c.l.bf16 %v383
      %v425 = vunpack.c.l.bf16 %v384
      %v426 = vunpack.c.l.bf16 %v385
      %v427 = vunpack.c.l.bf16 %v386
      %v428 = vunpack.c.l.bf16 %v387
      %v429 = vunpack.c.l.bf16 %v388
      %v430 = vunpack.c.l.bf16 %v389
      %v431 = vunpack.c.l.bf16 %v390
      %v432 = vunpack.c.l.bf16 %v391
      %v433 = vunpack.c.l.bf16 %v392
      %v434 = vunpack.c.l.bf16 %v393
      %v435 = vunpack.c.l.bf16 %v394
      %v436 = vunpack.c.l.bf16 %v395
      %v437 = vunpack.c.l.bf16 %v396
      %v479 = vunpack.c.l.b16 %v299
      %v480 = vunpack.c.l.b16 %v300
      %v481 = vunpack.c.l.b16 %v301
      %v482 = vunpack.c.l.b16 %v302
      %v483 = vunpack.c.l.b16 %v303
      %v484 = vunpack.c.l.b16 %v304
      %v485 = vunpack.c.l.b16 %v305
      %v486 = vunpack.c.l.b16 %v306
      %v487 = vunpack.c.l.b16 %v307
      %v488 = vunpack.c.l.b16 %v308
      %v489 = vunpack.c.l.b16 %v309
      %v490 = vunpack.c.l.b16 %v310
      %v491 = vunpack.c.l.b16 %v311
      %v492 = vunpack.c.l.b16 %v312
      %v493 = vunpack.c.l.b16 %v313
      %v494 = vunpack.c.l.b16 %v314
      %v495 = vunpack.c.l.b16 %v315
      %v496 = vunpack.c.l.b16 %v316
      %v497 = vunpack.c.l.b16 %v317
      %v498 = vunpack.c.l.b16 %v318
      %v499 = vunpack.c.l.b16 %v319
      %v500 = vunpack.c.l.b16 %v320
      %v501 = vunpack.c.l.b16 %v321
      %v502 = vunpack.c.l.b16 %v322
      %v503 = vunpack.c.l.b16 %v323
      %v504 = vunpack.c.l.b16 %v324
      %v505 = vunpack.c.l.b16 %v325
      %v506 = vunpack.c.l.b16 %v326
      %v507 = vunpack.c.l.b16 %v327
      %v508 = vunpack.c.l.b16 %v328
      %v509 = vunpack.c.l.b16 %v329
      %v510 = vunpack.c.l.b16 %v330
      %v511 = vunpack.c.l.b16 %v331
      %v512 = vunpack.c.l.b16 %v332
      %v513 = vunpack.c.l.b16 %v333
      %v514 = vunpack.c.l.b16 %v334
      %v515 = vunpack.c.l.b16 %v335
      %v516 = vunpack.c.l.b16 %v336
      %v517 = vunpack.c.l.b16 %v337
      %v518 = vunpack.c.l.b16 %v338
      %v519 = vunpack.c.l.b16 %v339
      %v520 = vpack.c.b16 %v480, %v479
      %v521 = vpack.c.b16 %v482, %v481
      %v522 = vpack.c.b16 %v484, %v483
      %v523 = vpack.c.b16 %v486, %v485
      %v524 = vpack.c.b16 %v488, %v487
      %v525 = vpack.c.b16 %v490, %v489
      %v526 = vpack.c.b16 %v492, %v491
      %v527 = vpack.c.b16 %v494, %v493
      %v528 = vpack.c.b16 %v496, %v495
      %v529 = vpack.c.b16 %v498, %v497
      %v530 = vpack.c.b16 %v500, %v499
      %v531 = vpack.c.b16 %v502, %v501
      %v532 = vpack.c.b16 %v504, %v503
      %v533 = vpack.c.b16 %v506, %v505
      %v534 = vpack.c.b16 %v508, %v507
      %v535 = vpack.c.b16 %v510, %v509
      %v536 = vpack.c.b16 %v512, %v511
      %v537 = vpack.c.b16 %v514, %v513
      %v538 = vpack.c.b16 %v516, %v515
      %v539 = vpack.c.b16 %v518, %v517
      %v540 = vpack.c.b16 %v519, %v519
      %v578 = vunpack.c.l.b16 %v340
      %v579 = vunpack.c.l.b16 %v341
      %v580 = vunpack.c.l.b16 %v342
      %v581 = vunpack.c.l.b16 %v343
      %v582 = vunpack.c.l.b16 %v344
      %v583 = vunpack.c.l.b16 %v345
      %v584 = vunpack.c.l.b16 %v346
      %v585 = vunpack.c.l.b16 %v347
      %v586 = vunpack.c.l.b16 %v348
      %v587 = vunpack.c.l.b16 %v349
      %v588 = vunpack.c.l.b16 %v350
      %v589 = vunpack.c.l.b16 %v351
      %v590 = vunpack.c.l.b16 %v352
      %v591 = vunpack.c.l.b16 %v353
      %v592 = vunpack.c.l.b16 %v354
      %v593 = vunpack.c.l.b16 %v355
      %v594 = vpack.c.b16 %v579, %v578
      %v595 = vpack.c.b16 %v581, %v580
      %v596 = vpack.c.b16 %v583, %v582
      %v597 = vpack.c.b16 %v585, %v584
      %v598 = vpack.c.b16 %v587, %v586
      %v599 = vpack.c.b16 %v589, %v588
      %v600 = vpack.c.b16 %v591, %v590
      %v601 = vpack.c.b16 %v593, %v592
      %610 = vmatpush.bf16.msra.mxu0 %v601
      %611 = vmatpush.bf16.msra.mxu0 %v600
      %612 = vmatpush.bf16.msra.mxu0 %v599
      %613 = vmatpush.bf16.msra.mxu0 %v598
      %614 = vmatpush.bf16.msra.mxu0 %v597
      %615 = vmatpush.bf16.msra.mxu0 %v596
      %616 = vmatpush.bf16.msra.mxu0 %v595
      %617 = vmatpush.bf16.msra.mxu0 %v594
      %618 = vmatmul.bf16.gmra.mxu0 %v520
      %v619 = vpop.f32.mrf.mxu0
      %v620 = vadd.f32 %v397, %v619
      %v621 = vpop.f32.mrf.mxu0
      %v622 = vadd.f32 %v398, %v621
      %623 = vmatmul.bf16.gmra.mxu0 %v521
      %v624 = vpop.f32.mrf.mxu0
      %v625 = vadd.f32 %v399, %v624
      %v626 = vpop.f32.mrf.mxu0
      %v627 = vadd.f32 %v400, %v626
      %628 = vmatmul.bf16.gmra.mxu0 %v522
      %v629 = vpop.f32.mrf.mxu0
      %v630 = vadd.f32 %v401, %v629
      %v631 = vpop.f32.mrf.mxu0
      %v632 = vadd.f32 %v402, %v631
      %633 = vmatmul.bf16.gmra.mxu0 %v523
      %v634 = vpop.f32.mrf.mxu0
      %v635 = vadd.f32 %v403, %v634
      %v636 = vpop.f32.mrf.mxu0
      %v637 = vadd.f32 %v404, %v636
      %638 = vmatmul.bf16.gmra.mxu0 %v524
      %v639 = vpop.f32.mrf.mxu0
      %v640 = vadd.f32 %v405, %v639
      %v641 = vpop.f32.mrf.mxu0
      %v642 = vadd.f32 %v406, %v641
      %643 = vmatmul.bf16.gmra.mxu0 %v525
      %v644 = vpop.f32.mrf.mxu0
      %v645 = vadd.f32 %v407, %v644
      %v646 = vpop.f32.mrf.mxu0
      %v647 = vadd.f32 %v408, %v646
      %648 = vmatmul.bf16.gmra.mxu0 %v526
      %v649 = vpop.f32.mrf.mxu0
      %v650 = vadd.f32 %v409, %v649
      %v651 = vpop.f32.mrf.mxu0
      %v652 = vadd.f32 %v410, %v651
      %653 = vmatmul.bf16.gmra.mxu0 %v527
      %v654 = vpop.f32.mrf.mxu0
      %v655 = vadd.f32 %v411, %v654
      %v656 = vpop.f32.mrf.mxu0
      %v657 = vadd.f32 %v412, %v656
      %658 = vmatmul.bf16.gmra.mxu0 %v528
      %v659 = vpop.f32.mrf.mxu0
      %v660 = vadd.f32 %v413, %v659
      %v661 = vpop.f32.mrf.mxu0
      %v662 = vadd.f32 %v414, %v661
      %663 = vmatmul.bf16.gmra.mxu0 %v529
      %v664 = vpop.f32.mrf.mxu0
      %v665 = vadd.f32 %v415, %v664
      %v666 = vpop.f32.mrf.mxu0
      %v667 = vadd.f32 %v416, %v666
      %668 = vmatmul.bf16.gmra.mxu0 %v530
      %v669 = vpop.f32.mrf.mxu0
      %v670 = vadd.f32 %v417, %v669
      %v671 = vpop.f32.mrf.mxu0
      %v672 = vadd.f32 %v418, %v671
      %673 = vmatmul.bf16.gmra.mxu0 %v531
      %v674 = vpop.f32.mrf.mxu0
      %v675 = vadd.f32 %v419, %v674
      %v676 = vpop.f32.mrf.mxu0
      %v677 = vadd.f32 %v420, %v676
      %678 = vmatmul.bf16.gmra.mxu0 %v532
      %v679 = vpop.f32.mrf.mxu0
      %v680 = vadd.f32 %v421, %v679
      %v681 = vpop.f32.mrf.mxu0
      %v682 = vadd.f32 %v422, %v681
      %683 = vmatmul.bf16.gmra.mxu0 %v533
      %v684 = vpop.f32.mrf.mxu0
      %v685 = vadd.f32 %v423, %v684
      %v686 = vpop.f32.mrf.mxu0
      %v687 = vadd.f32 %v424, %v686
      %688 = vmatmul.bf16.gmra.mxu0 %v534
      %v689 = vpop.f32.mrf.mxu0
      %v690 = vadd.f32 %v425, %v689
      %v691 = vpop.f32.mrf.mxu0
      %v692 = vadd.f32 %v426, %v691
      %693 = vmatmul.bf16.gmra.mxu0 %v535
      %v694 = vpop.f32.mrf.mxu0
      %v695 = vadd.f32 %v427, %v694
      %v696 = vpop.f32.mrf.mxu0
      %v697 = vadd.f32 %v428, %v696
      %698 = vmatmul.bf16.gmra.mxu0 %v536
      %v699 = vpop.f32.mrf.mxu0
      %v700 = vadd.f32 %v429, %v699
      %v701 = vpop.f32.mrf.mxu0
      %v702 = vadd.f32 %v430, %v701
      %703 = vmatmul.bf16.gmra.mxu0 %v537
      %v704 = vpop.f32.mrf.mxu0
      %v705 = vadd.f32 %v431, %v704
      %v706 = vpop.f32.mrf.mxu0
      %v707 = vadd.f32 %v432, %v706
      %708 = vmatmul.bf16.gmra.mxu0 %v538
      %v709 = vpop.f32.mrf.mxu0
      %v710 = vadd.f32 %v433, %v709
      %v711 = vpop.f32.mrf.mxu0
      %v712 = vadd.f32 %v434, %v711
      %713 = vmatmul.bf16.gmra.mxu0 %v539
      %v714 = vpop.f32.mrf.mxu0
      %v715 = vadd.f32 %v435, %v714
      %v716 = vpop.f32.mrf.mxu0
      %v717 = vadd.f32 %v436, %v716
      %718 = vmatmul.bf16.gmra.mxu0 %v540
      %v719 = vpop.f32.mrf.mxu0
      %v720 = vadd.f32 %v437, %v719
      %v721 = vpop.f32.mrf.mxu0
      %722 = vdwg.mxu0
      %v723 = vld [vmem:[%s3] sm:$0x1]
      %v725 = vperm.slane %v723, 0
      %v727 = vmul.f32 %v620, %v725
      %v728 = vmul.f32 %v622, %v725
      %v729 = vmul.f32 %v625, %v725
      %v730 = vmul.f32 %v627, %v725
      %v731 = vmul.f32 %v630, %v725
      %v732 = vmul.f32 %v632, %v725
      %v733 = vmul.f32 %v635, %v725
      %v734 = vmul.f32 %v637, %v725
      %v735 = vmul.f32 %v640, %v725
      %v736 = vmul.f32 %v642, %v725
      %v737 = vmul.f32 %v645, %v725
      %v738 = vmul.f32 %v647, %v725
      %v739 = vmul.f32 %v650, %v725
      %v740 = vmul.f32 %v652, %v725
      %v741 = vmul.f32 %v655, %v725
      %v742 = vmul.f32 %v657, %v725
      %v743 = vmul.f32 %v660, %v725
      %v744 = vmul.f32 %v662, %v725
      %v745 = vmul.f32 %v665, %v725
      %v746 = vmul.f32 %v667, %v725
      %v747 = vmul.f32 %v670, %v725
      %v748 = vmul.f32 %v672, %v725
      %v749 = vmul.f32 %v675, %v725
      %v750 = vmul.f32 %v677, %v725
      %v751 = vmul.f32 %v680, %v725
      %v752 = vmul.f32 %v682, %v725
      %v753 = vmul.f32 %v685, %v725
      %v754 = vmul.f32 %v687, %v725
      %v755 = vmul.f32 %v690, %v725
      %v756 = vmul.f32 %v692, %v725
      %v757 = vmul.f32 %v695, %v725
      %v758 = vmul.f32 %v697, %v725
      %v759 = vmul.f32 %v700, %v725
      %v760 = vmul.f32 %v702, %v725
      %v761 = vmul.f32 %v705, %v725
      %v762 = vmul.f32 %v707, %v725
      %v763 = vmul.f32 %v710, %v725
      %v764 = vmul.f32 %v712, %v725
      %v765 = vmul.f32 %v715, %v725
      %v766 = vmul.f32 %v717, %v725
      %v767 = vmul.f32 %v720, %v725
      %v768 = vld [vmem:[%s4] sm:$0x1]
      %v770 = vperm.slane %v768, 0
      %v772 = vadd.f32 %v727, %v770
      %v773 = vadd.f32 %v728, %v770
      %v774 = vadd.f32 %v729, %v770
      %v775 = vadd.f32 %v730, %v770
      %v776 = vadd.f32 %v731, %v770
      %v777 = vadd.f32 %v732, %v770
      %v778 = vadd.f32 %v733, %v770
      %v779 = vadd.f32 %v734, %v770
      %v780 = vadd.f32 %v735, %v770
      %v781 = vadd.f32 %v736, %v770
      %v782 = vadd.f32 %v737, %v770
      %v783 = vadd.f32 %v738, %v770
      %v784 = vadd.f32 %v739, %v770
      %v785 = vadd.f32 %v740, %v770
      %v786 = vadd.f32 %v741, %v770
      %v787 = vadd.f32 %v742, %v770
      %v788 = vadd.f32 %v743, %v770
      %v789 = vadd.f32 %v744, %v770
      %v790 = vadd.f32 %v745, %v770
      %v791 = vadd.f32 %v746, %v770
      %v792 = vadd.f32 %v747, %v770
      %v793 = vadd.f32 %v748, %v770
      %v794 = vadd.f32 %v749, %v770
      %v795 = vadd.f32 %v750, %v770
      %v796 = vadd.f32 %v751, %v770
      %v797 = vadd.f32 %v752, %v770
      %v798 = vadd.f32 %v753, %v770
      %v799 = vadd.f32 %v754, %v770
      %v800 = vadd.f32 %v755, %v770
      %v801 = vadd.f32 %v756, %v770
      %v802 = vadd.f32 %v757, %v770
      %v803 = vadd.f32 %v758, %v770
      %v804 = vadd.f32 %v759, %v770
      %v805 = vadd.f32 %v760, %v770
      %v806 = vadd.f32 %v761, %v770
      %v807 = vadd.f32 %v762, %v770
      %v808 = vadd.f32 %v763, %v770
      %v809 = vadd.f32 %v764, %v770
      %v810 = vadd.f32 %v765, %v770
      %v811 = vadd.f32 %v766, %v770
      %v812 = vadd.f32 %v767, %v770
      %v813 = vmax.f32 %v772, 0.0
      %v814 = vmax.f32 %v773, 0.0
      %v815 = vmax.f32 %v774, 0.0
      %v816 = vmax.f32 %v775, 0.0
      %v817 = vmax.f32 %v776, 0.0
      %v818 = vmax.f32 %v777, 0.0
      %v819 = vmax.f32 %v778, 0.0
      %v820 = vmax.f32 %v779, 0.0
      %v821 = vmax.f32 %v780, 0.0
      %v822 = vmax.f32 %v781, 0.0
      %v823 = vmax.f32 %v782, 0.0
      %v824 = vmax.f32 %v783, 0.0
      %v825 = vmax.f32 %v784, 0.0
      %v826 = vmax.f32 %v785, 0.0
      %v827 = vmax.f32 %v786, 0.0
      %v828 = vmax.f32 %v787, 0.0
      %v829 = vmax.f32 %v788, 0.0
      %v830 = vmax.f32 %v789, 0.0
      %v831 = vmax.f32 %v790, 0.0
      %v832 = vmax.f32 %v791, 0.0
      %v833 = vmax.f32 %v792, 0.0
      %v834 = vmax.f32 %v793, 0.0
      %v835 = vmax.f32 %v794, 0.0
      %v836 = vmax.f32 %v795, 0.0
      %v837 = vmax.f32 %v796, 0.0
      %v838 = vmax.f32 %v797, 0.0
      %v839 = vmax.f32 %v798, 0.0
      %v840 = vmax.f32 %v799, 0.0
      %v841 = vmax.f32 %v800, 0.0
      %v842 = vmax.f32 %v801, 0.0
      %v843 = vmax.f32 %v802, 0.0
      %v844 = vmax.f32 %v803, 0.0
      %v845 = vmax.f32 %v804, 0.0
      %v846 = vmax.f32 %v805, 0.0
      %v847 = vmax.f32 %v806, 0.0
      %v848 = vmax.f32 %v807, 0.0
      %v849 = vmax.f32 %v808, 0.0
      %v850 = vmax.f32 %v809, 0.0
      %v851 = vmax.f32 %v810, 0.0
      %v852 = vmax.f32 %v811, 0.0
      %v853 = vmax.f32 %v812, 0.0
      %v854 = vlaneseq
      %v855 = vshrl.u32 %v854, 7
      %v856 = vadd.s32 %v855, 8
      %v857 = vadd.s32 %v855, 16
      %v858 = vadd.s32 %v855, 24
      %v859 = vadd.s32 %v855, 32
      %v860 = vadd.s32 %v855, 40
      %v861 = vadd.s32 %v855, 48
      %v862 = vadd.s32 %v855, 56
      %v863 = vadd.s32 %v855, 64
      %v864 = vadd.s32 %v855, 72
      %v865 = vadd.s32 %v855, 80
      %v866 = vadd.s32 %v855, 88
      %v867 = vadd.s32 %v855, 96
      %v868 = vadd.s32 %v855, 104
      %v869 = vadd.s32 %v855, 112
      %v870 = vadd.s32 %v855, 120
      %v871 = vadd.s32 %v855, 128
      %v872 = vadd.s32 %v855, 136
      %v873 = vadd.s32 %v855, 144
      %v874 = vadd.s32 %v855, 152
      %v875 = vadd.s32 %v855, 160
      %v876 = vadd.s32 %v855, 168
      %v877 = vadd.s32 %v855, 176
      %v878 = vadd.s32 %v855, 184
      %v879 = vadd.s32 %v855, 192
      %v880 = vadd.s32 %v855, 200
      %v881 = vadd.s32 %v855, 208
      %v882 = vadd.s32 %v855, 216
      %v883 = vadd.s32 %v855, 224
      %v884 = vadd.s32 %v855, 232
      %v885 = vadd.s32 %v855, 240
      %v886 = vadd.s32 %v855, 248
      %v887 = vadd.s32 %v855, 256
      %v888 = vadd.s32 %v855, 264
      %v889 = vadd.s32 %v855, 272
      %v890 = vadd.s32 %v855, 280
      %v891 = vadd.s32 %v855, 288
      %v892 = vadd.s32 %v855, 296
      %v893 = vadd.s32 %v855, 304
      %v894 = vadd.s32 %v855, 312
      %v895 = vadd.s32 %v855, 320
      %v896 = vcvt.s32.f32 %v855
      %v897 = vcvt.s32.f32 %v856
      %v898 = vcvt.s32.f32 %v857
      %v899 = vcvt.s32.f32 %v858
      %v900 = vcvt.s32.f32 %v859
      %v901 = vcvt.s32.f32 %v860
      %v902 = vcvt.s32.f32 %v861
      %v903 = vcvt.s32.f32 %v862
      %v904 = vcvt.s32.f32 %v863
      %v905 = vcvt.s32.f32 %v864
      %v906 = vcvt.s32.f32 %v865
      %v907 = vcvt.s32.f32 %v866
      %v908 = vcvt.s32.f32 %v867
      %v909 = vcvt.s32.f32 %v868
      %v910 = vcvt.s32.f32 %v869
      %v911 = vcvt.s32.f32 %v870
      %v912 = vcvt.s32.f32 %v871
      %v913 = vcvt.s32.f32 %v872
      %v914 = vcvt.s32.f32 %v873
      %v915 = vcvt.s32.f32 %v874
      %v916 = vcvt.s32.f32 %v875
      %v917 = vcvt.s32.f32 %v876
      %v918 = vcvt.s32.f32 %v877
      %v919 = vcvt.s32.f32 %v878
      %v920 = vcvt.s32.f32 %v879
      %v921 = vcvt.s32.f32 %v880
      %v922 = vcvt.s32.f32 %v881
      %v923 = vcvt.s32.f32 %v882
      %v924 = vcvt.s32.f32 %v883
      %v925 = vcvt.s32.f32 %v884
      %v926 = vcvt.s32.f32 %v885
      %v927 = vcvt.s32.f32 %v886
      %v928 = vcvt.s32.f32 %v887
      %v929 = vcvt.s32.f32 %v888
      %v930 = vcvt.s32.f32 %v889
      %v931 = vcvt.s32.f32 %v890
      %v932 = vcvt.s32.f32 %v891
      %v933 = vcvt.s32.f32 %v892
      %v934 = vcvt.s32.f32 %v893
      %v935 = vcvt.s32.f32 %v894
      %v936 = vcvt.s32.f32 %v895
      %v937 = vadd.f32 %v896, 0.5
      %v938 = vadd.f32 %v897, 0.5
      %v939 = vadd.f32 %v898, 0.5
      %v940 = vadd.f32 %v899, 0.5
      %v941 = vadd.f32 %v900, 0.5
      %v942 = vadd.f32 %v901, 0.5
      %v943 = vadd.f32 %v902, 0.5
      %v944 = vadd.f32 %v903, 0.5
      %v945 = vadd.f32 %v904, 0.5
      %v946 = vadd.f32 %v905, 0.5
      %v947 = vadd.f32 %v906, 0.5
      %v948 = vadd.f32 %v907, 0.5
      %v949 = vadd.f32 %v908, 0.5
      %v950 = vadd.f32 %v909, 0.5
      %v951 = vadd.f32 %v910, 0.5
      %v952 = vadd.f32 %v911, 0.5
      %v953 = vadd.f32 %v912, 0.5
      %v954 = vadd.f32 %v913, 0.5
      %v955 = vadd.f32 %v914, 0.5
      %v956 = vadd.f32 %v915, 0.5
      %v957 = vadd.f32 %v916, 0.5
      %v958 = vadd.f32 %v917, 0.5
      %v959 = vadd.f32 %v918, 0.5
      %v960 = vadd.f32 %v919, 0.5
      %v961 = vadd.f32 %v920, 0.5
      %v962 = vadd.f32 %v921, 0.5
      %v963 = vadd.f32 %v922, 0.5
      %v964 = vadd.f32 %v923, 0.5
      %v965 = vadd.f32 %v924, 0.5
      %v966 = vadd.f32 %v925, 0.5
      %v967 = vadd.f32 %v926, 0.5
      %v968 = vadd.f32 %v927, 0.5
      %v969 = vadd.f32 %v928, 0.5
      %v970 = vadd.f32 %v929, 0.5
      %v971 = vadd.f32 %v930, 0.5
      %v972 = vadd.f32 %v931, 0.5
      %v973 = vadd.f32 %v932, 0.5
      %v974 = vadd.f32 %v933, 0.5
      %v975 = vadd.f32 %v934, 0.5
      %v976 = vadd.f32 %v935, 0.5
      %v977 = vadd.f32 %v936, 0.5
      %v978 = vmul.f32 %v937, 0.055555556
      %v979 = vmul.f32 %v938, 0.055555556
      %v980 = vmul.f32 %v939, 0.055555556
      %v981 = vmul.f32 %v940, 0.055555556
      %v982 = vmul.f32 %v941, 0.055555556
      %v983 = vmul.f32 %v942, 0.055555556
      %v984 = vmul.f32 %v943, 0.055555556
      %v985 = vmul.f32 %v944, 0.055555556
      %v986 = vmul.f32 %v945, 0.055555556
      %v987 = vmul.f32 %v946, 0.055555556
      %v988 = vmul.f32 %v947, 0.055555556
      %v989 = vmul.f32 %v948, 0.055555556
      %v990 = vmul.f32 %v949, 0.055555556
      %v991 = vmul.f32 %v950, 0.055555556
      %v992 = vmul.f32 %v951, 0.055555556
      %v993 = vmul.f32 %v952, 0.055555556
      %v994 = vmul.f32 %v953, 0.055555556
      %v995 = vmul.f32 %v954, 0.055555556
      %v996 = vmul.f32 %v955, 0.055555556
      %v997 = vmul.f32 %v956, 0.055555556
      %v998 = vmul.f32 %v957, 0.055555556
      %v999 = vmul.f32 %v958, 0.055555556
      %v1000 = vmul.f32 %v959, 0.055555556
      %v1001 = vmul.f32 %v960, 0.055555556
      %v1002 = vmul.f32 %v961, 0.055555556
      %v1003 = vmul.f32 %v962, 0.055555556
      %v1004 = vmul.f32 %v963, 0.055555556
      %v1005 = vmul.f32 %v964, 0.055555556
      %v1006 = vmul.f32 %v965, 0.055555556
      %v1007 = vmul.f32 %v966, 0.055555556
      %v1008 = vmul.f32 %v967, 0.055555556
      %v1009 = vmul.f32 %v968, 0.055555556
      %v1010 = vmul.f32 %v969, 0.055555556
      %v1011 = vmul.f32 %v970, 0.055555556
      %v1012 = vmul.f32 %v971, 0.055555556
      %v1013 = vmul.f32 %v972, 0.055555556
      %v1014 = vmul.f32 %v973, 0.055555556
      %v1015 = vmul.f32 %v974, 0.055555556
      %v1016 = vmul.f32 %v975, 0.055555556
      %v1017 = vmul.f32 %v976, 0.055555556
      %v1018 = vmul.f32 %v977, 0.055555556
      %v1019 = vfloor.f32 %v978
      %v1020 = vfloor.f32 %v979
      %v1021 = vfloor.f32 %v980
      %v1022 = vfloor.f32 %v981
      %v1023 = vfloor.f32 %v982
      %v1024 = vfloor.f32 %v983
      %v1025 = vfloor.f32 %v984
      %v1026 = vfloor.f32 %v985
      %v1027 = vfloor.f32 %v986
      %v1028 = vfloor.f32 %v987
      %v1029 = vfloor.f32 %v988
      %v1030 = vfloor.f32 %v989
      %v1031 = vfloor.f32 %v990
      %v1032 = vfloor.f32 %v991
      %v1033 = vfloor.f32 %v992
      %v1034 = vfloor.f32 %v993
      %v1035 = vfloor.f32 %v994
      %v1036 = vfloor.f32 %v995
      %v1037 = vfloor.f32 %v996
      %v1038 = vfloor.f32 %v997
      %v1039 = vfloor.f32 %v998
      %v1040 = vfloor.f32 %v999
      %v1041 = vfloor.f32 %v1000
      %v1042 = vfloor.f32 %v1001
      %v1043 = vfloor.f32 %v1002
      %v1044 = vfloor.f32 %v1003
      %v1045 = vfloor.f32 %v1004
      %v1046 = vfloor.f32 %v1005
      %v1047 = vfloor.f32 %v1006
      %v1048 = vfloor.f32 %v1007
      %v1049 = vfloor.f32 %v1008
      %v1050 = vfloor.f32 %v1009
      %v1051 = vfloor.f32 %v1010
      %v1052 = vfloor.f32 %v1011
      %v1053 = vfloor.f32 %v1012
      %v1054 = vfloor.f32 %v1013
      %v1055 = vfloor.f32 %v1014
      %v1056 = vfloor.f32 %v1015
      %v1057 = vfloor.f32 %v1016
      %v1058 = vfloor.f32 %v1017
      %v1059 = vfloor.f32 %v1018
      %v1060 = vmul.f32 %v1019, 18.0
      %v1061 = vmul.f32 %v1020, 18.0
      %v1062 = vmul.f32 %v1021, 18.0
      %v1063 = vmul.f32 %v1022, 18.0
      %v1064 = vmul.f32 %v1023, 18.0
      %v1065 = vmul.f32 %v1024, 18.0
      %v1066 = vmul.f32 %v1025, 18.0
      %v1067 = vmul.f32 %v1026, 18.0
      %v1068 = vmul.f32 %v1027, 18.0
      %v1069 = vmul.f32 %v1028, 18.0
      %v1070 = vmul.f32 %v1029, 18.0
      %v1071 = vmul.f32 %v1030, 18.0
      %v1072 = vmul.f32 %v1031, 18.0
      %v1073 = vmul.f32 %v1032, 18.0
      %v1074 = vmul.f32 %v1033, 18.0
      %v1075 = vmul.f32 %v1034, 18.0
      %v1076 = vmul.f32 %v1035, 18.0
      %v1077 = vmul.f32 %v1036, 18.0
      %v1078 = vmul.f32 %v1037, 18.0
      %v1079 = vmul.f32 %v1038, 18.0
      %v1080 = vmul.f32 %v1039, 18.0
      %v1081 = vmul.f32 %v1040, 18.0
      %v1082 = vmul.f32 %v1041, 18.0
      %v1083 = vmul.f32 %v1042, 18.0
      %v1084 = vmul.f32 %v1043, 18.0
      %v1085 = vmul.f32 %v1044, 18.0
      %v1086 = vmul.f32 %v1045, 18.0
      %v1087 = vmul.f32 %v1046, 18.0
      %v1088 = vmul.f32 %v1047, 18.0
      %v1089 = vmul.f32 %v1048, 18.0
      %v1090 = vmul.f32 %v1049, 18.0
      %v1091 = vmul.f32 %v1050, 18.0
      %v1092 = vmul.f32 %v1051, 18.0
      %v1093 = vmul.f32 %v1052, 18.0
      %v1094 = vmul.f32 %v1053, 18.0
      %v1095 = vmul.f32 %v1054, 18.0
      %v1096 = vmul.f32 %v1055, 18.0
      %v1097 = vmul.f32 %v1056, 18.0
      %v1098 = vmul.f32 %v1057, 18.0
      %v1099 = vmul.f32 %v1058, 18.0
      %v1100 = vmul.f32 %v1059, 18.0
      %v1101 = vsub.f32 %v896, %v1060
      %v1102 = vsub.f32 %v897, %v1061
      %v1103 = vsub.f32 %v898, %v1062
      %v1104 = vsub.f32 %v899, %v1063
      %v1105 = vsub.f32 %v900, %v1064
      %v1106 = vsub.f32 %v901, %v1065
      %v1107 = vsub.f32 %v902, %v1066
      %v1108 = vsub.f32 %v903, %v1067
      %v1109 = vsub.f32 %v904, %v1068
      %v1110 = vsub.f32 %v905, %v1069
      %v1111 = vsub.f32 %v906, %v1070
      %v1112 = vsub.f32 %v907, %v1071
      %v1113 = vsub.f32 %v908, %v1072
      %v1114 = vsub.f32 %v909, %v1073
      %v1115 = vsub.f32 %v910, %v1074
      %v1116 = vsub.f32 %v911, %v1075
      %v1117 = vsub.f32 %v912, %v1076
      %v1118 = vsub.f32 %v913, %v1077
      %v1119 = vsub.f32 %v914, %v1078
      %v1120 = vsub.f32 %v915, %v1079
      %v1121 = vsub.f32 %v916, %v1080
      %v1122 = vsub.f32 %v917, %v1081
      %v1123 = vsub.f32 %v918, %v1082
      %v1124 = vsub.f32 %v919, %v1083
      %v1125 = vsub.f32 %v920, %v1084
      %v1126 = vsub.f32 %v921, %v1085
      %v1127 = vsub.f32 %v922, %v1086
      %v1128 = vsub.f32 %v923, %v1087
      %v1129 = vsub.f32 %v924, %v1088
      %v1130 = vsub.f32 %v925, %v1089
      %v1131 = vsub.f32 %v926, %v1090
      %v1132 = vsub.f32 %v927, %v1091
      %v1133 = vsub.f32 %v928, %v1092
      %v1134 = vsub.f32 %v929, %v1093
      %v1135 = vsub.f32 %v930, %v1094
      %v1136 = vsub.f32 %v931, %v1095
      %v1137 = vsub.f32 %v932, %v1096
      %v1138 = vsub.f32 %v933, %v1097
      %v1139 = vsub.f32 %v934, %v1098
      %v1140 = vsub.f32 %v935, %v1099
      %v1141 = vsub.f32 %v936, %v1100
      %vm1142 = vcmp.ge.f32.partialorder %v1019, 1.0
      %vm1143 = vcmp.ge.f32.partialorder %v1020, 1.0
      %vm1144 = vcmp.ge.f32.partialorder %v1021, 1.0
      %vm1145 = vcmp.ge.f32.partialorder %v1022, 1.0
      %vm1146 = vcmp.ge.f32.partialorder %v1023, 1.0
      %vm1147 = vcmp.ge.f32.partialorder %v1024, 1.0
      %vm1148 = vcmp.ge.f32.partialorder %v1025, 1.0
      %vm1149 = vcmp.ge.f32.partialorder %v1026, 1.0
      %vm1150 = vcmp.ge.f32.partialorder %v1027, 1.0
      %vm1151 = vcmp.ge.f32.partialorder %v1028, 1.0
      %vm1152 = vcmp.ge.f32.partialorder %v1029, 1.0
      %vm1153 = vcmp.ge.f32.partialorder %v1030, 1.0
      %vm1154 = vcmp.ge.f32.partialorder %v1031, 1.0
      %vm1155 = vcmp.ge.f32.partialorder %v1032, 1.0
      %vm1156 = vcmp.ge.f32.partialorder %v1033, 1.0
      %vm1157 = vcmp.ge.f32.partialorder %v1034, 1.0
      %vm1158 = vcmp.ge.f32.partialorder %v1035, 1.0
      %vm1159 = vcmp.ge.f32.partialorder %v1036, 1.0
      %vm1160 = vcmp.ge.f32.partialorder %v1037, 1.0
      %vm1161 = vcmp.ge.f32.partialorder %v1038, 1.0
      %vm1162 = vcmp.ge.f32.partialorder %v1039, 1.0
      %vm1163 = vcmp.ge.f32.partialorder %v1040, 1.0
      %vm1164 = vcmp.ge.f32.partialorder %v1041, 1.0
      %vm1165 = vcmp.ge.f32.partialorder %v1042, 1.0
      %vm1166 = vcmp.ge.f32.partialorder %v1043, 1.0
      %vm1167 = vcmp.ge.f32.partialorder %v1044, 1.0
      %vm1168 = vcmp.ge.f32.partialorder %v1045, 1.0
      %vm1169 = vcmp.ge.f32.partialorder %v1046, 1.0
      %vm1170 = vcmp.ge.f32.partialorder %v1047, 1.0
      %vm1171 = vcmp.ge.f32.partialorder %v1048, 1.0
      %vm1172 = vcmp.ge.f32.partialorder %v1049, 1.0
      %vm1173 = vcmp.ge.f32.partialorder %v1050, 1.0
      %vm1174 = vcmp.ge.f32.partialorder %v1051, 1.0
      %vm1175 = vcmp.ge.f32.partialorder %v1052, 1.0
      %vm1176 = vcmp.ge.f32.partialorder %v1053, 1.0
      %vm1177 = vcmp.ge.f32.partialorder %v1054, 1.0
      %vm1178 = vcmp.ge.f32.partialorder %v1055, 1.0
      %vm1179 = vcmp.ge.f32.partialorder %v1056, 1.0
      %vm1180 = vcmp.ge.f32.partialorder %v1057, 1.0
      %vm1181 = vcmp.ge.f32.partialorder %v1058, 1.0
      %vm1182 = vcmp.ge.f32.partialorder %v1059, 1.0
      %vm1183 = vcmp.le.f32.partialorder %v1019, 16.0
      %vm1184 = vcmp.le.f32.partialorder %v1020, 16.0
      %vm1185 = vcmp.le.f32.partialorder %v1021, 16.0
      %vm1186 = vcmp.le.f32.partialorder %v1022, 16.0
      %vm1187 = vcmp.le.f32.partialorder %v1023, 16.0
      %vm1188 = vcmp.le.f32.partialorder %v1024, 16.0
      %vm1189 = vcmp.le.f32.partialorder %v1025, 16.0
      %vm1190 = vcmp.le.f32.partialorder %v1026, 16.0
      %vm1191 = vcmp.le.f32.partialorder %v1027, 16.0
      %vm1192 = vcmp.le.f32.partialorder %v1028, 16.0
      %vm1193 = vcmp.le.f32.partialorder %v1029, 16.0
      %vm1194 = vcmp.le.f32.partialorder %v1030, 16.0
      %vm1195 = vcmp.le.f32.partialorder %v1031, 16.0
      %vm1196 = vcmp.le.f32.partialorder %v1032, 16.0
      %vm1197 = vcmp.le.f32.partialorder %v1033, 16.0
      %vm1198 = vcmp.le.f32.partialorder %v1034, 16.0
      %vm1199 = vcmp.le.f32.partialorder %v1035, 16.0
      %vm1200 = vcmp.le.f32.partialorder %v1036, 16.0
      %vm1201 = vcmp.le.f32.partialorder %v1037, 16.0
      %vm1202 = vcmp.le.f32.partialorder %v1038, 16.0
      %vm1203 = vcmp.le.f32.partialorder %v1039, 16.0
      %vm1204 = vcmp.le.f32.partialorder %v1040, 16.0
      %vm1205 = vcmp.le.f32.partialorder %v1041, 16.0
      %vm1206 = vcmp.le.f32.partialorder %v1042, 16.0
      %vm1207 = vcmp.le.f32.partialorder %v1043, 16.0
      %vm1208 = vcmp.le.f32.partialorder %v1044, 16.0
      %vm1209 = vcmp.le.f32.partialorder %v1045, 16.0
      %vm1210 = vcmp.le.f32.partialorder %v1046, 16.0
      %vm1211 = vcmp.le.f32.partialorder %v1047, 16.0
      %vm1212 = vcmp.le.f32.partialorder %v1048, 16.0
      %vm1213 = vcmp.le.f32.partialorder %v1049, 16.0
      %vm1214 = vcmp.le.f32.partialorder %v1050, 16.0
      %vm1215 = vcmp.le.f32.partialorder %v1051, 16.0
      %vm1216 = vcmp.le.f32.partialorder %v1052, 16.0
      %vm1217 = vcmp.le.f32.partialorder %v1053, 16.0
      %vm1218 = vcmp.le.f32.partialorder %v1054, 16.0
      %vm1219 = vcmp.le.f32.partialorder %v1055, 16.0
      %vm1220 = vcmp.le.f32.partialorder %v1056, 16.0
      %vm1221 = vcmp.le.f32.partialorder %v1057, 16.0
      %vm1222 = vcmp.le.f32.partialorder %v1058, 16.0
      %vm1223 = vcmp.le.f32.partialorder %v1059, 16.0
      %vm1224 = vmand %vm1142, %vm1183
      %vm1225 = vmand %vm1143, %vm1184
      %vm1226 = vmand %vm1144, %vm1185
      %vm1227 = vmand %vm1145, %vm1186
      %vm1228 = vmand %vm1146, %vm1187
      %vm1229 = vmand %vm1147, %vm1188
      %vm1230 = vmand %vm1148, %vm1189
      %vm1231 = vmand %vm1149, %vm1190
      %vm1232 = vmand %vm1150, %vm1191
      %vm1233 = vmand %vm1151, %vm1192
      %vm1234 = vmand %vm1152, %vm1193
      %vm1235 = vmand %vm1153, %vm1194
      %vm1236 = vmand %vm1154, %vm1195
      %vm1237 = vmand %vm1155, %vm1196
      %vm1238 = vmand %vm1156, %vm1197
      %vm1239 = vmand %vm1157, %vm1198
      %vm1240 = vmand %vm1158, %vm1199
      %vm1241 = vmand %vm1159, %vm1200
      %vm1242 = vmand %vm1160, %vm1201
      %vm1243 = vmand %vm1161, %vm1202
      %vm1244 = vmand %vm1162, %vm1203
      %vm1245 = vmand %vm1163, %vm1204
      %vm1246 = vmand %vm1164, %vm1205
      %vm1247 = vmand %vm1165, %vm1206
      %vm1248 = vmand %vm1166, %vm1207
      %vm1249 = vmand %vm1167, %vm1208
      %vm1250 = vmand %vm1168, %vm1209
      %vm1251 = vmand %vm1169, %vm1210
      %vm1252 = vmand %vm1170, %vm1211
      %vm1253 = vmand %vm1171, %vm1212
      %vm1254 = vmand %vm1172, %vm1213
      %vm1255 = vmand %vm1173, %vm1214
      %vm1256 = vmand %vm1174, %vm1215
      %vm1257 = vmand %vm1175, %vm1216
      %vm1258 = vmand %vm1176, %vm1217
      %vm1259 = vmand %vm1177, %vm1218
      %vm1260 = vmand %vm1178, %vm1219
      %vm1261 = vmand %vm1179, %vm1220
      %vm1262 = vmand %vm1180, %vm1221
      %vm1263 = vmand %vm1181, %vm1222
      %vm1264 = vmand %vm1182, %vm1223
      %vm1265 = vcmp.ge.f32.partialorder %v1101, 1.0
      %vm1266 = vcmp.ge.f32.partialorder %v1102, 1.0
      %vm1267 = vcmp.ge.f32.partialorder %v1103, 1.0
      %vm1268 = vcmp.ge.f32.partialorder %v1104, 1.0
      %vm1269 = vcmp.ge.f32.partialorder %v1105, 1.0
      %vm1270 = vcmp.ge.f32.partialorder %v1106, 1.0
      %vm1271 = vcmp.ge.f32.partialorder %v1107, 1.0
      %vm1272 = vcmp.ge.f32.partialorder %v1108, 1.0
      %vm1273 = vcmp.ge.f32.partialorder %v1109, 1.0
      %vm1274 = vcmp.ge.f32.partialorder %v1110, 1.0
      %vm1275 = vcmp.ge.f32.partialorder %v1111, 1.0
      %vm1276 = vcmp.ge.f32.partialorder %v1112, 1.0
      %vm1277 = vcmp.ge.f32.partialorder %v1113, 1.0
      %vm1278 = vcmp.ge.f32.partialorder %v1114, 1.0
      %vm1279 = vcmp.ge.f32.partialorder %v1115, 1.0
      %vm1280 = vcmp.ge.f32.partialorder %v1116, 1.0
      %vm1281 = vcmp.ge.f32.partialorder %v1117, 1.0
      %vm1282 = vcmp.ge.f32.partialorder %v1118, 1.0
      %vm1283 = vcmp.ge.f32.partialorder %v1119, 1.0
      %vm1284 = vcmp.ge.f32.partialorder %v1120, 1.0
      %vm1285 = vcmp.ge.f32.partialorder %v1121, 1.0
      %vm1286 = vcmp.ge.f32.partialorder %v1122, 1.0
      %vm1287 = vcmp.ge.f32.partialorder %v1123, 1.0
      %vm1288 = vcmp.ge.f32.partialorder %v1124, 1.0
      %vm1289 = vcmp.ge.f32.partialorder %v1125, 1.0
      %vm1290 = vcmp.ge.f32.partialorder %v1126, 1.0
      %vm1291 = vcmp.ge.f32.partialorder %v1127, 1.0
      %vm1292 = vcmp.ge.f32.partialorder %v1128, 1.0
      %vm1293 = vcmp.ge.f32.partialorder %v1129, 1.0
      %vm1294 = vcmp.ge.f32.partialorder %v1130, 1.0
      %vm1295 = vcmp.ge.f32.partialorder %v1131, 1.0
      %vm1296 = vcmp.ge.f32.partialorder %v1132, 1.0
      %vm1297 = vcmp.ge.f32.partialorder %v1133, 1.0
      %vm1298 = vcmp.ge.f32.partialorder %v1134, 1.0
      %vm1299 = vcmp.ge.f32.partialorder %v1135, 1.0
      %vm1300 = vcmp.ge.f32.partialorder %v1136, 1.0
      %vm1301 = vcmp.ge.f32.partialorder %v1137, 1.0
      %vm1302 = vcmp.ge.f32.partialorder %v1138, 1.0
      %vm1303 = vcmp.ge.f32.partialorder %v1139, 1.0
      %vm1304 = vcmp.ge.f32.partialorder %v1140, 1.0
      %vm1305 = vcmp.ge.f32.partialorder %v1141, 1.0
      %vm1306 = vmand %vm1224, %vm1265
      %vm1307 = vmand %vm1225, %vm1266
      %vm1308 = vmand %vm1226, %vm1267
      %vm1309 = vmand %vm1227, %vm1268
      %vm1310 = vmand %vm1228, %vm1269
      %vm1311 = vmand %vm1229, %vm1270
      %vm1312 = vmand %vm1230, %vm1271
      %vm1313 = vmand %vm1231, %vm1272
      %vm1314 = vmand %vm1232, %vm1273
      %vm1315 = vmand %vm1233, %vm1274
      %vm1316 = vmand %vm1234, %vm1275
      %vm1317 = vmand %vm1235, %vm1276
      %vm1318 = vmand %vm1236, %vm1277
      %vm1319 = vmand %vm1237, %vm1278
      %vm1320 = vmand %vm1238, %vm1279
      %vm1321 = vmand %vm1239, %vm1280
      %vm1322 = vmand %vm1240, %vm1281
      %vm1323 = vmand %vm1241, %vm1282
      %vm1324 = vmand %vm1242, %vm1283
      %vm1325 = vmand %vm1243, %vm1284
      %vm1326 = vmand %vm1244, %vm1285
      %vm1327 = vmand %vm1245, %vm1286
      %vm1328 = vmand %vm1246, %vm1287
      %vm1329 = vmand %vm1247, %vm1288
      %vm1330 = vmand %vm1248, %vm1289
      %vm1331 = vmand %vm1249, %vm1290
      %vm1332 = vmand %vm1250, %vm1291
      %vm1333 = vmand %vm1251, %vm1292
      %vm1334 = vmand %vm1252, %vm1293
      %vm1335 = vmand %vm1253, %vm1294
      %vm1336 = vmand %vm1254, %vm1295
      %vm1337 = vmand %vm1255, %vm1296
      %vm1338 = vmand %vm1256, %vm1297
      %vm1339 = vmand %vm1257, %vm1298
      %vm1340 = vmand %vm1258, %vm1299
      %vm1341 = vmand %vm1259, %vm1300
      %vm1342 = vmand %vm1260, %vm1301
      %vm1343 = vmand %vm1261, %vm1302
      %vm1344 = vmand %vm1262, %vm1303
      %vm1345 = vmand %vm1263, %vm1304
      %vm1346 = vmand %vm1264, %vm1305
      %vm1347 = vcmp.le.f32.partialorder %v1101, 16.0
      %vm1348 = vcmp.le.f32.partialorder %v1102, 16.0
      %vm1349 = vcmp.le.f32.partialorder %v1103, 16.0
      %vm1350 = vcmp.le.f32.partialorder %v1104, 16.0
      %vm1351 = vcmp.le.f32.partialorder %v1105, 16.0
      %vm1352 = vcmp.le.f32.partialorder %v1106, 16.0
      %vm1353 = vcmp.le.f32.partialorder %v1107, 16.0
      %vm1354 = vcmp.le.f32.partialorder %v1108, 16.0
      %vm1355 = vcmp.le.f32.partialorder %v1109, 16.0
      %vm1356 = vcmp.le.f32.partialorder %v1110, 16.0
      %vm1357 = vcmp.le.f32.partialorder %v1111, 16.0
      %vm1358 = vcmp.le.f32.partialorder %v1112, 16.0
      %vm1359 = vcmp.le.f32.partialorder %v1113, 16.0
      %vm1360 = vcmp.le.f32.partialorder %v1114, 16.0
      %vm1361 = vcmp.le.f32.partialorder %v1115, 16.0
      %vm1362 = vcmp.le.f32.partialorder %v1116, 16.0
      %vm1363 = vcmp.le.f32.partialorder %v1117, 16.0
      %vm1364 = vcmp.le.f32.partialorder %v1118, 16.0
      %vm1365 = vcmp.le.f32.partialorder %v1119, 16.0
      %vm1366 = vcmp.le.f32.partialorder %v1120, 16.0
      %vm1367 = vcmp.le.f32.partialorder %v1121, 16.0
      %vm1368 = vcmp.le.f32.partialorder %v1122, 16.0
      %vm1369 = vcmp.le.f32.partialorder %v1123, 16.0
      %vm1370 = vcmp.le.f32.partialorder %v1124, 16.0
      %vm1371 = vcmp.le.f32.partialorder %v1125, 16.0
      %vm1372 = vcmp.le.f32.partialorder %v1126, 16.0
      %vm1373 = vcmp.le.f32.partialorder %v1127, 16.0
      %vm1374 = vcmp.le.f32.partialorder %v1128, 16.0
      %vm1375 = vcmp.le.f32.partialorder %v1129, 16.0
      %vm1376 = vcmp.le.f32.partialorder %v1130, 16.0
      %vm1377 = vcmp.le.f32.partialorder %v1131, 16.0
      %vm1378 = vcmp.le.f32.partialorder %v1132, 16.0
      %vm1379 = vcmp.le.f32.partialorder %v1133, 16.0
      %vm1380 = vcmp.le.f32.partialorder %v1134, 16.0
      %vm1381 = vcmp.le.f32.partialorder %v1135, 16.0
      %vm1382 = vcmp.le.f32.partialorder %v1136, 16.0
      %vm1383 = vcmp.le.f32.partialorder %v1137, 16.0
      %vm1384 = vcmp.le.f32.partialorder %v1138, 16.0
      %vm1385 = vcmp.le.f32.partialorder %v1139, 16.0
      %vm1386 = vcmp.le.f32.partialorder %v1140, 16.0
      %vm1387 = vcmp.le.f32.partialorder %v1141, 16.0
      %vm1388 = vmand %vm1306, %vm1347
      %vm1389 = vmand %vm1307, %vm1348
      %vm1390 = vmand %vm1308, %vm1349
      %vm1391 = vmand %vm1309, %vm1350
      %vm1392 = vmand %vm1310, %vm1351
      %vm1393 = vmand %vm1311, %vm1352
      %vm1394 = vmand %vm1312, %vm1353
      %vm1395 = vmand %vm1313, %vm1354
      %vm1396 = vmand %vm1314, %vm1355
      %vm1397 = vmand %vm1315, %vm1356
      %vm1398 = vmand %vm1316, %vm1357
      %vm1399 = vmand %vm1317, %vm1358
      %vm1400 = vmand %vm1318, %vm1359
      %vm1401 = vmand %vm1319, %vm1360
      %vm1402 = vmand %vm1320, %vm1361
      %vm1403 = vmand %vm1321, %vm1362
      %vm1404 = vmand %vm1322, %vm1363
      %vm1405 = vmand %vm1323, %vm1364
      %vm1406 = vmand %vm1324, %vm1365
      %vm1407 = vmand %vm1325, %vm1366
      %vm1408 = vmand %vm1326, %vm1367
      %vm1409 = vmand %vm1327, %vm1368
      %vm1410 = vmand %vm1328, %vm1369
      %vm1411 = vmand %vm1329, %vm1370
      %vm1412 = vmand %vm1330, %vm1371
      %vm1413 = vmand %vm1331, %vm1372
      %vm1414 = vmand %vm1332, %vm1373
      %vm1415 = vmand %vm1333, %vm1374
      %vm1416 = vmand %vm1334, %vm1375
      %vm1417 = vmand %vm1335, %vm1376
      %vm1418 = vmand %vm1336, %vm1377
      %vm1419 = vmand %vm1337, %vm1378
      %vm1420 = vmand %vm1338, %vm1379
      %vm1421 = vmand %vm1339, %vm1380
      %vm1422 = vmand %vm1340, %vm1381
      %vm1423 = vmand %vm1341, %vm1382
      %vm1424 = vmand %vm1342, %vm1383
      %vm1425 = vmand %vm1343, %vm1384
      %vm1426 = vmand %vm1344, %vm1385
      %vm1427 = vmand %vm1345, %vm1386
      %vm1428 = vmand %vm1346, %vm1387
      %v1429 = vsel %vm1388, 1, 0
      %v1430 = vsel %vm1389, 1, 0
      %v1431 = vsel %vm1390, 1, 0
      %v1432 = vsel %vm1391, 1, 0
      %v1433 = vsel %vm1392, 1, 0
      %v1434 = vsel %vm1393, 1, 0
      %v1435 = vsel %vm1394, 1, 0
      %v1436 = vsel %vm1395, 1, 0
      %v1437 = vsel %vm1396, 1, 0
      %v1438 = vsel %vm1397, 1, 0
      %v1439 = vsel %vm1398, 1, 0
      %v1440 = vsel %vm1399, 1, 0
      %v1441 = vsel %vm1400, 1, 0
      %v1442 = vsel %vm1401, 1, 0
      %v1443 = vsel %vm1402, 1, 0
      %v1444 = vsel %vm1403, 1, 0
      %v1445 = vsel %vm1404, 1, 0
      %v1446 = vsel %vm1405, 1, 0
      %v1447 = vsel %vm1406, 1, 0
      %v1448 = vsel %vm1407, 1, 0
      %v1449 = vsel %vm1408, 1, 0
      %v1450 = vsel %vm1409, 1, 0
      %v1451 = vsel %vm1410, 1, 0
      %v1452 = vsel %vm1411, 1, 0
      %v1453 = vsel %vm1412, 1, 0
      %v1454 = vsel %vm1413, 1, 0
      %v1455 = vsel %vm1414, 1, 0
      %v1456 = vsel %vm1415, 1, 0
      %v1457 = vsel %vm1416, 1, 0
      %v1458 = vsel %vm1417, 1, 0
      %v1459 = vsel %vm1418, 1, 0
      %v1460 = vsel %vm1419, 1, 0
      %v1461 = vsel %vm1420, 1, 0
      %v1462 = vsel %vm1421, 1, 0
      %v1463 = vsel %vm1422, 1, 0
      %v1464 = vsel %vm1423, 1, 0
      %v1465 = vsel %vm1424, 1, 0
      %v1466 = vsel %vm1425, 1, 0
      %v1467 = vsel %vm1426, 1, 0
      %v1468 = vsel %vm1427, 1, 0
      %v1469 = vsel %vm1428, 1, 0
      %vm1470 = vcmp.eq.s32.totalorder %v1429, 1
      %vm1471 = vcmp.eq.s32.totalorder %v1430, 1
      %vm1472 = vcmp.eq.s32.totalorder %v1431, 1
      %vm1473 = vcmp.eq.s32.totalorder %v1432, 1
      %vm1474 = vcmp.eq.s32.totalorder %v1433, 1
      %vm1475 = vcmp.eq.s32.totalorder %v1434, 1
      %vm1476 = vcmp.eq.s32.totalorder %v1435, 1
      %vm1477 = vcmp.eq.s32.totalorder %v1436, 1
      %vm1478 = vcmp.eq.s32.totalorder %v1437, 1
      %vm1479 = vcmp.eq.s32.totalorder %v1438, 1
      %vm1480 = vcmp.eq.s32.totalorder %v1439, 1
      %vm1481 = vcmp.eq.s32.totalorder %v1440, 1
      %vm1482 = vcmp.eq.s32.totalorder %v1441, 1
      %vm1483 = vcmp.eq.s32.totalorder %v1442, 1
      %vm1484 = vcmp.eq.s32.totalorder %v1443, 1
      %vm1485 = vcmp.eq.s32.totalorder %v1444, 1
      %vm1486 = vcmp.eq.s32.totalorder %v1445, 1
      %vm1487 = vcmp.eq.s32.totalorder %v1446, 1
      %vm1488 = vcmp.eq.s32.totalorder %v1447, 1
      %vm1489 = vcmp.eq.s32.totalorder %v1448, 1
      %vm1490 = vcmp.eq.s32.totalorder %v1449, 1
      %vm1491 = vcmp.eq.s32.totalorder %v1450, 1
      %vm1492 = vcmp.eq.s32.totalorder %v1451, 1
      %vm1493 = vcmp.eq.s32.totalorder %v1452, 1
      %vm1494 = vcmp.eq.s32.totalorder %v1453, 1
      %vm1495 = vcmp.eq.s32.totalorder %v1454, 1
      %vm1496 = vcmp.eq.s32.totalorder %v1455, 1
      %vm1497 = vcmp.eq.s32.totalorder %v1456, 1
      %vm1498 = vcmp.eq.s32.totalorder %v1457, 1
      %vm1499 = vcmp.eq.s32.totalorder %v1458, 1
      %vm1500 = vcmp.eq.s32.totalorder %v1459, 1
      %vm1501 = vcmp.eq.s32.totalorder %v1460, 1
      %vm1502 = vcmp.eq.s32.totalorder %v1461, 1
      %vm1503 = vcmp.eq.s32.totalorder %v1462, 1
      %vm1504 = vcmp.eq.s32.totalorder %v1463, 1
      %vm1505 = vcmp.eq.s32.totalorder %v1464, 1
      %vm1506 = vcmp.eq.s32.totalorder %v1465, 1
      %vm1507 = vcmp.eq.s32.totalorder %v1466, 1
      %vm1508 = vcmp.eq.s32.totalorder %v1467, 1
      %vm1509 = vcmp.eq.s32.totalorder %v1468, 1
      %vm1510 = vcmp.eq.s32.totalorder %v1469, 1
      %v1511 = vsel %vm1470, %v813, 0.0
      %v1512 = vsel %vm1471, %v814, 0.0
      %v1513 = vsel %vm1472, %v815, 0.0
      %v1514 = vsel %vm1473, %v816, 0.0
      %v1515 = vsel %vm1474, %v817, 0.0
      %v1516 = vsel %vm1475, %v818, 0.0
      %v1517 = vsel %vm1476, %v819, 0.0
      %v1518 = vsel %vm1477, %v820, 0.0
      %v1519 = vsel %vm1478, %v821, 0.0
      %v1520 = vsel %vm1479, %v822, 0.0
      %v1521 = vsel %vm1480, %v823, 0.0
      %v1522 = vsel %vm1481, %v824, 0.0
      %v1523 = vsel %vm1482, %v825, 0.0
      %v1524 = vsel %vm1483, %v826, 0.0
      %v1525 = vsel %vm1484, %v827, 0.0
      %v1526 = vsel %vm1485, %v828, 0.0
      %v1527 = vsel %vm1486, %v829, 0.0
      %v1528 = vsel %vm1487, %v830, 0.0
      %v1529 = vsel %vm1488, %v831, 0.0
      %v1530 = vsel %vm1489, %v832, 0.0
      %v1531 = vsel %vm1490, %v833, 0.0
      %v1532 = vsel %vm1491, %v834, 0.0
      %v1533 = vsel %vm1492, %v835, 0.0
      %v1534 = vsel %vm1493, %v836, 0.0
      %v1535 = vsel %vm1494, %v837, 0.0
      %v1536 = vsel %vm1495, %v838, 0.0
      %v1537 = vsel %vm1496, %v839, 0.0
      %v1538 = vsel %vm1497, %v840, 0.0
      %v1539 = vsel %vm1498, %v841, 0.0
      %v1540 = vsel %vm1499, %v842, 0.0
      %v1541 = vsel %vm1500, %v843, 0.0
      %v1542 = vsel %vm1501, %v844, 0.0
      %v1543 = vsel %vm1502, %v845, 0.0
      %v1544 = vsel %vm1503, %v846, 0.0
      %v1545 = vsel %vm1504, %v847, 0.0
      %v1546 = vsel %vm1505, %v848, 0.0
      %v1547 = vsel %vm1506, %v849, 0.0
      %v1548 = vsel %vm1507, %v850, 0.0
      %v1549 = vsel %vm1508, %v851, 0.0
      %v1550 = vsel %vm1509, %v852, 0.0
      %v1551 = vsel %vm1510, %v853, 0.0
      %1552 = vst [vmem:[#allocation2] sm:$0xff] 0.0
      %1553 = vst [vmem:[#allocation2 + $0x8] sm:$0xff] 0.0
      %1554 = vst [vmem:[#allocation2 + $0x10] sm:$0xff] 0.0
      %1555 = vst [vmem:[#allocation2 + $0x160] sm:$0xff] 0.0
      %1556 = vst [vmem:[#allocation2 + $0x168] sm:$0xff] 0.0
      %1557 = vst [vmem:[#allocation2 + $0x170] sm:$0xff] 0.0
      %1558 = vst [vmem:[#allocation2 + $0x18] sm:$0xff] %v1511
      %1559 = vst [vmem:[#allocation2 + $0x20] sm:$0xff] %v1512
      %1560 = vst [vmem:[#allocation2 + $0x28] sm:$0xff] %v1513
      %1561 = vst [vmem:[#allocation2 + $0x30] sm:$0xff] %v1514
      %1562 = vst [vmem:[#allocation2 + $0x38] sm:$0xff] %v1515
      %1563 = vst [vmem:[#allocation2 + $0x40] sm:$0xff] %v1516
      %1564 = vst [vmem:[#allocation2 + $0x48] sm:$0xff] %v1517
      %1565 = vst [vmem:[#allocation2 + $0x50] sm:$0xff] %v1518
      %1566 = vst [vmem:[#allocation2 + $0x58] sm:$0xff] %v1519
      %1567 = vst [vmem:[#allocation2 + $0x60] sm:$0xff] %v1520
      %1568 = vst [vmem:[#allocation2 + $0x68] sm:$0xff] %v1521
      %1569 = vst [vmem:[#allocation2 + $0x70] sm:$0xff] %v1522
      %1570 = vst [vmem:[#allocation2 + $0x78] sm:$0xff] %v1523
      %1571 = vst [vmem:[#allocation2 + $0x80] sm:$0xff] %v1524
      %1572 = vst [vmem:[#allocation2 + $0x88] sm:$0xff] %v1525
      %1573 = vst [vmem:[#allocation2 + $0x90] sm:$0xff] %v1526
      %1574 = vst [vmem:[#allocation2 + $0x98] sm:$0xff] %v1527
      %1575 = vst [vmem:[#allocation2 + $0xa0] sm:$0xff] %v1528
      %1576 = vst [vmem:[#allocation2 + $0xa8] sm:$0xff] %v1529
      %1577 = vst [vmem:[#allocation2 + $0xb0] sm:$0xff] %v1530
      %1578 = vst [vmem:[#allocation2 + $0xb8] sm:$0xff] %v1531
      %1579 = vst [vmem:[#allocation2 + $0xc0] sm:$0xff] %v1532
      %1580 = vst [vmem:[#allocation2 + $0xc8] sm:$0xff] %v1533
      %1581 = vst [vmem:[#allocation2 + $0xd0] sm:$0xff] %v1534
      %1582 = vst [vmem:[#allocation2 + $0xd8] sm:$0xff] %v1535
      %1583 = vst [vmem:[#allocation2 + $0xe0] sm:$0xff] %v1536
      %1584 = vst [vmem:[#allocation2 + $0xe8] sm:$0xff] %v1537
      %1585 = vst [vmem:[#allocation2 + $0xf0] sm:$0xff] %v1538
      %1586 = vst [vmem:[#allocation2 + $0xf8] sm:$0xff] %v1539
      %1587 = vst [vmem:[#allocation2 + $0x100] sm:$0xff] %v1540
      %1588 = vst [vmem:[#allocation2 + $0x108] sm:$0xff] %v1541
      %1589 = vst [vmem:[#allocation2 + $0x110] sm:$0xff] %v1542
      %1590 = vst [vmem:[#allocation2 + $0x118] sm:$0xff] %v1543
      %1591 = vst [vmem:[#allocation2 + $0x120] sm:$0xff] %v1544
      %1592 = vst [vmem:[#allocation2 + $0x128] sm:$0xff] %v1545
      %1593 = vst [vmem:[#allocation2 + $0x130] sm:$0xff] %v1546
      %1594 = vst [vmem:[#allocation2 + $0x138] sm:$0xff] %v1547
      %1595 = vst [vmem:[#allocation2 + $0x140] sm:$0xff] %v1548
      %1596 = vst [vmem:[#allocation2 + $0x148] sm:$0xff] %v1549
      %1597 = vst [vmem:[#allocation2 + $0x150] sm:$0xff] %v1550
      %1598 = vst [vmem:[#allocation2 + $0x158] sm:$0xff] %v1551
      %v1599 = vpack.c.bf16 %v1512, %v1511
      %v1600 = vpack.c.bf16 %v1514, %v1513
      %v1601 = vpack.c.bf16 %v1516, %v1515
      %v1602 = vpack.c.bf16 %v1518, %v1517
      %v1603 = vpack.c.bf16 %v1520, %v1519
      %v1604 = vpack.c.bf16 %v1522, %v1521
      %v1605 = vpack.c.bf16 %v1524, %v1523
      %v1606 = vpack.c.bf16 %v1526, %v1525
      %v1607 = vpack.c.bf16 %v1528, %v1527
      %v1608 = vpack.c.bf16 %v1530, %v1529
      %v1609 = vpack.c.bf16 %v1532, %v1531
      %v1610 = vpack.c.bf16 %v1534, %v1533
      %v1611 = vpack.c.bf16 %v1536, %v1535
      %v1612 = vpack.c.bf16 %v1538, %v1537
      %v1613 = vpack.c.bf16 %v1540, %v1539
      %v1614 = vpack.c.bf16 %v1542, %v1541
      %v1615 = vpack.c.bf16 %v1544, %v1543
      %v1616 = vpack.c.bf16 %v1546, %v1545
      %v1617 = vpack.c.bf16 %v1548, %v1547
      %v1618 = vpack.c.bf16 %v1550, %v1549
      %v1619 = vpack.c.bf16 %v1551, %v1551
      %v1620 = vld [vmem:[%s5] sm:$0xf]
      %v1621 = vld [vmem:[%s5 + $0x4] sm:$0xf]
      %v1622 = vld [vmem:[%s5 + $0x8] sm:$0xf]
      %v1623 = vld [vmem:[%s5 + $0xc] sm:$0xf]
      %v1624 = vld [vmem:[%s5 + $0x10] sm:$0xf]
      %v1625 = vld [vmem:[%s5 + $0x14] sm:$0xf]
      %v1626 = vld [vmem:[%s5 + $0x18] sm:$0xf]
      %v1627 = vld [vmem:[%s5 + $0x1c] sm:$0xf]
      %v1628 = vld [vmem:[%s5 + $0x20] sm:$0xf]
      %v1629 = vld [vmem:[%s5 + $0x24] sm:$0xf]
      %v1630 = vld [vmem:[%s5 + $0x28] sm:$0xf]
      %v1631 = vld [vmem:[%s5 + $0x2c] sm:$0xf]
      %v1632 = vld [vmem:[%s5 + $0x30] sm:$0xf]
      %v1633 = vld [vmem:[%s5 + $0x34] sm:$0xf]
      %v1634 = vld [vmem:[%s5 + $0x38] sm:$0xf]
      %v1635 = vld [vmem:[%s5 + $0x3c] sm:$0xf]
      %v1636 = vld [vmem:[#allocation2 + $0x5] sm:$0xff]
      %v1637 = vld [vmem:[#allocation2 + $0xd] sm:$0xff]
      %v1638 = vld [vmem:[#allocation2 + $0x15] sm:$0xff]
      %v1639 = vld [vmem:[#allocation2 + $0x1d] sm:$0xff]
      %v1640 = vld [vmem:[#allocation2 + $0x25] sm:$0xff]
      %v1641 = vld [vmem:[#allocation2 + $0x2d] sm:$0xff]
      %v1642 = vld [vmem:[#allocation2 + $0x35] sm:$0xff]
      %v1643 = vld [vmem:[#allocation2 + $0x3d] sm:$0xff]
      %v1644 = vld [vmem:[#allocation2 + $0x45] sm:$0xff]
      %v1645 = vld [vmem:[#allocation2 + $0x4d] sm:$0xff]
      %v1646 = vld [vmem:[#allocation2 + $0x55] sm:$0xff]
      %v1647 = vld [vmem:[#allocation2 + $0x5d] sm:$0xff]
      %v1648 = vld [vmem:[#allocation2 + $0x65] sm:$0xff]
      %v1649 = vld [vmem:[#allocation2 + $0x6d] sm:$0xff]
      %v1650 = vld [vmem:[#allocation2 + $0x75] sm:$0xff]
      %v1651 = vld [vmem:[#allocation2 + $0x7d] sm:$0xff]
      %v1652 = vld [vmem:[#allocation2 + $0x85] sm:$0xff]
      %v1653 = vld [vmem:[#allocation2 + $0x8d] sm:$0xff]
      %v1654 = vld [vmem:[#allocation2 + $0x95] sm:$0xff]
      %v1655 = vld [vmem:[#allocation2 + $0x9d] sm:$0xff]
      %v1656 = vld [vmem:[#allocation2 + $0xa5] sm:$0xff]
      %v1657 = vld [vmem:[#allocation2 + $0xad] sm:$0xff]
      %v1658 = vld [vmem:[#allocation2 + $0xb5] sm:$0xff]
      %v1659 = vld [vmem:[#allocation2 + $0xbd] sm:$0xff]
      %v1660 = vld [vmem:[#allocation2 + $0xc5] sm:$0xff]
      %v1661 = vld [vmem:[#allocation2 + $0xcd] sm:$0xff]
      %v1662 = vld [vmem:[#allocation2 + $0xd5] sm:$0xff]
      %v1663 = vld [vmem:[#allocation2 + $0xdd] sm:$0xff]
      %v1664 = vld [vmem:[#allocation2 + $0xe5] sm:$0xff]
      %v1665 = vld [vmem:[#allocation2 + $0xed] sm:$0xff]
      %v1666 = vld [vmem:[#allocation2 + $0xf5] sm:$0xff]
      %v1667 = vld [vmem:[#allocation2 + $0xfd] sm:$0xff]
      %v1668 = vld [vmem:[#allocation2 + $0x105] sm:$0xff]
      %v1669 = vld [vmem:[#allocation2 + $0x10d] sm:$0xff]
      %v1670 = vld [vmem:[#allocation2 + $0x115] sm:$0xff]
      %v1671 = vld [vmem:[#allocation2 + $0x11d] sm:$0xff]
      %v1672 = vld [vmem:[#allocation2 + $0x125] sm:$0xff]
      %v1673 = vld [vmem:[#allocation2 + $0x12d] sm:$0xff]
      %v1674 = vld [vmem:[#allocation2 + $0x135] sm:$0xff]
      %v1675 = vld [vmem:[#allocation2 + $0x13d] sm:$0xff]
      %v1676 = vld [vmem:[#allocation2 + $0x145] sm:$0xff]
      %v1677 = vpack.c.bf16 %v1636, %v1636
      %v1678 = vpack.c.bf16 %v1637, %v1637
      %v1679 = vpack.c.bf16 %v1638, %v1638
      %v1680 = vpack.c.bf16 %v1639, %v1639
      %v1681 = vpack.c.bf16 %v1640, %v1640
      %v1682 = vpack.c.bf16 %v1641, %v1641
      %v1683 = vpack.c.bf16 %v1642, %v1642
      %v1684 = vpack.c.bf16 %v1643, %v1643
      %v1685 = vpack.c.bf16 %v1644, %v1644
      %v1686 = vpack.c.bf16 %v1645, %v1645
      %v1687 = vpack.c.bf16 %v1646, %v1646
      %v1688 = vpack.c.bf16 %v1647, %v1647
      %v1689 = vpack.c.bf16 %v1648, %v1648
      %v1690 = vpack.c.bf16 %v1649, %v1649
      %v1691 = vpack.c.bf16 %v1650, %v1650
      %v1692 = vpack.c.bf16 %v1651, %v1651
      %v1693 = vpack.c.bf16 %v1652, %v1652
      %v1694 = vpack.c.bf16 %v1653, %v1653
      %v1695 = vpack.c.bf16 %v1654, %v1654
      %v1696 = vpack.c.bf16 %v1655, %v1655
      %v1697 = vpack.c.bf16 %v1656, %v1656
      %v1698 = vpack.c.bf16 %v1657, %v1657
      %v1699 = vpack.c.bf16 %v1658, %v1658
      %v1700 = vpack.c.bf16 %v1659, %v1659
      %v1701 = vpack.c.bf16 %v1660, %v1660
      %v1702 = vpack.c.bf16 %v1661, %v1661
      %v1703 = vpack.c.bf16 %v1662, %v1662
      %v1704 = vpack.c.bf16 %v1663, %v1663
      %v1705 = vpack.c.bf16 %v1664, %v1664
      %v1706 = vpack.c.bf16 %v1665, %v1665
      %v1707 = vpack.c.bf16 %v1666, %v1666
      %v1708 = vpack.c.bf16 %v1667, %v1667
      %v1709 = vpack.c.bf16 %v1668, %v1668
      %v1710 = vpack.c.bf16 %v1669, %v1669
      %v1711 = vpack.c.bf16 %v1670, %v1670
      %v1712 = vpack.c.bf16 %v1671, %v1671
      %v1713 = vpack.c.bf16 %v1672, %v1672
      %v1714 = vpack.c.bf16 %v1673, %v1673
      %v1715 = vpack.c.bf16 %v1674, %v1674
      %v1716 = vpack.c.bf16 %v1675, %v1675
      %v1717 = vpack.c.bf16 %v1676, %v1676
      %v1718 = vld [vmem:[#allocation2 + $0x6] sm:$0xff]
      %v1719 = vld [vmem:[#allocation2 + $0xe] sm:$0xff]
      %v1720 = vld [vmem:[#allocation2 + $0x16] sm:$0xff]
      %v1721 = vld [vmem:[#allocation2 + $0x1e] sm:$0xff]
      %v1722 = vld [vmem:[#allocation2 + $0x26] sm:$0xff]
      %v1723 = vld [vmem:[#allocation2 + $0x2e] sm:$0xff]
      %v1724 = vld [vmem:[#allocation2 + $0x36] sm:$0xff]
      %v1725 = vld [vmem:[#allocation2 + $0x3e] sm:$0xff]
      %v1726 = vld [vmem:[#allocation2 + $0x46] sm:$0xff]
      %v1727 = vld [vmem:[#allocation2 + $0x4e] sm:$0xff]
      %v1728 = vld [vmem:[#allocation2 + $0x56] sm:$0xff]
      %v1729 = vld [vmem:[#allocation2 + $0x5e] sm:$0xff]
      %v1730 = vld [vmem:[#allocation2 + $0x66] sm:$0xff]
      %v1731 = vld [vmem:[#allocation2 + $0x6e] sm:$0xff]
      %v1732 = vld [vmem:[#allocation2 + $0x76] sm:$0xff]
      %v1733 = vld [vmem:[#allocation2 + $0x7e] sm:$0xff]
      %v1734 = vld [vmem:[#allocation2 + $0x86] sm:$0xff]
      %v1735 = vld [vmem:[#allocation2 + $0x8e] sm:$0xff]
      %v1736 = vld [vmem:[#allocation2 + $0x96] sm:$0xff]
      %v1737 = vld [vmem:[#allocation2 + $0x9e] sm:$0xff]
      %v1738 = vld [vmem:[#allocation2 + $0xa6] sm:$0xff]
      %v1739 = vld [vmem:[#allocation2 + $0xae] sm:$0xff]
      %v1740 = vld [vmem:[#allocation2 + $0xb6] sm:$0xff]
      %v1741 = vld [vmem:[#allocation2 + $0xbe] sm:$0xff]
      %v1742 = vld [vmem:[#allocation2 + $0xc6] sm:$0xff]
      %v1743 = vld [vmem:[#allocation2 + $0xce] sm:$0xff]
      %v1744 = vld [vmem:[#allocation2 + $0xd6] sm:$0xff]
      %v1745 = vld [vmem:[#allocation2 + $0xde] sm:$0xff]
      %v1746 = vld [vmem:[#allocation2 + $0xe6] sm:$0xff]
      %v1747 = vld [vmem:[#allocation2 + $0xee] sm:$0xff]
      %v1748 = vld [vmem:[#allocation2 + $0xf6] sm:$0xff]
      %v1749 = vld [vmem:[#allocation2 + $0xfe] sm:$0xff]
      %v1750 = vld [vmem:[#allocation2 + $0x106] sm:$0xff]
      %v1751 = vld [vmem:[#allocation2 + $0x10e] sm:$0xff]
      %v1752 = vld [vmem:[#allocation2 + $0x116] sm:$0xff]
      %v1753 = vld [vmem:[#allocation2 + $0x11e] sm:$0xff]
      %v1754 = vld [vmem:[#allocation2 + $0x126] sm:$0xff]
      %v1755 = vld [vmem:[#allocation2 + $0x12e] sm:$0xff]
      %v1756 = vld [vmem:[#allocation2 + $0x136] sm:$0xff]
      %v1757 = vld [vmem:[#allocation2 + $0x13e] sm:$0xff]
      %v1758 = vld [vmem:[#allocation2 + $0x146] sm:$0xff]
      %v1759 = vpack.c.bf16 %v1718, %v1718
      %v1760 = vpack.c.bf16 %v1719, %v1719
      %v1761 = vpack.c.bf16 %v1720, %v1720
      %v1762 = vpack.c.bf16 %v1721, %v1721
      %v1763 = vpack.c.bf16 %v1722, %v1722
      %v1764 = vpack.c.bf16 %v1723, %v1723
      %v1765 = vpack.c.bf16 %v1724, %v1724
      %v1766 = vpack.c.bf16 %v1725, %v1725
      %v1767 = vpack.c.bf16 %v1726, %v1726
      %v1768 = vpack.c.bf16 %v1727, %v1727
      %v1769 = vpack.c.bf16 %v1728, %v1728
      %v1770 = vpack.c.bf16 %v1729, %v1729
      %v1771 = vpack.c.bf16 %v1730, %v1730
      %v1772 = vpack.c.bf16 %v1731, %v1731
      %v1773 = vpack.c.bf16 %v1732, %v1732
      %v1774 = vpack.c.bf16 %v1733, %v1733
      %v1775 = vpack.c.bf16 %v1734, %v1734
      %v1776 = vpack.c.bf16 %v1735, %v1735
      %v1777 = vpack.c.bf16 %v1736, %v1736
      %v1778 = vpack.c.bf16 %v1737, %v1737
      %v1779 = vpack.c.bf16 %v1738, %v1738
      %v1780 = vpack.c.bf16 %v1739, %v1739
      %v1781 = vpack.c.bf16 %v1740, %v1740
      %v1782 = vpack.c.bf16 %v1741, %v1741
      %v1783 = vpack.c.bf16 %v1742, %v1742
      %v1784 = vpack.c.bf16 %v1743, %v1743
      %v1785 = vpack.c.bf16 %v1744, %v1744
      %v1786 = vpack.c.bf16 %v1745, %v1745
      %v1787 = vpack.c.bf16 %v1746, %v1746
      %v1788 = vpack.c.bf16 %v1747, %v1747
      %v1789 = vpack.c.bf16 %v1748, %v1748
      %v1790 = vpack.c.bf16 %v1749, %v1749
      %v1791 = vpack.c.bf16 %v1750, %v1750
      %v1792 = vpack.c.bf16 %v1751, %v1751
      %v1793 = vpack.c.bf16 %v1752, %v1752
      %v1794 = vpack.c.bf16 %v1753, %v1753
      %v1795 = vpack.c.bf16 %v1754, %v1754
      %v1796 = vpack.c.bf16 %v1755, %v1755
      %v1797 = vpack.c.bf16 %v1756, %v1756
      %v1798 = vpack.c.bf16 %v1757, %v1757
      %v1799 = vpack.c.bf16 %v1758, %v1758
      %v1800 = vld [vmem:[#allocation2 + $0x7] sm:$0xff]
      %v1801 = vld [vmem:[#allocation2 + $0xf] sm:$0xff]
      %v1802 = vld [vmem:[#allocation2 + $0x17] sm:$0xff]
      %v1803 = vld [vmem:[#allocation2 + $0x1f] sm:$0xff]
      %v1804 = vld [vmem:[#allocation2 + $0x27] sm:$0xff]
      %v1805 = vld [vmem:[#allocation2 + $0x2f] sm:$0xff]
      %v1806 = vld [vmem:[#allocation2 + $0x37] sm:$0xff]
      %v1807 = vld [vmem:[#allocation2 + $0x3f] sm:$0xff]
      %v1808 = vld [vmem:[#allocation2 + $0x47] sm:$0xff]
      %v1809 = vld [vmem:[#allocation2 + $0x4f] sm:$0xff]
      %v1810 = vld [vmem:[#allocation2 + $0x57] sm:$0xff]
      %v1811 = vld [vmem:[#allocation2 + $0x5f] sm:$0xff]
      %v1812 = vld [vmem:[#allocation2 + $0x67] sm:$0xff]
      %v1813 = vld [vmem:[#allocation2 + $0x6f] sm:$0xff]
      %v1814 = vld [vmem:[#allocation2 + $0x77] sm:$0xff]
      %v1815 = vld [vmem:[#allocation2 + $0x7f] sm:$0xff]
      %v1816 = vld [vmem:[#allocation2 + $0x87] sm:$0xff]
      %v1817 = vld [vmem:[#allocation2 + $0x8f] sm:$0xff]
      %v1818 = vld [vmem:[#allocation2 + $0x97] sm:$0xff]
      %v1819 = vld [vmem:[#allocation2 + $0x9f] sm:$0xff]
      %v1820 = vld [vmem:[#allocation2 + $0xa7] sm:$0xff]
      %v1821 = vld [vmem:[#allocation2 + $0xaf] sm:$0xff]
      %v1822 = vld [vmem:[#allocation2 + $0xb7] sm:$0xff]
      %v1823 = vld [vmem:[#allocation2 + $0xbf] sm:$0xff]
      %v1824 = vld [vmem:[#allocation2 + $0xc7] sm:$0xff]
      %v1825 = vld [vmem:[#allocation2 + $0xcf] sm:$0xff]
      %v1826 = vld [vmem:[#allocation2 + $0xd7] sm:$0xff]
      %v1827 = vld [vmem:[#allocation2 + $0xdf] sm:$0xff]
      %v1828 = vld [vmem:[#allocation2 + $0xe7] sm:$0xff]
      %v1829 = vld [vmem:[#allocation2 + $0xef] sm:$0xff]
      %v1830 = vld [vmem:[#allocation2 + $0xf7] sm:$0xff]
      %v1831 = vld [vmem:[#allocation2 + $0xff] sm:$0xff]
      %v1832 = vld [vmem:[#allocation2 + $0x107] sm:$0xff]
      %v1833 = vld [vmem:[#allocation2 + $0x10f] sm:$0xff]
      %v1834 = vld [vmem:[#allocation2 + $0x117] sm:$0xff]
      %v1835 = vld [vmem:[#allocation2 + $0x11f] sm:$0xff]
      %v1836 = vld [vmem:[#allocation2 + $0x127] sm:$0xff]
      %v1837 = vld [vmem:[#allocation2 + $0x12f] sm:$0xff]
      %v1838 = vld [vmem:[#allocation2 + $0x137] sm:$0xff]
      %v1839 = vld [vmem:[#allocation2 + $0x13f] sm:$0xff]
      %v1840 = vld [vmem:[#allocation2 + $0x147] sm:$0xff]
      %v1841 = vpack.c.bf16 %v1800, %v1800
      %v1842 = vpack.c.bf16 %v1801, %v1801
      %v1843 = vpack.c.bf16 %v1802, %v1802
      %v1844 = vpack.c.bf16 %v1803, %v1803
      %v1845 = vpack.c.bf16 %v1804, %v1804
      %v1846 = vpack.c.bf16 %v1805, %v1805
      %v1847 = vpack.c.bf16 %v1806, %v1806
      %v1848 = vpack.c.bf16 %v1807, %v1807
      %v1849 = vpack.c.bf16 %v1808, %v1808
      %v1850 = vpack.c.bf16 %v1809, %v1809
      %v1851 = vpack.c.bf16 %v1810, %v1810
      %v1852 = vpack.c.bf16 %v1811, %v1811
      %v1853 = vpack.c.bf16 %v1812, %v1812
      %v1854 = vpack.c.bf16 %v1813, %v1813
      %v1855 = vpack.c.bf16 %v1814, %v1814
      %v1856 = vpack.c.bf16 %v1815, %v1815
      %v1857 = vpack.c.bf16 %v1816, %v1816
      %v1858 = vpack.c.bf16 %v1817, %v1817
      %v1859 = vpack.c.bf16 %v1818, %v1818
      %v1860 = vpack.c.bf16 %v1819, %v1819
      %v1861 = vpack.c.bf16 %v1820, %v1820
      %v1862 = vpack.c.bf16 %v1821, %v1821
      %v1863 = vpack.c.bf16 %v1822, %v1822
      %v1864 = vpack.c.bf16 %v1823, %v1823
      %v1865 = vpack.c.bf16 %v1824, %v1824
      %v1866 = vpack.c.bf16 %v1825, %v1825
      %v1867 = vpack.c.bf16 %v1826, %v1826
      %v1868 = vpack.c.bf16 %v1827, %v1827
      %v1869 = vpack.c.bf16 %v1828, %v1828
      %v1870 = vpack.c.bf16 %v1829, %v1829
      %v1871 = vpack.c.bf16 %v1830, %v1830
      %v1872 = vpack.c.bf16 %v1831, %v1831
      %v1873 = vpack.c.bf16 %v1832, %v1832
      %v1874 = vpack.c.bf16 %v1833, %v1833
      %v1875 = vpack.c.bf16 %v1834, %v1834
      %v1876 = vpack.c.bf16 %v1835, %v1835
      %v1877 = vpack.c.bf16 %v1836, %v1836
      %v1878 = vpack.c.bf16 %v1837, %v1837
      %v1879 = vpack.c.bf16 %v1838, %v1838
      %v1880 = vpack.c.bf16 %v1839, %v1839
      %v1881 = vpack.c.bf16 %v1840, %v1840
      %v1882 = vld [vmem:[#allocation2 + $0x14f] sm:$0xff]
      %v1883 = vld [vmem:[#allocation2 + $0x157] sm:$0xff]
      %v1884 = vpack.c.bf16 %v1882, %v1882
      %v1885 = vpack.c.bf16 %v1883, %v1883
      %v1927 = vunpack.c.l.b16 %v1677
      %v1928 = vunpack.c.l.b16 %v1678
      %v1929 = vunpack.c.l.b16 %v1679
      %v1930 = vunpack.c.l.b16 %v1680
      %v1931 = vunpack.c.l.b16 %v1681
      %v1932 = vunpack.c.l.b16 %v1682
      %v1933 = vunpack.c.l.b16 %v1683
      %v1934 = vunpack.c.l.b16 %v1684
      %v1935 = vunpack.c.l.b16 %v1685
      %v1936 = vunpack.c.l.b16 %v1686
      %v1937 = vunpack.c.l.b16 %v1687
      %v1938 = vunpack.c.l.b16 %v1688
      %v1939 = vunpack.c.l.b16 %v1689
      %v1940 = vunpack.c.l.b16 %v1690
      %v1941 = vunpack.c.l.b16 %v1691
      %v1942 = vunpack.c.l.b16 %v1692
      %v1943 = vunpack.c.l.b16 %v1693
      %v1944 = vunpack.c.l.b16 %v1694
      %v1945 = vunpack.c.l.b16 %v1695
      %v1946 = vunpack.c.l.b16 %v1696
      %v1947 = vunpack.c.l.b16 %v1697
      %v1948 = vunpack.c.l.b16 %v1698
      %v1949 = vunpack.c.l.b16 %v1699
      %v1950 = vunpack.c.l.b16 %v1700
      %v1951 = vunpack.c.l.b16 %v1701
      %v1952 = vunpack.c.l.b16 %v1702
      %v1953 = vunpack.c.l.b16 %v1703
      %v1954 = vunpack.c.l.b16 %v1704
      %v1955 = vunpack.c.l.b16 %v1705
      %v1956 = vunpack.c.l.b16 %v1706
      %v1957 = vunpack.c.l.b16 %v1707
      %v1958 = vunpack.c.l.b16 %v1708
      %v1959 = vunpack.c.l.b16 %v1709
      %v1960 = vunpack.c.l.b16 %v1710
      %v1961 = vunpack.c.l.b16 %v1711
      %v1962 = vunpack.c.l.b16 %v1712
      %v1963 = vunpack.c.l.b16 %v1713
      %v1964 = vunpack.c.l.b16 %v1714
      %v1965 = vunpack.c.l.b16 %v1715
      %v1966 = vunpack.c.l.b16 %v1716
      %v1967 = vunpack.c.l.b16 %v1717
      %v1968 = vpack.c.b16 %v1928, %v1927
      %v1969 = vpack.c.b16 %v1930, %v1929
      %v1970 = vpack.c.b16 %v1932, %v1931
      %v1971 = vpack.c.b16 %v1934, %v1933
      %v1972 = vpack.c.b16 %v1936, %v1935
      %v1973 = vpack.c.b16 %v1938, %v1937
      %v1974 = vpack.c.b16 %v1940, %v1939
      %v1975 = vpack.c.b16 %v1942, %v1941
      %v1976 = vpack.c.b16 %v1944, %v1943
      %v1977 = vpack.c.b16 %v1946, %v1945
      %v1978 = vpack.c.b16 %v1948, %v1947
      %v1979 = vpack.c.b16 %v1950, %v1949
      %v1980 = vpack.c.b16 %v1952, %v1951
      %v1981 = vpack.c.b16 %v1954, %v1953
      %v1982 = vpack.c.b16 %v1956, %v1955
      %v1983 = vpack.c.b16 %v1958, %v1957
      %v1984 = vpack.c.b16 %v1960, %v1959
      %v1985 = vpack.c.b16 %v1962, %v1961
      %v1986 = vpack.c.b16 %v1964, %v1963
      %v1987 = vpack.c.b16 %v1966, %v1965
      %v1988 = vpack.c.b16 %v1967, %v1967
      %v2051 = vunpack.c.l.b16 %v1759
      %v2052 = vunpack.c.l.b16 %v1760
      %v2053 = vunpack.c.l.b16 %v1761
      %v2054 = vunpack.c.l.b16 %v1762
      %v2055 = vunpack.c.l.b16 %v1763
      %v2056 = vunpack.c.l.b16 %v1764
      %v2057 = vunpack.c.l.b16 %v1765
      %v2058 = vunpack.c.l.b16 %v1766
      %v2059 = vunpack.c.l.b16 %v1767
      %v2060 = vunpack.c.l.b16 %v1768
      %v2061 = vunpack.c.l.b16 %v1769
      %v2062 = vunpack.c.l.b16 %v1770
      %v2063 = vunpack.c.l.b16 %v1771
      %v2064 = vunpack.c.l.b16 %v1772
      %v2065 = vunpack.c.l.b16 %v1773
      %v2066 = vunpack.c.l.b16 %v1774
      %v2067 = vunpack.c.l.b16 %v1775
      %v2068 = vunpack.c.l.b16 %v1776
      %v2069 = vunpack.c.l.b16 %v1777
      %v2070 = vunpack.c.l.b16 %v1778
      %v2071 = vunpack.c.l.b16 %v1779
      %v2072 = vunpack.c.l.b16 %v1780
      %v2073 = vunpack.c.l.b16 %v1781
      %v2074 = vunpack.c.l.b16 %v1782
      %v2075 = vunpack.c.l.b16 %v1783
      %v2076 = vunpack.c.l.b16 %v1784
      %v2077 = vunpack.c.l.b16 %v1785
      %v2078 = vunpack.c.l.b16 %v1786
      %v2079 = vunpack.c.l.b16 %v1787
      %v2080 = vunpack.c.l.b16 %v1788
      %v2081 = vunpack.c.l.b16 %v1789
      %v2082 = vunpack.c.l.b16 %v1790
      %v2083 = vunpack.c.l.b16 %v1791
      %v2084 = vunpack.c.l.b16 %v1792
      %v2085 = vunpack.c.l.b16 %v1793
      %v2086 = vunpack.c.l.b16 %v1794
      %v2087 = vunpack.c.l.b16 %v1795
      %v2088 = vunpack.c.l.b16 %v1796
      %v2089 = vunpack.c.l.b16 %v1797
      %v2090 = vunpack.c.l.b16 %v1798
      %v2091 = vunpack.c.l.b16 %v1799
      %v2092 = vpack.c.b16 %v2052, %v2051
      %v2093 = vpack.c.b16 %v2054, %v2053
      %v2094 = vpack.c.b16 %v2056, %v2055
      %v2095 = vpack.c.b16 %v2058, %v2057
      %v2096 = vpack.c.b16 %v2060, %v2059
      %v2097 = vpack.c.b16 %v2062, %v2061
      %v2098 = vpack.c.b16 %v2064, %v2063
      %v2099 = vpack.c.b16 %v2066, %v2065
      %v2100 = vpack.c.b16 %v2068, %v2067
      %v2101 = vpack.c.b16 %v2070, %v2069
      %v2102 = vpack.c.b16 %v2072, %v2071
      %v2103 = vpack.c.b16 %v2074, %v2073
      %v2104 = vpack.c.b16 %v2076, %v2075
      %v2105 = vpack.c.b16 %v2078, %v2077
      %v2106 = vpack.c.b16 %v2080, %v2079
      %v2107 = vpack.c.b16 %v2082, %v2081
      %v2108 = vpack.c.b16 %v2084, %v2083
      %v2109 = vpack.c.b16 %v2086, %v2085
      %v2110 = vpack.c.b16 %v2088, %v2087
      %v2111 = vpack.c.b16 %v2090, %v2089
      %v2112 = vpack.c.b16 %v2091, %v2091
      %v2175 = vunpack.c.l.b16 %v1841
      %v2176 = vunpack.c.l.b16 %v1842
      %v2177 = vunpack.c.l.b16 %v1843
      %v2178 = vunpack.c.l.b16 %v1844
      %v2179 = vunpack.c.l.b16 %v1845
      %v2180 = vunpack.c.l.b16 %v1846
      %v2181 = vunpack.c.l.b16 %v1847
      %v2182 = vunpack.c.l.b16 %v1848
      %v2183 = vunpack.c.l.b16 %v1849
      %v2184 = vunpack.c.l.b16 %v1850
      %v2185 = vunpack.c.l.b16 %v1851
      %v2186 = vunpack.c.l.b16 %v1852
      %v2187 = vunpack.c.l.b16 %v1853
      %v2188 = vunpack.c.l.b16 %v1854
      %v2189 = vunpack.c.l.b16 %v1855
      %v2190 = vunpack.c.l.b16 %v1856
      %v2191 = vunpack.c.l.b16 %v1857
      %v2192 = vunpack.c.l.b16 %v1858
      %v2193 = vunpack.c.l.b16 %v1859
      %v2194 = vunpack.c.l.b16 %v1860
      %v2195 = vunpack.c.l.b16 %v1861
      %v2196 = vunpack.c.l.b16 %v1862
      %v2197 = vunpack.c.l.b16 %v1863
      %v2198 = vunpack.c.l.b16 %v1864
      %v2199 = vunpack.c.l.b16 %v1865
      %v2200 = vunpack.c.l.b16 %v1866
      %v2201 = vunpack.c.l.b16 %v1867
      %v2202 = vunpack.c.l.b16 %v1868
      %v2203 = vunpack.c.l.b16 %v1869
      %v2204 = vunpack.c.l.b16 %v1870
      %v2205 = vunpack.c.l.b16 %v1871
      %v2206 = vunpack.c.l.b16 %v1872
      %v2207 = vunpack.c.l.b16 %v1873
      %v2208 = vunpack.c.l.b16 %v1874
      %v2209 = vunpack.c.l.b16 %v1875
      %v2210 = vunpack.c.l.b16 %v1876
      %v2211 = vunpack.c.l.b16 %v1877
      %v2212 = vunpack.c.l.b16 %v1878
      %v2213 = vunpack.c.l.b16 %v1879
      %v2214 = vunpack.c.l.b16 %v1880
      %v2215 = vunpack.c.l.b16 %v1881
      %v2216 = vpack.c.b16 %v2176, %v2175
      %v2217 = vpack.c.b16 %v2178, %v2177
      %v2218 = vpack.c.b16 %v2180, %v2179
      %v2219 = vpack.c.b16 %v2182, %v2181
      %v2220 = vpack.c.b16 %v2184, %v2183
      %v2221 = vpack.c.b16 %v2186, %v2185
      %v2222 = vpack.c.b16 %v2188, %v2187
      %v2223 = vpack.c.b16 %v2190, %v2189
      %v2224 = vpack.c.b16 %v2192, %v2191
      %v2225 = vpack.c.b16 %v2194, %v2193
      %v2226 = vpack.c.b16 %v2196, %v2195
      %v2227 = vpack.c.b16 %v2198, %v2197
      %v2228 = vpack.c.b16 %v2200, %v2199
      %v2229 = vpack.c.b16 %v2202, %v2201
      %v2230 = vpack.c.b16 %v2204, %v2203
      %v2231 = vpack.c.b16 %v2206, %v2205
      %v2232 = vpack.c.b16 %v2208, %v2207
      %v2233 = vpack.c.b16 %v2210, %v2209
      %v2234 = vpack.c.b16 %v2212, %v2211
      %v2235 = vpack.c.b16 %v2214, %v2213
      %v2236 = vpack.c.b16 %v2215, %v2215
      %v2260 = vunpack.c.l.b16 %v1884
      %v2261 = vunpack.c.l.b16 %v1885
      %v2262 = vpack.c.b16 %v2260, %v2215
      %v2263 = vpack.c.b16 %v2261, %v2261
      %v2266 = vld [vmem:[%s6] sm:$0xf]
      %v2267 = vld [vmem:[%s6 + $0x4] sm:$0xf]
      %v2268 = vld [vmem:[%s6 + $0x8] sm:$0xf]
      %v2269 = vld [vmem:[%s6 + $0xc] sm:$0xf]
      %v2270 = vld [vmem:[%s6 + $0x10] sm:$0xf]
      %v2271 = vld [vmem:[%s6 + $0x14] sm:$0xf]
      %v2272 = vld [vmem:[%s6 + $0x18] sm:$0xf]
      %v2273 = vld [vmem:[%s6 + $0x1c] sm:$0xf]
      %v2274 = vld [vmem:[%s6 + $0x20] sm:$0xf]
      %v2275 = vld [vmem:[%s6 + $0x24] sm:$0xf]
      %v2276 = vld [vmem:[%s6 + $0x28] sm:$0xf]
      %v2277 = vld [vmem:[%s6 + $0x2c] sm:$0xf]
      %v2278 = vld [vmem:[%s6 + $0x30] sm:$0xf]
      %v2279 = vld [vmem:[%s6 + $0x34] sm:$0xf]
      %v2280 = vld [vmem:[%s6 + $0x38] sm:$0xf]
      %v2281 = vld [vmem:[%s6 + $0x3c] sm:$0xf]
      %v2282 = vld [vmem:[%s6 + $0x40] sm:$0xf]
      %v2283 = vld [vmem:[%s6 + $0x44] sm:$0xf]
      %v2284 = vld [vmem:[%s6 + $0x48] sm:$0xf]
      %v2285 = vld [vmem:[%s6 + $0x4c] sm:$0xf]
      %v2286 = vld [vmem:[%s6 + $0x50] sm:$0xf]
      %v2287 = vld [vmem:[%s6 + $0x54] sm:$0xf]
      %v2288 = vld [vmem:[%s6 + $0x58] sm:$0xf]
      %v2289 = vld [vmem:[%s6 + $0x5c] sm:$0xf]
      %v2290 = vld [vmem:[%s6 + $0x60] sm:$0xf]
      %v2291 = vld [vmem:[%s6 + $0x64] sm:$0xf]
      %v2292 = vld [vmem:[%s6 + $0x68] sm:$0xf]
      %v2293 = vld [vmem:[%s6 + $0x6c] sm:$0xf]
      %v2294 = vld [vmem:[%s6 + $0x70] sm:$0xf]
      %v2295 = vld [vmem:[%s6 + $0x74] sm:$0xf]
      %v2296 = vld [vmem:[%s6 + $0x78] sm:$0xf]
      %v2297 = vld [vmem:[%s6 + $0x7c] sm:$0xf]
      %v2298 = vld [vmem:[%s6 + $0x80] sm:$0xf]
      %v2299 = vld [vmem:[%s6 + $0x84] sm:$0xf]
      %v2300 = vld [vmem:[%s6 + $0x88] sm:$0xf]
      %v2301 = vld [vmem:[%s6 + $0x8c] sm:$0xf]
      %v2302 = vld [vmem:[%s6 + $0x90] sm:$0xf]
      %v2303 = vld [vmem:[%s6 + $0x94] sm:$0xf]
      %v2304 = vld [vmem:[%s6 + $0x98] sm:$0xf]
      %v2305 = vld [vmem:[%s6 + $0x9c] sm:$0xf]
      %v2306 = vld [vmem:[%s6 + $0xa0] sm:$0xf]
      %v2307 = vld [vmem:[%s6 + $0xa4] sm:$0xf]
      %v2308 = vld [vmem:[%s6 + $0xa8] sm:$0xf]
      %v2309 = vld [vmem:[%s6 + $0xac] sm:$0xf]
      %v2310 = vld [vmem:[%s6 + $0xb0] sm:$0xf]
      %v2311 = vld [vmem:[%s6 + $0xb4] sm:$0xf]
      %v2312 = vld [vmem:[%s6 + $0xb8] sm:$0xf]
      %v2313 = vld [vmem:[%s6 + $0xbc] sm:$0xf]
      %v2314 = vld [vmem:[%s6 + $0xc0] sm:$0xf]
      %v2315 = vld [vmem:[%s6 + $0xc4] sm:$0xf]
      %v2316 = vld [vmem:[%s6 + $0xc8] sm:$0xf]
      %v2317 = vld [vmem:[%s6 + $0xcc] sm:$0xf]
      %v2318 = vld [vmem:[%s6 + $0xd0] sm:$0xf]
      %v2319 = vld [vmem:[%s6 + $0xd4] sm:$0xf]
      %v2320 = vld [vmem:[%s6 + $0xd8] sm:$0xf]
      %v2321 = vld [vmem:[%s6 + $0xdc] sm:$0xf]
      %v2322 = vld [vmem:[%s6 + $0xe0] sm:$0xf]
      %v2323 = vld [vmem:[%s6 + $0xe4] sm:$0xf]
      %v2324 = vld [vmem:[%s6 + $0xe8] sm:$0xf]
      %v2325 = vld [vmem:[%s6 + $0xec] sm:$0xf]
      %v2326 = vld [vmem:[%s6 + $0xf0] sm:$0xf]
      %v2327 = vld [vmem:[%s6 + $0xf4] sm:$0xf]
      %v2328 = vld [vmem:[%s6 + $0xf8] sm:$0xf]
      %v2329 = vld [vmem:[%s6 + $0xfc] sm:$0xf]
      %v2394 = vunpack.c.l.b16 %v2266
      %v2395 = vunpack.c.l.b16 %v2267
      %v2396 = vunpack.c.l.b16 %v2268
      %v2397 = vunpack.c.l.b16 %v2269
      %v2398 = vunpack.c.l.b16 %v2270
      %v2399 = vunpack.c.l.b16 %v2271
      %v2400 = vunpack.c.l.b16 %v2272
      %v2401 = vunpack.c.l.b16 %v2273
      %v2402 = vunpack.c.l.b16 %v2274
      %v2403 = vunpack.c.l.b16 %v2275
      %v2404 = vunpack.c.l.b16 %v2276
      %v2405 = vunpack.c.l.b16 %v2277
      %v2406 = vunpack.c.l.b16 %v2278
      %v2407 = vunpack.c.l.b16 %v2279
      %v2408 = vunpack.c.l.b16 %v2280
      %v2409 = vunpack.c.l.b16 %v2281
      %v2410 = vunpack.c.l.b16 %v2282
      %v2411 = vunpack.c.l.b16 %v2283
      %v2412 = vunpack.c.l.b16 %v2284
      %v2413 = vunpack.c.l.b16 %v2285
      %v2414 = vunpack.c.l.b16 %v2286
      %v2415 = vunpack.c.l.b16 %v2287
      %v2416 = vunpack.c.l.b16 %v2288
      %v2417 = vunpack.c.l.b16 %v2289
      %v2418 = vunpack.c.l.b16 %v2290
      %v2419 = vunpack.c.l.b16 %v2291
      %v2420 = vunpack.c.l.b16 %v2292
      %v2421 = vunpack.c.l.b16 %v2293
      %v2422 = vunpack.c.l.b16 %v2294
      %v2423 = vunpack.c.l.b16 %v2295
      %v2424 = vunpack.c.l.b16 %v2296
      %v2425 = vunpack.c.l.b16 %v2297
      %v2426 = vunpack.c.l.b16 %v2298
      %v2427 = vunpack.c.l.b16 %v2299
      %v2428 = vunpack.c.l.b16 %v2300
      %v2429 = vunpack.c.l.b16 %v2301
      %v2430 = vunpack.c.l.b16 %v2302
      %v2431 = vunpack.c.l.b16 %v2303
      %v2432 = vunpack.c.l.b16 %v2304
      %v2433 = vunpack.c.l.b16 %v2305
      %v2434 = vunpack.c.l.b16 %v2306
      %v2435 = vunpack.c.l.b16 %v2307
      %v2436 = vunpack.c.l.b16 %v2308
      %v2437 = vunpack.c.l.b16 %v2309
      %v2438 = vunpack.c.l.b16 %v2310
      %v2439 = vunpack.c.l.b16 %v2311
      %v2440 = vunpack.c.l.b16 %v2312
      %v2441 = vunpack.c.l.b16 %v2313
      %v2442 = vunpack.c.l.b16 %v2314
      %v2443 = vunpack.c.l.b16 %v2315
      %v2444 = vunpack.c.l.b16 %v2316
      %v2445 = vunpack.c.l.b16 %v2317
      %v2446 = vunpack.c.l.b16 %v2318
      %v2447 = vunpack.c.l.b16 %v2319
      %v2448 = vunpack.c.l.b16 %v2320
      %v2449 = vunpack.c.l.b16 %v2321
      %v2450 = vunpack.c.l.b16 %v2322
      %v2451 = vunpack.c.l.b16 %v2323
      %v2452 = vunpack.c.l.b16 %v2324
      %v2453 = vunpack.c.l.b16 %v2325
      %v2454 = vunpack.c.l.b16 %v2326
      %v2455 = vunpack.c.l.b16 %v2327
      %v2456 = vunpack.c.l.b16 %v2328
      %v2457 = vunpack.c.l.b16 %v2329
      %v2458 = vpack.c.b16 %v2395, %v2394
      %v2459 = vpack.c.b16 %v2397, %v2396
      %v2460 = vpack.c.b16 %v2399, %v2398
      %v2461 = vpack.c.b16 %v2401, %v2400
      %v2462 = vpack.c.b16 %v2403, %v2402
      %v2463 = vpack.c.b16 %v2405, %v2404
      %v2464 = vpack.c.b16 %v2407, %v2406
      %v2465 = vpack.c.b16 %v2409, %v2408
      %v2466 = vpack.c.b16 %v2411, %v2410
      %v2467 = vpack.c.b16 %v2413, %v2412
      %v2468 = vpack.c.b16 %v2415, %v2414
      %v2469 = vpack.c.b16 %v2417, %v2416
      %v2470 = vpack.c.b16 %v2419, %v2418
      %v2471 = vpack.c.b16 %v2421, %v2420
      %v2472 = vpack.c.b16 %v2423, %v2422
      %v2473 = vpack.c.b16 %v2425, %v2424
      %v2474 = vpack.c.b16 %v2427, %v2426
      %v2475 = vpack.c.b16 %v2429, %v2428
      %v2476 = vpack.c.b16 %v2431, %v2430
      %v2477 = vpack.c.b16 %v2433, %v2432
      %v2478 = vpack.c.b16 %v2435, %v2434
      %v2479 = vpack.c.b16 %v2437, %v2436
      %v2480 = vpack.c.b16 %v2439, %v2438
      %v2481 = vpack.c.b16 %v2441, %v2440
      %v2482 = vpack.c.b16 %v2443, %v2442
      %v2483 = vpack.c.b16 %v2445, %v2444
      %v2484 = vpack.c.b16 %v2447, %v2446
      %v2485 = vpack.c.b16 %v2449, %v2448
      %v2486 = vpack.c.b16 %v2451, %v2450
      %v2487 = vpack.c.b16 %v2453, %v2452
      %v2488 = vpack.c.b16 %v2455, %v2454
      %v2489 = vpack.c.b16 %v2457, %v2456
      %2522 = vmatpush.bf16.msra.mxu0 %v2465
      %2523 = vmatpush.bf16.msra.mxu0 %v2464
      %2524 = vmatpush.bf16.msra.mxu0 %v2463
      %2525 = vmatpush.bf16.msra.mxu0 %v2462
      %2526 = vmatpush.bf16.msra.mxu0 %v2461
      %2527 = vmatpush.bf16.msra.mxu0 %v2460
      %2528 = vmatpush.bf16.msra.mxu0 %v2459
      %2529 = vmatpush.bf16.msra.mxu0 %v2458
      %2530 = vmatmul.bf16.gmra.mxu0 %v1968
      %v2531 = vpop.f32.mrf.mxu0
      %v2532 = vadd.f32 0.0, %v2531
      %v2533 = vpop.f32.mrf.mxu0
      %v2534 = vadd.f32 0.0, %v2533
      %2535 = vmatmul.bf16.gmra.mxu0 %v1969
      %v2536 = vpop.f32.mrf.mxu0
      %v2537 = vadd.f32 0.0, %v2536
      %v2538 = vpop.f32.mrf.mxu0
      %v2539 = vadd.f32 0.0, %v2538
      %2540 = vmatmul.bf16.gmra.mxu0 %v1970
      %v2541 = vpop.f32.mrf.mxu0
      %v2542 = vadd.f32 0.0, %v2541
      %v2543 = vpop.f32.mrf.mxu0
      %v2544 = vadd.f32 0.0, %v2543
      %2545 = vmatmul.bf16.gmra.mxu0 %v1971
      %v2546 = vpop.f32.mrf.mxu0
      %v2547 = vadd.f32 0.0, %v2546
      %v2548 = vpop.f32.mrf.mxu0
      %v2549 = vadd.f32 0.0, %v2548
      %2550 = vmatmul.bf16.gmra.mxu0 %v1972
      %v2551 = vpop.f32.mrf.mxu0
      %v2552 = vadd.f32 0.0, %v2551
      %v2553 = vpop.f32.mrf.mxu0
      %v2554 = vadd.f32 0.0, %v2553
      %2555 = vmatmul.bf16.gmra.mxu0 %v1973
      %v2556 = vpop.f32.mrf.mxu0
      %v2557 = vadd.f32 0.0, %v2556
      %v2558 = vpop.f32.mrf.mxu0
      %v2559 = vadd.f32 0.0, %v2558
      %2560 = vmatmul.bf16.gmra.mxu0 %v1974
      %v2561 = vpop.f32.mrf.mxu0
      %v2562 = vadd.f32 0.0, %v2561
      %v2563 = vpop.f32.mrf.mxu0
      %v2564 = vadd.f32 0.0, %v2563
      %2565 = vmatmul.bf16.gmra.mxu0 %v1975
      %v2566 = vpop.f32.mrf.mxu0
      %v2567 = vadd.f32 0.0, %v2566
      %v2568 = vpop.f32.mrf.mxu0
      %v2569 = vadd.f32 0.0, %v2568
      %2570 = vmatmul.bf16.gmra.mxu0 %v1976
      %v2571 = vpop.f32.mrf.mxu0
      %v2572 = vadd.f32 0.0, %v2571
      %v2573 = vpop.f32.mrf.mxu0
      %v2574 = vadd.f32 0.0, %v2573
      %2575 = vmatmul.bf16.gmra.mxu0 %v1977
      %v2576 = vpop.f32.mrf.mxu0
      %v2577 = vadd.f32 0.0, %v2576
      %v2578 = vpop.f32.mrf.mxu0
      %v2579 = vadd.f32 0.0, %v2578
      %2580 = vmatmul.bf16.gmra.mxu0 %v1978
      %v2581 = vpop.f32.mrf.mxu0
      %v2582 = vadd.f32 0.0, %v2581
      %v2583 = vpop.f32.mrf.mxu0
      %v2584 = vadd.f32 0.0, %v2583
      %2585 = vmatmul.bf16.gmra.mxu0 %v1979
      %v2586 = vpop.f32.mrf.mxu0
      %v2587 = vadd.f32 0.0, %v2586
      %v2588 = vpop.f32.mrf.mxu0
      %v2589 = vadd.f32 0.0, %v2588
      %2590 = vmatmul.bf16.gmra.mxu0 %v1980
      %v2591 = vpop.f32.mrf.mxu0
      %v2592 = vadd.f32 0.0, %v2591
      %v2593 = vpop.f32.mrf.mxu0
      %v2594 = vadd.f32 0.0, %v2593
      %2595 = vmatmul.bf16.gmra.mxu0 %v1981
      %v2596 = vpop.f32.mrf.mxu0
      %v2597 = vadd.f32 0.0, %v2596
      %v2598 = vpop.f32.mrf.mxu0
      %v2599 = vadd.f32 0.0, %v2598
      %2600 = vmatmul.bf16.gmra.mxu0 %v1982
      %v2601 = vpop.f32.mrf.mxu0
      %v2602 = vadd.f32 0.0, %v2601
      %v2603 = vpop.f32.mrf.mxu0
      %v2604 = vadd.f32 0.0, %v2603
      %2605 = vmatmul.bf16.gmra.mxu0 %v1983
      %v2606 = vpop.f32.mrf.mxu0
      %v2607 = vadd.f32 0.0, %v2606
      %v2608 = vpop.f32.mrf.mxu0
      %v2609 = vadd.f32 0.0, %v2608
      %2610 = vmatmul.bf16.gmra.mxu0 %v1984
      %v2611 = vpop.f32.mrf.mxu0
      %v2612 = vadd.f32 0.0, %v2611
      %v2613 = vpop.f32.mrf.mxu0
      %v2614 = vadd.f32 0.0, %v2613
      %2615 = vmatmul.bf16.gmra.mxu0 %v1985
      %v2616 = vpop.f32.mrf.mxu0
      %v2617 = vadd.f32 0.0, %v2616
      %v2618 = vpop.f32.mrf.mxu0
      %v2619 = vadd.f32 0.0, %v2618
      %2620 = vmatmul.bf16.gmra.mxu0 %v1986
      %v2621 = vpop.f32.mrf.mxu0
      %v2622 = vadd.f32 0.0, %v2621
      %v2623 = vpop.f32.mrf.mxu0
      %v2624 = vadd.f32 0.0, %v2623
      %2625 = vmatmul.bf16.gmra.mxu0 %v1987
      %v2626 = vpop.f32.mrf.mxu0
      %v2627 = vadd.f32 0.0, %v2626
      %v2628 = vpop.f32.mrf.mxu0
      %v2629 = vadd.f32 0.0, %v2628
      %2630 = vmatmul.bf16.gmra.mxu0 %v1988
      %v2631 = vpop.f32.mrf.mxu0
      %v2632 = vadd.f32 0.0, %v2631
      %v2633 = vpop.f32.mrf.mxu0
      %2634 = vdwg.mxu0
      %2635 = vmatpush.bf16.msra.mxu0 %v2473
      %2636 = vmatpush.bf16.msra.mxu0 %v2472
      %2637 = vmatpush.bf16.msra.mxu0 %v2471
      %2638 = vmatpush.bf16.msra.mxu0 %v2470
      %2639 = vmatpush.bf16.msra.mxu0 %v2469
      %2640 = vmatpush.bf16.msra.mxu0 %v2468
      %2641 = vmatpush.bf16.msra.mxu0 %v2467
      %2642 = vmatpush.bf16.msra.mxu0 %v2466
      %2643 = vmatmul.bf16.gmra.mxu0 %v2092
      %v2644 = vpop.f32.mrf.mxu0
      %v2645 = vadd.f32 %v2532, %v2644
      %v2646 = vpop.f32.mrf.mxu0
      %v2647 = vadd.f32 %v2534, %v2646
      %2648 = vmatmul.bf16.gmra.mxu0 %v2093
      %v2649 = vpop.f32.mrf.mxu0
      %v2650 = vadd.f32 %v2537, %v2649
      %v2651 = vpop.f32.mrf.mxu0
      %v2652 = vadd.f32 %v2539, %v2651
      %2653 = vmatmul.bf16.gmra.mxu0 %v2094
      %v2654 = vpop.f32.mrf.mxu0
      %v2655 = vadd.f32 %v2542, %v2654
      %v2656 = vpop.f32.mrf.mxu0
      %v2657 = vadd.f32 %v2544, %v2656
      %2658 = vmatmul.bf16.gmra.mxu0 %v2095
      %v2659 = vpop.f32.mrf.mxu0
      %v2660 = vadd.f32 %v2547, %v2659
      %v2661 = vpop.f32.mrf.mxu0
      %v2662 = vadd.f32 %v2549, %v2661
      %2663 = vmatmul.bf16.gmra.mxu0 %v2096
      %v2664 = vpop.f32.mrf.mxu0
      %v2665 = vadd.f32 %v2552, %v2664
      %v2666 = vpop.f32.mrf.mxu0
      %v2667 = vadd.f32 %v2554, %v2666
      %2668 = vmatmul.bf16.gmra.mxu0 %v2097
      %v2669 = vpop.f32.mrf.mxu0
      %v2670 = vadd.f32 %v2557, %v2669
      %v2671 = vpop.f32.mrf.mxu0
      %v2672 = vadd.f32 %v2559, %v2671
      %2673 = vmatmul.bf16.gmra.mxu0 %v2098
      %v2674 = vpop.f32.mrf.mxu0
      %v2675 = vadd.f32 %v2562, %v2674
      %v2676 = vpop.f32.mrf.mxu0
      %v2677 = vadd.f32 %v2564, %v2676
      %2678 = vmatmul.bf16.gmra.mxu0 %v2099
      %v2679 = vpop.f32.mrf.mxu0
      %v2680 = vadd.f32 %v2567, %v2679
      %v2681 = vpop.f32.mrf.mxu0
      %v2682 = vadd.f32 %v2569, %v2681
      %2683 = vmatmul.bf16.gmra.mxu0 %v2100
      %v2684 = vpop.f32.mrf.mxu0
      %v2685 = vadd.f32 %v2572, %v2684
      %v2686 = vpop.f32.mrf.mxu0
      %v2687 = vadd.f32 %v2574, %v2686
      %2688 = vmatmul.bf16.gmra.mxu0 %v2101
      %v2689 = vpop.f32.mrf.mxu0
      %v2690 = vadd.f32 %v2577, %v2689
      %v2691 = vpop.f32.mrf.mxu0
      %v2692 = vadd.f32 %v2579, %v2691
      %2693 = vmatmul.bf16.gmra.mxu0 %v2102
      %v2694 = vpop.f32.mrf.mxu0
      %v2695 = vadd.f32 %v2582, %v2694
      %v2696 = vpop.f32.mrf.mxu0
      %v2697 = vadd.f32 %v2584, %v2696
      %2698 = vmatmul.bf16.gmra.mxu0 %v2103
      %v2699 = vpop.f32.mrf.mxu0
      %v2700 = vadd.f32 %v2587, %v2699
      %v2701 = vpop.f32.mrf.mxu0
      %v2702 = vadd.f32 %v2589, %v2701
      %2703 = vmatmul.bf16.gmra.mxu0 %v2104
      %v2704 = vpop.f32.mrf.mxu0
      %v2705 = vadd.f32 %v2592, %v2704
      %v2706 = vpop.f32.mrf.mxu0
      %v2707 = vadd.f32 %v2594, %v2706
      %2708 = vmatmul.bf16.gmra.mxu0 %v2105
      %v2709 = vpop.f32.mrf.mxu0
      %v2710 = vadd.f32 %v2597, %v2709
      %v2711 = vpop.f32.mrf.mxu0
      %v2712 = vadd.f32 %v2599, %v2711
      %2713 = vmatmul.bf16.gmra.mxu0 %v2106
      %v2714 = vpop.f32.mrf.mxu0
      %v2715 = vadd.f32 %v2602, %v2714
      %v2716 = vpop.f32.mrf.mxu0
      %v2717 = vadd.f32 %v2604, %v2716
      %2718 = vmatmul.bf16.gmra.mxu0 %v2107
      %v2719 = vpop.f32.mrf.mxu0
      %v2720 = vadd.f32 %v2607, %v2719
      %v2721 = vpop.f32.mrf.mxu0
      %v2722 = vadd.f32 %v2609, %v2721
      %2723 = vmatmul.bf16.gmra.mxu0 %v2108
      %v2724 = vpop.f32.mrf.mxu0
      %v2725 = vadd.f32 %v2612, %v2724
      %v2726 = vpop.f32.mrf.mxu0
      %v2727 = vadd.f32 %v2614, %v2726
      %2728 = vmatmul.bf16.gmra.mxu0 %v2109
      %v2729 = vpop.f32.mrf.mxu0
      %v2730 = vadd.f32 %v2617, %v2729
      %v2731 = vpop.f32.mrf.mxu0
      %v2732 = vadd.f32 %v2619, %v2731
      %2733 = vmatmul.bf16.gmra.mxu0 %v2110
      %v2734 = vpop.f32.mrf.mxu0
      %v2735 = vadd.f32 %v2622, %v2734
      %v2736 = vpop.f32.mrf.mxu0
      %v2737 = vadd.f32 %v2624, %v2736
      %2738 = vmatmul.bf16.gmra.mxu0 %v2111
      %v2739 = vpop.f32.mrf.mxu0
      %v2740 = vadd.f32 %v2627, %v2739
      %v2741 = vpop.f32.mrf.mxu0
      %v2742 = vadd.f32 %v2629, %v2741
      %2743 = vmatmul.bf16.gmra.mxu0 %v2112
      %v2744 = vpop.f32.mrf.mxu0
      %v2745 = vadd.f32 %v2632, %v2744
      %v2746 = vpop.f32.mrf.mxu0
      %2747 = vdwg.mxu0
      %2748 = vmatpush.bf16.msra.mxu0 %v2481
      %2749 = vmatpush.bf16.msra.mxu0 %v2480
      %2750 = vmatpush.bf16.msra.mxu0 %v2479
      %2751 = vmatpush.bf16.msra.mxu0 %v2478
      %2752 = vmatpush.bf16.msra.mxu0 %v2477
      %2753 = vmatpush.bf16.msra.mxu0 %v2476
      %2754 = vmatpush.bf16.msra.mxu0 %v2475
      %2755 = vmatpush.bf16.msra.mxu0 %v2474
      %2756 = vmatmul.bf16.gmra.mxu0 %v2216
      %v2757 = vpop.f32.mrf.mxu0
      %v2758 = vadd.f32 %v2645, %v2757
      %v2759 = vpop.f32.mrf.mxu0
      %v2760 = vadd.f32 %v2647, %v2759
      %2761 = vmatmul.bf16.gmra.mxu0 %v2217
      %v2762 = vpop.f32.mrf.mxu0
      %v2763 = vadd.f32 %v2650, %v2762
      %v2764 = vpop.f32.mrf.mxu0
      %v2765 = vadd.f32 %v2652, %v2764
      %2766 = vmatmul.bf16.gmra.mxu0 %v2218
      %v2767 = vpop.f32.mrf.mxu0
      %v2768 = vadd.f32 %v2655, %v2767
      %v2769 = vpop.f32.mrf.mxu0
      %v2770 = vadd.f32 %v2657, %v2769
      %2771 = vmatmul.bf16.gmra.mxu0 %v2219
      %v2772 = vpop.f32.mrf.mxu0
      %v2773 = vadd.f32 %v2660, %v2772
      %v2774 = vpop.f32.mrf.mxu0
      %v2775 = vadd.f32 %v2662, %v2774
      %2776 = vmatmul.bf16.gmra.mxu0 %v2220
      %v2777 = vpop.f32.mrf.mxu0
      %v2778 = vadd.f32 %v2665, %v2777
      %v2779 = vpop.f32.mrf.mxu0
      %v2780 = vadd.f32 %v2667, %v2779
      %2781 = vmatmul.bf16.gmra.mxu0 %v2221
      %v2782 = vpop.f32.mrf.mxu0
      %v2783 = vadd.f32 %v2670, %v2782
      %v2784 = vpop.f32.mrf.mxu0
      %v2785 = vadd.f32 %v2672, %v2784
      %2786 = vmatmul.bf16.gmra.mxu0 %v2222
      %v2787 = vpop.f32.mrf.mxu0
      %v2788 = vadd.f32 %v2675, %v2787
      %v2789 = vpop.f32.mrf.mxu0
      %v2790 = vadd.f32 %v2677, %v2789
      %2791 = vmatmul.bf16.gmra.mxu0 %v2223
      %v2792 = vpop.f32.mrf.mxu0
      %v2793 = vadd.f32 %v2680, %v2792
      %v2794 = vpop.f32.mrf.mxu0
      %v2795 = vadd.f32 %v2682, %v2794
      %2796 = vmatmul.bf16.gmra.mxu0 %v2224
      %v2797 = vpop.f32.mrf.mxu0
      %v2798 = vadd.f32 %v2685, %v2797
      %v2799 = vpop.f32.mrf.mxu0
      %v2800 = vadd.f32 %v2687, %v2799
      %2801 = vmatmul.bf16.gmra.mxu0 %v2225
      %v2802 = vpop.f32.mrf.mxu0
      %v2803 = vadd.f32 %v2690, %v2802
      %v2804 = vpop.f32.mrf.mxu0
      %v2805 = vadd.f32 %v2692, %v2804
      %2806 = vmatmul.bf16.gmra.mxu0 %v2226
      %v2807 = vpop.f32.mrf.mxu0
      %v2808 = vadd.f32 %v2695, %v2807
      %v2809 = vpop.f32.mrf.mxu0
      %v2810 = vadd.f32 %v2697, %v2809
      %2811 = vmatmul.bf16.gmra.mxu0 %v2227
      %v2812 = vpop.f32.mrf.mxu0
      %v2813 = vadd.f32 %v2700, %v2812
      %v2814 = vpop.f32.mrf.mxu0
      %v2815 = vadd.f32 %v2702, %v2814
      %2816 = vmatmul.bf16.gmra.mxu0 %v2228
      %v2817 = vpop.f32.mrf.mxu0
      %v2818 = vadd.f32 %v2705, %v2817
      %v2819 = vpop.f32.mrf.mxu0
      %v2820 = vadd.f32 %v2707, %v2819
      %2821 = vmatmul.bf16.gmra.mxu0 %v2229
      %v2822 = vpop.f32.mrf.mxu0
      %v2823 = vadd.f32 %v2710, %v2822
      %v2824 = vpop.f32.mrf.mxu0
      %v2825 = vadd.f32 %v2712, %v2824
      %2826 = vmatmul.bf16.gmra.mxu0 %v2230
      %v2827 = vpop.f32.mrf.mxu0
      %v2828 = vadd.f32 %v2715, %v2827
      %v2829 = vpop.f32.mrf.mxu0
      %v2830 = vadd.f32 %v2717, %v2829
      %2831 = vmatmul.bf16.gmra.mxu0 %v2231
      %v2832 = vpop.f32.mrf.mxu0
      %v2833 = vadd.f32 %v2720, %v2832
      %v2834 = vpop.f32.mrf.mxu0
      %v2835 = vadd.f32 %v2722, %v2834
      %2836 = vmatmul.bf16.gmra.mxu0 %v2232
      %v2837 = vpop.f32.mrf.mxu0
      %v2838 = vadd.f32 %v2725, %v2837
      %v2839 = vpop.f32.mrf.mxu0
      %v2840 = vadd.f32 %v2727, %v2839
      %2841 = vmatmul.bf16.gmra.mxu0 %v2233
      %v2842 = vpop.f32.mrf.mxu0
      %v2843 = vadd.f32 %v2730, %v2842
      %v2844 = vpop.f32.mrf.mxu0
      %v2845 = vadd.f32 %v2732, %v2844
      %2846 = vmatmul.bf16.gmra.mxu0 %v2234
      %v2847 = vpop.f32.mrf.mxu0
      %v2848 = vadd.f32 %v2735, %v2847
      %v2849 = vpop.f32.mrf.mxu0
      %v2850 = vadd.f32 %v2737, %v2849
      %2851 = vmatmul.bf16.gmra.mxu0 %v2235
      %v2852 = vpop.f32.mrf.mxu0
      %v2853 = vadd.f32 %v2740, %v2852
      %v2854 = vpop.f32.mrf.mxu0
      %v2855 = vadd.f32 %v2742, %v2854
      %2856 = vmatmul.bf16.gmra.mxu0 %v2236
      %v2857 = vpop.f32.mrf.mxu0
      %v2858 = vadd.f32 %v2745, %v2857
      %v2859 = vpop.f32.mrf.mxu0
      %2860 = vdwg.mxu0
      %2861 = vmatpush.bf16.msra.mxu0 %v2489
      %2862 = vmatpush.bf16.msra.mxu0 %v2488
      %2863 = vmatpush.bf16.msra.mxu0 %v2487
      %2864 = vmatpush.bf16.msra.mxu0 %v2486
      %2865 = vmatpush.bf16.msra.mxu0 %v2485
      %2866 = vmatpush.bf16.msra.mxu0 %v2484
      %2867 = vmatpush.bf16.msra.mxu0 %v2483
      %2868 = vmatpush.bf16.msra.mxu0 %v2482
      %2869 = vmatmul.bf16.gmra.mxu0 %v2217
      %v2870 = vpop.f32.mrf.mxu0
      %v2871 = vadd.f32 %v2758, %v2870
      %v2872 = vpop.f32.mrf.mxu0
      %v2873 = vadd.f32 %v2760, %v2872
      %2874 = vmatmul.bf16.gmra.mxu0 %v2218
      %v2875 = vpop.f32.mrf.mxu0
      %v2876 = vadd.f32 %v2763, %v2875
      %v2877 = vpop.f32.mrf.mxu0
      %v2878 = vadd.f32 %v2765, %v2877
      %2879 = vmatmul.bf16.gmra.mxu0 %v2219
      %v2880 = vpop.f32.mrf.mxu0
      %v2881 = vadd.f32 %v2768, %v2880
      %v2882 = vpop.f32.mrf.mxu0
      %v2883 = vadd.f32 %v2770, %v2882
      %2884 = vmatmul.bf16.gmra.mxu0 %v2220
      %v2885 = vpop.f32.mrf.mxu0
      %v2886 = vadd.f32 %v2773, %v2885
      %v2887 = vpop.f32.mrf.mxu0
      %v2888 = vadd.f32 %v2775, %v2887
      %2889 = vmatmul.bf16.gmra.mxu0 %v2221
      %v2890 = vpop.f32.mrf.mxu0
      %v2891 = vadd.f32 %v2778, %v2890
      %v2892 = vpop.f32.mrf.mxu0
      %v2893 = vadd.f32 %v2780, %v2892
      %2894 = vmatmul.bf16.gmra.mxu0 %v2222
      %v2895 = vpop.f32.mrf.mxu0
      %v2896 = vadd.f32 %v2783, %v2895
      %v2897 = vpop.f32.mrf.mxu0
      %v2898 = vadd.f32 %v2785, %v2897
      %2899 = vmatmul.bf16.gmra.mxu0 %v2223
      %v2900 = vpop.f32.mrf.mxu0
      %v2901 = vadd.f32 %v2788, %v2900
      %v2902 = vpop.f32.mrf.mxu0
      %v2903 = vadd.f32 %v2790, %v2902
      %2904 = vmatmul.bf16.gmra.mxu0 %v2224
      %v2905 = vpop.f32.mrf.mxu0
      %v2906 = vadd.f32 %v2793, %v2905
      %v2907 = vpop.f32.mrf.mxu0
      %v2908 = vadd.f32 %v2795, %v2907
      %2909 = vmatmul.bf16.gmra.mxu0 %v2225
      %v2910 = vpop.f32.mrf.mxu0
      %v2911 = vadd.f32 %v2798, %v2910
      %v2912 = vpop.f32.mrf.mxu0
      %v2913 = vadd.f32 %v2800, %v2912
      %2914 = vmatmul.bf16.gmra.mxu0 %v2226
      %v2915 = vpop.f32.mrf.mxu0
      %v2916 = vadd.f32 %v2803, %v2915
      %v2917 = vpop.f32.mrf.mxu0
      %v2918 = vadd.f32 %v2805, %v2917
      %2919 = vmatmul.bf16.gmra.mxu0 %v2227
      %v2920 = vpop.f32.mrf.mxu0
      %v2921 = vadd.f32 %v2808, %v2920
      %v2922 = vpop.f32.mrf.mxu0
      %v2923 = vadd.f32 %v2810, %v2922
      %2924 = vmatmul.bf16.gmra.mxu0 %v2228
      %v2925 = vpop.f32.mrf.mxu0
      %v2926 = vadd.f32 %v2813, %v2925
      %v2927 = vpop.f32.mrf.mxu0
      %v2928 = vadd.f32 %v2815, %v2927
      %2929 = vmatmul.bf16.gmra.mxu0 %v2229
      %v2930 = vpop.f32.mrf.mxu0
      %v2931 = vadd.f32 %v2818, %v2930
      %v2932 = vpop.f32.mrf.mxu0
      %v2933 = vadd.f32 %v2820, %v2932
      %2934 = vmatmul.bf16.gmra.mxu0 %v2230
      %v2935 = vpop.f32.mrf.mxu0
      %v2936 = vadd.f32 %v2823, %v2935
      %v2937 = vpop.f32.mrf.mxu0
      %v2938 = vadd.f32 %v2825, %v2937
      %2939 = vmatmul.bf16.gmra.mxu0 %v2231
      %v2940 = vpop.f32.mrf.mxu0
      %v2941 = vadd.f32 %v2828, %v2940
      %v2942 = vpop.f32.mrf.mxu0
      %v2943 = vadd.f32 %v2830, %v2942
      %2944 = vmatmul.bf16.gmra.mxu0 %v2232
      %v2945 = vpop.f32.mrf.mxu0
      %v2946 = vadd.f32 %v2833, %v2945
      %v2947 = vpop.f32.mrf.mxu0
      %v2948 = vadd.f32 %v2835, %v2947
      %2949 = vmatmul.bf16.gmra.mxu0 %v2233
      %v2950 = vpop.f32.mrf.mxu0
      %v2951 = vadd.f32 %v2838, %v2950
      %v2952 = vpop.f32.mrf.mxu0
      %v2953 = vadd.f32 %v2840, %v2952
      %2954 = vmatmul.bf16.gmra.mxu0 %v2234
      %v2955 = vpop.f32.mrf.mxu0
      %v2956 = vadd.f32 %v2843, %v2955
      %v2957 = vpop.f32.mrf.mxu0
      %v2958 = vadd.f32 %v2845, %v2957
      %2959 = vmatmul.bf16.gmra.mxu0 %v2235
      %v2960 = vpop.f32.mrf.mxu0
      %v2961 = vadd.f32 %v2848, %v2960
      %v2962 = vpop.f32.mrf.mxu0
      %v2963 = vadd.f32 %v2850, %v2962
      %2964 = vmatmul.bf16.gmra.mxu0 %v2262
      %v2965 = vpop.f32.mrf.mxu0
      %v2966 = vadd.f32 %v2853, %v2965
      %v2967 = vpop.f32.mrf.mxu0
      %v2968 = vadd.f32 %v2855, %v2967
      %2969 = vmatmul.bf16.gmra.mxu0 %v2263
      %v2970 = vpop.f32.mrf.mxu0
      %v2971 = vadd.f32 %v2858, %v2970
      %v2972 = vpop.f32.mrf.mxu0
      %2973 = vdwg.mxu0
      %v2990 = vunpack.c.l.b16 %v1620
      %v2991 = vunpack.c.l.b16 %v1621
      %v2992 = vunpack.c.l.b16 %v1622
      %v2993 = vunpack.c.l.b16 %v1623
      %v2994 = vunpack.c.l.b16 %v1624
      %v2995 = vunpack.c.l.b16 %v1625
      %v2996 = vunpack.c.l.b16 %v1626
      %v2997 = vunpack.c.l.b16 %v1627
      %v2998 = vunpack.c.l.b16 %v1628
      %v2999 = vunpack.c.l.b16 %v1629
      %v3000 = vunpack.c.l.b16 %v1630
      %v3001 = vunpack.c.l.b16 %v1631
      %v3002 = vunpack.c.l.b16 %v1632
      %v3003 = vunpack.c.l.b16 %v1633
      %v3004 = vunpack.c.l.b16 %v1634
      %v3005 = vunpack.c.l.b16 %v1635
      %v3006 = vpack.c.b16 %v2991, %v2990
      %v3007 = vpack.c.b16 %v2993, %v2992
      %v3008 = vpack.c.b16 %v2995, %v2994
      %v3009 = vpack.c.b16 %v2997, %v2996
      %v3010 = vpack.c.b16 %v2999, %v2998
      %v3011 = vpack.c.b16 %v3001, %v3000
      %v3012 = vpack.c.b16 %v3003, %v3002
      %v3013 = vpack.c.b16 %v3005, %v3004
      %3022 = vmatpush.bf16.msra.mxu0 %v3013
      %3023 = vmatpush.bf16.msra.mxu0 %v3012
      %3024 = vmatpush.bf16.msra.mxu0 %v3011
      %3025 = vmatpush.bf16.msra.mxu0 %v3010
      %3026 = vmatpush.bf16.msra.mxu0 %v3009
      %3027 = vmatpush.bf16.msra.mxu0 %v3008
      %3028 = vmatpush.bf16.msra.mxu0 %v3007
      %3029 = vmatpush.bf16.msra.mxu0 %v3006
      %3030 = vmatmul.bf16.gmra.mxu0 %v1599
      %v3031 = vpop.f32.mrf.mxu0
      %v3032 = vadd.f32 %v2871, %v3031
      %v3033 = vpop.f32.mrf.mxu0
      %v3034 = vadd.f32 %v2873, %v3033
      %3035 = vmatmul.bf16.gmra.mxu0 %v1600
      %v3036 = vpop.f32.mrf.mxu0
      %v3037 = vadd.f32 %v2876, %v3036
      %v3038 = vpop.f32.mrf.mxu0
      %v3039 = vadd.f32 %v2878, %v3038
      %3040 = vmatmul.bf16.gmra.mxu0 %v1601
      %v3041 = vpop.f32.mrf.mxu0
      %v3042 = vadd.f32 %v2881, %v3041
      %v3043 = vpop.f32.mrf.mxu0
      %v3044 = vadd.f32 %v2883, %v3043
      %3045 = vmatmul.bf16.gmra.mxu0 %v1602
      %v3046 = vpop.f32.mrf.mxu0
      %v3047 = vadd.f32 %v2886, %v3046
      %v3048 = vpop.f32.mrf.mxu0
      %v3049 = vadd.f32 %v2888, %v3048
      %3050 = vmatmul.bf16.gmra.mxu0 %v1603
      %v3051 = vpop.f32.mrf.mxu0
      %v3052 = vadd.f32 %v2891, %v3051
      %v3053 = vpop.f32.mrf.mxu0
      %v3054 = vadd.f32 %v2893, %v3053
      %3055 = vmatmul.bf16.gmra.mxu0 %v1604
      %v3056 = vpop.f32.mrf.mxu0
      %v3057 = vadd.f32 %v2896, %v3056
      %v3058 = vpop.f32.mrf.mxu0
      %v3059 = vadd.f32 %v2898, %v3058
      %3060 = vmatmul.bf16.gmra.mxu0 %v1605
      %v3061 = vpop.f32.mrf.mxu0
      %v3062 = vadd.f32 %v2901, %v3061
      %v3063 = vpop.f32.mrf.mxu0
      %v3064 = vadd.f32 %v2903, %v3063
      %3065 = vmatmul.bf16.gmra.mxu0 %v1606
      %v3066 = vpop.f32.mrf.mxu0
      %v3067 = vadd.f32 %v2906, %v3066
      %v3068 = vpop.f32.mrf.mxu0
      %v3069 = vadd.f32 %v2908, %v3068
      %3070 = vmatmul.bf16.gmra.mxu0 %v1607
      %v3071 = vpop.f32.mrf.mxu0
      %v3072 = vadd.f32 %v2911, %v3071
      %v3073 = vpop.f32.mrf.mxu0
      %v3074 = vadd.f32 %v2913, %v3073
      %3075 = vmatmul.bf16.gmra.mxu0 %v1608
      %v3076 = vpop.f32.mrf.mxu0
      %v3077 = vadd.f32 %v2916, %v3076
      %v3078 = vpop.f32.mrf.mxu0
      %v3079 = vadd.f32 %v2918, %v3078
      %3080 = vmatmul.bf16.gmra.mxu0 %v1609
      %v3081 = vpop.f32.mrf.mxu0
      %v3082 = vadd.f32 %v2921, %v3081
      %v3083 = vpop.f32.mrf.mxu0
      %v3084 = vadd.f32 %v2923, %v3083
      %3085 = vmatmul.bf16.gmra.mxu0 %v1610
      %v3086 = vpop.f32.mrf.mxu0
      %v3087 = vadd.f32 %v2926, %v3086
      %v3088 = vpop.f32.mrf.mxu0
      %v3089 = vadd.f32 %v2928, %v3088
      %3090 = vmatmul.bf16.gmra.mxu0 %v1611
      %v3091 = vpop.f32.mrf.mxu0
      %v3092 = vadd.f32 %v2931, %v3091
      %v3093 = vpop.f32.mrf.mxu0
      %v3094 = vadd.f32 %v2933, %v3093
      %3095 = vmatmul.bf16.gmra.mxu0 %v1612
      %v3096 = vpop.f32.mrf.mxu0
      %v3097 = vadd.f32 %v2936, %v3096
      %v3098 = vpop.f32.mrf.mxu0
      %v3099 = vadd.f32 %v2938, %v3098
      %3100 = vmatmul.bf16.gmra.mxu0 %v1613
      %v3101 = vpop.f32.mrf.mxu0
      %v3102 = vadd.f32 %v2941, %v3101
      %v3103 = vpop.f32.mrf.mxu0
      %v3104 = vadd.f32 %v2943, %v3103
      %3105 = vmatmul.bf16.gmra.mxu0 %v1614
      %v3106 = vpop.f32.mrf.mxu0
      %v3107 = vadd.f32 %v2946, %v3106
      %v3108 = vpop.f32.mrf.mxu0
      %v3109 = vadd.f32 %v2948, %v3108
      %3110 = vmatmul.bf16.gmra.mxu0 %v1615
      %v3111 = vpop.f32.mrf.mxu0
      %v3112 = vadd.f32 %v2951, %v3111
      %v3113 = vpop.f32.mrf.mxu0
      %v3114 = vadd.f32 %v2953, %v3113
      %3115 = vmatmul.bf16.gmra.mxu0 %v1616
      %v3116 = vpop.f32.mrf.mxu0
      %v3117 = vadd.f32 %v2956, %v3116
      %v3118 = vpop.f32.mrf.mxu0
      %v3119 = vadd.f32 %v2958, %v3118
      %3120 = vmatmul.bf16.gmra.mxu0 %v1617
      %v3121 = vpop.f32.mrf.mxu0
      %v3122 = vadd.f32 %v2961, %v3121
      %v3123 = vpop.f32.mrf.mxu0
      %v3124 = vadd.f32 %v2963, %v3123
      %3125 = vmatmul.bf16.gmra.mxu0 %v1618
      %v3126 = vpop.f32.mrf.mxu0
      %v3127 = vadd.f32 %v2966, %v3126
      %v3128 = vpop.f32.mrf.mxu0
      %v3129 = vadd.f32 %v2968, %v3128
      %3130 = vmatmul.bf16.gmra.mxu0 %v1619
      %v3131 = vpop.f32.mrf.mxu0
      %v3132 = vadd.f32 %v2971, %v3131
      %v3133 = vpop.f32.mrf.mxu0
      %3134 = vdwg.mxu0
      %v3135 = vld [vmem:[#allocation2 + $0x19] sm:$0xff]
      %v3136 = vld [vmem:[#allocation2 + $0x21] sm:$0xff]
      %v3137 = vld [vmem:[#allocation2 + $0x29] sm:$0xff]
      %v3138 = vld [vmem:[#allocation2 + $0x31] sm:$0xff]
      %v3139 = vld [vmem:[#allocation2 + $0x39] sm:$0xff]
      %v3140 = vld [vmem:[#allocation2 + $0x41] sm:$0xff]
      %v3141 = vld [vmem:[#allocation2 + $0x49] sm:$0xff]
      %v3142 = vld [vmem:[#allocation2 + $0x51] sm:$0xff]
      %v3143 = vld [vmem:[#allocation2 + $0x59] sm:$0xff]
      %v3144 = vld [vmem:[#allocation2 + $0x61] sm:$0xff]
      %v3145 = vld [vmem:[#allocation2 + $0x69] sm:$0xff]
      %v3146 = vld [vmem:[#allocation2 + $0x71] sm:$0xff]
      %v3147 = vld [vmem:[#allocation2 + $0x79] sm:$0xff]
      %v3148 = vld [vmem:[#allocation2 + $0x81] sm:$0xff]
      %v3149 = vld [vmem:[#allocation2 + $0x89] sm:$0xff]
      %v3150 = vld [vmem:[#allocation2 + $0x91] sm:$0xff]
      %v3151 = vld [vmem:[#allocation2 + $0x99] sm:$0xff]
      %v3152 = vld [vmem:[#allocation2 + $0xa1] sm:$0xff]
      %v3153 = vld [vmem:[#allocation2 + $0xa9] sm:$0xff]
      %v3154 = vld [vmem:[#allocation2 + $0xb1] sm:$0xff]
      %v3155 = vld [vmem:[#allocation2 + $0xb9] sm:$0xff]
      %v3156 = vld [vmem:[#allocation2 + $0xc1] sm:$0xff]
      %v3157 = vld [vmem:[#allocation2 + $0xc9] sm:$0xff]
      %v3158 = vld [vmem:[#allocation2 + $0xd1] sm:$0xff]
      %v3159 = vld [vmem:[#allocation2 + $0xd9] sm:$0xff]
      %v3160 = vld [vmem:[#allocation2 + $0xe1] sm:$0xff]
      %v3161 = vld [vmem:[#allocation2 + $0xe9] sm:$0xff]
      %v3162 = vld [vmem:[#allocation2 + $0xf1] sm:$0xff]
      %v3163 = vld [vmem:[#allocation2 + $0xf9] sm:$0xff]
      %v3164 = vld [vmem:[#allocation2 + $0x101] sm:$0xff]
      %v3165 = vld [vmem:[#allocation2 + $0x109] sm:$0xff]
      %v3166 = vld [vmem:[#allocation2 + $0x111] sm:$0xff]
      %v3167 = vld [vmem:[#allocation2 + $0x119] sm:$0xff]
      %v3168 = vld [vmem:[#allocation2 + $0x121] sm:$0xff]
      %v3169 = vld [vmem:[#allocation2 + $0x129] sm:$0xff]
      %v3170 = vld [vmem:[#allocation2 + $0x131] sm:$0xff]
      %v3171 = vld [vmem:[#allocation2 + $0x139] sm:$0xff]
      %v3172 = vld [vmem:[#allocation2 + $0x141] sm:$0xff]
      %v3173 = vld [vmem:[#allocation2 + $0x149] sm:$0xff]
      %v3174 = vld [vmem:[#allocation2 + $0x151] sm:$0xff]
      %v3175 = vld [vmem:[#allocation2 + $0x159] sm:$0xff]
      %v3176 = vpack.c.bf16 %v3135, %v3135
      %v3177 = vpack.c.bf16 %v3136, %v3136
      %v3178 = vpack.c.bf16 %v3137, %v3137
      %v3179 = vpack.c.bf16 %v3138, %v3138
      %v3180 = vpack.c.bf16 %v3139, %v3139
      %v3181 = vpack.c.bf16 %v3140, %v3140
      %v3182 = vpack.c.bf16 %v3141, %v3141
      %v3183 = vpack.c.bf16 %v3142, %v3142
      %v3184 = vpack.c.bf16 %v3143, %v3143
      %v3185 = vpack.c.bf16 %v3144, %v3144
      %v3186 = vpack.c.bf16 %v3145, %v3145
      %v3187 = vpack.c.bf16 %v3146, %v3146
      %v3188 = vpack.c.bf16 %v3147, %v3147
      %v3189 = vpack.c.bf16 %v3148, %v3148
      %v3190 = vpack.c.bf16 %v3149, %v3149
      %v3191 = vpack.c.bf16 %v3150, %v3150
      %v3192 = vpack.c.bf16 %v3151, %v3151
      %v3193 = vpack.c.bf16 %v3152, %v3152
      %v3194 = vpack.c.bf16 %v3153, %v3153
      %v3195 = vpack.c.bf16 %v3154, %v3154
      %v3196 = vpack.c.bf16 %v3155, %v3155
      %v3197 = vpack.c.bf16 %v3156, %v3156
      %v3198 = vpack.c.bf16 %v3157, %v3157
      %v3199 = vpack.c.bf16 %v3158, %v3158
      %v3200 = vpack.c.bf16 %v3159, %v3159
      %v3201 = vpack.c.bf16 %v3160, %v3160
      %v3202 = vpack.c.bf16 %v3161, %v3161
      %v3203 = vpack.c.bf16 %v3162, %v3162
      %v3204 = vpack.c.bf16 %v3163, %v3163
      %v3205 = vpack.c.bf16 %v3164, %v3164
      %v3206 = vpack.c.bf16 %v3165, %v3165
      %v3207 = vpack.c.bf16 %v3166, %v3166
      %v3208 = vpack.c.bf16 %v3167, %v3167
      %v3209 = vpack.c.bf16 %v3168, %v3168
      %v3210 = vpack.c.bf16 %v3169, %v3169
      %v3211 = vpack.c.bf16 %v3170, %v3170
      %v3212 = vpack.c.bf16 %v3171, %v3171
      %v3213 = vpack.c.bf16 %v3172, %v3172
      %v3214 = vpack.c.bf16 %v3173, %v3173
      %v3215 = vpack.c.bf16 %v3174, %v3174
      %v3216 = vpack.c.bf16 %v3175, %v3175
      %v3217 = vld [vmem:[#allocation2 + $0x161] sm:$0xff]
      %v3218 = vld [vmem:[#allocation2 + $0x169] sm:$0xff]
      %v3219 = vpack.c.bf16 %v3217, %v3217
      %v3220 = vpack.c.bf16 %v3218, %v3218
      %v3221 = vld [vmem:[#allocation2 + $0x2a] sm:$0xff]
      %v3222 = vld [vmem:[#allocation2 + $0x32] sm:$0xff]
      %v3223 = vld [vmem:[#allocation2 + $0x3a] sm:$0xff]
      %v3224 = vld [vmem:[#allocation2 + $0x42] sm:$0xff]
      %v3225 = vld [vmem:[#allocation2 + $0x4a] sm:$0xff]
      %v3226 = vld [vmem:[#allocation2 + $0x52] sm:$0xff]
      %v3227 = vld [vmem:[#allocation2 + $0x5a] sm:$0xff]
      %v3228 = vld [vmem:[#allocation2 + $0x62] sm:$0xff]
      %v3229 = vld [vmem:[#allocation2 + $0x6a] sm:$0xff]
      %v3230 = vld [vmem:[#allocation2 + $0x72] sm:$0xff]
      %v3231 = vld [vmem:[#allocation2 + $0x7a] sm:$0xff]
      %v3232 = vld [vmem:[#allocation2 + $0x82] sm:$0xff]
      %v3233 = vld [vmem:[#allocation2 + $0x8a] sm:$0xff]
      %v3234 = vld [vmem:[#allocation2 + $0x92] sm:$0xff]
      %v3235 = vld [vmem:[#allocation2 + $0x9a] sm:$0xff]
      %v3236 = vld [vmem:[#allocation2 + $0xa2] sm:$0xff]
      %v3237 = vld [vmem:[#allocation2 + $0xaa] sm:$0xff]
      %v3238 = vld [vmem:[#allocation2 + $0xb2] sm:$0xff]
      %v3239 = vld [vmem:[#allocation2 + $0xba] sm:$0xff]
      %v3240 = vld [vmem:[#allocation2 + $0xc2] sm:$0xff]
      %v3241 = vld [vmem:[#allocation2 + $0xca] sm:$0xff]
      %v3242 = vld [vmem:[#allocation2 + $0xd2] sm:$0xff]
      %v3243 = vld [vmem:[#allocation2 + $0xda] sm:$0xff]
      %v3244 = vld [vmem:[#allocation2 + $0xe2] sm:$0xff]
      %v3245 = vld [vmem:[#allocation2 + $0xea] sm:$0xff]
      %v3246 = vld [vmem:[#allocation2 + $0xf2] sm:$0xff]
      %v3247 = vld [vmem:[#allocation2 + $0xfa] sm:$0xff]
      %v3248 = vld [vmem:[#allocation2 + $0x102] sm:$0xff]
      %v3249 = vld [vmem:[#allocation2 + $0x10a] sm:$0xff]
      %v3250 = vld [vmem:[#allocation2 + $0x112] sm:$0xff]
      %v3251 = vld [vmem:[#allocation2 + $0x11a] sm:$0xff]
      %v3252 = vld [vmem:[#allocation2 + $0x122] sm:$0xff]
      %v3253 = vld [vmem:[#allocation2 + $0x12a] sm:$0xff]
      %v3254 = vld [vmem:[#allocation2 + $0x132] sm:$0xff]
      %v3255 = vld [vmem:[#allocation2 + $0x13a] sm:$0xff]
      %v3256 = vld [vmem:[#allocation2 + $0x142] sm:$0xff]
      %v3257 = vld [vmem:[#allocation2 + $0x14a] sm:$0xff]
      %v3258 = vld [vmem:[#allocation2 + $0x152] sm:$0xff]
      %v3259 = vld [vmem:[#allocation2 + $0x15a] sm:$0xff]
      %v3260 = vld [vmem:[#allocation2 + $0x162] sm:$0xff]
      %v3261 = vld [vmem:[#allocation2 + $0x16a] sm:$0xff]
      %v3262 = vpack.c.bf16 %v3221, %v3221
      %v3263 = vpack.c.bf16 %v3222, %v3222
      %v3264 = vpack.c.bf16 %v3223, %v3223
      %v3265 = vpack.c.bf16 %v3224, %v3224
      %v3266 = vpack.c.bf16 %v3225, %v3225
      %v3267 = vpack.c.bf16 %v3226, %v3226
      %v3268 = vpack.c.bf16 %v3227, %v3227
      %v3269 = vpack.c.bf16 %v3228, %v3228
      %v3270 = vpack.c.bf16 %v3229, %v3229
      %v3271 = vpack.c.bf16 %v3230, %v3230
      %v3272 = vpack.c.bf16 %v3231, %v3231
      %v3273 = vpack.c.bf16 %v3232, %v3232
      %v3274 = vpack.c.bf16 %v3233, %v3233
      %v3275 = vpack.c.bf16 %v3234, %v3234
      %v3276 = vpack.c.bf16 %v3235, %v3235
      %v3277 = vpack.c.bf16 %v3236, %v3236
      %v3278 = vpack.c.bf16 %v3237, %v3237
      %v3279 = vpack.c.bf16 %v3238, %v3238
      %v3280 = vpack.c.bf16 %v3239, %v3239
      %v3281 = vpack.c.bf16 %v3240, %v3240
      %v3282 = vpack.c.bf16 %v3241, %v3241
      %v3283 = vpack.c.bf16 %v3242, %v3242
      %v3284 = vpack.c.bf16 %v3243, %v3243
      %v3285 = vpack.c.bf16 %v3244, %v3244
      %v3286 = vpack.c.bf16 %v3245, %v3245
      %v3287 = vpack.c.bf16 %v3246, %v3246
      %v3288 = vpack.c.bf16 %v3247, %v3247
      %v3289 = vpack.c.bf16 %v3248, %v3248
      %v3290 = vpack.c.bf16 %v3249, %v3249
      %v3291 = vpack.c.bf16 %v3250, %v3250
      %v3292 = vpack.c.bf16 %v3251, %v3251
      %v3293 = vpack.c.bf16 %v3252, %v3252
      %v3294 = vpack.c.bf16 %v3253, %v3253
      %v3295 = vpack.c.bf16 %v3254, %v3254
      %v3296 = vpack.c.bf16 %v3255, %v3255
      %v3297 = vpack.c.bf16 %v3256, %v3256
      %v3298 = vpack.c.bf16 %v3257, %v3257
      %v3299 = vpack.c.bf16 %v3258, %v3258
      %v3300 = vpack.c.bf16 %v3259, %v3259
      %v3301 = vpack.c.bf16 %v3260, %v3260
      %v3302 = vpack.c.bf16 %v3261, %v3261
      %v3303 = vld [vmem:[#allocation2 + $0x2b] sm:$0xff]
      %v3304 = vld [vmem:[#allocation2 + $0x33] sm:$0xff]
      %v3305 = vld [vmem:[#allocation2 + $0x3b] sm:$0xff]
      %v3306 = vld [vmem:[#allocation2 + $0x43] sm:$0xff]
      %v3307 = vld [vmem:[#allocation2 + $0x4b] sm:$0xff]
      %v3308 = vld [vmem:[#allocation2 + $0x53] sm:$0xff]
      %v3309 = vld [vmem:[#allocation2 + $0x5b] sm:$0xff]
      %v3310 = vld [vmem:[#allocation2 + $0x63] sm:$0xff]
      %v3311 = vld [vmem:[#allocation2 + $0x6b] sm:$0xff]
      %v3312 = vld [vmem:[#allocation2 + $0x73] sm:$0xff]
      %v3313 = vld [vmem:[#allocation2 + $0x7b] sm:$0xff]
      %v3314 = vld [vmem:[#allocation2 + $0x83] sm:$0xff]
      %v3315 = vld [vmem:[#allocation2 + $0x8b] sm:$0xff]
      %v3316 = vld [vmem:[#allocation2 + $0x93] sm:$0xff]
      %v3317 = vld [vmem:[#allocation2 + $0x9b] sm:$0xff]
      %v3318 = vld [vmem:[#allocation2 + $0xa3] sm:$0xff]
      %v3319 = vld [vmem:[#allocation2 + $0xab] sm:$0xff]
      %v3320 = vld [vmem:[#allocation2 + $0xb3] sm:$0xff]
      %v3321 = vld [vmem:[#allocation2 + $0xbb] sm:$0xff]
      %v3322 = vld [vmem:[#allocation2 + $0xc3] sm:$0xff]
      %v3323 = vld [vmem:[#allocation2 + $0xcb] sm:$0xff]
      %v3324 = vld [vmem:[#allocation2 + $0xd3] sm:$0xff]
      %v3325 = vld [vmem:[#allocation2 + $0xdb] sm:$0xff]
      %v3326 = vld [vmem:[#allocation2 + $0xe3] sm:$0xff]
      %v3327 = vld [vmem:[#allocation2 + $0xeb] sm:$0xff]
      %v3328 = vld [vmem:[#allocation2 + $0xf3] sm:$0xff]
      %v3329 = vld [vmem:[#allocation2 + $0xfb] sm:$0xff]
      %v3330 = vld [vmem:[#allocation2 + $0x103] sm:$0xff]
      %v3331 = vld [vmem:[#allocation2 + $0x10b] sm:$0xff]
      %v3332 = vld [vmem:[#allocation2 + $0x113] sm:$0xff]
      %v3333 = vld [vmem:[#allocation2 + $0x11b] sm:$0xff]
      %v3334 = vld [vmem:[#allocation2 + $0x123] sm:$0xff]
      %v3335 = vld [vmem:[#allocation2 + $0x12b] sm:$0xff]
      %v3336 = vld [vmem:[#allocation2 + $0x133] sm:$0xff]
      %v3337 = vld [vmem:[#allocation2 + $0x13b] sm:$0xff]
      %v3338 = vld [vmem:[#allocation2 + $0x143] sm:$0xff]
      %v3339 = vld [vmem:[#allocation2 + $0x14b] sm:$0xff]
      %v3340 = vld [vmem:[#allocation2 + $0x153] sm:$0xff]
      %v3341 = vld [vmem:[#allocation2 + $0x15b] sm:$0xff]
      %v3342 = vld [vmem:[#allocation2 + $0x163] sm:$0xff]
      %v3343 = vld [vmem:[#allocation2 + $0x16b] sm:$0xff]
      %v3344 = vpack.c.bf16 %v3303, %v3303
      %v3345 = vpack.c.bf16 %v3304, %v3304
      %v3346 = vpack.c.bf16 %v3305, %v3305
      %v3347 = vpack.c.bf16 %v3306, %v3306
      %v3348 = vpack.c.bf16 %v3307, %v3307
      %v3349 = vpack.c.bf16 %v3308, %v3308
      %v3350 = vpack.c.bf16 %v3309, %v3309
      %v3351 = vpack.c.bf16 %v3310, %v3310
      %v3352 = vpack.c.bf16 %v3311, %v3311
      %v3353 = vpack.c.bf16 %v3312, %v3312
      %v3354 = vpack.c.bf16 %v3313, %v3313
      %v3355 = vpack.c.bf16 %v3314, %v3314
      %v3356 = vpack.c.bf16 %v3315, %v3315
      %v3357 = vpack.c.bf16 %v3316, %v3316
      %v3358 = vpack.c.bf16 %v3317, %v3317
      %v3359 = vpack.c.bf16 %v3318, %v3318
      %v3360 = vpack.c.bf16 %v3319, %v3319
      %v3361 = vpack.c.bf16 %v3320, %v3320
      %v3362 = vpack.c.bf16 %v3321, %v3321
      %v3363 = vpack.c.bf16 %v3322, %v3322
      %v3364 = vpack.c.bf16 %v3323, %v3323
      %v3365 = vpack.c.bf16 %v3324, %v3324
      %v3366 = vpack.c.bf16 %v3325, %v3325
      %v3367 = vpack.c.bf16 %v3326, %v3326
      %v3368 = vpack.c.bf16 %v3327, %v3327
      %v3369 = vpack.c.bf16 %v3328, %v3328
      %v3370 = vpack.c.bf16 %v3329, %v3329
      %v3371 = vpack.c.bf16 %v3330, %v3330
      %v3372 = vpack.c.bf16 %v3331, %v3331
      %v3373 = vpack.c.bf16 %v3332, %v3332
      %v3374 = vpack.c.bf16 %v3333, %v3333
      %v3375 = vpack.c.bf16 %v3334, %v3334
      %v3376 = vpack.c.bf16 %v3335, %v3335
      %v3377 = vpack.c.bf16 %v3336, %v3336
      %v3378 = vpack.c.bf16 %v3337, %v3337
      %v3379 = vpack.c.bf16 %v3338, %v3338
      %v3380 = vpack.c.bf16 %v3339, %v3339
      %v3381 = vpack.c.bf16 %v3340, %v3340
      %v3382 = vpack.c.bf16 %v3341, %v3341
      %v3383 = vpack.c.bf16 %v3342, %v3342
      %v3384 = vpack.c.bf16 %v3343, %v3343
      %v3426 = vunpack.c.l.b16 %v3176
      %v3427 = vunpack.c.l.b16 %v3177
      %v3428 = vunpack.c.l.b16 %v3178
      %v3429 = vunpack.c.l.b16 %v3179
      %v3430 = vunpack.c.l.b16 %v3180
      %v3431 = vunpack.c.l.b16 %v3181
      %v3432 = vunpack.c.l.b16 %v3182
      %v3433 = vunpack.c.l.b16 %v3183
      %v3434 = vunpack.c.l.b16 %v3184
      %v3435 = vunpack.c.l.b16 %v3185
      %v3436 = vunpack.c.l.b16 %v3186
      %v3437 = vunpack.c.l.b16 %v3187
      %v3438 = vunpack.c.l.b16 %v3188
      %v3439 = vunpack.c.l.b16 %v3189
      %v3440 = vunpack.c.l.b16 %v3190
      %v3441 = vunpack.c.l.b16 %v3191
      %v3442 = vunpack.c.l.b16 %v3192
      %v3443 = vunpack.c.l.b16 %v3193
      %v3444 = vunpack.c.l.b16 %v3194
      %v3445 = vunpack.c.l.b16 %v3195
      %v3446 = vunpack.c.l.b16 %v3196
      %v3447 = vunpack.c.l.b16 %v3197
      %v3448 = vunpack.c.l.b16 %v3198
      %v3449 = vunpack.c.l.b16 %v3199
      %v3450 = vunpack.c.l.b16 %v3200
      %v3451 = vunpack.c.l.b16 %v3201
      %v3452 = vunpack.c.l.b16 %v3202
      %v3453 = vunpack.c.l.b16 %v3203
      %v3454 = vunpack.c.l.b16 %v3204
      %v3455 = vunpack.c.l.b16 %v3205
      %v3456 = vunpack.c.l.b16 %v3206
      %v3457 = vunpack.c.l.b16 %v3207
      %v3458 = vunpack.c.l.b16 %v3208
      %v3459 = vunpack.c.l.b16 %v3209
      %v3460 = vunpack.c.l.b16 %v3210
      %v3461 = vunpack.c.l.b16 %v3211
      %v3462 = vunpack.c.l.b16 %v3212
      %v3463 = vunpack.c.l.b16 %v3213
      %v3464 = vunpack.c.l.b16 %v3214
      %v3465 = vunpack.c.l.b16 %v3215
      %v3466 = vunpack.c.l.b16 %v3216
      %v3467 = vpack.c.b16 %v3427, %v3426
      %v3468 = vpack.c.b16 %v3429, %v3428
      %v3469 = vpack.c.b16 %v3431, %v3430
      %v3470 = vpack.c.b16 %v3433, %v3432
      %v3471 = vpack.c.b16 %v3435, %v3434
      %v3472 = vpack.c.b16 %v3437, %v3436
      %v3473 = vpack.c.b16 %v3439, %v3438
      %v3474 = vpack.c.b16 %v3441, %v3440
      %v3475 = vpack.c.b16 %v3443, %v3442
      %v3476 = vpack.c.b16 %v3445, %v3444
      %v3477 = vpack.c.b16 %v3447, %v3446
      %v3478 = vpack.c.b16 %v3449, %v3448
      %v3479 = vpack.c.b16 %v3451, %v3450
      %v3480 = vpack.c.b16 %v3453, %v3452
      %v3481 = vpack.c.b16 %v3455, %v3454
      %v3482 = vpack.c.b16 %v3457, %v3456
      %v3483 = vpack.c.b16 %v3459, %v3458
      %v3484 = vpack.c.b16 %v3461, %v3460
      %v3485 = vpack.c.b16 %v3463, %v3462
      %v3486 = vpack.c.b16 %v3465, %v3464
      %v3487 = vpack.c.b16 %v3466, %v3466
      %v3511 = vunpack.c.l.b16 %v3219
      %v3512 = vunpack.c.l.b16 %v3220
      %v3513 = vpack.c.b16 %v3511, %v3466
      %v3514 = vpack.c.b16 %v3512, %v3512
      %v3558 = vunpack.c.l.b16 %v3262
      %v3559 = vunpack.c.l.b16 %v3263
      %v3560 = vunpack.c.l.b16 %v3264
      %v3561 = vunpack.c.l.b16 %v3265
      %v3562 = vunpack.c.l.b16 %v3266
      %v3563 = vunpack.c.l.b16 %v3267
      %v3564 = vunpack.c.l.b16 %v3268
      %v3565 = vunpack.c.l.b16 %v3269
      %v3566 = vunpack.c.l.b16 %v3270
      %v3567 = vunpack.c.l.b16 %v3271
      %v3568 = vunpack.c.l.b16 %v3272
      %v3569 = vunpack.c.l.b16 %v3273
      %v3570 = vunpack.c.l.b16 %v3274
      %v3571 = vunpack.c.l.b16 %v3275
      %v3572 = vunpack.c.l.b16 %v3276
      %v3573 = vunpack.c.l.b16 %v3277
      %v3574 = vunpack.c.l.b16 %v3278
      %v3575 = vunpack.c.l.b16 %v3279
      %v3576 = vunpack.c.l.b16 %v3280
      %v3577 = vunpack.c.l.b16 %v3281
      %v3578 = vunpack.c.l.b16 %v3282
      %v3579 = vunpack.c.l.b16 %v3283
      %v3580 = vunpack.c.l.b16 %v3284
      %v3581 = vunpack.c.l.b16 %v3285
      %v3582 = vunpack.c.l.b16 %v3286
      %v3583 = vunpack.c.l.b16 %v3287
      %v3584 = vunpack.c.l.b16 %v3288
      %v3585 = vunpack.c.l.b16 %v3289
      %v3586 = vunpack.c.l.b16 %v3290
      %v3587 = vunpack.c.l.b16 %v3291
      %v3588 = vunpack.c.l.b16 %v3292
      %v3589 = vunpack.c.l.b16 %v3293
      %v3590 = vunpack.c.l.b16 %v3294
      %v3591 = vunpack.c.l.b16 %v3295
      %v3592 = vunpack.c.l.b16 %v3296
      %v3593 = vunpack.c.l.b16 %v3297
      %v3594 = vunpack.c.l.b16 %v3298
      %v3595 = vunpack.c.l.b16 %v3299
      %v3596 = vunpack.c.l.b16 %v3300
      %v3597 = vunpack.c.l.b16 %v3301
      %v3598 = vunpack.c.l.b16 %v3302
      %v3599 = vpack.c.b16 %v3559, %v3558
      %v3600 = vpack.c.b16 %v3561, %v3560
      %v3601 = vpack.c.b16 %v3563, %v3562
      %v3602 = vpack.c.b16 %v3565, %v3564
      %v3603 = vpack.c.b16 %v3567, %v3566
      %v3604 = vpack.c.b16 %v3569, %v3568
      %v3605 = vpack.c.b16 %v3571, %v3570
      %v3606 = vpack.c.b16 %v3573, %v3572
      %v3607 = vpack.c.b16 %v3575, %v3574
      %v3608 = vpack.c.b16 %v3577, %v3576
      %v3609 = vpack.c.b16 %v3579, %v3578
      %v3610 = vpack.c.b16 %v3581, %v3580
      %v3611 = vpack.c.b16 %v3583, %v3582
      %v3612 = vpack.c.b16 %v3585, %v3584
      %v3613 = vpack.c.b16 %v3587, %v3586
      %v3614 = vpack.c.b16 %v3589, %v3588
      %v3615 = vpack.c.b16 %v3591, %v3590
      %v3616 = vpack.c.b16 %v3593, %v3592
      %v3617 = vpack.c.b16 %v3595, %v3594
      %v3618 = vpack.c.b16 %v3597, %v3596
      %v3619 = vpack.c.b16 %v3598, %v3598
      %v3682 = vunpack.c.l.b16 %v3344
      %v3683 = vunpack.c.l.b16 %v3345
      %v3684 = vunpack.c.l.b16 %v3346
      %v3685 = vunpack.c.l.b16 %v3347
      %v3686 = vunpack.c.l.b16 %v3348
      %v3687 = vunpack.c.l.b16 %v3349
      %v3688 = vunpack.c.l.b16 %v3350
      %v3689 = vunpack.c.l.b16 %v3351
      %v3690 = vunpack.c.l.b16 %v3352
      %v3691 = vunpack.c.l.b16 %v3353
      %v3692 = vunpack.c.l.b16 %v3354
      %v3693 = vunpack.c.l.b16 %v3355
      %v3694 = vunpack.c.l.b16 %v3356
      %v3695 = vunpack.c.l.b16 %v3357
      %v3696 = vunpack.c.l.b16 %v3358
      %v3697 = vunpack.c.l.b16 %v3359
      %v3698 = vunpack.c.l.b16 %v3360
      %v3699 = vunpack.c.l.b16 %v3361
      %v3700 = vunpack.c.l.b16 %v3362
      %v3701 = vunpack.c.l.b16 %v3363
      %v3702 = vunpack.c.l.b16 %v3364
      %v3703 = vunpack.c.l.b16 %v3365
      %v3704 = vunpack.c.l.b16 %v3366
      %v3705 = vunpack.c.l.b16 %v3367
      %v3706 = vunpack.c.l.b16 %v3368
      %v3707 = vunpack.c.l.b16 %v3369
      %v3708 = vunpack.c.l.b16 %v3370
      %v3709 = vunpack.c.l.b16 %v3371
      %v3710 = vunpack.c.l.b16 %v3372
      %v3711 = vunpack.c.l.b16 %v3373
      %v3712 = vunpack.c.l.b16 %v3374
      %v3713 = vunpack.c.l.b16 %v3375
      %v3714 = vunpack.c.l.b16 %v3376
      %v3715 = vunpack.c.l.b16 %v3377
      %v3716 = vunpack.c.l.b16 %v3378
      %v3717 = vunpack.c.l.b16 %v3379
      %v3718 = vunpack.c.l.b16 %v3380
      %v3719 = vunpack.c.l.b16 %v3381
      %v3720 = vunpack.c.l.b16 %v3382
      %v3721 = vunpack.c.l.b16 %v3383
      %v3722 = vunpack.c.l.b16 %v3384
      %v3723 = vpack.c.b16 %v3683, %v3682
      %v3724 = vpack.c.b16 %v3685, %v3684
      %v3725 = vpack.c.b16 %v3687, %v3686
      %v3726 = vpack.c.b16 %v3689, %v3688
      %v3727 = vpack.c.b16 %v3691, %v3690
      %v3728 = vpack.c.b16 %v3693, %v3692
      %v3729 = vpack.c.b16 %v3695, %v3694
      %v3730 = vpack.c.b16 %v3697, %v3696
      %v3731 = vpack.c.b16 %v3699, %v3698
      %v3732 = vpack.c.b16 %v3701, %v3700
      %v3733 = vpack.c.b16 %v3703, %v3702
      %v3734 = vpack.c.b16 %v3705, %v3704
      %v3735 = vpack.c.b16 %v3707, %v3706
      %v3736 = vpack.c.b16 %v3709, %v3708
      %v3737 = vpack.c.b16 %v3711, %v3710
      %v3738 = vpack.c.b16 %v3713, %v3712
      %v3739 = vpack.c.b16 %v3715, %v3714
      %v3740 = vpack.c.b16 %v3717, %v3716
      %v3741 = vpack.c.b16 %v3719, %v3718
      %v3742 = vpack.c.b16 %v3721, %v3720
      %v3743 = vpack.c.b16 %v3722, %v3722
      %s3765 = scalar_lea.vmem %s6, 256
      %v3766 = vld [vmem:[%s3765] sm:$0xf]
      %v3767 = vld [vmem:[%s3765 + $0x4] sm:$0xf]
      %v3768 = vld [vmem:[%s3765 + $0x8] sm:$0xf]
      %v3769 = vld [vmem:[%s3765 + $0xc] sm:$0xf]
      %v3770 = vld [vmem:[%s3765 + $0x10] sm:$0xf]
      %v3771 = vld [vmem:[%s3765 + $0x14] sm:$0xf]
      %v3772 = vld [vmem:[%s3765 + $0x18] sm:$0xf]
      %v3773 = vld [vmem:[%s3765 + $0x1c] sm:$0xf]
      %v3774 = vld [vmem:[%s3765 + $0x20] sm:$0xf]
      %v3775 = vld [vmem:[%s3765 + $0x24] sm:$0xf]
      %v3776 = vld [vmem:[%s3765 + $0x28] sm:$0xf]
      %v3777 = vld [vmem:[%s3765 + $0x2c] sm:$0xf]
      %v3778 = vld [vmem:[%s3765 + $0x30] sm:$0xf]
      %v3779 = vld [vmem:[%s3765 + $0x34] sm:$0xf]
      %v3780 = vld [vmem:[%s3765 + $0x38] sm:$0xf]
      %v3781 = vld [vmem:[%s3765 + $0x3c] sm:$0xf]
      %v3782 = vld [vmem:[%s3765 + $0x40] sm:$0xf]
      %v3783 = vld [vmem:[%s3765 + $0x44] sm:$0xf]
      %v3784 = vld [vmem:[%s3765 + $0x48] sm:$0xf]
      %v3785 = vld [vmem:[%s3765 + $0x4c] sm:$0xf]
      %v3786 = vld [vmem:[%s3765 + $0x50] sm:$0xf]
      %v3787 = vld [vmem:[%s3765 + $0x54] sm:$0xf]
      %v3788 = vld [vmem:[%s3765 + $0x58] sm:$0xf]
      %v3789 = vld [vmem:[%s3765 + $0x5c] sm:$0xf]
      %v3790 = vld [vmem:[%s3765 + $0x60] sm:$0xf]
      %v3791 = vld [vmem:[%s3765 + $0x64] sm:$0xf]
      %v3792 = vld [vmem:[%s3765 + $0x68] sm:$0xf]
      %v3793 = vld [vmem:[%s3765 + $0x6c] sm:$0xf]
      %v3794 = vld [vmem:[%s3765 + $0x70] sm:$0xf]
      %v3795 = vld [vmem:[%s3765 + $0x74] sm:$0xf]
      %v3796 = vld [vmem:[%s3765 + $0x78] sm:$0xf]
      %v3797 = vld [vmem:[%s3765 + $0x7c] sm:$0xf]
      %v3798 = vld [vmem:[%s3765 + $0x80] sm:$0xf]
      %v3799 = vld [vmem:[%s3765 + $0x84] sm:$0xf]
      %v3800 = vld [vmem:[%s3765 + $0x88] sm:$0xf]
      %v3801 = vld [vmem:[%s3765 + $0x8c] sm:$0xf]
      %v3802 = vld [vmem:[%s3765 + $0x90] sm:$0xf]
      %v3803 = vld [vmem:[%s3765 + $0x94] sm:$0xf]
      %v3804 = vld [vmem:[%s3765 + $0x98] sm:$0xf]
      %v3805 = vld [vmem:[%s3765 + $0x9c] sm:$0xf]
      %v3806 = vld [vmem:[%s3765 + $0xa0] sm:$0xf]
      %v3807 = vld [vmem:[%s3765 + $0xa4] sm:$0xf]
      %v3808 = vld [vmem:[%s3765 + $0xa8] sm:$0xf]
      %v3809 = vld [vmem:[%s3765 + $0xac] sm:$0xf]
      %v3810 = vld [vmem:[%s3765 + $0xb0] sm:$0xf]
      %v3811 = vld [vmem:[%s3765 + $0xb4] sm:$0xf]
      %v3812 = vld [vmem:[%s3765 + $0xb8] sm:$0xf]
      %v3813 = vld [vmem:[%s3765 + $0xbc] sm:$0xf]
      %v3814 = vld [vmem:[%s3765 + $0xc0] sm:$0xf]
      %v3815 = vld [vmem:[%s3765 + $0xc4] sm:$0xf]
      %v3816 = vld [vmem:[%s3765 + $0xc8] sm:$0xf]
      %v3817 = vld [vmem:[%s3765 + $0xcc] sm:$0xf]
      %v3818 = vld [vmem:[%s3765 + $0xd0] sm:$0xf]
      %v3819 = vld [vmem:[%s3765 + $0xd4] sm:$0xf]
      %v3820 = vld [vmem:[%s3765 + $0xd8] sm:$0xf]
      %v3821 = vld [vmem:[%s3765 + $0xdc] sm:$0xf]
      %v3822 = vld [vmem:[%s3765 + $0xe0] sm:$0xf]
      %v3823 = vld [vmem:[%s3765 + $0xe4] sm:$0xf]
      %v3824 = vld [vmem:[%s3765 + $0xe8] sm:$0xf]
      %v3825 = vld [vmem:[%s3765 + $0xec] sm:$0xf]
      %v3826 = vld [vmem:[%s3765 + $0xf0] sm:$0xf]
      %v3827 = vld [vmem:[%s3765 + $0xf4] sm:$0xf]
      %v3828 = vld [vmem:[%s3765 + $0xf8] sm:$0xf]
      %v3829 = vld [vmem:[%s3765 + $0xfc] sm:$0xf]
      %v3894 = vunpack.c.l.b16 %v3766
      %v3895 = vunpack.c.l.b16 %v3767
      %v3896 = vunpack.c.l.b16 %v3768
      %v3897 = vunpack.c.l.b16 %v3769
      %v3898 = vunpack.c.l.b16 %v3770
      %v3899 = vunpack.c.l.b16 %v3771
      %v3900 = vunpack.c.l.b16 %v3772
      %v3901 = vunpack.c.l.b16 %v3773
      %v3902 = vunpack.c.l.b16 %v3774
      %v3903 = vunpack.c.l.b16 %v3775
      %v3904 = vunpack.c.l.b16 %v3776
      %v3905 = vunpack.c.l.b16 %v3777
      %v3906 = vunpack.c.l.b16 %v3778
      %v3907 = vunpack.c.l.b16 %v3779
      %v3908 = vunpack.c.l.b16 %v3780
      %v3909 = vunpack.c.l.b16 %v3781
      %v3910 = vunpack.c.l.b16 %v3782
      %v3911 = vunpack.c.l.b16 %v3783
      %v3912 = vunpack.c.l.b16 %v3784
      %v3913 = vunpack.c.l.b16 %v3785
      %v3914 = vunpack.c.l.b16 %v3786
      %v3915 = vunpack.c.l.b16 %v3787
      %v3916 = vunpack.c.l.b16 %v3788
      %v3917 = vunpack.c.l.b16 %v3789
      %v3918 = vunpack.c.l.b16 %v3790
      %v3919 = vunpack.c.l.b16 %v3791
      %v3920 = vunpack.c.l.b16 %v3792
      %v3921 = vunpack.c.l.b16 %v3793
      %v3922 = vunpack.c.l.b16 %v3794
      %v3923 = vunpack.c.l.b16 %v3795
      %v3924 = vunpack.c.l.b16 %v3796
      %v3925 = vunpack.c.l.b16 %v3797
      %v3926 = vunpack.c.l.b16 %v3798
      %v3927 = vunpack.c.l.b16 %v3799
      %v3928 = vunpack.c.l.b16 %v3800
      %v3929 = vunpack.c.l.b16 %v3801
      %v3930 = vunpack.c.l.b16 %v3802
      %v3931 = vunpack.c.l.b16 %v3803
      %v3932 = vunpack.c.l.b16 %v3804
      %v3933 = vunpack.c.l.b16 %v3805
      %v3934 = vunpack.c.l.b16 %v3806
      %v3935 = vunpack.c.l.b16 %v3807
      %v3936 = vunpack.c.l.b16 %v3808
      %v3937 = vunpack.c.l.b16 %v3809
      %v3938 = vunpack.c.l.b16 %v3810
      %v3939 = vunpack.c.l.b16 %v3811
      %v3940 = vunpack.c.l.b16 %v3812
      %v3941 = vunpack.c.l.b16 %v3813
      %v3942 = vunpack.c.l.b16 %v3814
      %v3943 = vunpack.c.l.b16 %v3815
      %v3944 = vunpack.c.l.b16 %v3816
      %v3945 = vunpack.c.l.b16 %v3817
      %v3946 = vunpack.c.l.b16 %v3818
      %v3947 = vunpack.c.l.b16 %v3819
      %v3948 = vunpack.c.l.b16 %v3820
      %v3949 = vunpack.c.l.b16 %v3821
      %v3950 = vunpack.c.l.b16 %v3822
      %v3951 = vunpack.c.l.b16 %v3823
      %v3952 = vunpack.c.l.b16 %v3824
      %v3953 = vunpack.c.l.b16 %v3825
      %v3954 = vunpack.c.l.b16 %v3826
      %v3955 = vunpack.c.l.b16 %v3827
      %v3956 = vunpack.c.l.b16 %v3828
      %v3957 = vunpack.c.l.b16 %v3829
      %v3958 = vpack.c.b16 %v3895, %v3894
      %v3959 = vpack.c.b16 %v3897, %v3896
      %v3960 = vpack.c.b16 %v3899, %v3898
      %v3961 = vpack.c.b16 %v3901, %v3900
      %v3962 = vpack.c.b16 %v3903, %v3902
      %v3963 = vpack.c.b16 %v3905, %v3904
      %v3964 = vpack.c.b16 %v3907, %v3906
      %v3965 = vpack.c.b16 %v3909, %v3908
      %v3966 = vpack.c.b16 %v3911, %v3910
      %v3967 = vpack.c.b16 %v3913, %v3912
      %v3968 = vpack.c.b16 %v3915, %v3914
      %v3969 = vpack.c.b16 %v3917, %v3916
      %v3970 = vpack.c.b16 %v3919, %v3918
      %v3971 = vpack.c.b16 %v3921, %v3920
      %v3972 = vpack.c.b16 %v3923, %v3922
      %v3973 = vpack.c.b16 %v3925, %v3924
      %v3974 = vpack.c.b16 %v3927, %v3926
      %v3975 = vpack.c.b16 %v3929, %v3928
      %v3976 = vpack.c.b16 %v3931, %v3930
      %v3977 = vpack.c.b16 %v3933, %v3932
      %v3978 = vpack.c.b16 %v3935, %v3934
      %v3979 = vpack.c.b16 %v3937, %v3936
      %v3980 = vpack.c.b16 %v3939, %v3938
      %v3981 = vpack.c.b16 %v3941, %v3940
      %v3982 = vpack.c.b16 %v3943, %v3942
      %v3983 = vpack.c.b16 %v3945, %v3944
      %v3984 = vpack.c.b16 %v3947, %v3946
      %v3985 = vpack.c.b16 %v3949, %v3948
      %v3986 = vpack.c.b16 %v3951, %v3950
      %v3987 = vpack.c.b16 %v3953, %v3952
      %v3988 = vpack.c.b16 %v3955, %v3954
      %v3989 = vpack.c.b16 %v3957, %v3956
      %4022 = vmatpush.bf16.msra.mxu0 %v3965
      %4023 = vmatpush.bf16.msra.mxu0 %v3964
      %4024 = vmatpush.bf16.msra.mxu0 %v3963
      %4025 = vmatpush.bf16.msra.mxu0 %v3962
      %4026 = vmatpush.bf16.msra.mxu0 %v3961
      %4027 = vmatpush.bf16.msra.mxu0 %v3960
      %4028 = vmatpush.bf16.msra.mxu0 %v3959
      %4029 = vmatpush.bf16.msra.mxu0 %v3958
      %4030 = vmatmul.bf16.gmra.mxu0 %v3467
      %v4031 = vpop.f32.mrf.mxu0
      %v4032 = vadd.f32 0.0, %v4031
      %v4033 = vpop.f32.mrf.mxu0
      %v4034 = vadd.f32 0.0, %v4033
      %4035 = vmatmul.bf16.gmra.mxu0 %v3468
      %v4036 = vpop.f32.mrf.mxu0
      %v4037 = vadd.f32 0.0, %v4036
      %v4038 = vpop.f32.mrf.mxu0
      %v4039 = vadd.f32 0.0, %v4038
      %4040 = vmatmul.bf16.gmra.mxu0 %v3469
      %v4041 = vpop.f32.mrf.mxu0
      %v4042 = vadd.f32 0.0, %v4041
      %v4043 = vpop.f32.mrf.mxu0
      %v4044 = vadd.f32 0.0, %v4043
      %4045 = vmatmul.bf16.gmra.mxu0 %v3470
      %v4046 = vpop.f32.mrf.mxu0
      %v4047 = vadd.f32 0.0, %v4046
      %v4048 = vpop.f32.mrf.mxu0
      %v4049 = vadd.f32 0.0, %v4048
      %4050 = vmatmul.bf16.gmra.mxu0 %v3471
      %v4051 = vpop.f32.mrf.mxu0
      %v4052 = vadd.f32 0.0, %v4051
      %v4053 = vpop.f32.mrf.mxu0
      %v4054 = vadd.f32 0.0, %v4053
      %4055 = vmatmul.bf16.gmra.mxu0 %v3472
      %v4056 = vpop.f32.mrf.mxu0
      %v4057 = vadd.f32 0.0, %v4056
      %v4058 = vpop.f32.mrf.mxu0
      %v4059 = vadd.f32 0.0, %v4058
      %4060 = vmatmul.bf16.gmra.mxu0 %v3473
      %v4061 = vpop.f32.mrf.mxu0
      %v4062 = vadd.f32 0.0, %v4061
      %v4063 = vpop.f32.mrf.mxu0
      %v4064 = vadd.f32 0.0, %v4063
      %4065 = vmatmul.bf16.gmra.mxu0 %v3474
      %v4066 = vpop.f32.mrf.mxu0
      %v4067 = vadd.f32 0.0, %v4066
      %v4068 = vpop.f32.mrf.mxu0
      %v4069 = vadd.f32 0.0, %v4068
      %4070 = vmatmul.bf16.gmra.mxu0 %v3475
      %v4071 = vpop.f32.mrf.mxu0
      %v4072 = vadd.f32 0.0, %v4071
      %v4073 = vpop.f32.mrf.mxu0
      %v4074 = vadd.f32 0.0, %v4073
      %4075 = vmatmul.bf16.gmra.mxu0 %v3476
      %v4076 = vpop.f32.mrf.mxu0
      %v4077 = vadd.f32 0.0, %v4076
      %v4078 = vpop.f32.mrf.mxu0
      %v4079 = vadd.f32 0.0, %v4078
      %4080 = vmatmul.bf16.gmra.mxu0 %v3477
      %v4081 = vpop.f32.mrf.mxu0
      %v4082 = vadd.f32 0.0, %v4081
      %v4083 = vpop.f32.mrf.mxu0
      %v4084 = vadd.f32 0.0, %v4083
      %4085 = vmatmul.bf16.gmra.mxu0 %v3478
      %v4086 = vpop.f32.mrf.mxu0
      %v4087 = vadd.f32 0.0, %v4086
      %v4088 = vpop.f32.mrf.mxu0
      %v4089 = vadd.f32 0.0, %v4088
      %4090 = vmatmul.bf16.gmra.mxu0 %v3479
      %v4091 = vpop.f32.mrf.mxu0
      %v4092 = vadd.f32 0.0, %v4091
      %v4093 = vpop.f32.mrf.mxu0
      %v4094 = vadd.f32 0.0, %v4093
      %4095 = vmatmul.bf16.gmra.mxu0 %v3480
      %v4096 = vpop.f32.mrf.mxu0
      %v4097 = vadd.f32 0.0, %v4096
      %v4098 = vpop.f32.mrf.mxu0
      %v4099 = vadd.f32 0.0, %v4098
      %4100 = vmatmul.bf16.gmra.mxu0 %v3481
      %v4101 = vpop.f32.mrf.mxu0
      %v4102 = vadd.f32 0.0, %v4101
      %v4103 = vpop.f32.mrf.mxu0
      %v4104 = vadd.f32 0.0, %v4103
      %4105 = vmatmul.bf16.gmra.mxu0 %v3482
      %v4106 = vpop.f32.mrf.mxu0
      %v4107 = vadd.f32 0.0, %v4106
      %v4108 = vpop.f32.mrf.mxu0
      %v4109 = vadd.f32 0.0, %v4108
      %4110 = vmatmul.bf16.gmra.mxu0 %v3483
      %v4111 = vpop.f32.mrf.mxu0
      %v4112 = vadd.f32 0.0, %v4111
      %v4113 = vpop.f32.mrf.mxu0
      %v4114 = vadd.f32 0.0, %v4113
      %4115 = vmatmul.bf16.gmra.mxu0 %v3484
      %v4116 = vpop.f32.mrf.mxu0
      %v4117 = vadd.f32 0.0, %v4116
      %v4118 = vpop.f32.mrf.mxu0
      %v4119 = vadd.f32 0.0, %v4118
      %4120 = vmatmul.bf16.gmra.mxu0 %v3485
      %v4121 = vpop.f32.mrf.mxu0
      %v4122 = vadd.f32 0.0, %v4121
      %v4123 = vpop.f32.mrf.mxu0
      %v4124 = vadd.f32 0.0, %v4123
      %4125 = vmatmul.bf16.gmra.mxu0 %v3486
      %v4126 = vpop.f32.mrf.mxu0
      %v4127 = vadd.f32 0.0, %v4126
      %v4128 = vpop.f32.mrf.mxu0
      %v4129 = vadd.f32 0.0, %v4128
      %4130 = vmatmul.bf16.gmra.mxu0 %v3487
      %v4131 = vpop.f32.mrf.mxu0
      %v4132 = vadd.f32 0.0, %v4131
      %v4133 = vpop.f32.mrf.mxu0
      %4134 = vdwg.mxu0
      %4135 = vmatpush.bf16.msra.mxu0 %v3973
      %4136 = vmatpush.bf16.msra.mxu0 %v3972
      %4137 = vmatpush.bf16.msra.mxu0 %v3971
      %4138 = vmatpush.bf16.msra.mxu0 %v3970
      %4139 = vmatpush.bf16.msra.mxu0 %v3969
      %4140 = vmatpush.bf16.msra.mxu0 %v3968
      %4141 = vmatpush.bf16.msra.mxu0 %v3967
      %4142 = vmatpush.bf16.msra.mxu0 %v3966
      %4143 = vmatmul.bf16.gmra.mxu0 %v3468
      %v4144 = vpop.f32.mrf.mxu0
      %v4145 = vadd.f32 %v4032, %v4144
      %v4146 = vpop.f32.mrf.mxu0
      %v4147 = vadd.f32 %v4034, %v4146
      %4148 = vmatmul.bf16.gmra.mxu0 %v3469
      %v4149 = vpop.f32.mrf.mxu0
      %v4150 = vadd.f32 %v4037, %v4149
      %v4151 = vpop.f32.mrf.mxu0
      %v4152 = vadd.f32 %v4039, %v4151
      %4153 = vmatmul.bf16.gmra.mxu0 %v3470
      %v4154 = vpop.f32.mrf.mxu0
      %v4155 = vadd.f32 %v4042, %v4154
      %v4156 = vpop.f32.mrf.mxu0
      %v4157 = vadd.f32 %v4044, %v4156
      %4158 = vmatmul.bf16.gmra.mxu0 %v3471
      %v4159 = vpop.f32.mrf.mxu0
      %v4160 = vadd.f32 %v4047, %v4159
      %v4161 = vpop.f32.mrf.mxu0
      %v4162 = vadd.f32 %v4049, %v4161
      %4163 = vmatmul.bf16.gmra.mxu0 %v3472
      %v4164 = vpop.f32.mrf.mxu0
      %v4165 = vadd.f32 %v4052, %v4164
      %v4166 = vpop.f32.mrf.mxu0
      %v4167 = vadd.f32 %v4054, %v4166
      %4168 = vmatmul.bf16.gmra.mxu0 %v3473
      %v4169 = vpop.f32.mrf.mxu0
      %v4170 = vadd.f32 %v4057, %v4169
      %v4171 = vpop.f32.mrf.mxu0
      %v4172 = vadd.f32 %v4059, %v4171
      %4173 = vmatmul.bf16.gmra.mxu0 %v3474
      %v4174 = vpop.f32.mrf.mxu0
      %v4175 = vadd.f32 %v4062, %v4174
      %v4176 = vpop.f32.mrf.mxu0
      %v4177 = vadd.f32 %v4064, %v4176
      %4178 = vmatmul.bf16.gmra.mxu0 %v3475
      %v4179 = vpop.f32.mrf.mxu0
      %v4180 = vadd.f32 %v4067, %v4179
      %v4181 = vpop.f32.mrf.mxu0
      %v4182 = vadd.f32 %v4069, %v4181
      %4183 = vmatmul.bf16.gmra.mxu0 %v3476
      %v4184 = vpop.f32.mrf.mxu0
      %v4185 = vadd.f32 %v4072, %v4184
      %v4186 = vpop.f32.mrf.mxu0
      %v4187 = vadd.f32 %v4074, %v4186
      %4188 = vmatmul.bf16.gmra.mxu0 %v3477
      %v4189 = vpop.f32.mrf.mxu0
      %v4190 = vadd.f32 %v4077, %v4189
      %v4191 = vpop.f32.mrf.mxu0
      %v4192 = vadd.f32 %v4079, %v4191
      %4193 = vmatmul.bf16.gmra.mxu0 %v3478
      %v4194 = vpop.f32.mrf.mxu0
      %v4195 = vadd.f32 %v4082, %v4194
      %v4196 = vpop.f32.mrf.mxu0
      %v4197 = vadd.f32 %v4084, %v4196
      %4198 = vmatmul.bf16.gmra.mxu0 %v3479
      %v4199 = vpop.f32.mrf.mxu0
      %v4200 = vadd.f32 %v4087, %v4199
      %v4201 = vpop.f32.mrf.mxu0
      %v4202 = vadd.f32 %v4089, %v4201
      %4203 = vmatmul.bf16.gmra.mxu0 %v3480
      %v4204 = vpop.f32.mrf.mxu0
      %v4205 = vadd.f32 %v4092, %v4204
      %v4206 = vpop.f32.mrf.mxu0
      %v4207 = vadd.f32 %v4094, %v4206
      %4208 = vmatmul.bf16.gmra.mxu0 %v3481
      %v4209 = vpop.f32.mrf.mxu0
      %v4210 = vadd.f32 %v4097, %v4209
      %v4211 = vpop.f32.mrf.mxu0
      %v4212 = vadd.f32 %v4099, %v4211
      %4213 = vmatmul.bf16.gmra.mxu0 %v3482
      %v4214 = vpop.f32.mrf.mxu0
      %v4215 = vadd.f32 %v4102, %v4214
      %v4216 = vpop.f32.mrf.mxu0
      %v4217 = vadd.f32 %v4104, %v4216
      %4218 = vmatmul.bf16.gmra.mxu0 %v3483
      %v4219 = vpop.f32.mrf.mxu0
      %v4220 = vadd.f32 %v4107, %v4219
      %v4221 = vpop.f32.mrf.mxu0
      %v4222 = vadd.f32 %v4109, %v4221
      %4223 = vmatmul.bf16.gmra.mxu0 %v3484
      %v4224 = vpop.f32.mrf.mxu0
      %v4225 = vadd.f32 %v4112, %v4224
      %v4226 = vpop.f32.mrf.mxu0
      %v4227 = vadd.f32 %v4114, %v4226
      %4228 = vmatmul.bf16.gmra.mxu0 %v3485
      %v4229 = vpop.f32.mrf.mxu0
      %v4230 = vadd.f32 %v4117, %v4229
      %v4231 = vpop.f32.mrf.mxu0
      %v4232 = vadd.f32 %v4119, %v4231
      %4233 = vmatmul.bf16.gmra.mxu0 %v3486
      %v4234 = vpop.f32.mrf.mxu0
      %v4235 = vadd.f32 %v4122, %v4234
      %v4236 = vpop.f32.mrf.mxu0
      %v4237 = vadd.f32 %v4124, %v4236
      %4238 = vmatmul.bf16.gmra.mxu0 %v3513
      %v4239 = vpop.f32.mrf.mxu0
      %v4240 = vadd.f32 %v4127, %v4239
      %v4241 = vpop.f32.mrf.mxu0
      %v4242 = vadd.f32 %v4129, %v4241
      %4243 = vmatmul.bf16.gmra.mxu0 %v3514
      %v4244 = vpop.f32.mrf.mxu0
      %v4245 = vadd.f32 %v4132, %v4244
      %v4246 = vpop.f32.mrf.mxu0
      %4247 = vdwg.mxu0
      %4248 = vmatpush.bf16.msra.mxu0 %v3981
      %4249 = vmatpush.bf16.msra.mxu0 %v3980
      %4250 = vmatpush.bf16.msra.mxu0 %v3979
      %4251 = vmatpush.bf16.msra.mxu0 %v3978
      %4252 = vmatpush.bf16.msra.mxu0 %v3977
      %4253 = vmatpush.bf16.msra.mxu0 %v3976
      %4254 = vmatpush.bf16.msra.mxu0 %v3975
      %4255 = vmatpush.bf16.msra.mxu0 %v3974
      %4256 = vmatmul.bf16.gmra.mxu0 %v3599
      %v4257 = vpop.f32.mrf.mxu0
      %v4258 = vadd.f32 %v4145, %v4257
      %v4259 = vpop.f32.mrf.mxu0
      %v4260 = vadd.f32 %v4147, %v4259
      %4261 = vmatmul.bf16.gmra.mxu0 %v3600
      %v4262 = vpop.f32.mrf.mxu0
      %v4263 = vadd.f32 %v4150, %v4262
      %v4264 = vpop.f32.mrf.mxu0
      %v4265 = vadd.f32 %v4152, %v4264
      %4266 = vmatmul.bf16.gmra.mxu0 %v3601
      %v4267 = vpop.f32.mrf.mxu0
      %v4268 = vadd.f32 %v4155, %v4267
      %v4269 = vpop.f32.mrf.mxu0
      %v4270 = vadd.f32 %v4157, %v4269
      %4271 = vmatmul.bf16.gmra.mxu0 %v3602
      %v4272 = vpop.f32.mrf.mxu0
      %v4273 = vadd.f32 %v4160, %v4272
      %v4274 = vpop.f32.mrf.mxu0
      %v4275 = vadd.f32 %v4162, %v4274
      %4276 = vmatmul.bf16.gmra.mxu0 %v3603
      %v4277 = vpop.f32.mrf.mxu0
      %v4278 = vadd.f32 %v4165, %v4277
      %v4279 = vpop.f32.mrf.mxu0
      %v4280 = vadd.f32 %v4167, %v4279
      %4281 = vmatmul.bf16.gmra.mxu0 %v3604
      %v4282 = vpop.f32.mrf.mxu0
      %v4283 = vadd.f32 %v4170, %v4282
      %v4284 = vpop.f32.mrf.mxu0
      %v4285 = vadd.f32 %v4172, %v4284
      %4286 = vmatmul.bf16.gmra.mxu0 %v3605
      %v4287 = vpop.f32.mrf.mxu0
      %v4288 = vadd.f32 %v4175, %v4287
      %v4289 = vpop.f32.mrf.mxu0
      %v4290 = vadd.f32 %v4177, %v4289
      %4291 = vmatmul.bf16.gmra.mxu0 %v3606
      %v4292 = vpop.f32.mrf.mxu0
      %v4293 = vadd.f32 %v4180, %v4292
      %v4294 = vpop.f32.mrf.mxu0
      %v4295 = vadd.f32 %v4182, %v4294
      %4296 = vmatmul.bf16.gmra.mxu0 %v3607
      %v4297 = vpop.f32.mrf.mxu0
      %v4298 = vadd.f32 %v4185, %v4297
      %v4299 = vpop.f32.mrf.mxu0
      %v4300 = vadd.f32 %v4187, %v4299
      %4301 = vmatmul.bf16.gmra.mxu0 %v3608
      %v4302 = vpop.f32.mrf.mxu0
      %v4303 = vadd.f32 %v4190, %v4302
      %v4304 = vpop.f32.mrf.mxu0
      %v4305 = vadd.f32 %v4192, %v4304
      %4306 = vmatmul.bf16.gmra.mxu0 %v3609
      %v4307 = vpop.f32.mrf.mxu0
      %v4308 = vadd.f32 %v4195, %v4307
      %v4309 = vpop.f32.mrf.mxu0
      %v4310 = vadd.f32 %v4197, %v4309
      %4311 = vmatmul.bf16.gmra.mxu0 %v3610
      %v4312 = vpop.f32.mrf.mxu0
      %v4313 = vadd.f32 %v4200, %v4312
      %v4314 = vpop.f32.mrf.mxu0
      %v4315 = vadd.f32 %v4202, %v4314
      %4316 = vmatmul.bf16.gmra.mxu0 %v3611
      %v4317 = vpop.f32.mrf.mxu0
      %v4318 = vadd.f32 %v4205, %v4317
      %v4319 = vpop.f32.mrf.mxu0
      %v4320 = vadd.f32 %v4207, %v4319
      %4321 = vmatmul.bf16.gmra.mxu0 %v3612
      %v4322 = vpop.f32.mrf.mxu0
      %v4323 = vadd.f32 %v4210, %v4322
      %v4324 = vpop.f32.mrf.mxu0
      %v4325 = vadd.f32 %v4212, %v4324
      %4326 = vmatmul.bf16.gmra.mxu0 %v3613
      %v4327 = vpop.f32.mrf.mxu0
      %v4328 = vadd.f32 %v4215, %v4327
      %v4329 = vpop.f32.mrf.mxu0
      %v4330 = vadd.f32 %v4217, %v4329
      %4331 = vmatmul.bf16.gmra.mxu0 %v3614
      %v4332 = vpop.f32.mrf.mxu0
      %v4333 = vadd.f32 %v4220, %v4332
      %v4334 = vpop.f32.mrf.mxu0
      %v4335 = vadd.f32 %v4222, %v4334
      %4336 = vmatmul.bf16.gmra.mxu0 %v3615
      %v4337 = vpop.f32.mrf.mxu0
      %v4338 = vadd.f32 %v4225, %v4337
      %v4339 = vpop.f32.mrf.mxu0
      %v4340 = vadd.f32 %v4227, %v4339
      %4341 = vmatmul.bf16.gmra.mxu0 %v3616
      %v4342 = vpop.f32.mrf.mxu0
      %v4343 = vadd.f32 %v4230, %v4342
      %v4344 = vpop.f32.mrf.mxu0
      %v4345 = vadd.f32 %v4232, %v4344
      %4346 = vmatmul.bf16.gmra.mxu0 %v3617
      %v4347 = vpop.f32.mrf.mxu0
      %v4348 = vadd.f32 %v4235, %v4347
      %v4349 = vpop.f32.mrf.mxu0
      %v4350 = vadd.f32 %v4237, %v4349
      %4351 = vmatmul.bf16.gmra.mxu0 %v3618
      %v4352 = vpop.f32.mrf.mxu0
      %v4353 = vadd.f32 %v4240, %v4352
      %v4354 = vpop.f32.mrf.mxu0
      %v4355 = vadd.f32 %v4242, %v4354
      %4356 = vmatmul.bf16.gmra.mxu0 %v3619
      %v4357 = vpop.f32.mrf.mxu0
      %v4358 = vadd.f32 %v4245, %v4357
      %v4359 = vpop.f32.mrf.mxu0
      %4360 = vdwg.mxu0
      %4361 = vmatpush.bf16.msra.mxu0 %v3989
      %4362 = vmatpush.bf16.msra.mxu0 %v3988
      %4363 = vmatpush.bf16.msra.mxu0 %v3987
      %4364 = vmatpush.bf16.msra.mxu0 %v3986
      %4365 = vmatpush.bf16.msra.mxu0 %v3985
      %4366 = vmatpush.bf16.msra.mxu0 %v3984
      %4367 = vmatpush.bf16.msra.mxu0 %v3983
      %4368 = vmatpush.bf16.msra.mxu0 %v3982
      %4369 = vmatmul.bf16.gmra.mxu0 %v3723
      %v4370 = vpop.f32.mrf.mxu0
      %v4371 = vadd.f32 %v4258, %v4370
      %v4372 = vpop.f32.mrf.mxu0
      %v4373 = vadd.f32 %v4260, %v4372
      %4374 = vmatmul.bf16.gmra.mxu0 %v3724
      %v4375 = vpop.f32.mrf.mxu0
      %v4376 = vadd.f32 %v4263, %v4375
      %v4377 = vpop.f32.mrf.mxu0
      %v4378 = vadd.f32 %v4265, %v4377
      %4379 = vmatmul.bf16.gmra.mxu0 %v3725
      %v4380 = vpop.f32.mrf.mxu0
      %v4381 = vadd.f32 %v4268, %v4380
      %v4382 = vpop.f32.mrf.mxu0
      %v4383 = vadd.f32 %v4270, %v4382
      %4384 = vmatmul.bf16.gmra.mxu0 %v3726
      %v4385 = vpop.f32.mrf.mxu0
      %v4386 = vadd.f32 %v4273, %v4385
      %v4387 = vpop.f32.mrf.mxu0
      %v4388 = vadd.f32 %v4275, %v4387
      %4389 = vmatmul.bf16.gmra.mxu0 %v3727
      %v4390 = vpop.f32.mrf.mxu0
      %v4391 = vadd.f32 %v4278, %v4390
      %v4392 = vpop.f32.mrf.mxu0
      %v4393 = vadd.f32 %v4280, %v4392
      %4394 = vmatmul.bf16.gmra.mxu0 %v3728
      %v4395 = vpop.f32.mrf.mxu0
      %v4396 = vadd.f32 %v4283, %v4395
      %v4397 = vpop.f32.mrf.mxu0
      %v4398 = vadd.f32 %v4285, %v4397
      %4399 = vmatmul.bf16.gmra.mxu0 %v3729
      %v4400 = vpop.f32.mrf.mxu0
      %v4401 = vadd.f32 %v4288, %v4400
      %v4402 = vpop.f32.mrf.mxu0
      %v4403 = vadd.f32 %v4290, %v4402
      %4404 = vmatmul.bf16.gmra.mxu0 %v3730
      %v4405 = vpop.f32.mrf.mxu0
      %v4406 = vadd.f32 %v4293, %v4405
      %v4407 = vpop.f32.mrf.mxu0
      %v4408 = vadd.f32 %v4295, %v4407
      %4409 = vmatmul.bf16.gmra.mxu0 %v3731
      %v4410 = vpop.f32.mrf.mxu0
      %v4411 = vadd.f32 %v4298, %v4410
      %v4412 = vpop.f32.mrf.mxu0
      %v4413 = vadd.f32 %v4300, %v4412
      %4414 = vmatmul.bf16.gmra.mxu0 %v3732
      %v4415 = vpop.f32.mrf.mxu0
      %v4416 = vadd.f32 %v4303, %v4415
      %v4417 = vpop.f32.mrf.mxu0
      %v4418 = vadd.f32 %v4305, %v4417
      %4419 = vmatmul.bf16.gmra.mxu0 %v3733
      %v4420 = vpop.f32.mrf.mxu0
      %v4421 = vadd.f32 %v4308, %v4420
      %v4422 = vpop.f32.mrf.mxu0
      %v4423 = vadd.f32 %v4310, %v4422
      %4424 = vmatmul.bf16.gmra.mxu0 %v3734
      %v4425 = vpop.f32.mrf.mxu0
      %v4426 = vadd.f32 %v4313, %v4425
      %v4427 = vpop.f32.mrf.mxu0
      %v4428 = vadd.f32 %v4315, %v4427
      %4429 = vmatmul.bf16.gmra.mxu0 %v3735
      %v4430 = vpop.f32.mrf.mxu0
      %v4431 = vadd.f32 %v4318, %v4430
      %v4432 = vpop.f32.mrf.mxu0
      %v4433 = vadd.f32 %v4320, %v4432
      %4434 = vmatmul.bf16.gmra.mxu0 %v3736
      %v4435 = vpop.f32.mrf.mxu0
      %v4436 = vadd.f32 %v4323, %v4435
      %v4437 = vpop.f32.mrf.mxu0
      %v4438 = vadd.f32 %v4325, %v4437
      %4439 = vmatmul.bf16.gmra.mxu0 %v3737
      %v4440 = vpop.f32.mrf.mxu0
      %v4441 = vadd.f32 %v4328, %v4440
      %v4442 = vpop.f32.mrf.mxu0
      %v4443 = vadd.f32 %v4330, %v4442
      %4444 = vmatmul.bf16.gmra.mxu0 %v3738
      %v4445 = vpop.f32.mrf.mxu0
      %v4446 = vadd.f32 %v4333, %v4445
      %v4447 = vpop.f32.mrf.mxu0
      %v4448 = vadd.f32 %v4335, %v4447
      %4449 = vmatmul.bf16.gmra.mxu0 %v3739
      %v4450 = vpop.f32.mrf.mxu0
      %v4451 = vadd.f32 %v4338, %v4450
      %v4452 = vpop.f32.mrf.mxu0
      %v4453 = vadd.f32 %v4340, %v4452
      %4454 = vmatmul.bf16.gmra.mxu0 %v3740
      %v4455 = vpop.f32.mrf.mxu0
      %v4456 = vadd.f32 %v4343, %v4455
      %v4457 = vpop.f32.mrf.mxu0
      %v4458 = vadd.f32 %v4345, %v4457
      %4459 = vmatmul.bf16.gmra.mxu0 %v3741
      %v4460 = vpop.f32.mrf.mxu0
      %v4461 = vadd.f32 %v4348, %v4460
      %v4462 = vpop.f32.mrf.mxu0
      %v4463 = vadd.f32 %v4350, %v4462
      %4464 = vmatmul.bf16.gmra.mxu0 %v3742
      %v4465 = vpop.f32.mrf.mxu0
      %v4466 = vadd.f32 %v4353, %v4465
      %v4467 = vpop.f32.mrf.mxu0
      %v4468 = vadd.f32 %v4355, %v4467
      %4469 = vmatmul.bf16.gmra.mxu0 %v3743
      %v4470 = vpop.f32.mrf.mxu0
      %v4471 = vadd.f32 %v4358, %v4470
      %v4472 = vpop.f32.mrf.mxu0
      %4473 = vdwg.mxu0
      %v4474 = vadd.f32 %v3032, %v4371
      %v4475 = vadd.f32 %v3034, %v4373
      %v4476 = vadd.f32 %v3037, %v4376
      %v4477 = vadd.f32 %v3039, %v4378
      %v4478 = vadd.f32 %v3042, %v4381
      %v4479 = vadd.f32 %v3044, %v4383
      %v4480 = vadd.f32 %v3047, %v4386
      %v4481 = vadd.f32 %v3049, %v4388
      %v4482 = vadd.f32 %v3052, %v4391
      %v4483 = vadd.f32 %v3054, %v4393
      %v4484 = vadd.f32 %v3057, %v4396
      %v4485 = vadd.f32 %v3059, %v4398
      %v4486 = vadd.f32 %v3062, %v4401
      %v4487 = vadd.f32 %v3064, %v4403
      %v4488 = vadd.f32 %v3067, %v4406
      %v4489 = vadd.f32 %v3069, %v4408
      %v4490 = vadd.f32 %v3072, %v4411
      %v4491 = vadd.f32 %v3074, %v4413
      %v4492 = vadd.f32 %v3077, %v4416
      %v4493 = vadd.f32 %v3079, %v4418
      %v4494 = vadd.f32 %v3082, %v4421
      %v4495 = vadd.f32 %v3084, %v4423
      %v4496 = vadd.f32 %v3087, %v4426
      %v4497 = vadd.f32 %v3089, %v4428
      %v4498 = vadd.f32 %v3092, %v4431
      %v4499 = vadd.f32 %v3094, %v4433
      %v4500 = vadd.f32 %v3097, %v4436
      %v4501 = vadd.f32 %v3099, %v4438
      %v4502 = vadd.f32 %v3102, %v4441
      %v4503 = vadd.f32 %v3104, %v4443
      %v4504 = vadd.f32 %v3107, %v4446
      %v4505 = vadd.f32 %v3109, %v4448
      %v4506 = vadd.f32 %v3112, %v4451
      %v4507 = vadd.f32 %v3114, %v4453
      %v4508 = vadd.f32 %v3117, %v4456
      %v4509 = vadd.f32 %v3119, %v4458
      %v4510 = vadd.f32 %v3122, %v4461
      %v4511 = vadd.f32 %v3124, %v4463
      %v4512 = vadd.f32 %v3127, %v4466
      %v4513 = vadd.f32 %v3129, %v4468
      %v4514 = vadd.f32 %v3132, %v4471
      %v4515 = vpack.c.bf16 %v4474, %v4474
      %v4516 = vpack.c.bf16 %v4475, %v4475
      %v4517 = vpack.c.bf16 %v4476, %v4476
      %v4518 = vpack.c.bf16 %v4477, %v4477
      %v4519 = vpack.c.bf16 %v4478, %v4478
      %v4520 = vpack.c.bf16 %v4479, %v4479
      %v4521 = vpack.c.bf16 %v4480, %v4480
      %v4522 = vpack.c.bf16 %v4481, %v4481
      %v4523 = vpack.c.bf16 %v4482, %v4482
      %v4524 = vpack.c.bf16 %v4483, %v4483
      %v4525 = vpack.c.bf16 %v4484, %v4484
      %v4526 = vpack.c.bf16 %v4485, %v4485
      %v4527 = vpack.c.bf16 %v4486, %v4486
      %v4528 = vpack.c.bf16 %v4487, %v4487
      %v4529 = vpack.c.bf16 %v4488, %v4488
      %v4530 = vpack.c.bf16 %v4489, %v4489
      %v4531 = vpack.c.bf16 %v4490, %v4490
      %v4532 = vpack.c.bf16 %v4491, %v4491
      %v4533 = vpack.c.bf16 %v4492, %v4492
      %v4534 = vpack.c.bf16 %v4493, %v4493
      %v4535 = vpack.c.bf16 %v4494, %v4494
      %v4536 = vpack.c.bf16 %v4495, %v4495
      %v4537 = vpack.c.bf16 %v4496, %v4496
      %v4538 = vpack.c.bf16 %v4497, %v4497
      %v4539 = vpack.c.bf16 %v4498, %v4498
      %v4540 = vpack.c.bf16 %v4499, %v4499
      %v4541 = vpack.c.bf16 %v4500, %v4500
      %v4542 = vpack.c.bf16 %v4501, %v4501
      %v4543 = vpack.c.bf16 %v4502, %v4502
      %v4544 = vpack.c.bf16 %v4503, %v4503
      %v4545 = vpack.c.bf16 %v4504, %v4504
      %v4546 = vpack.c.bf16 %v4505, %v4505
      %v4547 = vpack.c.bf16 %v4506, %v4506
      %v4548 = vpack.c.bf16 %v4507, %v4507
      %v4549 = vpack.c.bf16 %v4508, %v4508
      %v4550 = vpack.c.bf16 %v4509, %v4509
      %v4551 = vpack.c.bf16 %v4510, %v4510
      %v4552 = vpack.c.bf16 %v4511, %v4511
      %v4553 = vpack.c.bf16 %v4512, %v4512
      %v4554 = vpack.c.bf16 %v4513, %v4513
      %v4555 = vpack.c.bf16 %v4514, %v4514
      %4556 = vst [vmem:[%s298] sm:$0xf] %v4515
      %4557 = vst [vmem:[%s298 + $0x4] sm:$0xf] %v4516
      %4558 = vst [vmem:[%s298 + $0x8] sm:$0xf] %v4517
      %4559 = vst [vmem:[%s298 + $0xc] sm:$0xf] %v4518
      %4560 = vst [vmem:[%s298 + $0x10] sm:$0xf] %v4519
      %4561 = vst [vmem:[%s298 + $0x14] sm:$0xf] %v4520
      %4562 = vst [vmem:[%s298 + $0x18] sm:$0xf] %v4521
      %4563 = vst [vmem:[%s298 + $0x1c] sm:$0xf] %v4522
      %4564 = vst [vmem:[%s298 + $0x20] sm:$0xf] %v4523
      %4565 = vst [vmem:[%s298 + $0x24] sm:$0xf] %v4524
      %4566 = vst [vmem:[%s298 + $0x28] sm:$0xf] %v4525
      %4567 = vst [vmem:[%s298 + $0x2c] sm:$0xf] %v4526
      %4568 = vst [vmem:[%s298 + $0x30] sm:$0xf] %v4527
      %4569 = vst [vmem:[%s298 + $0x34] sm:$0xf] %v4528
      %4570 = vst [vmem:[%s298 + $0x38] sm:$0xf] %v4529
      %4571 = vst [vmem:[%s298 + $0x3c] sm:$0xf] %v4530
      %4572 = vst [vmem:[%s298 + $0x40] sm:$0xf] %v4531
      %4573 = vst [vmem:[%s298 + $0x44] sm:$0xf] %v4532
      %4574 = vst [vmem:[%s298 + $0x48] sm:$0xf] %v4533
      %4575 = vst [vmem:[%s298 + $0x4c] sm:$0xf] %v4534
      %4576 = vst [vmem:[%s298 + $0x50] sm:$0xf] %v4535
      %4577 = vst [vmem:[%s298 + $0x54] sm:$0xf] %v4536
      %4578 = vst [vmem:[%s298 + $0x58] sm:$0xf] %v4537
      %4579 = vst [vmem:[%s298 + $0x5c] sm:$0xf] %v4538
      %4580 = vst [vmem:[%s298 + $0x60] sm:$0xf] %v4539
      %4581 = vst [vmem:[%s298 + $0x64] sm:$0xf] %v4540
      %4582 = vst [vmem:[%s298 + $0x68] sm:$0xf] %v4541
      %4583 = vst [vmem:[%s298 + $0x6c] sm:$0xf] %v4542
      %4584 = vst [vmem:[%s298 + $0x70] sm:$0xf] %v4543
      %4585 = vst [vmem:[%s298 + $0x74] sm:$0xf] %v4544
      %4586 = vst [vmem:[%s298 + $0x78] sm:$0xf] %v4545
      %4587 = vst [vmem:[%s298 + $0x7c] sm:$0xf] %v4546
      %4588 = vst [vmem:[%s298 + $0x80] sm:$0xf] %v4547
      %4589 = vst [vmem:[%s298 + $0x84] sm:$0xf] %v4548
      %4590 = vst [vmem:[%s298 + $0x88] sm:$0xf] %v4549
      %4591 = vst [vmem:[%s298 + $0x8c] sm:$0xf] %v4550
      %4592 = vst [vmem:[%s298 + $0x90] sm:$0xf] %v4551
      %4593 = vst [vmem:[%s298 + $0x94] sm:$0xf] %v4552
      %4594 = vst [vmem:[%s298 + $0x98] sm:$0xf] %v4553
      %4595 = vst [vmem:[%s298 + $0x9c] sm:$0xf] %v4554
      %4596 = vst [vmem:[%s298 + $0xa0] sm:$0xf] %v4555
      %p4597 = scmp.lt.s32.totalorder %s18, 1
      %s4598 = scalar_select %p4597, %s18, 1
      %s4599 = smul.addr %s4598, 41
      %s4600 = smul.addr %s4599, 4
      %s4601 = scalar_lea.vmem %s7, %s4600
      // Predicated region
      $region49: #{dappm_forward.7} parent=47 // pred_check
        %p4602 = pneg %p193
      $region50: #{dappm_forward.7} parent=47 // pred_check_branch
        %4604 = sbr.rel (%p4602) target = $region52
      $region51: #{dappm_forward.7} parent=47 // pred_region
        _
      $region52: #{dappm_forward.7} parent=47 // pred_fallthru
        _
    $region48: #{dappm_forward.7} parent=5 // pred_fallthru
      _
    %p4605 = scmp.le.s32.totalorder 2, %s13
    // Predicated region
    $region53: #{dappm_forward.7} parent=5 // pred_check
      %p4606 = pneg %p4605
    $region54: #{dappm_forward.7} parent=5 // pred_check_branch
      %4608 = sbr.rel (%p4606) target = $region56
    $region55: #{dappm_forward.7} parent=5 // pred_region
      %s4609 = ssub.s32 %s13, 2
      // Predicated region
      $region57: #{dappm_forward.7} parent=55 // pred_check
        %p4610 = pneg %p199
      $region58: #{dappm_forward.7} parent=55 // pred_check_branch
        %4612 = sbr.rel (%p4610) target = $region60
      $region59: #{dappm_forward.7} parent=55 // pred_region
        %p4613 = scmp.lt.s32.totalorder %s19, 1
        %s4614 = scalar_select %p4613, %s19, 1
        %s4615 = smul.addr %s4614, 41
        %s4616 = smul.addr %s4615, 4
        %s4617 = scalar_lea.vmem %s7, %s4616
      $region60: #{dappm_forward.7} parent=55 // pred_fallthru
        _
    $region56: #{dappm_forward.7} parent=5 // pred_fallthru
      _
  $region6: #{dappm_forward.7} parent=0 // loop_footer
    %s17 = sadd.s32 1, %s13
  $region7: #{dappm_forward.7} parent=0 // loop_footer_branch
    %12 = sbr.rel target = $region3
  $region8: #{dappm_forward.7} parent=0 // loop_exit
    _

// kernel: dappm_forward.11
$region0: #{dappm_forward.11}
  #allocation0 [shape = 'u32[]', space=smem, size = 0x4, offset = 0x4, fixed_abs, tag = 'smem constant byte address 0x4 - core index']
  #allocation1 [shape = 'u32[72,128]{1,0:T(1,128)}', space=vmem, size = 0x9000, scoped, tag = 'internal scratch']
  %s0 = inlined_call_operand.vmem [shape: bf16[2,328,128], index: 0, kind: input, shape index: {}]
  %s1 = inlined_call_operand.vmem [shape: bf16[2,328,128], index: 1, kind: input, shape index: {}]
  %s2 = inlined_call_operand.vmem [shape: bf16[2,328,128], index: 2, kind: input, shape index: {}]
  %s3 = inlined_call_operand.vmem [shape: bf16[2,328,128], index: 3, kind: input, shape index: {}]
  %s4 = inlined_call_operand.vmem [shape: bf16[2,328,128], index: 4, kind: input, shape index: {}]
  %s5 = inlined_call_operand.vmem [shape: bf16[2,328,128], index: 5, kind: input, shape index: {}]
  %s6 = inlined_call_operand.vmem [shape: f32[5,128], index: 6, kind: input, shape index: {}]
  %s7 = inlined_call_operand.vmem [shape: f32[5,128], index: 7, kind: input, shape index: {}]
  %s8 = inlined_call_operand.vmem [shape: bf16[640,128], index: 8, kind: input, shape index: {}]
  %s9 = inlined_call_operand.vmem [shape: f32[2,328,128], index: 9, kind: output, shape index: {}]
  %s10 = sld [smem:[#allocation0]]
  $region69: #{dappm_forward.11} parent=0
    _
  %s12 = ssub.s32 1, %s10
  %s13 = scalar_select 0, %s12, %s10
  loop: start=0, step=1, limit=4
  $region2: #{dappm_forward.11} parent=0 // loop_pre_header
    _
  $region3: #{dappm_forward.11} parent=0 // loop_header
    %s15 = sphi 0, %s19
    %p16 = scmp.ge.s32.totalorder %s15, 4
    %s25 = sphi 0, %s27
    %s28 = sphi 0, %s25
    %s29 = sphi 0, %s28
    %s45 = sphi 0, %s29
    %s51 = sphi 0, %s53
    %s54 = sphi 0, %s51
    %s55 = sphi 0, %s54
    %s71 = sphi 0, %s55
    %s77 = sphi 0, %s79
    %s80 = sphi 0, %s77
    %s81 = sphi 0, %s80
    %s97 = sphi 0, %s81
    %s103 = sphi 0, %s105
    %s106 = sphi 0, %s103
    %s107 = sphi 0, %s106
    %s123 = sphi 0, %s107
    %s129 = sphi 0, %s131
    %s132 = sphi 0, %s129
    %s133 = sphi 0, %s132
    %s149 = sphi 0, %s133
    %s155 = sphi 0, %s157
    %s158 = sphi 0, %s155
    %s159 = sphi 0, %s158
    %s175 = sphi 0, %s159
    %s179 = sphi 0, %s179
    %s181 = sphi 0, %s179
    %s182 = sphi 0, %s181
    %s196 = sphi 0, %s182
    %s200 = sphi 0, %s200
    %s202 = sphi 0, %s200
    %s203 = sphi 0, %s202
    %s217 = sphi 0, %s203
    %s221 = sphi 0, %s221
    %s223 = sphi 0, %s221
    %s224 = sphi 0, %s223
    %s238 = sphi 0, %s224
    %s244 = sphi 0, %s246
    %s247 = sphi 0, %s244
    %s248 = sphi 0, %s247
    %s264 = sphi 0, %s248
  $region4: #{dappm_forward.11} parent=0 // loop_header_branch
    %18 = sbr.rel (%p16) target = $region8
  $region5: #{dappm_forward.11} parent=0 // loop_body
    %s20 = ssub.s32 %s15, 1
    %s21 = ssub.s32 %s15, 2
    %s22 = sadd.s32 %s15, 1
    %s23 = ssub.s32 %s15, %s22
    %p24 = scmp.eq.s32.totalorder %s23, 0
    %s26 = sadd.s32 %s25, 1
    %s27 = scalar_select %p24, %s25, %s26
    %p30 = pneg %p24
    %p31 = scmp.eq.s32.totalorder %s15, 1
    %p32 = por %p30, %p31
    %p33 = scmp.ne.s32.totalorder %s25, %s28
    %p34 = scmp.eq.s32.totalorder %s15, 0
    %p35 = por %p33, %p34
    %p36 = scmp.ne.s32.totalorder %s25, %s28
    %p37 = scmp.eq.s32.totalorder %s20, 1
    %p38 = por %p36, %p37
    %p39 = scmp.ne.s32.totalorder %s28, %s29
    %p40 = scmp.eq.s32.totalorder %s20, 0
    %p41 = por %p39, %p40
    %p42 = scmp.ne.s32.totalorder %s28, %s29
    %p43 = scmp.eq.s32.totalorder %s21, 1
    %p44 = por %p42, %p43
    %p46 = scmp.ne.s32.totalorder %s29, %s45
    %p47 = scmp.eq.s32.totalorder %s21, 0
    %p48 = por %p46, %p47
    %s49 = ssub.s32 %s15, %s22
    %p50 = scmp.eq.s32.totalorder %s49, 0
    %s52 = sadd.s32 %s51, 1
    %s53 = scalar_select %p50, %s51, %s52
    %p56 = pneg %p50
    %p57 = scmp.eq.s32.totalorder %s15, 1
    %p58 = por %p56, %p57
    %p59 = scmp.ne.s32.totalorder %s51, %s54
    %p60 = scmp.eq.s32.totalorder %s15, 0
    %p61 = por %p59, %p60
    %p62 = scmp.ne.s32.totalorder %s51, %s54
    %p63 = scmp.eq.s32.totalorder %s20, 1
    %p64 = por %p62, %p63
    %p65 = scmp.ne.s32.totalorder %s54, %s55
    %p66 = scmp.eq.s32.totalorder %s20, 0
    %p67 = por %p65, %p66
    %p68 = scmp.ne.s32.totalorder %s54, %s55
    %p69 = scmp.eq.s32.totalorder %s21, 1
    %p70 = por %p68, %p69
    %p72 = scmp.ne.s32.totalorder %s55, %s71
    %p73 = scmp.eq.s32.totalorder %s21, 0
    %p74 = por %p72, %p73
    %s75 = ssub.s32 %s15, %s22
    %p76 = scmp.eq.s32.totalorder %s75, 0
    %s78 = sadd.s32 %s77, 1
    %s79 = scalar_select %p76, %s77, %s78
    %p82 = pneg %p76
    %p83 = scmp.eq.s32.totalorder %s15, 1
    %p84 = por %p82, %p83
    %p85 = scmp.ne.s32.totalorder %s77, %s80
    %p86 = scmp.eq.s32.totalorder %s15, 0
    %p87 = por %p85, %p86
    %p88 = scmp.ne.s32.totalorder %s77, %s80
    %p89 = scmp.eq.s32.totalorder %s20, 1
    %p90 = por %p88, %p89
    %p91 = scmp.ne.s32.totalorder %s80, %s81
    %p92 = scmp.eq.s32.totalorder %s20, 0
    %p93 = por %p91, %p92
    %p94 = scmp.ne.s32.totalorder %s80, %s81
    %p95 = scmp.eq.s32.totalorder %s21, 1
    %p96 = por %p94, %p95
    %p98 = scmp.ne.s32.totalorder %s81, %s97
    %p99 = scmp.eq.s32.totalorder %s21, 0
    %p100 = por %p98, %p99
    %s101 = ssub.s32 %s15, %s22
    %p102 = scmp.eq.s32.totalorder %s101, 0
    %s104 = sadd.s32 %s103, 1
    %s105 = scalar_select %p102, %s103, %s104
    %p108 = pneg %p102
    %p109 = scmp.eq.s32.totalorder %s15, 1
    %p110 = por %p108, %p109
    %p111 = scmp.ne.s32.totalorder %s103, %s106
    %p112 = scmp.eq.s32.totalorder %s15, 0
    %p113 = por %p111, %p112
    %p114 = scmp.ne.s32.totalorder %s103, %s106
    %p115 = scmp.eq.s32.totalorder %s20, 1
    %p116 = por %p114, %p115
    %p117 = scmp.ne.s32.totalorder %s106, %s107
    %p118 = scmp.eq.s32.totalorder %s20, 0
    %p119 = por %p117, %p118
    %p120 = scmp.ne.s32.totalorder %s106, %s107
    %p121 = scmp.eq.s32.totalorder %s21, 1
    %p122 = por %p120, %p121
    %p124 = scmp.ne.s32.totalorder %s107, %s123
    %p125 = scmp.eq.s32.totalorder %s21, 0
    %p126 = por %p124, %p125
    %s127 = ssub.s32 %s15, %s22
    %p128 = scmp.eq.s32.totalorder %s127, 0
    %s130 = sadd.s32 %s129, 1
    %s131 = scalar_select %p128, %s129, %s130
    %p134 = pneg %p128
    %p135 = scmp.eq.s32.totalorder %s15, 1
    %p136 = por %p134, %p135
    %p137 = scmp.ne.s32.totalorder %s129, %s132
    %p138 = scmp.eq.s32.totalorder %s15, 0
    %p139 = por %p137, %p138
    %p140 = scmp.ne.s32.totalorder %s129, %s132
    %p141 = scmp.eq.s32.totalorder %s20, 1
    %p142 = por %p140, %p141
    %p143 = scmp.ne.s32.totalorder %s132, %s133
    %p144 = scmp.eq.s32.totalorder %s20, 0
    %p145 = por %p143, %p144
    %p146 = scmp.ne.s32.totalorder %s132, %s133
    %p147 = scmp.eq.s32.totalorder %s21, 1
    %p148 = por %p146, %p147
    %p150 = scmp.ne.s32.totalorder %s133, %s149
    %p151 = scmp.eq.s32.totalorder %s21, 0
    %p152 = por %p150, %p151
    %s153 = ssub.s32 %s15, %s22
    %p154 = scmp.eq.s32.totalorder %s153, 0
    %s156 = sadd.s32 %s155, 1
    %s157 = scalar_select %p154, %s155, %s156
    %p160 = pneg %p154
    %p161 = scmp.eq.s32.totalorder %s15, 1
    %p162 = por %p160, %p161
    %p163 = scmp.ne.s32.totalorder %s155, %s158
    %p164 = scmp.eq.s32.totalorder %s15, 0
    %p165 = por %p163, %p164
    %p166 = scmp.ne.s32.totalorder %s155, %s158
    %p167 = scmp.eq.s32.totalorder %s20, 1
    %p168 = por %p166, %p167
    %p169 = scmp.ne.s32.totalorder %s158, %s159
    %p170 = scmp.eq.s32.totalorder %s20, 0
    %p171 = por %p169, %p170
    %p172 = scmp.ne.s32.totalorder %s158, %s159
    %p173 = scmp.eq.s32.totalorder %s21, 1
    %p174 = por %p172, %p173
    %p176 = scmp.ne.s32.totalorder %s159, %s175
    %p177 = scmp.eq.s32.totalorder %s21, 0
    %p178 = por %p176, %p177
    %s180 = sadd.s32 %s179, 1
    %p183 = scmp.eq.s32.totalorder %s15, 1
    %p184 = scmp.ne.s32.totalorder %s179, %s181
    %p185 = scmp.eq.s32.totalorder %s15, 0
    %p186 = por %p184, %p185
    %p187 = scmp.ne.s32.totalorder %s179, %s181
    %p188 = scmp.eq.s32.totalorder %s20, 1
    %p189 = por %p187, %p188
    %p190 = scmp.ne.s32.totalorder %s181, %s182
    %p191 = scmp.eq.s32.totalorder %s20, 0
    %p192 = por %p190, %p191
    %p193 = scmp.ne.s32.totalorder %s181, %s182
    %p194 = scmp.eq.s32.totalorder %s21, 1
    %p195 = por %p193, %p194
    %p197 = scmp.ne.s32.totalorder %s182, %s196
    %p198 = scmp.eq.s32.totalorder %s21, 0
    %p199 = por %p197, %p198
    %s201 = sadd.s32 %s200, 1
    %p204 = scmp.eq.s32.totalorder %s15, 1
    %p205 = scmp.ne.s32.totalorder %s200, %s202
    %p206 = scmp.eq.s32.totalorder %s15, 0
    %p207 = por %p205, %p206
    %p208 = scmp.ne.s32.totalorder %s200, %s202
    %p209 = scmp.eq.s32.totalorder %s20, 1
    %p210 = por %p208, %p209
    %p211 = scmp.ne.s32.totalorder %s202, %s203
    %p212 = scmp.eq.s32.totalorder %s20, 0
    %p213 = por %p211, %p212
    %p214 = scmp.ne.s32.totalorder %s202, %s203
    %p215 = scmp.eq.s32.totalorder %s21, 1
    %p216 = por %p214, %p215
    %p218 = scmp.ne.s32.totalorder %s203, %s217
    %p219 = scmp.eq.s32.totalorder %s21, 0
    %p220 = por %p218, %p219
    %s222 = sadd.s32 %s221, 1
    %p225 = scmp.eq.s32.totalorder %s15, 1
    %p226 = scmp.ne.s32.totalorder %s221, %s223
    %p227 = scmp.eq.s32.totalorder %s15, 0
    %p228 = por %p226, %p227
    %p229 = scmp.ne.s32.totalorder %s221, %s223
    %p230 = scmp.eq.s32.totalorder %s20, 1
    %p231 = por %p229, %p230
    %p232 = scmp.ne.s32.totalorder %s223, %s224
    %p233 = scmp.eq.s32.totalorder %s20, 0
    %p234 = por %p232, %p233
    %p235 = scmp.ne.s32.totalorder %s223, %s224
    %p236 = scmp.eq.s32.totalorder %s21, 1
    %p237 = por %p235, %p236
    %p239 = scmp.ne.s32.totalorder %s224, %s238
    %p240 = scmp.eq.s32.totalorder %s21, 0
    %p241 = por %p239, %p240
    %s242 = ssub.s32 %s15, %s22
    %p243 = scmp.eq.s32.totalorder %s242, 0
    %s245 = sadd.s32 %s244, 1
    %s246 = scalar_select %p243, %s244, %s245
    %p249 = pneg %p243
    %p250 = scmp.eq.s32.totalorder %s15, 1
    %p251 = por %p249, %p250
    %p252 = scmp.ne.s32.totalorder %s244, %s247
    %p253 = scmp.eq.s32.totalorder %s15, 0
    %p254 = por %p252, %p253
    %p255 = scmp.ne.s32.totalorder %s244, %s247
    %p256 = scmp.eq.s32.totalorder %s20, 1
    %p257 = por %p255, %p256
    %p258 = scmp.ne.s32.totalorder %s247, %s248
    %p259 = scmp.eq.s32.totalorder %s20, 0
    %p260 = por %p258, %p259
    %p261 = scmp.ne.s32.totalorder %s247, %s248
    %p262 = scmp.eq.s32.totalorder %s21, 1
    %p263 = por %p261, %p262
    %p265 = scmp.ne.s32.totalorder %s248, %s264
    %p266 = scmp.eq.s32.totalorder %s21, 0
    %p267 = por %p265, %p266
    %p268 = scmp.le.s32.totalorder 1, %s15
    %p269 = scmp.lt.s32.totalorder %s15, 3
    %p270 = pnand %p268, %p269
    %p271 = pneg %p270
    // Predicated region
    $region9: #{dappm_forward.11} parent=5 // pred_check
      _
    $region10: #{dappm_forward.11} parent=5 // pred_check_branch
      %273 = sbr.rel (%p270) target = $region12
    $region11: #{dappm_forward.11} parent=5 // pred_region
      %s274 = ssub.s32 %s15, 1
      // Predicated region
      $region13: #{dappm_forward.11} parent=11 // pred_check
        %p275 = pneg %p192
      $region14: #{dappm_forward.11} parent=11 // pred_check_branch
        %277 = sbr.rel (%p275) target = $region16
      $region15: #{dappm_forward.11} parent=11 // pred_region
        _
      $region16: #{dappm_forward.11} parent=11 // pred_fallthru
        _
      // Predicated region
      $region17: #{dappm_forward.11} parent=11 // pred_check
        %p278 = pneg %p213
      $region18: #{dappm_forward.11} parent=11 // pred_check_branch
        %280 = sbr.rel (%p278) target = $region20
      $region19: #{dappm_forward.11} parent=11 // pred_region
        _
      $region20: #{dappm_forward.11} parent=11 // pred_fallthru
        _
      // Predicated region
      $region21: #{dappm_forward.11} parent=11 // pred_check
        %p281 = pneg %p234
      $region22: #{dappm_forward.11} parent=11 // pred_check_branch
        %283 = sbr.rel (%p281) target = $region24
      $region23: #{dappm_forward.11} parent=11 // pred_region
        _
      $region24: #{dappm_forward.11} parent=11 // pred_fallthru
        _
    $region12: #{dappm_forward.11} parent=5 // pred_fallthru
      _
    %p284 = scmp.lt.s32.totalorder %s15, 2
    // Predicated region
    $region25: #{dappm_forward.11} parent=5 // pred_check
      %p285 = pneg %p284
    $region26: #{dappm_forward.11} parent=5 // pred_check_branch
      %287 = sbr.rel (%p285) target = $region28
    $region27: #{dappm_forward.11} parent=5 // pred_region
      // Predicated region
      $region29: #{dappm_forward.11} parent=27 // pred_check
        %p288 = pneg %p35
      $region30: #{dappm_forward.11} parent=27 // pred_check_branch
        %290 = sbr.rel (%p288) target = $region32
      $region31: #{dappm_forward.11} parent=27 // pred_region
        %p291 = scmp.lt.s32.totalorder %s15, 1
        %s292 = scalar_select %p291, %s15, 1
        %s293 = smul.addr %s292, 41
        %s294 = smul.addr %s293, 4
        %s295 = scalar_lea.vmem %s0, %s294
      $region32: #{dappm_forward.11} parent=27 // pred_fallthru
        _
      // Predicated region
      $region33: #{dappm_forward.11} parent=27 // pred_check
        %p296 = pneg %p61
      $region34: #{dappm_forward.11} parent=27 // pred_check_branch
        %298 = sbr.rel (%p296) target = $region36
      $region35: #{dappm_forward.11} parent=27 // pred_region
        %p299 = scmp.lt.s32.totalorder %s15, 1
        %s300 = scalar_select %p299, %s15, 1
        %s301 = smul.addr %s300, 41
        %s302 = smul.addr %s301, 4
        %s303 = scalar_lea.vmem %s1, %s302
      $region36: #{dappm_forward.11} parent=27 // pred_fallthru
        _
      // Predicated region
      $region37: #{dappm_forward.11} parent=27 // pred_check
        %p304 = pneg %p87
      $region38: #{dappm_forward.11} parent=27 // pred_check_branch
        %306 = sbr.rel (%p304) target = $region40
      $region39: #{dappm_forward.11} parent=27 // pred_region
        %p307 = scmp.lt.s32.totalorder %s15, 1
        %s308 = scalar_select %p307, %s15, 1
        %s309 = smul.addr %s308, 41
        %s310 = smul.addr %s309, 4
        %s311 = scalar_lea.vmem %s2, %s310
      $region40: #{dappm_forward.11} parent=27 // pred_fallthru
        _
      // Predicated region
      $region41: #{dappm_forward.11} parent=27 // pred_check
        %p312 = pneg %p113
      $region42: #{dappm_forward.11} parent=27 // pred_check_branch
        %314 = sbr.rel (%p312) target = $region44
      $region43: #{dappm_forward.11} parent=27 // pred_region
        %p315 = scmp.lt.s32.totalorder %s15, 1
        %s316 = scalar_select %p315, %s15, 1
        %s317 = smul.addr %s316, 41
        %s318 = smul.addr %s317, 4
        %s319 = scalar_lea.vmem %s3, %s318
      $region44: #{dappm_forward.11} parent=27 // pred_fallthru
        _
      // Predicated region
      $region45: #{dappm_forward.11} parent=27 // pred_check
        %p320 = pneg %p139
      $region46: #{dappm_forward.11} parent=27 // pred_check_branch
        %322 = sbr.rel (%p320) target = $region48
      $region47: #{dappm_forward.11} parent=27 // pred_region
        %p323 = scmp.lt.s32.totalorder %s15, 1
        %s324 = scalar_select %p323, %s15, 1
        %s325 = smul.addr %s324, 41
        %s326 = smul.addr %s325, 4
        %s327 = scalar_lea.vmem %s4, %s326
      $region48: #{dappm_forward.11} parent=27 // pred_fallthru
        _
      // Predicated region
      $region49: #{dappm_forward.11} parent=27 // pred_check
        %p328 = pneg %p165
      $region50: #{dappm_forward.11} parent=27 // pred_check_branch
        %330 = sbr.rel (%p328) target = $region52
      $region51: #{dappm_forward.11} parent=27 // pred_region
        %p331 = scmp.lt.s32.totalorder %s15, 1
        %s332 = scalar_select %p331, %s15, 1
        %s333 = smul.addr %s332, 41
        %s334 = smul.addr %s333, 4
        %s335 = scalar_lea.vmem %s5, %s334
      $region52: #{dappm_forward.11} parent=27 // pred_fallthru
        _
    $region28: #{dappm_forward.11} parent=5 // pred_fallthru
      _
    %p336 = scmp.le.s32.totalorder 1, %s15
    %p337 = scmp.lt.s32.totalorder %s15, 3
    %p338 = pnand %p336, %p337
    %p339 = pneg %p338
    // Predicated region
    $region53: #{dappm_forward.11} parent=5 // pred_check
      _
    $region54: #{dappm_forward.11} parent=5 // pred_check_branch
      %341 = sbr.rel (%p338) target = $region56
    $region55: #{dappm_forward.11} parent=5 // pred_region
      %s342 = ssub.s32 %s15, 1
      %p343 = scmp.lt.s32.totalorder %s20, 1
      %s344 = scalar_select %p343, %s20, 1
      %s345 = smul.addr %s344, 41
      %s346 = smul.addr %s345, 4
      %s347 = scalar_lea.vmem %s0, %s346
      %p348 = pneg %p41
      %p349 = pneg %p38
      %p350 = scmp.lt.s32.totalorder %s20, 1
      %s351 = scalar_select %p350, %s20, 1
      %s352 = smul.addr %s351, 41
      %s353 = smul.addr %s352, 4
      %s354 = scalar_lea.vmem %s1, %s353
      %p355 = pneg %p67
      %p356 = pneg %p64
      %p357 = scmp.lt.s32.totalorder %s20, 1
      %s358 = scalar_select %p357, %s20, 1
      %s359 = smul.addr %s358, 41
      %s360 = smul.addr %s359, 4
      %s361 = scalar_lea.vmem %s2, %s360
      %p362 = pneg %p93
      %p363 = pneg %p90
      %p364 = scmp.lt.s32.totalorder %s20, 1
      %s365 = scalar_select %p364, %s20, 1
      %s366 = smul.addr %s365, 41
      %s367 = smul.addr %s366, 4
      %s368 = scalar_lea.vmem %s3, %s367
      %p369 = pneg %p119
      %p370 = pneg %p116
      %p371 = scmp.lt.s32.totalorder %s20, 1
      %s372 = scalar_select %p371, %s20, 1
      %s373 = smul.addr %s372, 41
      %s374 = smul.addr %s373, 4
      %s375 = scalar_lea.vmem %s4, %s374
      %p376 = pneg %p145
      %p377 = pneg %p142
      %p378 = scmp.lt.s32.totalorder %s20, 1
      %s379 = scalar_select %p378, %s20, 1
      %s380 = smul.addr %s379, 41
      %s381 = smul.addr %s380, 4
      %s382 = scalar_lea.vmem %s5, %s381
      %p383 = pneg %p171
      %p384 = pneg %p168
      %p385 = pneg %p192
      %p386 = pneg %p189
      %p387 = pneg %p213
      %p388 = pneg %p210
      %p389 = pneg %p234
      %p390 = pneg %p231
      %p391 = pneg %p260
      %p392 = pneg %p257
      %p393 = scmp.lt.s32.totalorder %s20, 1
      %s394 = scalar_select %p393, %s20, 1
      %s395 = smul.addr %s394, 41
      %s396 = smul.addr %s395, 8
      %s397 = scalar_lea.vmem %s9, %s396
      %p398 = scmp.lt.s32.totalorder %s20, 1
      %s399 = scalar_select %p398, %s20, 1
      %s400 = smul.addr %s399, 41
      %s401 = smul.addr %s400, 4
      %s402 = scalar_lea.vmem %s0, %s401
      %p403 = scmp.lt.s32.totalorder %s20, 1
      %s404 = scalar_select %p403, %s20, 1
      %s405 = smul.addr %s404, 41
      %s406 = smul.addr %s405, 4
      %s407 = scalar_lea.vmem %s1, %s406
      %p408 = scmp.lt.s32.totalorder %s20, 1
      %s409 = scalar_select %p408, %s20, 1
      %s410 = smul.addr %s409, 41
      %s411 = smul.addr %s410, 4
      %s412 = scalar_lea.vmem %s2, %s411
      %p413 = scmp.lt.s32.totalorder %s20, 1
      %s414 = scalar_select %p413, %s20, 1
      %s415 = smul.addr %s414, 41
      %s416 = smul.addr %s415, 4
      %s417 = scalar_lea.vmem %s3, %s416
      %p418 = scmp.lt.s32.totalorder %s20, 1
      %s419 = scalar_select %p418, %s20, 1
      %s420 = smul.addr %s419, 41
      %s421 = smul.addr %s420, 4
      %s422 = scalar_lea.vmem %s4, %s421
      %p423 = scmp.lt.s32.totalorder %s20, 1
      %s424 = scalar_select %p423, %s20, 1
      %s425 = smul.addr %s424, 41
      %s426 = smul.addr %s425, 4
      %s427 = scalar_lea.vmem %s5, %s426
      %p428 = scmp.lt.s32.totalorder %s20, 1
      %s429 = scalar_select %p428, %s20, 1
      %s430 = smul.addr %s429, 41
      %s431 = smul.addr %s430, 8
      %s432 = scalar_lea.vmem %s9, %s431
      %v433 = vld [vmem:[%s402] sm:$0xf]
      %v434 = vld [vmem:[%s402 + $0x4] sm:$0xf]
      %v435 = vld [vmem:[%s402 + $0x8] sm:$0xf]
      %v436 = vld [vmem:[%s402 + $0xc] sm:$0xf]
      %v437 = vld [vmem:[%s402 + $0x10] sm:$0xf]
      %v438 = vld [vmem:[%s402 + $0x14] sm:$0xf]
      %v439 = vld [vmem:[%s402 + $0x18] sm:$0xf]
      %v440 = vld [vmem:[%s402 + $0x1c] sm:$0xf]
      %v441 = vld [vmem:[%s402 + $0x20] sm:$0xf]
      %v442 = vld [vmem:[%s402 + $0x24] sm:$0xf]
      %v443 = vld [vmem:[%s402 + $0x28] sm:$0xf]
      %v444 = vld [vmem:[%s402 + $0x2c] sm:$0xf]
      %v445 = vld [vmem:[%s402 + $0x30] sm:$0xf]
      %v446 = vld [vmem:[%s402 + $0x34] sm:$0xf]
      %v447 = vld [vmem:[%s402 + $0x38] sm:$0xf]
      %v448 = vld [vmem:[%s402 + $0x3c] sm:$0xf]
      %v449 = vld [vmem:[%s402 + $0x40] sm:$0xf]
      %v450 = vld [vmem:[%s402 + $0x44] sm:$0xf]
      %v451 = vld [vmem:[%s402 + $0x48] sm:$0xf]
      %v452 = vld [vmem:[%s402 + $0x4c] sm:$0xf]
      %v453 = vld [vmem:[%s402 + $0x50] sm:$0xf]
      %v454 = vld [vmem:[%s402 + $0x54] sm:$0xf]
      %v455 = vld [vmem:[%s402 + $0x58] sm:$0xf]
      %v456 = vld [vmem:[%s402 + $0x5c] sm:$0xf]
      %v457 = vld [vmem:[%s402 + $0x60] sm:$0xf]
      %v458 = vld [vmem:[%s402 + $0x64] sm:$0xf]
      %v459 = vld [vmem:[%s402 + $0x68] sm:$0xf]
      %v460 = vld [vmem:[%s402 + $0x6c] sm:$0xf]
      %v461 = vld [vmem:[%s402 + $0x70] sm:$0xf]
      %v462 = vld [vmem:[%s402 + $0x74] sm:$0xf]
      %v463 = vld [vmem:[%s402 + $0x78] sm:$0xf]
      %v464 = vld [vmem:[%s402 + $0x7c] sm:$0xf]
      %v465 = vld [vmem:[%s402 + $0x80] sm:$0xf]
      %v466 = vld [vmem:[%s402 + $0x84] sm:$0xf]
      %v467 = vld [vmem:[%s402 + $0x88] sm:$0xf]
      %v468 = vld [vmem:[%s402 + $0x8c] sm:$0xf]
      %v469 = vld [vmem:[%s402 + $0x90] sm:$0xf]
      %v470 = vld [vmem:[%s402 + $0x94] sm:$0xf]
      %v471 = vld [vmem:[%s402 + $0x98] sm:$0xf]
      %v472 = vld [vmem:[%s402 + $0x9c] sm:$0xf]
      %v473 = vld [vmem:[%s402 + $0xa0] sm:$0xf]
      %v474 = vunpack.c.l.bf16 %v433
      %v475 = vunpack.c.l.bf16 %v434
      %v476 = vunpack.c.l.bf16 %v435
      %v477 = vunpack.c.l.bf16 %v436
      %v478 = vunpack.c.l.bf16 %v437
      %v479 = vunpack.c.l.bf16 %v438
      %v480 = vunpack.c.l.bf16 %v439
      %v481 = vunpack.c.l.bf16 %v440
      %v482 = vunpack.c.l.bf16 %v441
      %v483 = vunpack.c.l.bf16 %v442
      %v484 = vunpack.c.l.bf16 %v443
      %v485 = vunpack.c.l.bf16 %v444
      %v486 = vunpack.c.l.bf16 %v445
      %v487 = vunpack.c.l.bf16 %v446
      %v488 = vunpack.c.l.bf16 %v447
      %v489 = vunpack.c.l.bf16 %v448
      %v490 = vunpack.c.l.bf16 %v449
      %v491 = vunpack.c.l.bf16 %v450
      %v492 = vunpack.c.l.bf16 %v451
      %v493 = vunpack.c.l.bf16 %v452
      %v494 = vunpack.c.l.bf16 %v453
      %v495 = vunpack.c.l.bf16 %v454
      %v496 = vunpack.c.l.bf16 %v455
      %v497 = vunpack.c.l.bf16 %v456
      %v498 = vunpack.c.l.bf16 %v457
      %v499 = vunpack.c.l.bf16 %v458
      %v500 = vunpack.c.l.bf16 %v459
      %v501 = vunpack.c.l.bf16 %v460
      %v502 = vunpack.c.l.bf16 %v461
      %v503 = vunpack.c.l.bf16 %v462
      %v504 = vunpack.c.l.bf16 %v463
      %v505 = vunpack.c.l.bf16 %v464
      %v506 = vunpack.c.l.bf16 %v465
      %v507 = vunpack.c.l.bf16 %v466
      %v508 = vunpack.c.l.bf16 %v467
      %v509 = vunpack.c.l.bf16 %v468
      %v510 = vunpack.c.l.bf16 %v469
      %v511 = vunpack.c.l.bf16 %v470
      %v512 = vunpack.c.l.bf16 %v471
      %v513 = vunpack.c.l.bf16 %v472
      %v514 = vunpack.c.l.bf16 %v473
      %v515 = vld [vmem:[%s6] sm:$0x1]
      %v516 = vperm.slane %v515, 0
      %v517 = vmul.f32 %v474, %v516
      %v518 = vmul.f32 %v475, %v516
      %v519 = vmul.f32 %v476, %v516
      %v520 = vmul.f32 %v477, %v516
      %v521 = vmul.f32 %v478, %v516
      %v522 = vmul.f32 %v479, %v516
      %v523 = vmul.f32 %v480, %v516
      %v524 = vmul.f32 %v481, %v516
      %v525 = vmul.f32 %v482, %v516
      %v526 = vmul.f32 %v483, %v516
      %v527 = vmul.f32 %v484, %v516
      %v528 = vmul.f32 %v485, %v516
      %v529 = vmul.f32 %v486, %v516
      %v530 = vmul.f32 %v487, %v516
      %v531 = vmul.f32 %v488, %v516
      %v532 = vmul.f32 %v489, %v516
      %v533 = vmul.f32 %v490, %v516
      %v534 = vmul.f32 %v491, %v516
      %v535 = vmul.f32 %v492, %v516
      %v536 = vmul.f32 %v493, %v516
      %v537 = vmul.f32 %v494, %v516
      %v538 = vmul.f32 %v495, %v516
      %v539 = vmul.f32 %v496, %v516
      %v540 = vmul.f32 %v497, %v516
      %v541 = vmul.f32 %v498, %v516
      %v542 = vmul.f32 %v499, %v516
      %v543 = vmul.f32 %v500, %v516
      %v544 = vmul.f32 %v501, %v516
      %v545 = vmul.f32 %v502, %v516
      %v546 = vmul.f32 %v503, %v516
      %v547 = vmul.f32 %v504, %v516
      %v548 = vmul.f32 %v505, %v516
      %v549 = vmul.f32 %v506, %v516
      %v550 = vmul.f32 %v507, %v516
      %v551 = vmul.f32 %v508, %v516
      %v552 = vmul.f32 %v509, %v516
      %v553 = vmul.f32 %v510, %v516
      %v554 = vmul.f32 %v511, %v516
      %v555 = vmul.f32 %v512, %v516
      %v556 = vmul.f32 %v513, %v516
      %v557 = vmul.f32 %v514, %v516
      %v558 = vld [vmem:[%s7] sm:$0x1]
      %v559 = vperm.slane %v558, 0
      %v560 = vadd.f32 %v517, %v559
      %v561 = vadd.f32 %v518, %v559
      %v562 = vadd.f32 %v519, %v559
      %v563 = vadd.f32 %v520, %v559
      %v564 = vadd.f32 %v521, %v559
      %v565 = vadd.f32 %v522, %v559
      %v566 = vadd.f32 %v523, %v559
      %v567 = vadd.f32 %v524, %v559
      %v568 = vadd.f32 %v525, %v559
      %v569 = vadd.f32 %v526, %v559
      %v570 = vadd.f32 %v527, %v559
      %v571 = vadd.f32 %v528, %v559
      %v572 = vadd.f32 %v529, %v559
      %v573 = vadd.f32 %v530, %v559
      %v574 = vadd.f32 %v531, %v559
      %v575 = vadd.f32 %v532, %v559
      %v576 = vadd.f32 %v533, %v559
      %v577 = vadd.f32 %v534, %v559
      %v578 = vadd.f32 %v535, %v559
      %v579 = vadd.f32 %v536, %v559
      %v580 = vadd.f32 %v537, %v559
      %v581 = vadd.f32 %v538, %v559
      %v582 = vadd.f32 %v539, %v559
      %v583 = vadd.f32 %v540, %v559
      %v584 = vadd.f32 %v541, %v559
      %v585 = vadd.f32 %v542, %v559
      %v586 = vadd.f32 %v543, %v559
      %v587 = vadd.f32 %v544, %v559
      %v588 = vadd.f32 %v545, %v559
      %v589 = vadd.f32 %v546, %v559
      %v590 = vadd.f32 %v547, %v559
      %v591 = vadd.f32 %v548, %v559
      %v592 = vadd.f32 %v549, %v559
      %v593 = vadd.f32 %v550, %v559
      %v594 = vadd.f32 %v551, %v559
      %v595 = vadd.f32 %v552, %v559
      %v596 = vadd.f32 %v553, %v559
      %v597 = vadd.f32 %v554, %v559
      %v598 = vadd.f32 %v555, %v559
      %v599 = vadd.f32 %v556, %v559
      %v600 = vadd.f32 %v557, %v559
      %v601 = vmax.f32 %v560, 0.0
      %v602 = vmax.f32 %v561, 0.0
      %v603 = vmax.f32 %v562, 0.0
      %v604 = vmax.f32 %v563, 0.0
      %v605 = vmax.f32 %v564, 0.0
      %v606 = vmax.f32 %v565, 0.0
      %v607 = vmax.f32 %v566, 0.0
      %v608 = vmax.f32 %v567, 0.0
      %v609 = vmax.f32 %v568, 0.0
      %v610 = vmax.f32 %v569, 0.0
      %v611 = vmax.f32 %v570, 0.0
      %v612 = vmax.f32 %v571, 0.0
      %v613 = vmax.f32 %v572, 0.0
      %v614 = vmax.f32 %v573, 0.0
      %v615 = vmax.f32 %v574, 0.0
      %v616 = vmax.f32 %v575, 0.0
      %v617 = vmax.f32 %v576, 0.0
      %v618 = vmax.f32 %v577, 0.0
      %v619 = vmax.f32 %v578, 0.0
      %v620 = vmax.f32 %v579, 0.0
      %v621 = vmax.f32 %v580, 0.0
      %v622 = vmax.f32 %v581, 0.0
      %v623 = vmax.f32 %v582, 0.0
      %v624 = vmax.f32 %v583, 0.0
      %v625 = vmax.f32 %v584, 0.0
      %v626 = vmax.f32 %v585, 0.0
      %v627 = vmax.f32 %v586, 0.0
      %v628 = vmax.f32 %v587, 0.0
      %v629 = vmax.f32 %v588, 0.0
      %v630 = vmax.f32 %v589, 0.0
      %v631 = vmax.f32 %v590, 0.0
      %v632 = vmax.f32 %v591, 0.0
      %v633 = vmax.f32 %v592, 0.0
      %v634 = vmax.f32 %v593, 0.0
      %v635 = vmax.f32 %v594, 0.0
      %v636 = vmax.f32 %v595, 0.0
      %v637 = vmax.f32 %v596, 0.0
      %v638 = vmax.f32 %v597, 0.0
      %v639 = vmax.f32 %v598, 0.0
      %v640 = vmax.f32 %v599, 0.0
      %v641 = vmax.f32 %v600, 0.0
      %v642 = vpack.c.bf16 %v601, %v601
      %v643 = vpack.c.bf16 %v602, %v602
      %v644 = vpack.c.bf16 %v603, %v603
      %v645 = vpack.c.bf16 %v604, %v604
      %v646 = vpack.c.bf16 %v605, %v605
      %v647 = vpack.c.bf16 %v606, %v606
      %v648 = vpack.c.bf16 %v607, %v607
      %v649 = vpack.c.bf16 %v608, %v608
      %v650 = vpack.c.bf16 %v609, %v609
      %v651 = vpack.c.bf16 %v610, %v610
      %v652 = vpack.c.bf16 %v611, %v611
      %v653 = vpack.c.bf16 %v612, %v612
      %v654 = vpack.c.bf16 %v613, %v613
      %v655 = vpack.c.bf16 %v614, %v614
      %v656 = vpack.c.bf16 %v615, %v615
      %v657 = vpack.c.bf16 %v616, %v616
      %v658 = vpack.c.bf16 %v617, %v617
      %v659 = vpack.c.bf16 %v618, %v618
      %v660 = vpack.c.bf16 %v619, %v619
      %v661 = vpack.c.bf16 %v620, %v620
      %v662 = vpack.c.bf16 %v621, %v621
      %v663 = vpack.c.bf16 %v622, %v622
      %v664 = vpack.c.bf16 %v623, %v623
      %v665 = vpack.c.bf16 %v624, %v624
      %v666 = vpack.c.bf16 %v625, %v625
      %v667 = vpack.c.bf16 %v626, %v626
      %v668 = vpack.c.bf16 %v627, %v627
      %v669 = vpack.c.bf16 %v628, %v628
      %v670 = vpack.c.bf16 %v629, %v629
      %v671 = vpack.c.bf16 %v630, %v630
      %v672 = vpack.c.bf16 %v631, %v631
      %v673 = vpack.c.bf16 %v632, %v632
      %v674 = vpack.c.bf16 %v633, %v633
      %v675 = vpack.c.bf16 %v634, %v634
      %v676 = vpack.c.bf16 %v635, %v635
      %v677 = vpack.c.bf16 %v636, %v636
      %v678 = vpack.c.bf16 %v637, %v637
      %v679 = vpack.c.bf16 %v638, %v638
      %v680 = vpack.c.bf16 %v639, %v639
      %v681 = vpack.c.bf16 %v640, %v640
      %v682 = vpack.c.bf16 %v641, %v641
      %v683 = vld [vmem:[%s407] sm:$0xf]
      %v684 = vld [vmem:[%s407 + $0x4] sm:$0xf]
      %v685 = vld [vmem:[%s407 + $0x8] sm:$0xf]
      %v686 = vld [vmem:[%s407 + $0xc] sm:$0xf]
      %v687 = vld [vmem:[%s407 + $0x10] sm:$0xf]
      %v688 = vld [vmem:[%s407 + $0x14] sm:$0xf]
      %v689 = vld [vmem:[%s407 + $0x18] sm:$0xf]
      %v690 = vld [vmem:[%s407 + $0x1c] sm:$0xf]
      %v691 = vld [vmem:[%s407 + $0x20] sm:$0xf]
      %v692 = vld [vmem:[%s407 + $0x24] sm:$0xf]
      %v693 = vld [vmem:[%s407 + $0x28] sm:$0xf]
      %v694 = vld [vmem:[%s407 + $0x2c] sm:$0xf]
      %v695 = vld [vmem:[%s407 + $0x30] sm:$0xf]
      %v696 = vld [vmem:[%s407 + $0x34] sm:$0xf]
      %v697 = vld [vmem:[%s407 + $0x38] sm:$0xf]
      %v698 = vld [vmem:[%s407 + $0x3c] sm:$0xf]
      %v699 = vld [vmem:[%s407 + $0x40] sm:$0xf]
      %v700 = vld [vmem:[%s407 + $0x44] sm:$0xf]
      %v701 = vld [vmem:[%s407 + $0x48] sm:$0xf]
      %v702 = vld [vmem:[%s407 + $0x4c] sm:$0xf]
      %v703 = vld [vmem:[%s407 + $0x50] sm:$0xf]
      %v704 = vld [vmem:[%s407 + $0x54] sm:$0xf]
      %v705 = vld [vmem:[%s407 + $0x58] sm:$0xf]
      %v706 = vld [vmem:[%s407 + $0x5c] sm:$0xf]
      %v707 = vld [vmem:[%s407 + $0x60] sm:$0xf]
      %v708 = vld [vmem:[%s407 + $0x64] sm:$0xf]
      %v709 = vld [vmem:[%s407 + $0x68] sm:$0xf]
      %v710 = vld [vmem:[%s407 + $0x6c] sm:$0xf]
      %v711 = vld [vmem:[%s407 + $0x70] sm:$0xf]
      %v712 = vld [vmem:[%s407 + $0x74] sm:$0xf]
      %v713 = vld [vmem:[%s407 + $0x78] sm:$0xf]
      %v714 = vld [vmem:[%s407 + $0x7c] sm:$0xf]
      %v715 = vld [vmem:[%s407 + $0x80] sm:$0xf]
      %v716 = vld [vmem:[%s407 + $0x84] sm:$0xf]
      %v717 = vld [vmem:[%s407 + $0x88] sm:$0xf]
      %v718 = vld [vmem:[%s407 + $0x8c] sm:$0xf]
      %v719 = vld [vmem:[%s407 + $0x90] sm:$0xf]
      %v720 = vld [vmem:[%s407 + $0x94] sm:$0xf]
      %v721 = vld [vmem:[%s407 + $0x98] sm:$0xf]
      %v722 = vld [vmem:[%s407 + $0x9c] sm:$0xf]
      %v723 = vld [vmem:[%s407 + $0xa0] sm:$0xf]
      %v724 = vunpack.c.l.bf16 %v683
      %v725 = vunpack.c.l.bf16 %v684
      %v726 = vunpack.c.l.bf16 %v685
      %v727 = vunpack.c.l.bf16 %v686
      %v728 = vunpack.c.l.bf16 %v687
      %v729 = vunpack.c.l.bf16 %v688
      %v730 = vunpack.c.l.bf16 %v689
      %v731 = vunpack.c.l.bf16 %v690
      %v732 = vunpack.c.l.bf16 %v691
      %v733 = vunpack.c.l.bf16 %v692
      %v734 = vunpack.c.l.bf16 %v693
      %v735 = vunpack.c.l.bf16 %v694
      %v736 = vunpack.c.l.bf16 %v695
      %v737 = vunpack.c.l.bf16 %v696
      %v738 = vunpack.c.l.bf16 %v697
      %v739 = vunpack.c.l.bf16 %v698
      %v740 = vunpack.c.l.bf16 %v699
      %v741 = vunpack.c.l.bf16 %v700
      %v742 = vunpack.c.l.bf16 %v701
      %v743 = vunpack.c.l.bf16 %v702
      %v744 = vunpack.c.l.bf16 %v703
      %v745 = vunpack.c.l.bf16 %v704
      %v746 = vunpack.c.l.bf16 %v705
      %v747 = vunpack.c.l.bf16 %v706
      %v748 = vunpack.c.l.bf16 %v707
      %v749 = vunpack.c.l.bf16 %v708
      %v750 = vunpack.c.l.bf16 %v709
      %v751 = vunpack.c.l.bf16 %v710
      %v752 = vunpack.c.l.bf16 %v711
      %v753 = vunpack.c.l.bf16 %v712
      %v754 = vunpack.c.l.bf16 %v713
      %v755 = vunpack.c.l.bf16 %v714
      %v756 = vunpack.c.l.bf16 %v715
      %v757 = vunpack.c.l.bf16 %v716
      %v758 = vunpack.c.l.bf16 %v717
      %v759 = vunpack.c.l.bf16 %v718
      %v760 = vunpack.c.l.bf16 %v719
      %v761 = vunpack.c.l.bf16 %v720
      %v762 = vunpack.c.l.bf16 %v721
      %v763 = vunpack.c.l.bf16 %v722
      %v764 = vunpack.c.l.bf16 %v723
      %v765 = vld [vmem:[%s6 + $0x1] sm:$0x1]
      %v766 = vperm.slane %v765, 0
      %v767 = vmul.f32 %v724, %v766
      %v768 = vmul.f32 %v725, %v766
      %v769 = vmul.f32 %v726, %v766
      %v770 = vmul.f32 %v727, %v766
      %v771 = vmul.f32 %v728, %v766
      %v772 = vmul.f32 %v729, %v766
      %v773 = vmul.f32 %v730, %v766
      %v774 = vmul.f32 %v731, %v766
      %v775 = vmul.f32 %v732, %v766
      %v776 = vmul.f32 %v733, %v766
      %v777 = vmul.f32 %v734, %v766
      %v778 = vmul.f32 %v735, %v766
      %v779 = vmul.f32 %v736, %v766
      %v780 = vmul.f32 %v737, %v766
      %v781 = vmul.f32 %v738, %v766
      %v782 = vmul.f32 %v739, %v766
      %v783 = vmul.f32 %v740, %v766
      %v784 = vmul.f32 %v741, %v766
      %v785 = vmul.f32 %v742, %v766
      %v786 = vmul.f32 %v743, %v766
      %v787 = vmul.f32 %v744, %v766
      %v788 = vmul.f32 %v745, %v766
      %v789 = vmul.f32 %v746, %v766
      %v790 = vmul.f32 %v747, %v766
      %v791 = vmul.f32 %v748, %v766
      %v792 = vmul.f32 %v749, %v766
      %v793 = vmul.f32 %v750, %v766
      %v794 = vmul.f32 %v751, %v766
      %v795 = vmul.f32 %v752, %v766
      %v796 = vmul.f32 %v753, %v766
      %v797 = vmul.f32 %v754, %v766
      %v798 = vmul.f32 %v755, %v766
      %v799 = vmul.f32 %v756, %v766
      %v800 = vmul.f32 %v757, %v766
      %v801 = vmul.f32 %v758, %v766
      %v802 = vmul.f32 %v759, %v766
      %v803 = vmul.f32 %v760, %v766
      %v804 = vmul.f32 %v761, %v766
      %v805 = vmul.f32 %v762, %v766
      %v806 = vmul.f32 %v763, %v766
      %v807 = vmul.f32 %v764, %v766
      %v808 = vld [vmem:[%s7 + $0x1] sm:$0x1]
      %v809 = vperm.slane %v808, 0
      %v810 = vadd.f32 %v767, %v809
      %v811 = vadd.f32 %v768, %v809
      %v812 = vadd.f32 %v769, %v809
      %v813 = vadd.f32 %v770, %v809
      %v814 = vadd.f32 %v771, %v809
      %v815 = vadd.f32 %v772, %v809
      %v816 = vadd.f32 %v773, %v809
      %v817 = vadd.f32 %v774, %v809
      %v818 = vadd.f32 %v775, %v809
      %v819 = vadd.f32 %v776, %v809
      %v820 = vadd.f32 %v777, %v809
      %v821 = vadd.f32 %v778, %v809
      %v822 = vadd.f32 %v779, %v809
      %v823 = vadd.f32 %v780, %v809
      %v824 = vadd.f32 %v781, %v809
      %v825 = vadd.f32 %v782, %v809
      %v826 = vadd.f32 %v783, %v809
      %v827 = vadd.f32 %v784, %v809
      %v828 = vadd.f32 %v785, %v809
      %v829 = vadd.f32 %v786, %v809
      %v830 = vadd.f32 %v787, %v809
      %v831 = vadd.f32 %v788, %v809
      %v832 = vadd.f32 %v789, %v809
      %v833 = vadd.f32 %v790, %v809
      %v834 = vadd.f32 %v791, %v809
      %v835 = vadd.f32 %v792, %v809
      %v836 = vadd.f32 %v793, %v809
      %v837 = vadd.f32 %v794, %v809
      %v838 = vadd.f32 %v795, %v809
      %v839 = vadd.f32 %v796, %v809
      %v840 = vadd.f32 %v797, %v809
      %v841 = vadd.f32 %v798, %v809
      %v842 = vadd.f32 %v799, %v809
      %v843 = vadd.f32 %v800, %v809
      %v844 = vadd.f32 %v801, %v809
      %v845 = vadd.f32 %v802, %v809
      %v846 = vadd.f32 %v803, %v809
      %v847 = vadd.f32 %v804, %v809
      %v848 = vadd.f32 %v805, %v809
      %v849 = vadd.f32 %v806, %v809
      %v850 = vadd.f32 %v807, %v809
      %v851 = vmax.f32 %v810, 0.0
      %v852 = vmax.f32 %v811, 0.0
      %v853 = vmax.f32 %v812, 0.0
      %v854 = vmax.f32 %v813, 0.0
      %v855 = vmax.f32 %v814, 0.0
      %v856 = vmax.f32 %v815, 0.0
      %v857 = vmax.f32 %v816, 0.0
      %v858 = vmax.f32 %v817, 0.0
      %v859 = vmax.f32 %v818, 0.0
      %v860 = vmax.f32 %v819, 0.0
      %v861 = vmax.f32 %v820, 0.0
      %v862 = vmax.f32 %v821, 0.0
      %v863 = vmax.f32 %v822, 0.0
      %v864 = vmax.f32 %v823, 0.0
      %v865 = vmax.f32 %v824, 0.0
      %v866 = vmax.f32 %v825, 0.0
      %v867 = vmax.f32 %v826, 0.0
      %v868 = vmax.f32 %v827, 0.0
      %v869 = vmax.f32 %v828, 0.0
      %v870 = vmax.f32 %v829, 0.0
      %v871 = vmax.f32 %v830, 0.0
      %v872 = vmax.f32 %v831, 0.0
      %v873 = vmax.f32 %v832, 0.0
      %v874 = vmax.f32 %v833, 0.0
      %v875 = vmax.f32 %v834, 0.0
      %v876 = vmax.f32 %v835, 0.0
      %v877 = vmax.f32 %v836, 0.0
      %v878 = vmax.f32 %v837, 0.0
      %v879 = vmax.f32 %v838, 0.0
      %v880 = vmax.f32 %v839, 0.0
      %v881 = vmax.f32 %v840, 0.0
      %v882 = vmax.f32 %v841, 0.0
      %v883 = vmax.f32 %v842, 0.0
      %v884 = vmax.f32 %v843, 0.0
      %v885 = vmax.f32 %v844, 0.0
      %v886 = vmax.f32 %v845, 0.0
      %v887 = vmax.f32 %v846, 0.0
      %v888 = vmax.f32 %v847, 0.0
      %v889 = vmax.f32 %v848, 0.0
      %v890 = vmax.f32 %v849, 0.0
      %v891 = vmax.f32 %v850, 0.0
      %v892 = vpack.c.bf16 %v851, %v851
      %v893 = vpack.c.bf16 %v852, %v852
      %v894 = vpack.c.bf16 %v853, %v853
      %v895 = vpack.c.bf16 %v854, %v854
      %v896 = vpack.c.bf16 %v855, %v855
      %v897 = vpack.c.bf16 %v856, %v856
      %v898 = vpack.c.bf16 %v857, %v857
      %v899 = vpack.c.bf16 %v858, %v858
      %v900 = vpack.c.bf16 %v859, %v859
      %v901 = vpack.c.bf16 %v860, %v860
      %v902 = vpack.c.bf16 %v861, %v861
      %v903 = vpack.c.bf16 %v862, %v862
      %v904 = vpack.c.bf16 %v863, %v863
      %v905 = vpack.c.bf16 %v864, %v864
      %v906 = vpack.c.bf16 %v865, %v865
      %v907 = vpack.c.bf16 %v866, %v866
      %v908 = vpack.c.bf16 %v867, %v867
      %v909 = vpack.c.bf16 %v868, %v868
      %v910 = vpack.c.bf16 %v869, %v869
      %v911 = vpack.c.bf16 %v870, %v870
      %v912 = vpack.c.bf16 %v871, %v871
      %v913 = vpack.c.bf16 %v872, %v872
      %v914 = vpack.c.bf16 %v873, %v873
      %v915 = vpack.c.bf16 %v874, %v874
      %v916 = vpack.c.bf16 %v875, %v875
      %v917 = vpack.c.bf16 %v876, %v876
      %v918 = vpack.c.bf16 %v877, %v877
      %v919 = vpack.c.bf16 %v878, %v878
      %v920 = vpack.c.bf16 %v879, %v879
      %v921 = vpack.c.bf16 %v880, %v880
      %v922 = vpack.c.bf16 %v881, %v881
      %v923 = vpack.c.bf16 %v882, %v882
      %v924 = vpack.c.bf16 %v883, %v883
      %v925 = vpack.c.bf16 %v884, %v884
      %v926 = vpack.c.bf16 %v885, %v885
      %v927 = vpack.c.bf16 %v886, %v886
      %v928 = vpack.c.bf16 %v887, %v887
      %v929 = vpack.c.bf16 %v888, %v888
      %v930 = vpack.c.bf16 %v889, %v889
      %v931 = vpack.c.bf16 %v890, %v890
      %v932 = vpack.c.bf16 %v891, %v891
      %v933 = vld [vmem:[%s412] sm:$0xf]
      %v934 = vld [vmem:[%s412 + $0x4] sm:$0xf]
      %v935 = vld [vmem:[%s412 + $0x8] sm:$0xf]
      %v936 = vld [vmem:[%s412 + $0xc] sm:$0xf]
      %v937 = vld [vmem:[%s412 + $0x10] sm:$0xf]
      %v938 = vld [vmem:[%s412 + $0x14] sm:$0xf]
      %v939 = vld [vmem:[%s412 + $0x18] sm:$0xf]
      %v940 = vld [vmem:[%s412 + $0x1c] sm:$0xf]
      %v941 = vld [vmem:[%s412 + $0x20] sm:$0xf]
      %v942 = vld [vmem:[%s412 + $0x24] sm:$0xf]
      %v943 = vld [vmem:[%s412 + $0x28] sm:$0xf]
      %v944 = vld [vmem:[%s412 + $0x2c] sm:$0xf]
      %v945 = vld [vmem:[%s412 + $0x30] sm:$0xf]
      %v946 = vld [vmem:[%s412 + $0x34] sm:$0xf]
      %v947 = vld [vmem:[%s412 + $0x38] sm:$0xf]
      %v948 = vld [vmem:[%s412 + $0x3c] sm:$0xf]
      %v949 = vld [vmem:[%s412 + $0x40] sm:$0xf]
      %v950 = vld [vmem:[%s412 + $0x44] sm:$0xf]
      %v951 = vld [vmem:[%s412 + $0x48] sm:$0xf]
      %v952 = vld [vmem:[%s412 + $0x4c] sm:$0xf]
      %v953 = vld [vmem:[%s412 + $0x50] sm:$0xf]
      %v954 = vld [vmem:[%s412 + $0x54] sm:$0xf]
      %v955 = vld [vmem:[%s412 + $0x58] sm:$0xf]
      %v956 = vld [vmem:[%s412 + $0x5c] sm:$0xf]
      %v957 = vld [vmem:[%s412 + $0x60] sm:$0xf]
      %v958 = vld [vmem:[%s412 + $0x64] sm:$0xf]
      %v959 = vld [vmem:[%s412 + $0x68] sm:$0xf]
      %v960 = vld [vmem:[%s412 + $0x6c] sm:$0xf]
      %v961 = vld [vmem:[%s412 + $0x70] sm:$0xf]
      %v962 = vld [vmem:[%s412 + $0x74] sm:$0xf]
      %v963 = vld [vmem:[%s412 + $0x78] sm:$0xf]
      %v964 = vld [vmem:[%s412 + $0x7c] sm:$0xf]
      %v965 = vld [vmem:[%s412 + $0x80] sm:$0xf]
      %v966 = vld [vmem:[%s412 + $0x84] sm:$0xf]
      %v967 = vld [vmem:[%s412 + $0x88] sm:$0xf]
      %v968 = vld [vmem:[%s412 + $0x8c] sm:$0xf]
      %v969 = vld [vmem:[%s412 + $0x90] sm:$0xf]
      %v970 = vld [vmem:[%s412 + $0x94] sm:$0xf]
      %v971 = vld [vmem:[%s412 + $0x98] sm:$0xf]
      %v972 = vld [vmem:[%s412 + $0x9c] sm:$0xf]
      %v973 = vld [vmem:[%s412 + $0xa0] sm:$0xf]
      %v974 = vunpack.c.l.bf16 %v933
      %v975 = vunpack.c.l.bf16 %v934
      %v976 = vunpack.c.l.bf16 %v935
      %v977 = vunpack.c.l.bf16 %v936
      %v978 = vunpack.c.l.bf16 %v937
      %v979 = vunpack.c.l.bf16 %v938
      %v980 = vunpack.c.l.bf16 %v939
      %v981 = vunpack.c.l.bf16 %v940
      %v982 = vunpack.c.l.bf16 %v941
      %v983 = vunpack.c.l.bf16 %v942
      %v984 = vunpack.c.l.bf16 %v943
      %v985 = vunpack.c.l.bf16 %v944
      %v986 = vunpack.c.l.bf16 %v945
      %v987 = vunpack.c.l.bf16 %v946
      %v988 = vunpack.c.l.bf16 %v947
      %v989 = vunpack.c.l.bf16 %v948
      %v990 = vunpack.c.l.bf16 %v949
      %v991 = vunpack.c.l.bf16 %v950
      %v992 = vunpack.c.l.bf16 %v951
      %v993 = vunpack.c.l.bf16 %v952
      %v994 = vunpack.c.l.bf16 %v953
      %v995 = vunpack.c.l.bf16 %v954
      %v996 = vunpack.c.l.bf16 %v955
      %v997 = vunpack.c.l.bf16 %v956
      %v998 = vunpack.c.l.bf16 %v957
      %v999 = vunpack.c.l.bf16 %v958
      %v1000 = vunpack.c.l.bf16 %v959
      %v1001 = vunpack.c.l.bf16 %v960
      %v1002 = vunpack.c.l.bf16 %v961
      %v1003 = vunpack.c.l.bf16 %v962
      %v1004 = vunpack.c.l.bf16 %v963
      %v1005 = vunpack.c.l.bf16 %v964
      %v1006 = vunpack.c.l.bf16 %v965
      %v1007 = vunpack.c.l.bf16 %v966
      %v1008 = vunpack.c.l.bf16 %v967
      %v1009 = vunpack.c.l.bf16 %v968
      %v1010 = vunpack.c.l.bf16 %v969
      %v1011 = vunpack.c.l.bf16 %v970
      %v1012 = vunpack.c.l.bf16 %v971
      %v1013 = vunpack.c.l.bf16 %v972
      %v1014 = vunpack.c.l.bf16 %v973
      %v1015 = vld [vmem:[%s6 + $0x2] sm:$0x1]
      %v1016 = vperm.slane %v1015, 0
      %v1017 = vmul.f32 %v974, %v1016
      %v1018 = vmul.f32 %v975, %v1016
      %v1019 = vmul.f32 %v976, %v1016
      %v1020 = vmul.f32 %v977, %v1016
      %v1021 = vmul.f32 %v978, %v1016
      %v1022 = vmul.f32 %v979, %v1016
      %v1023 = vmul.f32 %v980, %v1016
      %v1024 = vmul.f32 %v981, %v1016
      %v1025 = vmul.f32 %v982, %v1016
      %v1026 = vmul.f32 %v983, %v1016
      %v1027 = vmul.f32 %v984, %v1016
      %v1028 = vmul.f32 %v985, %v1016
      %v1029 = vmul.f32 %v986, %v1016
      %v1030 = vmul.f32 %v987, %v1016
      %v1031 = vmul.f32 %v988, %v1016
      %v1032 = vmul.f32 %v989, %v1016
      %v1033 = vmul.f32 %v990, %v1016
      %v1034 = vmul.f32 %v991, %v1016
      %v1035 = vmul.f32 %v992, %v1016
      %v1036 = vmul.f32 %v993, %v1016
      %v1037 = vmul.f32 %v994, %v1016
      %v1038 = vmul.f32 %v995, %v1016
      %v1039 = vmul.f32 %v996, %v1016
      %v1040 = vmul.f32 %v997, %v1016
      %v1041 = vmul.f32 %v998, %v1016
      %v1042 = vmul.f32 %v999, %v1016
      %v1043 = vmul.f32 %v1000, %v1016
      %v1044 = vmul.f32 %v1001, %v1016
      %v1045 = vmul.f32 %v1002, %v1016
      %v1046 = vmul.f32 %v1003, %v1016
      %v1047 = vmul.f32 %v1004, %v1016
      %v1048 = vmul.f32 %v1005, %v1016
      %v1049 = vmul.f32 %v1006, %v1016
      %v1050 = vmul.f32 %v1007, %v1016
      %v1051 = vmul.f32 %v1008, %v1016
      %v1052 = vmul.f32 %v1009, %v1016
      %v1053 = vmul.f32 %v1010, %v1016
      %v1054 = vmul.f32 %v1011, %v1016
      %v1055 = vmul.f32 %v1012, %v1016
      %v1056 = vmul.f32 %v1013, %v1016
      %v1057 = vmul.f32 %v1014, %v1016
      %v1058 = vld [vmem:[%s7 + $0x2] sm:$0x1]
      %v1059 = vperm.slane %v1058, 0
      %v1060 = vadd.f32 %v1017, %v1059
      %v1061 = vadd.f32 %v1018, %v1059
      %v1062 = vadd.f32 %v1019, %v1059
      %v1063 = vadd.f32 %v1020, %v1059
      %v1064 = vadd.f32 %v1021, %v1059
      %v1065 = vadd.f32 %v1022, %v1059
      %v1066 = vadd.f32 %v1023, %v1059
      %v1067 = vadd.f32 %v1024, %v1059
      %v1068 = vadd.f32 %v1025, %v1059
      %v1069 = vadd.f32 %v1026, %v1059
      %v1070 = vadd.f32 %v1027, %v1059
      %v1071 = vadd.f32 %v1028, %v1059
      %v1072 = vadd.f32 %v1029, %v1059
      %v1073 = vadd.f32 %v1030, %v1059
      %v1074 = vadd.f32 %v1031, %v1059
      %v1075 = vadd.f32 %v1032, %v1059
      %v1076 = vadd.f32 %v1033, %v1059
      %v1077 = vadd.f32 %v1034, %v1059
      %v1078 = vadd.f32 %v1035, %v1059
      %v1079 = vadd.f32 %v1036, %v1059
      %v1080 = vadd.f32 %v1037, %v1059
      %v1081 = vadd.f32 %v1038, %v1059
      %v1082 = vadd.f32 %v1039, %v1059
      %v1083 = vadd.f32 %v1040, %v1059
      %v1084 = vadd.f32 %v1041, %v1059
      %v1085 = vadd.f32 %v1042, %v1059
      %v1086 = vadd.f32 %v1043, %v1059
      %v1087 = vadd.f32 %v1044, %v1059
      %v1088 = vadd.f32 %v1045, %v1059
      %v1089 = vadd.f32 %v1046, %v1059
      %v1090 = vadd.f32 %v1047, %v1059
      %v1091 = vadd.f32 %v1048, %v1059
      %v1092 = vadd.f32 %v1049, %v1059
      %v1093 = vadd.f32 %v1050, %v1059
      %v1094 = vadd.f32 %v1051, %v1059
      %v1095 = vadd.f32 %v1052, %v1059
      %v1096 = vadd.f32 %v1053, %v1059
      %v1097 = vadd.f32 %v1054, %v1059
      %v1098 = vadd.f32 %v1055, %v1059
      %v1099 = vadd.f32 %v1056, %v1059
      %v1100 = vadd.f32 %v1057, %v1059
      %v1101 = vmax.f32 %v1060, 0.0
      %v1102 = vmax.f32 %v1061, 0.0
      %v1103 = vmax.f32 %v1062, 0.0
      %v1104 = vmax.f32 %v1063, 0.0
      %v1105 = vmax.f32 %v1064, 0.0
      %v1106 = vmax.f32 %v1065, 0.0
      %v1107 = vmax.f32 %v1066, 0.0
      %v1108 = vmax.f32 %v1067, 0.0
      %v1109 = vmax.f32 %v1068, 0.0
      %v1110 = vmax.f32 %v1069, 0.0
      %v1111 = vmax.f32 %v1070, 0.0
      %v1112 = vmax.f32 %v1071, 0.0
      %v1113 = vmax.f32 %v1072, 0.0
      %v1114 = vmax.f32 %v1073, 0.0
      %v1115 = vmax.f32 %v1074, 0.0
      %v1116 = vmax.f32 %v1075, 0.0
      %v1117 = vmax.f32 %v1076, 0.0
      %v1118 = vmax.f32 %v1077, 0.0
      %v1119 = vmax.f32 %v1078, 0.0
      %v1120 = vmax.f32 %v1079, 0.0
      %v1121 = vmax.f32 %v1080, 0.0
      %v1122 = vmax.f32 %v1081, 0.0
      %v1123 = vmax.f32 %v1082, 0.0
      %v1124 = vmax.f32 %v1083, 0.0
      %v1125 = vmax.f32 %v1084, 0.0
      %v1126 = vmax.f32 %v1085, 0.0
      %v1127 = vmax.f32 %v1086, 0.0
      %v1128 = vmax.f32 %v1087, 0.0
      %v1129 = vmax.f32 %v1088, 0.0
      %v1130 = vmax.f32 %v1089, 0.0
      %v1131 = vmax.f32 %v1090, 0.0
      %v1132 = vmax.f32 %v1091, 0.0
      %v1133 = vmax.f32 %v1092, 0.0
      %v1134 = vmax.f32 %v1093, 0.0
      %v1135 = vmax.f32 %v1094, 0.0
      %v1136 = vmax.f32 %v1095, 0.0
      %v1137 = vmax.f32 %v1096, 0.0
      %v1138 = vmax.f32 %v1097, 0.0
      %v1139 = vmax.f32 %v1098, 0.0
      %v1140 = vmax.f32 %v1099, 0.0
      %v1141 = vmax.f32 %v1100, 0.0
      %v1142 = vpack.c.bf16 %v1101, %v1101
      %v1143 = vpack.c.bf16 %v1102, %v1102
      %v1144 = vpack.c.bf16 %v1103, %v1103
      %v1145 = vpack.c.bf16 %v1104, %v1104
      %v1146 = vpack.c.bf16 %v1105, %v1105
      %v1147 = vpack.c.bf16 %v1106, %v1106
      %v1148 = vpack.c.bf16 %v1107, %v1107
      %v1149 = vpack.c.bf16 %v1108, %v1108
      %v1150 = vpack.c.bf16 %v1109, %v1109
      %v1151 = vpack.c.bf16 %v1110, %v1110
      %v1152 = vpack.c.bf16 %v1111, %v1111
      %v1153 = vpack.c.bf16 %v1112, %v1112
      %v1154 = vpack.c.bf16 %v1113, %v1113
      %v1155 = vpack.c.bf16 %v1114, %v1114
      %v1156 = vpack.c.bf16 %v1115, %v1115
      %v1157 = vpack.c.bf16 %v1116, %v1116
      %v1158 = vpack.c.bf16 %v1117, %v1117
      %v1159 = vpack.c.bf16 %v1118, %v1118
      %v1160 = vpack.c.bf16 %v1119, %v1119
      %v1161 = vpack.c.bf16 %v1120, %v1120
      %v1162 = vpack.c.bf16 %v1121, %v1121
      %v1163 = vpack.c.bf16 %v1122, %v1122
      %v1164 = vpack.c.bf16 %v1123, %v1123
      %v1165 = vpack.c.bf16 %v1124, %v1124
      %v1166 = vpack.c.bf16 %v1125, %v1125
      %v1167 = vpack.c.bf16 %v1126, %v1126
      %v1168 = vpack.c.bf16 %v1127, %v1127
      %v1169 = vpack.c.bf16 %v1128, %v1128
      %v1170 = vpack.c.bf16 %v1129, %v1129
      %v1171 = vpack.c.bf16 %v1130, %v1130
      %v1172 = vpack.c.bf16 %v1131, %v1131
      %v1173 = vpack.c.bf16 %v1132, %v1132
      %v1174 = vpack.c.bf16 %v1133, %v1133
      %v1175 = vpack.c.bf16 %v1134, %v1134
      %v1176 = vpack.c.bf16 %v1135, %v1135
      %v1177 = vpack.c.bf16 %v1136, %v1136
      %v1178 = vpack.c.bf16 %v1137, %v1137
      %v1179 = vpack.c.bf16 %v1138, %v1138
      %v1180 = vpack.c.bf16 %v1139, %v1139
      %v1181 = vpack.c.bf16 %v1140, %v1140
      %v1182 = vpack.c.bf16 %v1141, %v1141
      %v1183 = vld [vmem:[%s417] sm:$0xf]
      %v1184 = vld [vmem:[%s417 + $0x4] sm:$0xf]
      %v1185 = vld [vmem:[%s417 + $0x8] sm:$0xf]
      %v1186 = vld [vmem:[%s417 + $0xc] sm:$0xf]
      %v1187 = vld [vmem:[%s417 + $0x10] sm:$0xf]
      %v1188 = vld [vmem:[%s417 + $0x14] sm:$0xf]
      %v1189 = vld [vmem:[%s417 + $0x18] sm:$0xf]
      %v1190 = vld [vmem:[%s417 + $0x1c] sm:$0xf]
      %v1191 = vld [vmem:[%s417 + $0x20] sm:$0xf]
      %v1192 = vld [vmem:[%s417 + $0x24] sm:$0xf]
      %v1193 = vld [vmem:[%s417 + $0x28] sm:$0xf]
      %v1194 = vld [vmem:[%s417 + $0x2c] sm:$0xf]
      %v1195 = vld [vmem:[%s417 + $0x30] sm:$0xf]
      %v1196 = vld [vmem:[%s417 + $0x34] sm:$0xf]
      %v1197 = vld [vmem:[%s417 + $0x38] sm:$0xf]
      %v1198 = vld [vmem:[%s417 + $0x3c] sm:$0xf]
      %v1199 = vld [vmem:[%s417 + $0x40] sm:$0xf]
      %v1200 = vld [vmem:[%s417 + $0x44] sm:$0xf]
      %v1201 = vld [vmem:[%s417 + $0x48] sm:$0xf]
      %v1202 = vld [vmem:[%s417 + $0x4c] sm:$0xf]
      %v1203 = vld [vmem:[%s417 + $0x50] sm:$0xf]
      %v1204 = vld [vmem:[%s417 + $0x54] sm:$0xf]
      %v1205 = vld [vmem:[%s417 + $0x58] sm:$0xf]
      %v1206 = vld [vmem:[%s417 + $0x5c] sm:$0xf]
      %v1207 = vld [vmem:[%s417 + $0x60] sm:$0xf]
      %v1208 = vld [vmem:[%s417 + $0x64] sm:$0xf]
      %v1209 = vld [vmem:[%s417 + $0x68] sm:$0xf]
      %v1210 = vld [vmem:[%s417 + $0x6c] sm:$0xf]
      %v1211 = vld [vmem:[%s417 + $0x70] sm:$0xf]
      %v1212 = vld [vmem:[%s417 + $0x74] sm:$0xf]
      %v1213 = vld [vmem:[%s417 + $0x78] sm:$0xf]
      %v1214 = vld [vmem:[%s417 + $0x7c] sm:$0xf]
      %v1215 = vld [vmem:[%s417 + $0x80] sm:$0xf]
      %v1216 = vld [vmem:[%s417 + $0x84] sm:$0xf]
      %v1217 = vld [vmem:[%s417 + $0x88] sm:$0xf]
      %v1218 = vld [vmem:[%s417 + $0x8c] sm:$0xf]
      %v1219 = vld [vmem:[%s417 + $0x90] sm:$0xf]
      %v1220 = vld [vmem:[%s417 + $0x94] sm:$0xf]
      %v1221 = vld [vmem:[%s417 + $0x98] sm:$0xf]
      %v1222 = vld [vmem:[%s417 + $0x9c] sm:$0xf]
      %v1223 = vld [vmem:[%s417 + $0xa0] sm:$0xf]
      %v1224 = vunpack.c.l.bf16 %v1183
      %v1225 = vunpack.c.l.bf16 %v1184
      %v1226 = vunpack.c.l.bf16 %v1185
      %v1227 = vunpack.c.l.bf16 %v1186
      %v1228 = vunpack.c.l.bf16 %v1187
      %v1229 = vunpack.c.l.bf16 %v1188
      %v1230 = vunpack.c.l.bf16 %v1189
      %v1231 = vunpack.c.l.bf16 %v1190
      %v1232 = vunpack.c.l.bf16 %v1191
      %v1233 = vunpack.c.l.bf16 %v1192
      %v1234 = vunpack.c.l.bf16 %v1193
      %v1235 = vunpack.c.l.bf16 %v1194
      %v1236 = vunpack.c.l.bf16 %v1195
      %v1237 = vunpack.c.l.bf16 %v1196
      %v1238 = vunpack.c.l.bf16 %v1197
      %v1239 = vunpack.c.l.bf16 %v1198
      %v1240 = vunpack.c.l.bf16 %v1199
      %v1241 = vunpack.c.l.bf16 %v1200
      %v1242 = vunpack.c.l.bf16 %v1201
      %v1243 = vunpack.c.l.bf16 %v1202
      %v1244 = vunpack.c.l.bf16 %v1203
      %v1245 = vunpack.c.l.bf16 %v1204
      %v1246 = vunpack.c.l.bf16 %v1205
      %v1247 = vunpack.c.l.bf16 %v1206
      %v1248 = vunpack.c.l.bf16 %v1207
      %v1249 = vunpack.c.l.bf16 %v1208
      %v1250 = vunpack.c.l.bf16 %v1209
      %v1251 = vunpack.c.l.bf16 %v1210
      %v1252 = vunpack.c.l.bf16 %v1211
      %v1253 = vunpack.c.l.bf16 %v1212
      %v1254 = vunpack.c.l.bf16 %v1213
      %v1255 = vunpack.c.l.bf16 %v1214
      %v1256 = vunpack.c.l.bf16 %v1215
      %v1257 = vunpack.c.l.bf16 %v1216
      %v1258 = vunpack.c.l.bf16 %v1217
      %v1259 = vunpack.c.l.bf16 %v1218
      %v1260 = vunpack.c.l.bf16 %v1219
      %v1261 = vunpack.c.l.bf16 %v1220
      %v1262 = vunpack.c.l.bf16 %v1221
      %v1263 = vunpack.c.l.bf16 %v1222
      %v1264 = vunpack.c.l.bf16 %v1223
      %v1265 = vld [vmem:[%s6 + $0x3] sm:$0x1]
      %v1266 = vperm.slane %v1265, 0
      %v1267 = vmul.f32 %v1224, %v1266
      %v1268 = vmul.f32 %v1225, %v1266
      %v1269 = vmul.f32 %v1226, %v1266
      %v1270 = vmul.f32 %v1227, %v1266
      %v1271 = vmul.f32 %v1228, %v1266
      %v1272 = vmul.f32 %v1229, %v1266
      %v1273 = vmul.f32 %v1230, %v1266
      %v1274 = vmul.f32 %v1231, %v1266
      %v1275 = vmul.f32 %v1232, %v1266
      %v1276 = vmul.f32 %v1233, %v1266
      %v1277 = vmul.f32 %v1234, %v1266
      %v1278 = vmul.f32 %v1235, %v1266
      %v1279 = vmul.f32 %v1236, %v1266
      %v1280 = vmul.f32 %v1237, %v1266
      %v1281 = vmul.f32 %v1238, %v1266
      %v1282 = vmul.f32 %v1239, %v1266
      %v1283 = vmul.f32 %v1240, %v1266
      %v1284 = vmul.f32 %v1241, %v1266
      %v1285 = vmul.f32 %v1242, %v1266
      %v1286 = vmul.f32 %v1243, %v1266
      %v1287 = vmul.f32 %v1244, %v1266
      %v1288 = vmul.f32 %v1245, %v1266
      %v1289 = vmul.f32 %v1246, %v1266
      %v1290 = vmul.f32 %v1247, %v1266
      %v1291 = vmul.f32 %v1248, %v1266
      %v1292 = vmul.f32 %v1249, %v1266
      %v1293 = vmul.f32 %v1250, %v1266
      %v1294 = vmul.f32 %v1251, %v1266
      %v1295 = vmul.f32 %v1252, %v1266
      %v1296 = vmul.f32 %v1253, %v1266
      %v1297 = vmul.f32 %v1254, %v1266
      %v1298 = vmul.f32 %v1255, %v1266
      %v1299 = vmul.f32 %v1256, %v1266
      %v1300 = vmul.f32 %v1257, %v1266
      %v1301 = vmul.f32 %v1258, %v1266
      %v1302 = vmul.f32 %v1259, %v1266
      %v1303 = vmul.f32 %v1260, %v1266
      %v1304 = vmul.f32 %v1261, %v1266
      %v1305 = vmul.f32 %v1262, %v1266
      %v1306 = vmul.f32 %v1263, %v1266
      %v1307 = vmul.f32 %v1264, %v1266
      %v1308 = vld [vmem:[%s7 + $0x3] sm:$0x1]
      %v1309 = vperm.slane %v1308, 0
      %v1310 = vadd.f32 %v1267, %v1309
      %v1311 = vadd.f32 %v1268, %v1309
      %v1312 = vadd.f32 %v1269, %v1309
      %v1313 = vadd.f32 %v1270, %v1309
      %v1314 = vadd.f32 %v1271, %v1309
      %v1315 = vadd.f32 %v1272, %v1309
      %v1316 = vadd.f32 %v1273, %v1309
      %v1317 = vadd.f32 %v1274, %v1309
      %v1318 = vadd.f32 %v1275, %v1309
      %v1319 = vadd.f32 %v1276, %v1309
      %v1320 = vadd.f32 %v1277, %v1309
      %v1321 = vadd.f32 %v1278, %v1309
      %v1322 = vadd.f32 %v1279, %v1309
      %v1323 = vadd.f32 %v1280, %v1309
      %v1324 = vadd.f32 %v1281, %v1309
      %v1325 = vadd.f32 %v1282, %v1309
      %v1326 = vadd.f32 %v1283, %v1309
      %v1327 = vadd.f32 %v1284, %v1309
      %v1328 = vadd.f32 %v1285, %v1309
      %v1329 = vadd.f32 %v1286, %v1309
      %v1330 = vadd.f32 %v1287, %v1309
      %v1331 = vadd.f32 %v1288, %v1309
      %v1332 = vadd.f32 %v1289, %v1309
      %v1333 = vadd.f32 %v1290, %v1309
      %v1334 = vadd.f32 %v1291, %v1309
      %v1335 = vadd.f32 %v1292, %v1309
      %v1336 = vadd.f32 %v1293, %v1309
      %v1337 = vadd.f32 %v1294, %v1309
      %v1338 = vadd.f32 %v1295, %v1309
      %v1339 = vadd.f32 %v1296, %v1309
      %v1340 = vadd.f32 %v1297, %v1309
      %v1341 = vadd.f32 %v1298, %v1309
      %v1342 = vadd.f32 %v1299, %v1309
      %v1343 = vadd.f32 %v1300, %v1309
      %v1344 = vadd.f32 %v1301, %v1309
      %v1345 = vadd.f32 %v1302, %v1309
      %v1346 = vadd.f32 %v1303, %v1309
      %v1347 = vadd.f32 %v1304, %v1309
      %v1348 = vadd.f32 %v1305, %v1309
      %v1349 = vadd.f32 %v1306, %v1309
      %v1350 = vadd.f32 %v1307, %v1309
      %v1351 = vmax.f32 %v1310, 0.0
      %v1352 = vmax.f32 %v1311, 0.0
      %v1353 = vmax.f32 %v1312, 0.0
      %v1354 = vmax.f32 %v1313, 0.0
      %v1355 = vmax.f32 %v1314, 0.0
      %v1356 = vmax.f32 %v1315, 0.0
      %v1357 = vmax.f32 %v1316, 0.0
      %v1358 = vmax.f32 %v1317, 0.0
      %v1359 = vmax.f32 %v1318, 0.0
      %v1360 = vmax.f32 %v1319, 0.0
      %v1361 = vmax.f32 %v1320, 0.0
      %v1362 = vmax.f32 %v1321, 0.0
      %v1363 = vmax.f32 %v1322, 0.0
      %v1364 = vmax.f32 %v1323, 0.0
      %v1365 = vmax.f32 %v1324, 0.0
      %v1366 = vmax.f32 %v1325, 0.0
      %v1367 = vmax.f32 %v1326, 0.0
      %v1368 = vmax.f32 %v1327, 0.0
      %v1369 = vmax.f32 %v1328, 0.0
      %v1370 = vmax.f32 %v1329, 0.0
      %v1371 = vmax.f32 %v1330, 0.0
      %v1372 = vmax.f32 %v1331, 0.0
      %v1373 = vmax.f32 %v1332, 0.0
      %v1374 = vmax.f32 %v1333, 0.0
      %v1375 = vmax.f32 %v1334, 0.0
      %v1376 = vmax.f32 %v1335, 0.0
      %v1377 = vmax.f32 %v1336, 0.0
      %v1378 = vmax.f32 %v1337, 0.0
      %v1379 = vmax.f32 %v1338, 0.0
      %v1380 = vmax.f32 %v1339, 0.0
      %v1381 = vmax.f32 %v1340, 0.0
      %v1382 = vmax.f32 %v1341, 0.0
      %v1383 = vmax.f32 %v1342, 0.0
      %v1384 = vmax.f32 %v1343, 0.0
      %v1385 = vmax.f32 %v1344, 0.0
      %v1386 = vmax.f32 %v1345, 0.0
      %v1387 = vmax.f32 %v1346, 0.0
      %v1388 = vmax.f32 %v1347, 0.0
      %v1389 = vmax.f32 %v1348, 0.0
      %v1390 = vmax.f32 %v1349, 0.0
      %v1391 = vmax.f32 %v1350, 0.0
      %v1392 = vpack.c.bf16 %v1351, %v1351
      %v1393 = vpack.c.bf16 %v1352, %v1352
      %v1394 = vpack.c.bf16 %v1353, %v1353
      %v1395 = vpack.c.bf16 %v1354, %v1354
      %v1396 = vpack.c.bf16 %v1355, %v1355
      %v1397 = vpack.c.bf16 %v1356, %v1356
      %v1398 = vpack.c.bf16 %v1357, %v1357
      %v1399 = vpack.c.bf16 %v1358, %v1358
      %v1400 = vpack.c.bf16 %v1359, %v1359
      %v1401 = vpack.c.bf16 %v1360, %v1360
      %v1402 = vpack.c.bf16 %v1361, %v1361
      %v1403 = vpack.c.bf16 %v1362, %v1362
      %v1404 = vpack.c.bf16 %v1363, %v1363
      %v1405 = vpack.c.bf16 %v1364, %v1364
      %v1406 = vpack.c.bf16 %v1365, %v1365
      %v1407 = vpack.c.bf16 %v1366, %v1366
      %v1408 = vpack.c.bf16 %v1367, %v1367
      %v1409 = vpack.c.bf16 %v1368, %v1368
      %v1410 = vpack.c.bf16 %v1369, %v1369
      %v1411 = vpack.c.bf16 %v1370, %v1370
      %v1412 = vpack.c.bf16 %v1371, %v1371
      %v1413 = vpack.c.bf16 %v1372, %v1372
      %v1414 = vpack.c.bf16 %v1373, %v1373
      %v1415 = vpack.c.bf16 %v1374, %v1374
      %v1416 = vpack.c.bf16 %v1375, %v1375
      %v1417 = vpack.c.bf16 %v1376, %v1376
      %v1418 = vpack.c.bf16 %v1377, %v1377
      %v1419 = vpack.c.bf16 %v1378, %v1378
      %v1420 = vpack.c.bf16 %v1379, %v1379
      %v1421 = vpack.c.bf16 %v1380, %v1380
      %v1422 = vpack.c.bf16 %v1381, %v1381
      %v1423 = vpack.c.bf16 %v1382, %v1382
      %v1424 = vpack.c.bf16 %v1383, %v1383
      %v1425 = vpack.c.bf16 %v1384, %v1384
      %v1426 = vpack.c.bf16 %v1385, %v1385
      %v1427 = vpack.c.bf16 %v1386, %v1386
      %v1428 = vpack.c.bf16 %v1387, %v1387
      %v1429 = vpack.c.bf16 %v1388, %v1388
      %v1430 = vpack.c.bf16 %v1389, %v1389
      %v1431 = vpack.c.bf16 %v1390, %v1390
      %v1432 = vpack.c.bf16 %v1391, %v1391
      %v1433 = vld [vmem:[%s422] sm:$0xf]
      %v1434 = vld [vmem:[%s422 + $0x4] sm:$0xf]
      %v1435 = vld [vmem:[%s422 + $0x8] sm:$0xf]
      %v1436 = vld [vmem:[%s422 + $0xc] sm:$0xf]
      %v1437 = vld [vmem:[%s422 + $0x10] sm:$0xf]
      %v1438 = vld [vmem:[%s422 + $0x14] sm:$0xf]
      %v1439 = vld [vmem:[%s422 + $0x18] sm:$0xf]
      %v1440 = vld [vmem:[%s422 + $0x1c] sm:$0xf]
      %v1441 = vld [vmem:[%s422 + $0x20] sm:$0xf]
      %v1442 = vld [vmem:[%s422 + $0x24] sm:$0xf]
      %v1443 = vld [vmem:[%s422 + $0x28] sm:$0xf]
      %v1444 = vld [vmem:[%s422 + $0x2c] sm:$0xf]
      %v1445 = vld [vmem:[%s422 + $0x30] sm:$0xf]
      %v1446 = vld [vmem:[%s422 + $0x34] sm:$0xf]
      %v1447 = vld [vmem:[%s422 + $0x38] sm:$0xf]
      %v1448 = vld [vmem:[%s422 + $0x3c] sm:$0xf]
      %v1449 = vld [vmem:[%s422 + $0x40] sm:$0xf]
      %v1450 = vld [vmem:[%s422 + $0x44] sm:$0xf]
      %v1451 = vld [vmem:[%s422 + $0x48] sm:$0xf]
      %v1452 = vld [vmem:[%s422 + $0x4c] sm:$0xf]
      %v1453 = vld [vmem:[%s422 + $0x50] sm:$0xf]
      %v1454 = vld [vmem:[%s422 + $0x54] sm:$0xf]
      %v1455 = vld [vmem:[%s422 + $0x58] sm:$0xf]
      %v1456 = vld [vmem:[%s422 + $0x5c] sm:$0xf]
      %v1457 = vld [vmem:[%s422 + $0x60] sm:$0xf]
      %v1458 = vld [vmem:[%s422 + $0x64] sm:$0xf]
      %v1459 = vld [vmem:[%s422 + $0x68] sm:$0xf]
      %v1460 = vld [vmem:[%s422 + $0x6c] sm:$0xf]
      %v1461 = vld [vmem:[%s422 + $0x70] sm:$0xf]
      %v1462 = vld [vmem:[%s422 + $0x74] sm:$0xf]
      %v1463 = vld [vmem:[%s422 + $0x78] sm:$0xf]
      %v1464 = vld [vmem:[%s422 + $0x7c] sm:$0xf]
      %v1465 = vld [vmem:[%s422 + $0x80] sm:$0xf]
      %v1466 = vld [vmem:[%s422 + $0x84] sm:$0xf]
      %v1467 = vld [vmem:[%s422 + $0x88] sm:$0xf]
      %v1468 = vld [vmem:[%s422 + $0x8c] sm:$0xf]
      %v1469 = vld [vmem:[%s422 + $0x90] sm:$0xf]
      %v1470 = vld [vmem:[%s422 + $0x94] sm:$0xf]
      %v1471 = vld [vmem:[%s422 + $0x98] sm:$0xf]
      %v1472 = vld [vmem:[%s422 + $0x9c] sm:$0xf]
      %v1473 = vld [vmem:[%s422 + $0xa0] sm:$0xf]
      %v1474 = vunpack.c.l.bf16 %v1433
      %v1475 = vunpack.c.l.bf16 %v1434
      %v1476 = vunpack.c.l.bf16 %v1435
      %v1477 = vunpack.c.l.bf16 %v1436
      %v1478 = vunpack.c.l.bf16 %v1437
      %v1479 = vunpack.c.l.bf16 %v1438
      %v1480 = vunpack.c.l.bf16 %v1439
      %v1481 = vunpack.c.l.bf16 %v1440
      %v1482 = vunpack.c.l.bf16 %v1441
      %v1483 = vunpack.c.l.bf16 %v1442
      %v1484 = vunpack.c.l.bf16 %v1443
      %v1485 = vunpack.c.l.bf16 %v1444
      %v1486 = vunpack.c.l.bf16 %v1445
      %v1487 = vunpack.c.l.bf16 %v1446
      %v1488 = vunpack.c.l.bf16 %v1447
      %v1489 = vunpack.c.l.bf16 %v1448
      %v1490 = vunpack.c.l.bf16 %v1449
      %v1491 = vunpack.c.l.bf16 %v1450
      %v1492 = vunpack.c.l.bf16 %v1451
      %v1493 = vunpack.c.l.bf16 %v1452
      %v1494 = vunpack.c.l.bf16 %v1453
      %v1495 = vunpack.c.l.bf16 %v1454
      %v1496 = vunpack.c.l.bf16 %v1455
      %v1497 = vunpack.c.l.bf16 %v1456
      %v1498 = vunpack.c.l.bf16 %v1457
      %v1499 = vunpack.c.l.bf16 %v1458
      %v1500 = vunpack.c.l.bf16 %v1459
      %v1501 = vunpack.c.l.bf16 %v1460
      %v1502 = vunpack.c.l.bf16 %v1461
      %v1503 = vunpack.c.l.bf16 %v1462
      %v1504 = vunpack.c.l.bf16 %v1463
      %v1505 = vunpack.c.l.bf16 %v1464
      %v1506 = vunpack.c.l.bf16 %v1465
      %v1507 = vunpack.c.l.bf16 %v1466
      %v1508 = vunpack.c.l.bf16 %v1467
      %v1509 = vunpack.c.l.bf16 %v1468
      %v1510 = vunpack.c.l.bf16 %v1469
      %v1511 = vunpack.c.l.bf16 %v1470
      %v1512 = vunpack.c.l.bf16 %v1471
      %v1513 = vunpack.c.l.bf16 %v1472
      %v1514 = vunpack.c.l.bf16 %v1473
      %v1515 = vld [vmem:[%s6 + $0x4] sm:$0x1]
      %v1516 = vperm.slane %v1515, 0
      %v1517 = vmul.f32 %v1474, %v1516
      %v1518 = vmul.f32 %v1475, %v1516
      %v1519 = vmul.f32 %v1476, %v1516
      %v1520 = vmul.f32 %v1477, %v1516
      %v1521 = vmul.f32 %v1478, %v1516
      %v1522 = vmul.f32 %v1479, %v1516
      %v1523 = vmul.f32 %v1480, %v1516
      %v1524 = vmul.f32 %v1481, %v1516
      %v1525 = vmul.f32 %v1482, %v1516
      %v1526 = vmul.f32 %v1483, %v1516
      %v1527 = vmul.f32 %v1484, %v1516
      %v1528 = vmul.f32 %v1485, %v1516
      %v1529 = vmul.f32 %v1486, %v1516
      %v1530 = vmul.f32 %v1487, %v1516
      %v1531 = vmul.f32 %v1488, %v1516
      %v1532 = vmul.f32 %v1489, %v1516
      %v1533 = vmul.f32 %v1490, %v1516
      %v1534 = vmul.f32 %v1491, %v1516
      %v1535 = vmul.f32 %v1492, %v1516
      %v1536 = vmul.f32 %v1493, %v1516
      %v1537 = vmul.f32 %v1494, %v1516
      %v1538 = vmul.f32 %v1495, %v1516
      %v1539 = vmul.f32 %v1496, %v1516
      %v1540 = vmul.f32 %v1497, %v1516
      %v1541 = vmul.f32 %v1498, %v1516
      %v1542 = vmul.f32 %v1499, %v1516
      %v1543 = vmul.f32 %v1500, %v1516
      %v1544 = vmul.f32 %v1501, %v1516
      %v1545 = vmul.f32 %v1502, %v1516
      %v1546 = vmul.f32 %v1503, %v1516
      %v1547 = vmul.f32 %v1504, %v1516
      %v1548 = vmul.f32 %v1505, %v1516
      %v1549 = vmul.f32 %v1506, %v1516
      %v1550 = vmul.f32 %v1507, %v1516
      %v1551 = vmul.f32 %v1508, %v1516
      %v1552 = vmul.f32 %v1509, %v1516
      %v1553 = vmul.f32 %v1510, %v1516
      %v1554 = vmul.f32 %v1511, %v1516
      %v1555 = vmul.f32 %v1512, %v1516
      %v1556 = vmul.f32 %v1513, %v1516
      %v1557 = vmul.f32 %v1514, %v1516
      %v1558 = vld [vmem:[%s7 + $0x4] sm:$0x1]
      %v1559 = vperm.slane %v1558, 0
      %v1560 = vadd.f32 %v1517, %v1559
      %v1561 = vadd.f32 %v1518, %v1559
      %v1562 = vadd.f32 %v1519, %v1559
      %v1563 = vadd.f32 %v1520, %v1559
      %v1564 = vadd.f32 %v1521, %v1559
      %v1565 = vadd.f32 %v1522, %v1559
      %v1566 = vadd.f32 %v1523, %v1559
      %v1567 = vadd.f32 %v1524, %v1559
      %v1568 = vadd.f32 %v1525, %v1559
      %v1569 = vadd.f32 %v1526, %v1559
      %v1570 = vadd.f32 %v1527, %v1559
      %v1571 = vadd.f32 %v1528, %v1559
      %v1572 = vadd.f32 %v1529, %v1559
      %v1573 = vadd.f32 %v1530, %v1559
      %v1574 = vadd.f32 %v1531, %v1559
      %v1575 = vadd.f32 %v1532, %v1559
      %v1576 = vadd.f32 %v1533, %v1559
      %v1577 = vadd.f32 %v1534, %v1559
      %v1578 = vadd.f32 %v1535, %v1559
      %v1579 = vadd.f32 %v1536, %v1559
      %v1580 = vadd.f32 %v1537, %v1559
      %v1581 = vadd.f32 %v1538, %v1559
      %v1582 = vadd.f32 %v1539, %v1559
      %v1583 = vadd.f32 %v1540, %v1559
      %v1584 = vadd.f32 %v1541, %v1559
      %v1585 = vadd.f32 %v1542, %v1559
      %v1586 = vadd.f32 %v1543, %v1559
      %v1587 = vadd.f32 %v1544, %v1559
      %v1588 = vadd.f32 %v1545, %v1559
      %v1589 = vadd.f32 %v1546, %v1559
      %v1590 = vadd.f32 %v1547, %v1559
      %v1591 = vadd.f32 %v1548, %v1559
      %v1592 = vadd.f32 %v1549, %v1559
      %v1593 = vadd.f32 %v1550, %v1559
      %v1594 = vadd.f32 %v1551, %v1559
      %v1595 = vadd.f32 %v1552, %v1559
      %v1596 = vadd.f32 %v1553, %v1559
      %v1597 = vadd.f32 %v1554, %v1559
      %v1598 = vadd.f32 %v1555, %v1559
      %v1599 = vadd.f32 %v1556, %v1559
      %v1600 = vadd.f32 %v1557, %v1559
      %v1601 = vmax.f32 %v1560, 0.0
      %v1602 = vmax.f32 %v1561, 0.0
      %v1603 = vmax.f32 %v1562, 0.0
      %v1604 = vmax.f32 %v1563, 0.0
      %v1605 = vmax.f32 %v1564, 0.0
      %v1606 = vmax.f32 %v1565, 0.0
      %v1607 = vmax.f32 %v1566, 0.0
      %v1608 = vmax.f32 %v1567, 0.0
      %v1609 = vmax.f32 %v1568, 0.0
      %v1610 = vmax.f32 %v1569, 0.0
      %v1611 = vmax.f32 %v1570, 0.0
      %v1612 = vmax.f32 %v1571, 0.0
      %v1613 = vmax.f32 %v1572, 0.0
      %v1614 = vmax.f32 %v1573, 0.0
      %v1615 = vmax.f32 %v1574, 0.0
      %v1616 = vmax.f32 %v1575, 0.0
      %v1617 = vmax.f32 %v1576, 0.0
      %v1618 = vmax.f32 %v1577, 0.0
      %v1619 = vmax.f32 %v1578, 0.0
      %v1620 = vmax.f32 %v1579, 0.0
      %v1621 = vmax.f32 %v1580, 0.0
      %v1622 = vmax.f32 %v1581, 0.0
      %v1623 = vmax.f32 %v1582, 0.0
      %v1624 = vmax.f32 %v1583, 0.0
      %v1625 = vmax.f32 %v1584, 0.0
      %v1626 = vmax.f32 %v1585, 0.0
      %v1627 = vmax.f32 %v1586, 0.0
      %v1628 = vmax.f32 %v1587, 0.0
      %v1629 = vmax.f32 %v1588, 0.0
      %v1630 = vmax.f32 %v1589, 0.0
      %v1631 = vmax.f32 %v1590, 0.0
      %v1632 = vmax.f32 %v1591, 0.0
      %v1633 = vmax.f32 %v1592, 0.0
      %v1634 = vmax.f32 %v1593, 0.0
      %v1635 = vmax.f32 %v1594, 0.0
      %v1636 = vmax.f32 %v1595, 0.0
      %v1637 = vmax.f32 %v1596, 0.0
      %v1638 = vmax.f32 %v1597, 0.0
      %v1639 = vmax.f32 %v1598, 0.0
      %v1640 = vmax.f32 %v1599, 0.0
      %v1641 = vmax.f32 %v1600, 0.0
      %v1642 = vpack.c.bf16 %v1601, %v1601
      %v1643 = vpack.c.bf16 %v1602, %v1602
      %v1644 = vpack.c.bf16 %v1603, %v1603
      %v1645 = vpack.c.bf16 %v1604, %v1604
      %v1646 = vpack.c.bf16 %v1605, %v1605
      %v1647 = vpack.c.bf16 %v1606, %v1606
      %v1648 = vpack.c.bf16 %v1607, %v1607
      %v1649 = vpack.c.bf16 %v1608, %v1608
      %v1650 = vpack.c.bf16 %v1609, %v1609
      %v1651 = vpack.c.bf16 %v1610, %v1610
      %v1652 = vpack.c.bf16 %v1611, %v1611
      %v1653 = vpack.c.bf16 %v1612, %v1612
      %v1654 = vpack.c.bf16 %v1613, %v1613
      %v1655 = vpack.c.bf16 %v1614, %v1614
      %v1656 = vpack.c.bf16 %v1615, %v1615
      %v1657 = vpack.c.bf16 %v1616, %v1616
      %v1658 = vpack.c.bf16 %v1617, %v1617
      %v1659 = vpack.c.bf16 %v1618, %v1618
      %v1660 = vpack.c.bf16 %v1619, %v1619
      %v1661 = vpack.c.bf16 %v1620, %v1620
      %v1662 = vpack.c.bf16 %v1621, %v1621
      %v1663 = vpack.c.bf16 %v1622, %v1622
      %v1664 = vpack.c.bf16 %v1623, %v1623
      %v1665 = vpack.c.bf16 %v1624, %v1624
      %v1666 = vpack.c.bf16 %v1625, %v1625
      %v1667 = vpack.c.bf16 %v1626, %v1626
      %v1668 = vpack.c.bf16 %v1627, %v1627
      %v1669 = vpack.c.bf16 %v1628, %v1628
      %v1670 = vpack.c.bf16 %v1629, %v1629
      %v1671 = vpack.c.bf16 %v1630, %v1630
      %v1672 = vpack.c.bf16 %v1631, %v1631
      %v1673 = vpack.c.bf16 %v1632, %v1632
      %v1674 = vpack.c.bf16 %v1633, %v1633
      %v1675 = vpack.c.bf16 %v1634, %v1634
      %v1676 = vpack.c.bf16 %v1635, %v1635
      %v1677 = vpack.c.bf16 %v1636, %v1636
      %v1678 = vpack.c.bf16 %v1637, %v1637
      %v1679 = vpack.c.bf16 %v1638, %v1638
      %v1680 = vpack.c.bf16 %v1639, %v1639
      %v1681 = vpack.c.bf16 %v1640, %v1640
      %v1682 = vpack.c.bf16 %v1641, %v1641
      %v1724 = vunpack.c.l.b16 %v642
      %v1725 = vunpack.c.l.b16 %v643
      %v1726 = vunpack.c.l.b16 %v644
      %v1727 = vunpack.c.l.b16 %v645
      %v1728 = vunpack.c.l.b16 %v646
      %v1729 = vunpack.c.l.b16 %v647
      %v1730 = vunpack.c.l.b16 %v648
      %v1731 = vunpack.c.l.b16 %v649
      %v1732 = vunpack.c.l.b16 %v650
      %v1733 = vunpack.c.l.b16 %v651
      %v1734 = vunpack.c.l.b16 %v652
      %v1735 = vunpack.c.l.b16 %v653
      %v1736 = vunpack.c.l.b16 %v654
      %v1737 = vunpack.c.l.b16 %v655
      %v1738 = vunpack.c.l.b16 %v656
      %v1739 = vunpack.c.l.b16 %v657
      %v1740 = vunpack.c.l.b16 %v658
      %v1741 = vunpack.c.l.b16 %v659
      %v1742 = vunpack.c.l.b16 %v660
      %v1743 = vunpack.c.l.b16 %v661
      %v1744 = vunpack.c.l.b16 %v662
      %v1745 = vunpack.c.l.b16 %v663
      %v1746 = vunpack.c.l.b16 %v664
      %v1747 = vunpack.c.l.b16 %v665
      %v1748 = vunpack.c.l.b16 %v666
      %v1749 = vunpack.c.l.b16 %v667
      %v1750 = vunpack.c.l.b16 %v668
      %v1751 = vunpack.c.l.b16 %v669
      %v1752 = vunpack.c.l.b16 %v670
      %v1753 = vunpack.c.l.b16 %v671
      %v1754 = vunpack.c.l.b16 %v672
      %v1755 = vunpack.c.l.b16 %v673
      %v1756 = vunpack.c.l.b16 %v674
      %v1757 = vunpack.c.l.b16 %v675
      %v1758 = vunpack.c.l.b16 %v676
      %v1759 = vunpack.c.l.b16 %v677
      %v1760 = vunpack.c.l.b16 %v678
      %v1761 = vunpack.c.l.b16 %v679
      %v1762 = vunpack.c.l.b16 %v680
      %v1763 = vunpack.c.l.b16 %v681
      %v1764 = vunpack.c.l.b16 %v682
      %v1765 = vpack.c.b16 %v1725, %v1724
      %v1766 = vpack.c.b16 %v1727, %v1726
      %v1767 = vpack.c.b16 %v1729, %v1728
      %v1768 = vpack.c.b16 %v1731, %v1730
      %v1769 = vpack.c.b16 %v1733, %v1732
      %v1770 = vpack.c.b16 %v1735, %v1734
      %v1771 = vpack.c.b16 %v1737, %v1736
      %v1772 = vpack.c.b16 %v1739, %v1738
      %v1773 = vpack.c.b16 %v1741, %v1740
      %v1774 = vpack.c.b16 %v1743, %v1742
      %v1775 = vpack.c.b16 %v1745, %v1744
      %v1776 = vpack.c.b16 %v1747, %v1746
      %v1777 = vpack.c.b16 %v1749, %v1748
      %v1778 = vpack.c.b16 %v1751, %v1750
      %v1779 = vpack.c.b16 %v1753, %v1752
      %v1780 = vpack.c.b16 %v1755, %v1754
      %v1781 = vpack.c.b16 %v1757, %v1756
      %v1782 = vpack.c.b16 %v1759, %v1758
      %v1783 = vpack.c.b16 %v1761, %v1760
      %v1784 = vpack.c.b16 %v1763, %v1762
      %v1785 = vpack.c.b16 %v1764, %v1764
      %v1848 = vunpack.c.l.b16 %v892
      %v1849 = vunpack.c.l.b16 %v893
      %v1850 = vunpack.c.l.b16 %v894
      %v1851 = vunpack.c.l.b16 %v895
      %v1852 = vunpack.c.l.b16 %v896
      %v1853 = vunpack.c.l.b16 %v897
      %v1854 = vunpack.c.l.b16 %v898
      %v1855 = vunpack.c.l.b16 %v899
      %v1856 = vunpack.c.l.b16 %v900
      %v1857 = vunpack.c.l.b16 %v901
      %v1858 = vunpack.c.l.b16 %v902
      %v1859 = vunpack.c.l.b16 %v903
      %v1860 = vunpack.c.l.b16 %v904
      %v1861 = vunpack.c.l.b16 %v905
      %v1862 = vunpack.c.l.b16 %v906
      %v1863 = vunpack.c.l.b16 %v907
      %v1864 = vunpack.c.l.b16 %v908
      %v1865 = vunpack.c.l.b16 %v909
      %v1866 = vunpack.c.l.b16 %v910
      %v1867 = vunpack.c.l.b16 %v911
      %v1868 = vunpack.c.l.b16 %v912
      %v1869 = vunpack.c.l.b16 %v913
      %v1870 = vunpack.c.l.b16 %v914
      %v1871 = vunpack.c.l.b16 %v915
      %v1872 = vunpack.c.l.b16 %v916
      %v1873 = vunpack.c.l.b16 %v917
      %v1874 = vunpack.c.l.b16 %v918
      %v1875 = vunpack.c.l.b16 %v919
      %v1876 = vunpack.c.l.b16 %v920
      %v1877 = vunpack.c.l.b16 %v921
      %v1878 = vunpack.c.l.b16 %v922
      %v1879 = vunpack.c.l.b16 %v923
      %v1880 = vunpack.c.l.b16 %v924
      %v1881 = vunpack.c.l.b16 %v925
      %v1882 = vunpack.c.l.b16 %v926
      %v1883 = vunpack.c.l.b16 %v927
      %v1884 = vunpack.c.l.b16 %v928
      %v1885 = vunpack.c.l.b16 %v929
      %v1886 = vunpack.c.l.b16 %v930
      %v1887 = vunpack.c.l.b16 %v931
      %v1888 = vunpack.c.l.b16 %v932
      %v1889 = vpack.c.b16 %v1849, %v1848
      %v1890 = vpack.c.b16 %v1851, %v1850
      %v1891 = vpack.c.b16 %v1853, %v1852
      %v1892 = vpack.c.b16 %v1855, %v1854
      %v1893 = vpack.c.b16 %v1857, %v1856
      %v1894 = vpack.c.b16 %v1859, %v1858
      %v1895 = vpack.c.b16 %v1861, %v1860
      %v1896 = vpack.c.b16 %v1863, %v1862
      %v1897 = vpack.c.b16 %v1865, %v1864
      %v1898 = vpack.c.b16 %v1867, %v1866
      %v1899 = vpack.c.b16 %v1869, %v1868
      %v1900 = vpack.c.b16 %v1871, %v1870
      %v1901 = vpack.c.b16 %v1873, %v1872
      %v1902 = vpack.c.b16 %v1875, %v1874
      %v1903 = vpack.c.b16 %v1877, %v1876
      %v1904 = vpack.c.b16 %v1879, %v1878
      %v1905 = vpack.c.b16 %v1881, %v1880
      %v1906 = vpack.c.b16 %v1883, %v1882
      %v1907 = vpack.c.b16 %v1885, %v1884
      %v1908 = vpack.c.b16 %v1887, %v1886
      %v1909 = vpack.c.b16 %v1888, %v1888
      %v1972 = vunpack.c.l.b16 %v1142
      %v1973 = vunpack.c.l.b16 %v1143
      %v1974 = vunpack.c.l.b16 %v1144
      %v1975 = vunpack.c.l.b16 %v1145
      %v1976 = vunpack.c.l.b16 %v1146
      %v1977 = vunpack.c.l.b16 %v1147
      %v1978 = vunpack.c.l.b16 %v1148
      %v1979 = vunpack.c.l.b16 %v1149
      %v1980 = vunpack.c.l.b16 %v1150
      %v1981 = vunpack.c.l.b16 %v1151
      %v1982 = vunpack.c.l.b16 %v1152
      %v1983 = vunpack.c.l.b16 %v1153
      %v1984 = vunpack.c.l.b16 %v1154
      %v1985 = vunpack.c.l.b16 %v1155
      %v1986 = vunpack.c.l.b16 %v1156
      %v1987 = vunpack.c.l.b16 %v1157
      %v1988 = vunpack.c.l.b16 %v1158
      %v1989 = vunpack.c.l.b16 %v1159
      %v1990 = vunpack.c.l.b16 %v1160
      %v1991 = vunpack.c.l.b16 %v1161
      %v1992 = vunpack.c.l.b16 %v1162
      %v1993 = vunpack.c.l.b16 %v1163
      %v1994 = vunpack.c.l.b16 %v1164
      %v1995 = vunpack.c.l.b16 %v1165
      %v1996 = vunpack.c.l.b16 %v1166
      %v1997 = vunpack.c.l.b16 %v1167
      %v1998 = vunpack.c.l.b16 %v1168
      %v1999 = vunpack.c.l.b16 %v1169
      %v2000 = vunpack.c.l.b16 %v1170
      %v2001 = vunpack.c.l.b16 %v1171
      %v2002 = vunpack.c.l.b16 %v1172
      %v2003 = vunpack.c.l.b16 %v1173
      %v2004 = vunpack.c.l.b16 %v1174
      %v2005 = vunpack.c.l.b16 %v1175
      %v2006 = vunpack.c.l.b16 %v1176
      %v2007 = vunpack.c.l.b16 %v1177
      %v2008 = vunpack.c.l.b16 %v1178
      %v2009 = vunpack.c.l.b16 %v1179
      %v2010 = vunpack.c.l.b16 %v1180
      %v2011 = vunpack.c.l.b16 %v1181
      %v2012 = vunpack.c.l.b16 %v1182
      %v2013 = vpack.c.b16 %v1973, %v1972
      %v2014 = vpack.c.b16 %v1975, %v1974
      %v2015 = vpack.c.b16 %v1977, %v1976
      %v2016 = vpack.c.b16 %v1979, %v1978
      %v2017 = vpack.c.b16 %v1981, %v1980
      %v2018 = vpack.c.b16 %v1983, %v1982
      %v2019 = vpack.c.b16 %v1985, %v1984
      %v2020 = vpack.c.b16 %v1987, %v1986
      %v2021 = vpack.c.b16 %v1989, %v1988
      %v2022 = vpack.c.b16 %v1991, %v1990
      %v2023 = vpack.c.b16 %v1993, %v1992
      %v2024 = vpack.c.b16 %v1995, %v1994
      %v2025 = vpack.c.b16 %v1997, %v1996
      %v2026 = vpack.c.b16 %v1999, %v1998
      %v2027 = vpack.c.b16 %v2001, %v2000
      %v2028 = vpack.c.b16 %v2003, %v2002
      %v2029 = vpack.c.b16 %v2005, %v2004
      %v2030 = vpack.c.b16 %v2007, %v2006
      %v2031 = vpack.c.b16 %v2009, %v2008
      %v2032 = vpack.c.b16 %v2011, %v2010
      %v2033 = vpack.c.b16 %v2012, %v2012
      %v2096 = vunpack.c.l.b16 %v1392
      %v2097 = vunpack.c.l.b16 %v1393
      %v2098 = vunpack.c.l.b16 %v1394
      %v2099 = vunpack.c.l.b16 %v1395
      %v2100 = vunpack.c.l.b16 %v1396
      %v2101 = vunpack.c.l.b16 %v1397
      %v2102 = vunpack.c.l.b16 %v1398
      %v2103 = vunpack.c.l.b16 %v1399
      %v2104 = vunpack.c.l.b16 %v1400
      %v2105 = vunpack.c.l.b16 %v1401
      %v2106 = vunpack.c.l.b16 %v1402
      %v2107 = vunpack.c.l.b16 %v1403
      %v2108 = vunpack.c.l.b16 %v1404
      %v2109 = vunpack.c.l.b16 %v1405
      %v2110 = vunpack.c.l.b16 %v1406
      %v2111 = vunpack.c.l.b16 %v1407
      %v2112 = vunpack.c.l.b16 %v1408
      %v2113 = vunpack.c.l.b16 %v1409
      %v2114 = vunpack.c.l.b16 %v1410
      %v2115 = vunpack.c.l.b16 %v1411
      %v2116 = vunpack.c.l.b16 %v1412
      %v2117 = vunpack.c.l.b16 %v1413
      %v2118 = vunpack.c.l.b16 %v1414
      %v2119 = vunpack.c.l.b16 %v1415
      %v2120 = vunpack.c.l.b16 %v1416
      %v2121 = vunpack.c.l.b16 %v1417
      %v2122 = vunpack.c.l.b16 %v1418
      %v2123 = vunpack.c.l.b16 %v1419
      %v2124 = vunpack.c.l.b16 %v1420
      %v2125 = vunpack.c.l.b16 %v1421
      %v2126 = vunpack.c.l.b16 %v1422
      %v2127 = vunpack.c.l.b16 %v1423
      %v2128 = vunpack.c.l.b16 %v1424
      %v2129 = vunpack.c.l.b16 %v1425
      %v2130 = vunpack.c.l.b16 %v1426
      %v2131 = vunpack.c.l.b16 %v1427
      %v2132 = vunpack.c.l.b16 %v1428
      %v2133 = vunpack.c.l.b16 %v1429
      %v2134 = vunpack.c.l.b16 %v1430
      %v2135 = vunpack.c.l.b16 %v1431
      %v2136 = vunpack.c.l.b16 %v1432
      %v2137 = vpack.c.b16 %v2097, %v2096
      %v2138 = vpack.c.b16 %v2099, %v2098
      %v2139 = vpack.c.b16 %v2101, %v2100
      %v2140 = vpack.c.b16 %v2103, %v2102
      %v2141 = vpack.c.b16 %v2105, %v2104
      %v2142 = vpack.c.b16 %v2107, %v2106
      %v2143 = vpack.c.b16 %v2109, %v2108
      %v2144 = vpack.c.b16 %v2111, %v2110
      %v2145 = vpack.c.b16 %v2113, %v2112
      %v2146 = vpack.c.b16 %v2115, %v2114
      %v2147 = vpack.c.b16 %v2117, %v2116
      %v2148 = vpack.c.b16 %v2119, %v2118
      %v2149 = vpack.c.b16 %v2121, %v2120
      %v2150 = vpack.c.b16 %v2123, %v2122
      %v2151 = vpack.c.b16 %v2125, %v2124
      %v2152 = vpack.c.b16 %v2127, %v2126
      %v2153 = vpack.c.b16 %v2129, %v2128
      %v2154 = vpack.c.b16 %v2131, %v2130
      %v2155 = vpack.c.b16 %v2133, %v2132
      %v2156 = vpack.c.b16 %v2135, %v2134
      %v2157 = vpack.c.b16 %v2136, %v2136
      %v2220 = vunpack.c.l.b16 %v1642
      %v2221 = vunpack.c.l.b16 %v1643
      %v2222 = vunpack.c.l.b16 %v1644
      %v2223 = vunpack.c.l.b16 %v1645
      %v2224 = vunpack.c.l.b16 %v1646
      %v2225 = vunpack.c.l.b16 %v1647
      %v2226 = vunpack.c.l.b16 %v1648
      %v2227 = vunpack.c.l.b16 %v1649
      %v2228 = vunpack.c.l.b16 %v1650
      %v2229 = vunpack.c.l.b16 %v1651
      %v2230 = vunpack.c.l.b16 %v1652
      %v2231 = vunpack.c.l.b16 %v1653
      %v2232 = vunpack.c.l.b16 %v1654
      %v2233 = vunpack.c.l.b16 %v1655
      %v2234 = vunpack.c.l.b16 %v1656
      %v2235 = vunpack.c.l.b16 %v1657
      %v2236 = vunpack.c.l.b16 %v1658
      %v2237 = vunpack.c.l.b16 %v1659
      %v2238 = vunpack.c.l.b16 %v1660
      %v2239 = vunpack.c.l.b16 %v1661
      %v2240 = vunpack.c.l.b16 %v1662
      %v2241 = vunpack.c.l.b16 %v1663
      %v2242 = vunpack.c.l.b16 %v1664
      %v2243 = vunpack.c.l.b16 %v1665
      %v2244 = vunpack.c.l.b16 %v1666
      %v2245 = vunpack.c.l.b16 %v1667
      %v2246 = vunpack.c.l.b16 %v1668
      %v2247 = vunpack.c.l.b16 %v1669
      %v2248 = vunpack.c.l.b16 %v1670
      %v2249 = vunpack.c.l.b16 %v1671
      %v2250 = vunpack.c.l.b16 %v1672
      %v2251 = vunpack.c.l.b16 %v1673
      %v2252 = vunpack.c.l.b16 %v1674
      %v2253 = vunpack.c.l.b16 %v1675
      %v2254 = vunpack.c.l.b16 %v1676
      %v2255 = vunpack.c.l.b16 %v1677
      %v2256 = vunpack.c.l.b16 %v1678
      %v2257 = vunpack.c.l.b16 %v1679
      %v2258 = vunpack.c.l.b16 %v1680
      %v2259 = vunpack.c.l.b16 %v1681
      %v2260 = vunpack.c.l.b16 %v1682
      %v2261 = vpack.c.b16 %v2221, %v2220
      %v2262 = vpack.c.b16 %v2223, %v2222
      %v2263 = vpack.c.b16 %v2225, %v2224
      %v2264 = vpack.c.b16 %v2227, %v2226
      %v2265 = vpack.c.b16 %v2229, %v2228
      %v2266 = vpack.c.b16 %v2231, %v2230
      %v2267 = vpack.c.b16 %v2233, %v2232
      %v2268 = vpack.c.b16 %v2235, %v2234
      %v2269 = vpack.c.b16 %v2237, %v2236
      %v2270 = vpack.c.b16 %v2239, %v2238
      %v2271 = vpack.c.b16 %v2241, %v2240
      %v2272 = vpack.c.b16 %v2243, %v2242
      %v2273 = vpack.c.b16 %v2245, %v2244
      %v2274 = vpack.c.b16 %v2247, %v2246
      %v2275 = vpack.c.b16 %v2249, %v2248
      %v2276 = vpack.c.b16 %v2251, %v2250
      %v2277 = vpack.c.b16 %v2253, %v2252
      %v2278 = vpack.c.b16 %v2255, %v2254
      %v2279 = vpack.c.b16 %v2257, %v2256
      %v2280 = vpack.c.b16 %v2259, %v2258
      %v2281 = vpack.c.b16 %v2260, %v2260
      %v2303 = vld [vmem:[%s427] sm:$0xf]
      %v2304 = vld [vmem:[%s427 + $0x4] sm:$0xf]
      %v2305 = vld [vmem:[%s427 + $0x8] sm:$0xf]
      %v2306 = vld [vmem:[%s427 + $0xc] sm:$0xf]
      %v2307 = vld [vmem:[%s427 + $0x10] sm:$0xf]
      %v2308 = vld [vmem:[%s427 + $0x14] sm:$0xf]
      %v2309 = vld [vmem:[%s427 + $0x18] sm:$0xf]
      %v2310 = vld [vmem:[%s427 + $0x1c] sm:$0xf]
      %v2311 = vld [vmem:[%s427 + $0x20] sm:$0xf]
      %v2312 = vld [vmem:[%s427 + $0x24] sm:$0xf]
      %v2313 = vld [vmem:[%s427 + $0x28] sm:$0xf]
      %v2314 = vld [vmem:[%s427 + $0x2c] sm:$0xf]
      %v2315 = vld [vmem:[%s427 + $0x30] sm:$0xf]
      %v2316 = vld [vmem:[%s427 + $0x34] sm:$0xf]
      %v2317 = vld [vmem:[%s427 + $0x38] sm:$0xf]
      %v2318 = vld [vmem:[%s427 + $0x3c] sm:$0xf]
      %v2319 = vld [vmem:[%s427 + $0x40] sm:$0xf]
      %v2320 = vld [vmem:[%s427 + $0x44] sm:$0xf]
      %v2321 = vld [vmem:[%s427 + $0x48] sm:$0xf]
      %v2322 = vld [vmem:[%s427 + $0x4c] sm:$0xf]
      %v2323 = vld [vmem:[%s427 + $0x50] sm:$0xf]
      %v2324 = vld [vmem:[%s427 + $0x54] sm:$0xf]
      %v2325 = vld [vmem:[%s427 + $0x58] sm:$0xf]
      %v2326 = vld [vmem:[%s427 + $0x5c] sm:$0xf]
      %v2327 = vld [vmem:[%s427 + $0x60] sm:$0xf]
      %v2328 = vld [vmem:[%s427 + $0x64] sm:$0xf]
      %v2329 = vld [vmem:[%s427 + $0x68] sm:$0xf]
      %v2330 = vld [vmem:[%s427 + $0x6c] sm:$0xf]
      %v2331 = vld [vmem:[%s427 + $0x70] sm:$0xf]
      %v2332 = vld [vmem:[%s427 + $0x74] sm:$0xf]
      %v2333 = vld [vmem:[%s427 + $0x78] sm:$0xf]
      %v2334 = vld [vmem:[%s427 + $0x7c] sm:$0xf]
      %v2335 = vld [vmem:[%s427 + $0x80] sm:$0xf]
      %v2336 = vld [vmem:[%s427 + $0x84] sm:$0xf]
      %v2337 = vld [vmem:[%s427 + $0x88] sm:$0xf]
      %v2338 = vld [vmem:[%s427 + $0x8c] sm:$0xf]
      %v2339 = vld [vmem:[%s427 + $0x90] sm:$0xf]
      %v2340 = vld [vmem:[%s427 + $0x94] sm:$0xf]
      %v2341 = vld [vmem:[%s427 + $0x98] sm:$0xf]
      %v2342 = vld [vmem:[%s427 + $0x9c] sm:$0xf]
      %v2343 = vld [vmem:[%s427 + $0xa0] sm:$0xf]
      %v2344 = vunpack.c.l.bf16 %v2303
      %v2345 = vunpack.c.l.bf16 %v2304
      %v2346 = vunpack.c.l.bf16 %v2305
      %v2347 = vunpack.c.l.bf16 %v2306
      %v2348 = vunpack.c.l.bf16 %v2307
      %v2349 = vunpack.c.l.bf16 %v2308
      %v2350 = vunpack.c.l.bf16 %v2309
      %v2351 = vunpack.c.l.bf16 %v2310
      %v2352 = vunpack.c.l.bf16 %v2311
      %v2353 = vunpack.c.l.bf16 %v2312
      %v2354 = vunpack.c.l.bf16 %v2313
      %v2355 = vunpack.c.l.bf16 %v2314
      %v2356 = vunpack.c.l.bf16 %v2315
      %v2357 = vunpack.c.l.bf16 %v2316
      %v2358 = vunpack.c.l.bf16 %v2317
      %v2359 = vunpack.c.l.bf16 %v2318
      %v2360 = vunpack.c.l.bf16 %v2319
      %v2361 = vunpack.c.l.bf16 %v2320
      %v2362 = vunpack.c.l.bf16 %v2321
      %v2363 = vunpack.c.l.bf16 %v2322
      %v2364 = vunpack.c.l.bf16 %v2323
      %v2365 = vunpack.c.l.bf16 %v2324
      %v2366 = vunpack.c.l.bf16 %v2325
      %v2367 = vunpack.c.l.bf16 %v2326
      %v2368 = vunpack.c.l.bf16 %v2327
      %v2369 = vunpack.c.l.bf16 %v2328
      %v2370 = vunpack.c.l.bf16 %v2329
      %v2371 = vunpack.c.l.bf16 %v2330
      %v2372 = vunpack.c.l.bf16 %v2331
      %v2373 = vunpack.c.l.bf16 %v2332
      %v2374 = vunpack.c.l.bf16 %v2333
      %v2375 = vunpack.c.l.bf16 %v2334
      %v2376 = vunpack.c.l.bf16 %v2335
      %v2377 = vunpack.c.l.bf16 %v2336
      %v2378 = vunpack.c.l.bf16 %v2337
      %v2379 = vunpack.c.l.bf16 %v2338
      %v2380 = vunpack.c.l.bf16 %v2339
      %v2381 = vunpack.c.l.bf16 %v2340
      %v2382 = vunpack.c.l.bf16 %v2341
      %v2383 = vunpack.c.l.bf16 %v2342
      %v2384 = vunpack.c.l.bf16 %v2343
      %v2385 = vld [vmem:[%s8] sm:$0xf]
      %v2386 = vld [vmem:[%s8 + $0x4] sm:$0xf]
      %v2387 = vld [vmem:[%s8 + $0x8] sm:$0xf]
      %v2388 = vld [vmem:[%s8 + $0xc] sm:$0xf]
      %v2389 = vld [vmem:[%s8 + $0x10] sm:$0xf]
      %v2390 = vld [vmem:[%s8 + $0x14] sm:$0xf]
      %v2391 = vld [vmem:[%s8 + $0x18] sm:$0xf]
      %v2392 = vld [vmem:[%s8 + $0x1c] sm:$0xf]
      %v2393 = vld [vmem:[%s8 + $0x20] sm:$0xf]
      %v2394 = vld [vmem:[%s8 + $0x24] sm:$0xf]
      %v2395 = vld [vmem:[%s8 + $0x28] sm:$0xf]
      %v2396 = vld [vmem:[%s8 + $0x2c] sm:$0xf]
      %v2397 = vld [vmem:[%s8 + $0x30] sm:$0xf]
      %v2398 = vld [vmem:[%s8 + $0x34] sm:$0xf]
      %v2399 = vld [vmem:[%s8 + $0x38] sm:$0xf]
      %v2400 = vld [vmem:[%s8 + $0x3c] sm:$0xf]
      %v2401 = vld [vmem:[%s8 + $0x40] sm:$0xf]
      %v2402 = vld [vmem:[%s8 + $0x44] sm:$0xf]
      %v2403 = vld [vmem:[%s8 + $0x48] sm:$0xf]
      %v2404 = vld [vmem:[%s8 + $0x4c] sm:$0xf]
      %v2405 = vld [vmem:[%s8 + $0x50] sm:$0xf]
      %v2406 = vld [vmem:[%s8 + $0x54] sm:$0xf]
      %v2407 = vld [vmem:[%s8 + $0x58] sm:$0xf]
      %v2408 = vld [vmem:[%s8 + $0x5c] sm:$0xf]
      %v2409 = vld [vmem:[%s8 + $0x60] sm:$0xf]
      %v2410 = vld [vmem:[%s8 + $0x64] sm:$0xf]
      %v2411 = vld [vmem:[%s8 + $0x68] sm:$0xf]
      %v2412 = vld [vmem:[%s8 + $0x6c] sm:$0xf]
      %v2413 = vld [vmem:[%s8 + $0x70] sm:$0xf]
      %v2414 = vld [vmem:[%s8 + $0x74] sm:$0xf]
      %v2415 = vld [vmem:[%s8 + $0x78] sm:$0xf]
      %v2416 = vld [vmem:[%s8 + $0x7c] sm:$0xf]
      %v2417 = vld [vmem:[%s8 + $0x80] sm:$0xf]
      %v2418 = vld [vmem:[%s8 + $0x84] sm:$0xf]
      %v2419 = vld [vmem:[%s8 + $0x88] sm:$0xf]
      %v2420 = vld [vmem:[%s8 + $0x8c] sm:$0xf]
      %v2421 = vld [vmem:[%s8 + $0x90] sm:$0xf]
      %v2422 = vld [vmem:[%s8 + $0x94] sm:$0xf]
      %v2423 = vld [vmem:[%s8 + $0x98] sm:$0xf]
      %v2424 = vld [vmem:[%s8 + $0x9c] sm:$0xf]
      %v2425 = vld [vmem:[%s8 + $0xa0] sm:$0xf]
      %v2426 = vld [vmem:[%s8 + $0xa4] sm:$0xf]
      %v2427 = vld [vmem:[%s8 + $0xa8] sm:$0xf]
      %v2428 = vld [vmem:[%s8 + $0xac] sm:$0xf]
      %v2429 = vld [vmem:[%s8 + $0xb0] sm:$0xf]
      %v2430 = vld [vmem:[%s8 + $0xb4] sm:$0xf]
      %v2431 = vld [vmem:[%s8 + $0xb8] sm:$0xf]
      %v2432 = vld [vmem:[%s8 + $0xbc] sm:$0xf]
      %v2433 = vld [vmem:[%s8 + $0xc0] sm:$0xf]
      %v2434 = vld [vmem:[%s8 + $0xc4] sm:$0xf]
      %v2435 = vld [vmem:[%s8 + $0xc8] sm:$0xf]
      %v2436 = vld [vmem:[%s8 + $0xcc] sm:$0xf]
      %v2437 = vld [vmem:[%s8 + $0xd0] sm:$0xf]
      %v2438 = vld [vmem:[%s8 + $0xd4] sm:$0xf]
      %v2439 = vld [vmem:[%s8 + $0xd8] sm:$0xf]
      %v2440 = vld [vmem:[%s8 + $0xdc] sm:$0xf]
      %v2441 = vld [vmem:[%s8 + $0xe0] sm:$0xf]
      %v2442 = vld [vmem:[%s8 + $0xe4] sm:$0xf]
      %v2443 = vld [vmem:[%s8 + $0xe8] sm:$0xf]
      %v2444 = vld [vmem:[%s8 + $0xec] sm:$0xf]
      %v2445 = vld [vmem:[%s8 + $0xf0] sm:$0xf]
      %v2446 = vld [vmem:[%s8 + $0xf4] sm:$0xf]
      %v2447 = vld [vmem:[%s8 + $0xf8] sm:$0xf]
      %v2448 = vld [vmem:[%s8 + $0xfc] sm:$0xf]
      %v2449 = vld [vmem:[%s8 + $0x100] sm:$0xf]
      %v2450 = vld [vmem:[%s8 + $0x104] sm:$0xf]
      %v2451 = vld [vmem:[%s8 + $0x108] sm:$0xf]
      %v2452 = vld [vmem:[%s8 + $0x10c] sm:$0xf]
      %v2453 = vld [vmem:[%s8 + $0x110] sm:$0xf]
      %v2454 = vld [vmem:[%s8 + $0x114] sm:$0xf]
      %v2455 = vld [vmem:[%s8 + $0x118] sm:$0xf]
      %v2456 = vld [vmem:[%s8 + $0x11c] sm:$0xf]
      %v2457 = vld [vmem:[%s8 + $0x120] sm:$0xf]
      %v2458 = vld [vmem:[%s8 + $0x124] sm:$0xf]
      %v2459 = vld [vmem:[%s8 + $0x128] sm:$0xf]
      %v2460 = vld [vmem:[%s8 + $0x12c] sm:$0xf]
      %v2461 = vld [vmem:[%s8 + $0x130] sm:$0xf]
      %v2462 = vld [vmem:[%s8 + $0x134] sm:$0xf]
      %v2463 = vld [vmem:[%s8 + $0x138] sm:$0xf]
      %v2464 = vld [vmem:[%s8 + $0x13c] sm:$0xf]
      %v2545 = vunpack.c.l.b16 %v2385
      %v2546 = vunpack.c.l.b16 %v2386
      %v2547 = vunpack.c.l.b16 %v2387
      %v2548 = vunpack.c.l.b16 %v2388
      %v2549 = vunpack.c.l.b16 %v2389
      %v2550 = vunpack.c.l.b16 %v2390
      %v2551 = vunpack.c.l.b16 %v2391
      %v2552 = vunpack.c.l.b16 %v2392
      %v2553 = vunpack.c.l.b16 %v2393
      %v2554 = vunpack.c.l.b16 %v2394
      %v2555 = vunpack.c.l.b16 %v2395
      %v2556 = vunpack.c.l.b16 %v2396
      %v2557 = vunpack.c.l.b16 %v2397
      %v2558 = vunpack.c.l.b16 %v2398
      %v2559 = vunpack.c.l.b16 %v2399
      %v2560 = vunpack.c.l.b16 %v2400
      %v2561 = vunpack.c.l.b16 %v2401
      %v2562 = vunpack.c.l.b16 %v2402
      %v2563 = vunpack.c.l.b16 %v2403
      %v2564 = vunpack.c.l.b16 %v2404
      %v2565 = vunpack.c.l.b16 %v2405
      %v2566 = vunpack.c.l.b16 %v2406
      %v2567 = vunpack.c.l.b16 %v2407
      %v2568 = vunpack.c.l.b16 %v2408
      %v2569 = vunpack.c.l.b16 %v2409
      %v2570 = vunpack.c.l.b16 %v2410
      %v2571 = vunpack.c.l.b16 %v2411
      %v2572 = vunpack.c.l.b16 %v2412
      %v2573 = vunpack.c.l.b16 %v2413
      %v2574 = vunpack.c.l.b16 %v2414
      %v2575 = vunpack.c.l.b16 %v2415
      %v2576 = vunpack.c.l.b16 %v2416
      %v2577 = vunpack.c.l.b16 %v2417
      %v2578 = vunpack.c.l.b16 %v2418
      %v2579 = vunpack.c.l.b16 %v2419
      %v2580 = vunpack.c.l.b16 %v2420
      %v2581 = vunpack.c.l.b16 %v2421
      %v2582 = vunpack.c.l.b16 %v2422
      %v2583 = vunpack.c.l.b16 %v2423
      %v2584 = vunpack.c.l.b16 %v2424
      %v2585 = vunpack.c.l.b16 %v2425
      %v2586 = vunpack.c.l.b16 %v2426
      %v2587 = vunpack.c.l.b16 %v2427
      %v2588 = vunpack.c.l.b16 %v2428
      %v2589 = vunpack.c.l.b16 %v2429
      %v2590 = vunpack.c.l.b16 %v2430
      %v2591 = vunpack.c.l.b16 %v2431
      %v2592 = vunpack.c.l.b16 %v2432
      %v2593 = vunpack.c.l.b16 %v2433
      %v2594 = vunpack.c.l.b16 %v2434
      %v2595 = vunpack.c.l.b16 %v2435
      %v2596 = vunpack.c.l.b16 %v2436
      %v2597 = vunpack.c.l.b16 %v2437
      %v2598 = vunpack.c.l.b16 %v2438
      %v2599 = vunpack.c.l.b16 %v2439
      %v2600 = vunpack.c.l.b16 %v2440
      %v2601 = vunpack.c.l.b16 %v2441
      %v2602 = vunpack.c.l.b16 %v2442
      %v2603 = vunpack.c.l.b16 %v2443
      %v2604 = vunpack.c.l.b16 %v2444
      %v2605 = vunpack.c.l.b16 %v2445
      %v2606 = vunpack.c.l.b16 %v2446
      %v2607 = vunpack.c.l.b16 %v2447
      %v2608 = vunpack.c.l.b16 %v2448
      %v2609 = vunpack.c.l.b16 %v2449
      %v2610 = vunpack.c.l.b16 %v2450
      %v2611 = vunpack.c.l.b16 %v2451
      %v2612 = vunpack.c.l.b16 %v2452
      %v2613 = vunpack.c.l.b16 %v2453
      %v2614 = vunpack.c.l.b16 %v2454
      %v2615 = vunpack.c.l.b16 %v2455
      %v2616 = vunpack.c.l.b16 %v2456
      %v2617 = vunpack.c.l.b16 %v2457
      %v2618 = vunpack.c.l.b16 %v2458
      %v2619 = vunpack.c.l.b16 %v2459
      %v2620 = vunpack.c.l.b16 %v2460
      %v2621 = vunpack.c.l.b16 %v2461
      %v2622 = vunpack.c.l.b16 %v2462
      %v2623 = vunpack.c.l.b16 %v2463
      %v2624 = vunpack.c.l.b16 %v2464
      %v2625 = vpack.c.b16 %v2546, %v2545
      %v2626 = vpack.c.b16 %v2548, %v2547
      %v2627 = vpack.c.b16 %v2550, %v2549
      %v2628 = vpack.c.b16 %v2552, %v2551
      %v2629 = vpack.c.b16 %v2554, %v2553
      %v2630 = vpack.c.b16 %v2556, %v2555
      %v2631 = vpack.c.b16 %v2558, %v2557
      %v2632 = vpack.c.b16 %v2560, %v2559
      %v2633 = vpack.c.b16 %v2562, %v2561
      %v2634 = vpack.c.b16 %v2564, %v2563
      %v2635 = vpack.c.b16 %v2566, %v2565
      %v2636 = vpack.c.b16 %v2568, %v2567
      %v2637 = vpack.c.b16 %v2570, %v2569
      %v2638 = vpack.c.b16 %v2572, %v2571
      %v2639 = vpack.c.b16 %v2574, %v2573
      %v2640 = vpack.c.b16 %v2576, %v2575
      %v2641 = vpack.c.b16 %v2578, %v2577
      %v2642 = vpack.c.b16 %v2580, %v2579
      %v2643 = vpack.c.b16 %v2582, %v2581
      %v2644 = vpack.c.b16 %v2584, %v2583
      %v2645 = vpack.c.b16 %v2586, %v2585
      %v2646 = vpack.c.b16 %v2588, %v2587
      %v2647 = vpack.c.b16 %v2590, %v2589
      %v2648 = vpack.c.b16 %v2592, %v2591
      %v2649 = vpack.c.b16 %v2594, %v2593
      %v2650 = vpack.c.b16 %v2596, %v2595
      %v2651 = vpack.c.b16 %v2598, %v2597
      %v2652 = vpack.c.b16 %v2600, %v2599
      %v2653 = vpack.c.b16 %v2602, %v2601
      %v2654 = vpack.c.b16 %v2604, %v2603
      %v2655 = vpack.c.b16 %v2606, %v2605
      %v2656 = vpack.c.b16 %v2608, %v2607
      %v2657 = vpack.c.b16 %v2610, %v2609
      %v2658 = vpack.c.b16 %v2612, %v2611
      %v2659 = vpack.c.b16 %v2614, %v2613
      %v2660 = vpack.c.b16 %v2616, %v2615
      %v2661 = vpack.c.b16 %v2618, %v2617
      %v2662 = vpack.c.b16 %v2620, %v2619
      %v2663 = vpack.c.b16 %v2622, %v2621
      %v2664 = vpack.c.b16 %v2624, %v2623
      %2705 = vmatpush.bf16.msra.mxu0 %v2632
      %2706 = vmatpush.bf16.msra.mxu0 %v2631
      %2707 = vmatpush.bf16.msra.mxu0 %v2630
      %2708 = vmatpush.bf16.msra.mxu0 %v2629
      %2709 = vmatpush.bf16.msra.mxu0 %v2628
      %2710 = vmatpush.bf16.msra.mxu0 %v2627
      %2711 = vmatpush.bf16.msra.mxu0 %v2626
      %2712 = vmatpush.bf16.msra.mxu0 %v2625
      %2713 = vmatmul.bf16.gmra.mxu0 %v1765
      %v2714 = vpop.f32.mrf.mxu0
      %v2715 = vadd.f32 0.0, %v2714
      %v2716 = vpop.f32.mrf.mxu0
      %v2717 = vadd.f32 0.0, %v2716
      %2718 = vmatmul.bf16.gmra.mxu0 %v1766
      %v2719 = vpop.f32.mrf.mxu0
      %v2720 = vadd.f32 0.0, %v2719
      %v2721 = vpop.f32.mrf.mxu0
      %v2722 = vadd.f32 0.0, %v2721
      %2723 = vmatmul.bf16.gmra.mxu0 %v1767
      %v2724 = vpop.f32.mrf.mxu0
      %v2725 = vadd.f32 0.0, %v2724
      %v2726 = vpop.f32.mrf.mxu0
      %v2727 = vadd.f32 0.0, %v2726
      %2728 = vmatmul.bf16.gmra.mxu0 %v1768
      %v2729 = vpop.f32.mrf.mxu0
      %v2730 = vadd.f32 0.0, %v2729
      %v2731 = vpop.f32.mrf.mxu0
      %v2732 = vadd.f32 0.0, %v2731
      %2733 = vmatmul.bf16.gmra.mxu0 %v1769
      %v2734 = vpop.f32.mrf.mxu0
      %v2735 = vadd.f32 0.0, %v2734
      %v2736 = vpop.f32.mrf.mxu0
      %v2737 = vadd.f32 0.0, %v2736
      %2738 = vmatmul.bf16.gmra.mxu0 %v1770
      %v2739 = vpop.f32.mrf.mxu0
      %v2740 = vadd.f32 0.0, %v2739
      %v2741 = vpop.f32.mrf.mxu0
      %v2742 = vadd.f32 0.0, %v2741
      %2743 = vmatmul.bf16.gmra.mxu0 %v1771
      %v2744 = vpop.f32.mrf.mxu0
      %v2745 = vadd.f32 0.0, %v2744
      %v2746 = vpop.f32.mrf.mxu0
      %v2747 = vadd.f32 0.0, %v2746
      %2748 = vmatmul.bf16.gmra.mxu0 %v1772
      %v2749 = vpop.f32.mrf.mxu0
      %v2750 = vadd.f32 0.0, %v2749
      %v2751 = vpop.f32.mrf.mxu0
      %v2752 = vadd.f32 0.0, %v2751
      %2753 = vmatmul.bf16.gmra.mxu0 %v1773
      %v2754 = vpop.f32.mrf.mxu0
      %v2755 = vadd.f32 0.0, %v2754
      %v2756 = vpop.f32.mrf.mxu0
      %v2757 = vadd.f32 0.0, %v2756
      %2758 = vmatmul.bf16.gmra.mxu0 %v1774
      %v2759 = vpop.f32.mrf.mxu0
      %v2760 = vadd.f32 0.0, %v2759
      %v2761 = vpop.f32.mrf.mxu0
      %v2762 = vadd.f32 0.0, %v2761
      %2763 = vmatmul.bf16.gmra.mxu0 %v1775
      %v2764 = vpop.f32.mrf.mxu0
      %v2765 = vadd.f32 0.0, %v2764
      %v2766 = vpop.f32.mrf.mxu0
      %v2767 = vadd.f32 0.0, %v2766
      %2768 = vmatmul.bf16.gmra.mxu0 %v1776
      %v2769 = vpop.f32.mrf.mxu0
      %v2770 = vadd.f32 0.0, %v2769
      %v2771 = vpop.f32.mrf.mxu0
      %v2772 = vadd.f32 0.0, %v2771
      %2773 = vmatmul.bf16.gmra.mxu0 %v1777
      %v2774 = vpop.f32.mrf.mxu0
      %v2775 = vadd.f32 0.0, %v2774
      %v2776 = vpop.f32.mrf.mxu0
      %v2777 = vadd.f32 0.0, %v2776
      %2778 = vmatmul.bf16.gmra.mxu0 %v1778
      %v2779 = vpop.f32.mrf.mxu0
      %v2780 = vadd.f32 0.0, %v2779
      %v2781 = vpop.f32.mrf.mxu0
      %v2782 = vadd.f32 0.0, %v2781
      %2783 = vmatmul.bf16.gmra.mxu0 %v1779
      %v2784 = vpop.f32.mrf.mxu0
      %v2785 = vadd.f32 0.0, %v2784
      %v2786 = vpop.f32.mrf.mxu0
      %v2787 = vadd.f32 0.0, %v2786
      %2788 = vmatmul.bf16.gmra.mxu0 %v1780
      %v2789 = vpop.f32.mrf.mxu0
      %v2790 = vadd.f32 0.0, %v2789
      %v2791 = vpop.f32.mrf.mxu0
      %v2792 = vadd.f32 0.0, %v2791
      %2793 = vmatmul.bf16.gmra.mxu0 %v1781
      %v2794 = vpop.f32.mrf.mxu0
      %v2795 = vadd.f32 0.0, %v2794
      %v2796 = vpop.f32.mrf.mxu0
      %v2797 = vadd.f32 0.0, %v2796
      %2798 = vmatmul.bf16.gmra.mxu0 %v1782
      %v2799 = vpop.f32.mrf.mxu0
      %v2800 = vadd.f32 0.0, %v2799
      %v2801 = vpop.f32.mrf.mxu0
      %v2802 = vadd.f32 0.0, %v2801
      %2803 = vmatmul.bf16.gmra.mxu0 %v1783
      %v2804 = vpop.f32.mrf.mxu0
      %v2805 = vadd.f32 0.0, %v2804
      %v2806 = vpop.f32.mrf.mxu0
      %v2807 = vadd.f32 0.0, %v2806
      %2808 = vmatmul.bf16.gmra.mxu0 %v1784
      %v2809 = vpop.f32.mrf.mxu0
      %v2810 = vadd.f32 0.0, %v2809
      %v2811 = vpop.f32.mrf.mxu0
      %v2812 = vadd.f32 0.0, %v2811
      %2813 = vmatmul.bf16.gmra.mxu0 %v1785
      %v2814 = vpop.f32.mrf.mxu0
      %v2815 = vadd.f32 0.0, %v2814
      %v2816 = vpop.f32.mrf.mxu0
      %2817 = vdwg.mxu0
      %2818 = vmatpush.bf16.msra.mxu0 %v2640
      %2819 = vmatpush.bf16.msra.mxu0 %v2639
      %2820 = vmatpush.bf16.msra.mxu0 %v2638
      %2821 = vmatpush.bf16.msra.mxu0 %v2637
      %2822 = vmatpush.bf16.msra.mxu0 %v2636
      %2823 = vmatpush.bf16.msra.mxu0 %v2635
      %2824 = vmatpush.bf16.msra.mxu0 %v2634
      %2825 = vmatpush.bf16.msra.mxu0 %v2633
      %2826 = vmatmul.bf16.gmra.mxu0 %v1889
      %v2827 = vpop.f32.mrf.mxu0
      %v2828 = vadd.f32 %v2715, %v2827
      %v2829 = vpop.f32.mrf.mxu0
      %v2830 = vadd.f32 %v2717, %v2829
      %2831 = vmatmul.bf16.gmra.mxu0 %v1890
      %v2832 = vpop.f32.mrf.mxu0
      %v2833 = vadd.f32 %v2720, %v2832
      %v2834 = vpop.f32.mrf.mxu0
      %v2835 = vadd.f32 %v2722, %v2834
      %2836 = vmatmul.bf16.gmra.mxu0 %v1891
      %v2837 = vpop.f32.mrf.mxu0
      %v2838 = vadd.f32 %v2725, %v2837
      %v2839 = vpop.f32.mrf.mxu0
      %v2840 = vadd.f32 %v2727, %v2839
      %2841 = vmatmul.bf16.gmra.mxu0 %v1892
      %v2842 = vpop.f32.mrf.mxu0
      %v2843 = vadd.f32 %v2730, %v2842
      %v2844 = vpop.f32.mrf.mxu0
      %v2845 = vadd.f32 %v2732, %v2844
      %2846 = vmatmul.bf16.gmra.mxu0 %v1893
      %v2847 = vpop.f32.mrf.mxu0
      %v2848 = vadd.f32 %v2735, %v2847
      %v2849 = vpop.f32.mrf.mxu0
      %v2850 = vadd.f32 %v2737, %v2849
      %2851 = vmatmul.bf16.gmra.mxu0 %v1894
      %v2852 = vpop.f32.mrf.mxu0
      %v2853 = vadd.f32 %v2740, %v2852
      %v2854 = vpop.f32.mrf.mxu0
      %v2855 = vadd.f32 %v2742, %v2854
      %2856 = vmatmul.bf16.gmra.mxu0 %v1895
      %v2857 = vpop.f32.mrf.mxu0
      %v2858 = vadd.f32 %v2745, %v2857
      %v2859 = vpop.f32.mrf.mxu0
      %v2860 = vadd.f32 %v2747, %v2859
      %2861 = vmatmul.bf16.gmra.mxu0 %v1896
      %v2862 = vpop.f32.mrf.mxu0
      %v2863 = vadd.f32 %v2750, %v2862
      %v2864 = vpop.f32.mrf.mxu0
      %v2865 = vadd.f32 %v2752, %v2864
      %2866 = vmatmul.bf16.gmra.mxu0 %v1897
      %v2867 = vpop.f32.mrf.mxu0
      %v2868 = vadd.f32 %v2755, %v2867
      %v2869 = vpop.f32.mrf.mxu0
      %v2870 = vadd.f32 %v2757, %v2869
      %2871 = vmatmul.bf16.gmra.mxu0 %v1898
      %v2872 = vpop.f32.mrf.mxu0
      %v2873 = vadd.f32 %v2760, %v2872
      %v2874 = vpop.f32.mrf.mxu0
      %v2875 = vadd.f32 %v2762, %v2874
      %2876 = vmatmul.bf16.gmra.mxu0 %v1899
      %v2877 = vpop.f32.mrf.mxu0
      %v2878 = vadd.f32 %v2765, %v2877
      %v2879 = vpop.f32.mrf.mxu0
      %v2880 = vadd.f32 %v2767, %v2879
      %2881 = vmatmul.bf16.gmra.mxu0 %v1900
      %v2882 = vpop.f32.mrf.mxu0
      %v2883 = vadd.f32 %v2770, %v2882
      %v2884 = vpop.f32.mrf.mxu0
      %v2885 = vadd.f32 %v2772, %v2884
      %2886 = vmatmul.bf16.gmra.mxu0 %v1901
      %v2887 = vpop.f32.mrf.mxu0
      %v2888 = vadd.f32 %v2775, %v2887
      %v2889 = vpop.f32.mrf.mxu0
      %v2890 = vadd.f32 %v2777, %v2889
      %2891 = vmatmul.bf16.gmra.mxu0 %v1902
      %v2892 = vpop.f32.mrf.mxu0
      %v2893 = vadd.f32 %v2780, %v2892
      %v2894 = vpop.f32.mrf.mxu0
      %v2895 = vadd.f32 %v2782, %v2894
      %2896 = vmatmul.bf16.gmra.mxu0 %v1903
      %v2897 = vpop.f32.mrf.mxu0
      %v2898 = vadd.f32 %v2785, %v2897
      %v2899 = vpop.f32.mrf.mxu0
      %v2900 = vadd.f32 %v2787, %v2899
      %2901 = vmatmul.bf16.gmra.mxu0 %v1904
      %v2902 = vpop.f32.mrf.mxu0
      %v2903 = vadd.f32 %v2790, %v2902
      %v2904 = vpop.f32.mrf.mxu0
      %v2905 = vadd.f32 %v2792, %v2904
      %2906 = vmatmul.bf16.gmra.mxu0 %v1905
      %v2907 = vpop.f32.mrf.mxu0
      %v2908 = vadd.f32 %v2795, %v2907
      %v2909 = vpop.f32.mrf.mxu0
      %v2910 = vadd.f32 %v2797, %v2909
      %2911 = vmatmul.bf16.gmra.mxu0 %v1906
      %v2912 = vpop.f32.mrf.mxu0
      %v2913 = vadd.f32 %v2800, %v2912
      %v2914 = vpop.f32.mrf.mxu0
      %v2915 = vadd.f32 %v2802, %v2914
      %2916 = vmatmul.bf16.gmra.mxu0 %v1907
      %v2917 = vpop.f32.mrf.mxu0
      %v2918 = vadd.f32 %v2805, %v2917
      %v2919 = vpop.f32.mrf.mxu0
      %v2920 = vadd.f32 %v2807, %v2919
      %2921 = vmatmul.bf16.gmra.mxu0 %v1908
      %v2922 = vpop.f32.mrf.mxu0
      %v2923 = vadd.f32 %v2810, %v2922
      %v2924 = vpop.f32.mrf.mxu0
      %v2925 = vadd.f32 %v2812, %v2924
      %2926 = vmatmul.bf16.gmra.mxu0 %v1909
      %v2927 = vpop.f32.mrf.mxu0
      %v2928 = vadd.f32 %v2815, %v2927
      %v2929 = vpop.f32.mrf.mxu0
      %2930 = vdwg.mxu0
      %2931 = vmatpush.bf16.msra.mxu0 %v2648
      %2932 = vmatpush.bf16.msra.mxu0 %v2647
      %2933 = vmatpush.bf16.msra.mxu0 %v2646
      %2934 = vmatpush.bf16.msra.mxu0 %v2645
      %2935 = vmatpush.bf16.msra.mxu0 %v2644
      %2936 = vmatpush.bf16.msra.mxu0 %v2643
      %2937 = vmatpush.bf16.msra.mxu0 %v2642
      %2938 = vmatpush.bf16.msra.mxu0 %v2641
      %2939 = vmatmul.bf16.gmra.mxu0 %v2013
      %v2940 = vpop.f32.mrf.mxu0
      %v2941 = vadd.f32 %v2828, %v2940
      %v2942 = vpop.f32.mrf.mxu0
      %v2943 = vadd.f32 %v2830, %v2942
      %2944 = vmatmul.bf16.gmra.mxu0 %v2014
      %v2945 = vpop.f32.mrf.mxu0
      %v2946 = vadd.f32 %v2833, %v2945
      %v2947 = vpop.f32.mrf.mxu0
      %v2948 = vadd.f32 %v2835, %v2947
      %2949 = vmatmul.bf16.gmra.mxu0 %v2015
      %v2950 = vpop.f32.mrf.mxu0
      %v2951 = vadd.f32 %v2838, %v2950
      %v2952 = vpop.f32.mrf.mxu0
      %v2953 = vadd.f32 %v2840, %v2952
      %2954 = vmatmul.bf16.gmra.mxu0 %v2016
      %v2955 = vpop.f32.mrf.mxu0
      %v2956 = vadd.f32 %v2843, %v2955
      %v2957 = vpop.f32.mrf.mxu0
      %v2958 = vadd.f32 %v2845, %v2957
      %2959 = vmatmul.bf16.gmra.mxu0 %v2017
      %v2960 = vpop.f32.mrf.mxu0
      %v2961 = vadd.f32 %v2848, %v2960
      %v2962 = vpop.f32.mrf.mxu0
      %v2963 = vadd.f32 %v2850, %v2962
      %2964 = vmatmul.bf16.gmra.mxu0 %v2018
      %v2965 = vpop.f32.mrf.mxu0
      %v2966 = vadd.f32 %v2853, %v2965
      %v2967 = vpop.f32.mrf.mxu0
      %v2968 = vadd.f32 %v2855, %v2967
      %2969 = vmatmul.bf16.gmra.mxu0 %v2019
      %v2970 = vpop.f32.mrf.mxu0
      %v2971 = vadd.f32 %v2858, %v2970
      %v2972 = vpop.f32.mrf.mxu0
      %v2973 = vadd.f32 %v2860, %v2972
      %2974 = vmatmul.bf16.gmra.mxu0 %v2020
      %v2975 = vpop.f32.mrf.mxu0
      %v2976 = vadd.f32 %v2863, %v2975
      %v2977 = vpop.f32.mrf.mxu0
      %v2978 = vadd.f32 %v2865, %v2977
      %2979 = vmatmul.bf16.gmra.mxu0 %v2021
      %v2980 = vpop.f32.mrf.mxu0
      %v2981 = vadd.f32 %v2868, %v2980
      %v2982 = vpop.f32.mrf.mxu0
      %v2983 = vadd.f32 %v2870, %v2982
      %2984 = vmatmul.bf16.gmra.mxu0 %v2022
      %v2985 = vpop.f32.mrf.mxu0
      %v2986 = vadd.f32 %v2873, %v2985
      %v2987 = vpop.f32.mrf.mxu0
      %v2988 = vadd.f32 %v2875, %v2987
      %2989 = vmatmul.bf16.gmra.mxu0 %v2023
      %v2990 = vpop.f32.mrf.mxu0
      %v2991 = vadd.f32 %v2878, %v2990
      %v2992 = vpop.f32.mrf.mxu0
      %v2993 = vadd.f32 %v2880, %v2992
      %2994 = vmatmul.bf16.gmra.mxu0 %v2024
      %v2995 = vpop.f32.mrf.mxu0
      %v2996 = vadd.f32 %v2883, %v2995
      %v2997 = vpop.f32.mrf.mxu0
      %v2998 = vadd.f32 %v2885, %v2997
      %2999 = vmatmul.bf16.gmra.mxu0 %v2025
      %v3000 = vpop.f32.mrf.mxu0
      %v3001 = vadd.f32 %v2888, %v3000
      %v3002 = vpop.f32.mrf.mxu0
      %v3003 = vadd.f32 %v2890, %v3002
      %3004 = vmatmul.bf16.gmra.mxu0 %v2026
      %v3005 = vpop.f32.mrf.mxu0
      %v3006 = vadd.f32 %v2893, %v3005
      %v3007 = vpop.f32.mrf.mxu0
      %v3008 = vadd.f32 %v2895, %v3007
      %3009 = vmatmul.bf16.gmra.mxu0 %v2027
      %v3010 = vpop.f32.mrf.mxu0
      %v3011 = vadd.f32 %v2898, %v3010
      %v3012 = vpop.f32.mrf.mxu0
      %v3013 = vadd.f32 %v2900, %v3012
      %3014 = vmatmul.bf16.gmra.mxu0 %v2028
      %v3015 = vpop.f32.mrf.mxu0
      %v3016 = vadd.f32 %v2903, %v3015
      %v3017 = vpop.f32.mrf.mxu0
      %v3018 = vadd.f32 %v2905, %v3017
      %3019 = vmatmul.bf16.gmra.mxu0 %v2029
      %v3020 = vpop.f32.mrf.mxu0
      %v3021 = vadd.f32 %v2908, %v3020
      %v3022 = vpop.f32.mrf.mxu0
      %v3023 = vadd.f32 %v2910, %v3022
      %3024 = vmatmul.bf16.gmra.mxu0 %v2030
      %v3025 = vpop.f32.mrf.mxu0
      %v3026 = vadd.f32 %v2913, %v3025
      %v3027 = vpop.f32.mrf.mxu0
      %v3028 = vadd.f32 %v2915, %v3027
      %3029 = vmatmul.bf16.gmra.mxu0 %v2031
      %v3030 = vpop.f32.mrf.mxu0
      %v3031 = vadd.f32 %v2918, %v3030
      %v3032 = vpop.f32.mrf.mxu0
      %v3033 = vadd.f32 %v2920, %v3032
      %3034 = vmatmul.bf16.gmra.mxu0 %v2032
      %v3035 = vpop.f32.mrf.mxu0
      %v3036 = vadd.f32 %v2923, %v3035
      %v3037 = vpop.f32.mrf.mxu0
      %v3038 = vadd.f32 %v2925, %v3037
      %3039 = vmatmul.bf16.gmra.mxu0 %v2033
      %v3040 = vpop.f32.mrf.mxu0
      %v3041 = vadd.f32 %v2928, %v3040
      %v3042 = vpop.f32.mrf.mxu0
      %3043 = vdwg.mxu0
      %3044 = vmatpush.bf16.msra.mxu0 %v2656
      %3045 = vmatpush.bf16.msra.mxu0 %v2655
      %3046 = vmatpush.bf16.msra.mxu0 %v2654
      %3047 = vmatpush.bf16.msra.mxu0 %v2653
      %3048 = vmatpush.bf16.msra.mxu0 %v2652
      %3049 = vmatpush.bf16.msra.mxu0 %v2651
      %3050 = vmatpush.bf16.msra.mxu0 %v2650
      %3051 = vmatpush.bf16.msra.mxu0 %v2649
      %3052 = vmatmul.bf16.gmra.mxu0 %v2137
      %v3053 = vpop.f32.mrf.mxu0
      %v3054 = vadd.f32 %v2941, %v3053
      %v3055 = vpop.f32.mrf.mxu0
      %v3056 = vadd.f32 %v2943, %v3055
      %3057 = vmatmul.bf16.gmra.mxu0 %v2138
      %v3058 = vpop.f32.mrf.mxu0
      %v3059 = vadd.f32 %v2946, %v3058
      %v3060 = vpop.f32.mrf.mxu0
      %v3061 = vadd.f32 %v2948, %v3060
      %3062 = vmatmul.bf16.gmra.mxu0 %v2139
      %v3063 = vpop.f32.mrf.mxu0
      %v3064 = vadd.f32 %v2951, %v3063
      %v3065 = vpop.f32.mrf.mxu0
      %v3066 = vadd.f32 %v2953, %v3065
      %3067 = vmatmul.bf16.gmra.mxu0 %v2140
      %v3068 = vpop.f32.mrf.mxu0
      %v3069 = vadd.f32 %v2956, %v3068
      %v3070 = vpop.f32.mrf.mxu0
      %v3071 = vadd.f32 %v2958, %v3070
      %3072 = vmatmul.bf16.gmra.mxu0 %v2141
      %v3073 = vpop.f32.mrf.mxu0
      %v3074 = vadd.f32 %v2961, %v3073
      %v3075 = vpop.f32.mrf.mxu0
      %v3076 = vadd.f32 %v2963, %v3075
      %3077 = vmatmul.bf16.gmra.mxu0 %v2142
      %v3078 = vpop.f32.mrf.mxu0
      %v3079 = vadd.f32 %v2966, %v3078
      %v3080 = vpop.f32.mrf.mxu0
      %v3081 = vadd.f32 %v2968, %v3080
      %3082 = vmatmul.bf16.gmra.mxu0 %v2143
      %v3083 = vpop.f32.mrf.mxu0
      %v3084 = vadd.f32 %v2971, %v3083
      %v3085 = vpop.f32.mrf.mxu0
      %v3086 = vadd.f32 %v2973, %v3085
      %3087 = vmatmul.bf16.gmra.mxu0 %v2144
      %v3088 = vpop.f32.mrf.mxu0
      %v3089 = vadd.f32 %v2976, %v3088
      %v3090 = vpop.f32.mrf.mxu0
      %v3091 = vadd.f32 %v2978, %v3090
      %3092 = vmatmul.bf16.gmra.mxu0 %v2145
      %v3093 = vpop.f32.mrf.mxu0
      %v3094 = vadd.f32 %v2981, %v3093
      %v3095 = vpop.f32.mrf.mxu0
      %v3096 = vadd.f32 %v2983, %v3095
      %3097 = vmatmul.bf16.gmra.mxu0 %v2146
      %v3098 = vpop.f32.mrf.mxu0
      %v3099 = vadd.f32 %v2986, %v3098
      %v3100 = vpop.f32.mrf.mxu0
      %v3101 = vadd.f32 %v2988, %v3100
      %3102 = vmatmul.bf16.gmra.mxu0 %v2147
      %v3103 = vpop.f32.mrf.mxu0
      %v3104 = vadd.f32 %v2991, %v3103
      %v3105 = vpop.f32.mrf.mxu0
      %v3106 = vadd.f32 %v2993, %v3105
      %3107 = vmatmul.bf16.gmra.mxu0 %v2148
      %v3108 = vpop.f32.mrf.mxu0
      %v3109 = vadd.f32 %v2996, %v3108
      %v3110 = vpop.f32.mrf.mxu0
      %v3111 = vadd.f32 %v2998, %v3110
      %3112 = vmatmul.bf16.gmra.mxu0 %v2149
      %v3113 = vpop.f32.mrf.mxu0
      %v3114 = vadd.f32 %v3001, %v3113
      %v3115 = vpop.f32.mrf.mxu0
      %v3116 = vadd.f32 %v3003, %v3115
      %3117 = vmatmul.bf16.gmra.mxu0 %v2150
      %v3118 = vpop.f32.mrf.mxu0
      %v3119 = vadd.f32 %v3006, %v3118
      %v3120 = vpop.f32.mrf.mxu0
      %v3121 = vadd.f32 %v3008, %v3120
      %3122 = vmatmul.bf16.gmra.mxu0 %v2151
      %v3123 = vpop.f32.mrf.mxu0
      %v3124 = vadd.f32 %v3011, %v3123
      %v3125 = vpop.f32.mrf.mxu0
      %v3126 = vadd.f32 %v3013, %v3125
      %3127 = vmatmul.bf16.gmra.mxu0 %v2152
      %v3128 = vpop.f32.mrf.mxu0
      %v3129 = vadd.f32 %v3016, %v3128
      %v3130 = vpop.f32.mrf.mxu0
      %v3131 = vadd.f32 %v3018, %v3130
      %3132 = vmatmul.bf16.gmra.mxu0 %v2153
      %v3133 = vpop.f32.mrf.mxu0
      %v3134 = vadd.f32 %v3021, %v3133
      %v3135 = vpop.f32.mrf.mxu0
      %v3136 = vadd.f32 %v3023, %v3135
      %3137 = vmatmul.bf16.gmra.mxu0 %v2154
      %v3138 = vpop.f32.mrf.mxu0
      %v3139 = vadd.f32 %v3026, %v3138
      %v3140 = vpop.f32.mrf.mxu0
      %v3141 = vadd.f32 %v3028, %v3140
      %3142 = vmatmul.bf16.gmra.mxu0 %v2155
      %v3143 = vpop.f32.mrf.mxu0
      %v3144 = vadd.f32 %v3031, %v3143
      %v3145 = vpop.f32.mrf.mxu0
      %v3146 = vadd.f32 %v3033, %v3145
      %3147 = vmatmul.bf16.gmra.mxu0 %v2156
      %v3148 = vpop.f32.mrf.mxu0
      %v3149 = vadd.f32 %v3036, %v3148
      %v3150 = vpop.f32.mrf.mxu0
      %v3151 = vadd.f32 %v3038, %v3150
      %3152 = vmatmul.bf16.gmra.mxu0 %v2157
      %v3153 = vpop.f32.mrf.mxu0
      %v3154 = vadd.f32 %v3041, %v3153
      %v3155 = vpop.f32.mrf.mxu0
      %3156 = vdwg.mxu0
      %3157 = vmatpush.bf16.msra.mxu0 %v2664
      %3158 = vmatpush.bf16.msra.mxu0 %v2663
      %3159 = vmatpush.bf16.msra.mxu0 %v2662
      %3160 = vmatpush.bf16.msra.mxu0 %v2661
      %3161 = vmatpush.bf16.msra.mxu0 %v2660
      %3162 = vmatpush.bf16.msra.mxu0 %v2659
      %3163 = vmatpush.bf16.msra.mxu0 %v2658
      %3164 = vmatpush.bf16.msra.mxu0 %v2657
      %3165 = vmatmul.bf16.gmra.mxu0 %v2261
      %v3166 = vpop.f32.mrf.mxu0
      %v3167 = vadd.f32 %v3054, %v3166
      %v3168 = vpop.f32.mrf.mxu0
      %v3169 = vadd.f32 %v3056, %v3168
      %3170 = vmatmul.bf16.gmra.mxu0 %v2262
      %v3171 = vpop.f32.mrf.mxu0
      %v3172 = vadd.f32 %v3059, %v3171
      %v3173 = vpop.f32.mrf.mxu0
      %v3174 = vadd.f32 %v3061, %v3173
      %3175 = vmatmul.bf16.gmra.mxu0 %v2263
      %v3176 = vpop.f32.mrf.mxu0
      %v3177 = vadd.f32 %v3064, %v3176
      %v3178 = vpop.f32.mrf.mxu0
      %v3179 = vadd.f32 %v3066, %v3178
      %3180 = vmatmul.bf16.gmra.mxu0 %v2264
      %v3181 = vpop.f32.mrf.mxu0
      %v3182 = vadd.f32 %v3069, %v3181
      %v3183 = vpop.f32.mrf.mxu0
      %v3184 = vadd.f32 %v3071, %v3183
      %3185 = vmatmul.bf16.gmra.mxu0 %v2265
      %v3186 = vpop.f32.mrf.mxu0
      %v3187 = vadd.f32 %v3074, %v3186
      %v3188 = vpop.f32.mrf.mxu0
      %v3189 = vadd.f32 %v3076, %v3188
      %3190 = vmatmul.bf16.gmra.mxu0 %v2266
      %v3191 = vpop.f32.mrf.mxu0
      %v3192 = vadd.f32 %v3079, %v3191
      %v3193 = vpop.f32.mrf.mxu0
      %v3194 = vadd.f32 %v3081, %v3193
      %3195 = vmatmul.bf16.gmra.mxu0 %v2267
      %v3196 = vpop.f32.mrf.mxu0
      %v3197 = vadd.f32 %v3084, %v3196
      %v3198 = vpop.f32.mrf.mxu0
      %v3199 = vadd.f32 %v3086, %v3198
      %3200 = vmatmul.bf16.gmra.mxu0 %v2268
      %v3201 = vpop.f32.mrf.mxu0
      %v3202 = vadd.f32 %v3089, %v3201
      %v3203 = vpop.f32.mrf.mxu0
      %v3204 = vadd.f32 %v3091, %v3203
      %3205 = vmatmul.bf16.gmra.mxu0 %v2269
      %v3206 = vpop.f32.mrf.mxu0
      %v3207 = vadd.f32 %v3094, %v3206
      %v3208 = vpop.f32.mrf.mxu0
      %v3209 = vadd.f32 %v3096, %v3208
      %3210 = vmatmul.bf16.gmra.mxu0 %v2270
      %v3211 = vpop.f32.mrf.mxu0
      %v3212 = vadd.f32 %v3099, %v3211
      %v3213 = vpop.f32.mrf.mxu0
      %v3214 = vadd.f32 %v3101, %v3213
      %3215 = vmatmul.bf16.gmra.mxu0 %v2271
      %v3216 = vpop.f32.mrf.mxu0
      %v3217 = vadd.f32 %v3104, %v3216
      %v3218 = vpop.f32.mrf.mxu0
      %v3219 = vadd.f32 %v3106, %v3218
      %3220 = vmatmul.bf16.gmra.mxu0 %v2272
      %v3221 = vpop.f32.mrf.mxu0
      %v3222 = vadd.f32 %v3109, %v3221
      %v3223 = vpop.f32.mrf.mxu0
      %v3224 = vadd.f32 %v3111, %v3223
      %3225 = vmatmul.bf16.gmra.mxu0 %v2273
      %v3226 = vpop.f32.mrf.mxu0
      %v3227 = vadd.f32 %v3114, %v3226
      %v3228 = vpop.f32.mrf.mxu0
      %v3229 = vadd.f32 %v3116, %v3228
      %3230 = vmatmul.bf16.gmra.mxu0 %v2274
      %v3231 = vpop.f32.mrf.mxu0
      %v3232 = vadd.f32 %v3119, %v3231
      %v3233 = vpop.f32.mrf.mxu0
      %v3234 = vadd.f32 %v3121, %v3233
      %3235 = vmatmul.bf16.gmra.mxu0 %v2275
      %v3236 = vpop.f32.mrf.mxu0
      %v3237 = vadd.f32 %v3124, %v3236
      %v3238 = vpop.f32.mrf.mxu0
      %v3239 = vadd.f32 %v3126, %v3238
      %3240 = vmatmul.bf16.gmra.mxu0 %v2276
      %v3241 = vpop.f32.mrf.mxu0
      %v3242 = vadd.f32 %v3129, %v3241
      %v3243 = vpop.f32.mrf.mxu0
      %v3244 = vadd.f32 %v3131, %v3243
      %3245 = vmatmul.bf16.gmra.mxu0 %v2277
      %v3246 = vpop.f32.mrf.mxu0
      %v3247 = vadd.f32 %v3134, %v3246
      %v3248 = vpop.f32.mrf.mxu0
      %v3249 = vadd.f32 %v3136, %v3248
      %3250 = vmatmul.bf16.gmra.mxu0 %v2278
      %v3251 = vpop.f32.mrf.mxu0
      %v3252 = vadd.f32 %v3139, %v3251
      %v3253 = vpop.f32.mrf.mxu0
      %v3254 = vadd.f32 %v3141, %v3253
      %3255 = vmatmul.bf16.gmra.mxu0 %v2279
      %v3256 = vpop.f32.mrf.mxu0
      %v3257 = vadd.f32 %v3144, %v3256
      %v3258 = vpop.f32.mrf.mxu0
      %v3259 = vadd.f32 %v3146, %v3258
      %3260 = vmatmul.bf16.gmra.mxu0 %v2280
      %v3261 = vpop.f32.mrf.mxu0
      %v3262 = vadd.f32 %v3149, %v3261
      %v3263 = vpop.f32.mrf.mxu0
      %v3264 = vadd.f32 %v3151, %v3263
      %3265 = vmatmul.bf16.gmra.mxu0 %v2281
      %v3266 = vpop.f32.mrf.mxu0
      %v3267 = vadd.f32 %v3154, %v3266
      %v3268 = vpop.f32.mrf.mxu0
      %3269 = vdwg.mxu0
      %v3270 = vadd.f32 %v2344, %v3167
      %v3271 = vadd.f32 %v2345, %v3169
      %v3272 = vadd.f32 %v2346, %v3172
      %v3273 = vadd.f32 %v2347, %v3174
      %v3274 = vadd.f32 %v2348, %v3177
      %v3275 = vadd.f32 %v2349, %v3179
      %v3276 = vadd.f32 %v2350, %v3182
      %v3277 = vadd.f32 %v2351, %v3184
      %v3278 = vadd.f32 %v2352, %v3187
      %v3279 = vadd.f32 %v2353, %v3189
      %v3280 = vadd.f32 %v2354, %v3192
      %v3281 = vadd.f32 %v2355, %v3194
      %v3282 = vadd.f32 %v2356, %v3197
      %v3283 = vadd.f32 %v2357, %v3199
      %v3284 = vadd.f32 %v2358, %v3202
      %v3285 = vadd.f32 %v2359, %v3204
      %v3286 = vadd.f32 %v2360, %v3207
      %v3287 = vadd.f32 %v2361, %v3209
      %v3288 = vadd.f32 %v2362, %v3212
      %v3289 = vadd.f32 %v2363, %v3214
      %v3290 = vadd.f32 %v2364, %v3217
      %v3291 = vadd.f32 %v2365, %v3219
      %v3292 = vadd.f32 %v2366, %v3222
      %v3293 = vadd.f32 %v2367, %v3224
      %v3294 = vadd.f32 %v2368, %v3227
      %v3295 = vadd.f32 %v2369, %v3229
      %v3296 = vadd.f32 %v2370, %v3232
      %v3297 = vadd.f32 %v2371, %v3234
      %v3298 = vadd.f32 %v2372, %v3237
      %v3299 = vadd.f32 %v2373, %v3239
      %v3300 = vadd.f32 %v2374, %v3242
      %v3301 = vadd.f32 %v2375, %v3244
      %v3302 = vadd.f32 %v2376, %v3247
      %v3303 = vadd.f32 %v2377, %v3249
      %v3304 = vadd.f32 %v2378, %v3252
      %v3305 = vadd.f32 %v2379, %v3254
      %v3306 = vadd.f32 %v2380, %v3257
      %v3307 = vadd.f32 %v2381, %v3259
      %v3308 = vadd.f32 %v2382, %v3262
      %v3309 = vadd.f32 %v2383, %v3264
      %v3310 = vadd.f32 %v2384, %v3267
      %3311 = vst [vmem:[%s432] sm:$0xff] %v3270
      %3312 = vst [vmem:[%s432 + $0x8] sm:$0xff] %v3271
      %3313 = vst [vmem:[%s432 + $0x10] sm:$0xff] %v3272
      %3314 = vst [vmem:[%s432 + $0x18] sm:$0xff] %v3273
      %3315 = vst [vmem:[%s432 + $0x20] sm:$0xff] %v3274
      %3316 = vst [vmem:[%s432 + $0x28] sm:$0xff] %v3275
      %3317 = vst [vmem:[%s432 + $0x30] sm:$0xff] %v3276
      %3318 = vst [vmem:[%s432 + $0x38] sm:$0xff] %v3277
      %3319 = vst [vmem:[%s432 + $0x40] sm:$0xff] %v3278
      %3320 = vst [vmem:[%s432 + $0x48] sm:$0xff] %v3279
      %3321 = vst [vmem:[%s432 + $0x50] sm:$0xff] %v3280
      %3322 = vst [vmem:[%s432 + $0x58] sm:$0xff] %v3281
      %3323 = vst [vmem:[%s432 + $0x60] sm:$0xff] %v3282
      %3324 = vst [vmem:[%s432 + $0x68] sm:$0xff] %v3283
      %3325 = vst [vmem:[%s432 + $0x70] sm:$0xff] %v3284
      %3326 = vst [vmem:[%s432 + $0x78] sm:$0xff] %v3285
      %3327 = vst [vmem:[%s432 + $0x80] sm:$0xff] %v3286
      %3328 = vst [vmem:[%s432 + $0x88] sm:$0xff] %v3287
      %3329 = vst [vmem:[%s432 + $0x90] sm:$0xff] %v3288
      %3330 = vst [vmem:[%s432 + $0x98] sm:$0xff] %v3289
      %3331 = vst [vmem:[%s432 + $0xa0] sm:$0xff] %v3290
      %3332 = vst [vmem:[%s432 + $0xa8] sm:$0xff] %v3291
      %3333 = vst [vmem:[%s432 + $0xb0] sm:$0xff] %v3292
      %3334 = vst [vmem:[%s432 + $0xb8] sm:$0xff] %v3293
      %3335 = vst [vmem:[%s432 + $0xc0] sm:$0xff] %v3294
      %3336 = vst [vmem:[%s432 + $0xc8] sm:$0xff] %v3295
      %3337 = vst [vmem:[%s432 + $0xd0] sm:$0xff] %v3296
      %3338 = vst [vmem:[%s432 + $0xd8] sm:$0xff] %v3297
      %3339 = vst [vmem:[%s432 + $0xe0] sm:$0xff] %v3298
      %3340 = vst [vmem:[%s432 + $0xe8] sm:$0xff] %v3299
      %3341 = vst [vmem:[%s432 + $0xf0] sm:$0xff] %v3300
      %3342 = vst [vmem:[%s432 + $0xf8] sm:$0xff] %v3301
      %3343 = vst [vmem:[%s432 + $0x100] sm:$0xff] %v3302
      %3344 = vst [vmem:[%s432 + $0x108] sm:$0xff] %v3303
      %3345 = vst [vmem:[%s432 + $0x110] sm:$0xff] %v3304
      %3346 = vst [vmem:[%s432 + $0x118] sm:$0xff] %v3305
      %3347 = vst [vmem:[%s432 + $0x120] sm:$0xff] %v3306
      %3348 = vst [vmem:[%s432 + $0x128] sm:$0xff] %v3307
      %3349 = vst [vmem:[%s432 + $0x130] sm:$0xff] %v3308
      %3350 = vst [vmem:[%s432 + $0x138] sm:$0xff] %v3309
      %3351 = vst [vmem:[%s432 + $0x140] sm:$0xff] %v3310
      %p3352 = scmp.lt.s32.totalorder %s20, 1
      %s3353 = scalar_select %p3352, %s20, 1
      %s3354 = smul.addr %s3353, 41
      %s3355 = smul.addr %s3354, 8
      %s3356 = scalar_lea.vmem %s9, %s3355
      // Predicated region
      $region57: #{dappm_forward.11} parent=55 // pred_check
        %p3357 = pneg %p257
      $region58: #{dappm_forward.11} parent=55 // pred_check_branch
        %3359 = sbr.rel (%p3357) target = $region60
      $region59: #{dappm_forward.11} parent=55 // pred_region
        _
      $region60: #{dappm_forward.11} parent=55 // pred_fallthru
        _
    $region56: #{dappm_forward.11} parent=5 // pred_fallthru
      _
    %p3360 = scmp.le.s32.totalorder 2, %s15
    // Predicated region
    $region61: #{dappm_forward.11} parent=5 // pred_check
      %p3361 = pneg %p3360
    $region62: #{dappm_forward.11} parent=5 // pred_check_branch
      %3363 = sbr.rel (%p3361) target = $region64
    $region63: #{dappm_forward.11} parent=5 // pred_region
      %s3364 = ssub.s32 %s15, 2
      // Predicated region
      $region65: #{dappm_forward.11} parent=63 // pred_check
        %p3365 = pneg %p263
      $region66: #{dappm_forward.11} parent=63 // pred_check_branch
        %3367 = sbr.rel (%p3365) target = $region68
      $region67: #{dappm_forward.11} parent=63 // pred_region
        %p3368 = scmp.lt.s32.totalorder %s21, 1
        %s3369 = scalar_select %p3368, %s21, 1
        %s3370 = smul.addr %s3369, 41
        %s3371 = smul.addr %s3370, 8
        %s3372 = scalar_lea.vmem %s9, %s3371
      $region68: #{dappm_forward.11} parent=63 // pred_fallthru
        _
    $region64: #{dappm_forward.11} parent=5 // pred_fallthru
      _
  $region6: #{dappm_forward.11} parent=0 // loop_footer
    %s19 = sadd.s32 1, %s15
  $region7: #{dappm_forward.11} parent=0 // loop_footer_branch
    %14 = sbr.rel target = $region3
  $region8: #{dappm_forward.11} parent=0 // loop_exit
    _

</llo_original>
